<compile_context>
chip_gen: v7x
topology: tpu7x:2x2x1
jax: 0.10.0
libtpu: 0.0.40
codegen_flags: <defaults>
</compile_context>

<pallas_src>
import jax
import jax.numpy as jnp
import numpy as np
from jax import lax
from jax.experimental import pallas as pl
from jax.experimental.pallas import tpu as pltpu


_SELU_ALPHA = 1.6732632423543772
_SELU_SCALE = 1.0507009873554805


def _sigmoid_fast(x):
    # sigmoid(x) == 0.5 * (tanh(x/2) + 1): one transcendental instead of exp + divide
    return 0.5 * (jnp.tanh(0.5 * x) + 1.0)


def _selu(x):
    neg = _SELU_ALPHA * (jnp.exp(jnp.minimum(x, 0.0)) - 1.0)
    return _SELU_SCALE * jnp.where(x > 0, x, neg)


def _make_kernel(BP, T, H, T3):
    """BP = padded batch (multiple of 8), T = max seq len, H = hidden, T3 = conv out len."""
    TB = T * BP
    H2 = 2 * H            # packed state width:  [fwd | bwd]
    G = 8 * H             # packed gate width: 4 gates x 2 dirs, gate-major interleaved
                          # column layout: [i_f, i_b, f_f, f_b, g_f, g_b, o_f, o_b]

    def kernel(ids_ref, len_ref, table_ref, wih_ref, whh_ref, b_ref,
               wc1_ref, bc1_ref, wc2_ref, bc2_ref, wc3_ref, bc3_ref,
               rnn_ref, hn_ref, cn_ref, conv_ref,
               ig_ref, cat_ref, h1_ref, h2_ref):
        vpad = table_ref.shape[0]

        # ---- embedding: exact 0/1 one-hot matmul; rows are time-major (row = t*BP+b) ----
        # TODO(synk): for real vocabularies (>128) replace with a scalar-prefetched row
        # gather / manual DMA gather instead of a (TB, V) one-hot + in-VMEM table.
        ids = ids_ref[...]                                            # (TB, 1) int32
        onehot = (ids == lax.broadcasted_iota(jnp.int32, (TB, vpad), 1)
                  ).astype(jnp.float32)
        emb = jnp.dot(onehot, table_ref[...],
                      preferred_element_type=jnp.float32)             # (TB, H)

        # ---- input projections for BOTH directions in one matmul -> VMEM scratch ----
        # TODO(synk): time-tile this precompute (grid / emit_pipeline) at production
        # T*B so the (TB, 8H) slab fits v7x's 64 MiB VMEM.
        ig_ref[...] = (jnp.dot(emb, wih_ref[...],
                               preferred_element_type=jnp.float32)
                       + b_ref[...])                                  # (TB, 8H)

        # loop-invariant masks / broadcasts (hoisted: JAX does not CSE broadcasts)
        lane_g = lax.broadcasted_iota(jnp.int32, (BP, G), 1)
        fwd_cols = (lane_g % H2) < H           # forward-direction gate columns
        lane_2h = lax.broadcasted_iota(jnp.int32, (BP, H2), 1)
        half_lane = lane_2h < H                # forward half of the packed state
        len_2h = jnp.broadcast_to(len_ref[...], (BP, H2))             # (BP, 2H) int32
        whh = whh_ref[...]                     # (2H, 8H) block-diagonal recurrent weight

        h = jnp.zeros((BP, H2), jnp.float32)   # [h_fwd | h_bwd]
        c = jnp.zeros((BP, H2), jnp.float32)   # [c_fwd | c_bwd]

        # ---- fused bidirectional recurrence: step t = fwd time t  +  bwd time T-1-t ----
        # one K=2H block-diagonal recurrent matmul per step feeds both directions.
        # TODO(synk): switch to lax.fori_loop(+pl.ds) for large T; static unroll at T=16.
        for t in range(T):
            tb = T - 1 - t
            rf, rb = t * BP, tb * BP
            rec = jnp.dot(h, whh, preferred_element_type=jnp.float32)    # (BP, 8H)
            # fwd gate pre-acts come from row block t, bwd from row block T-1-t
            ig_t = jnp.where(fwd_cols, ig_ref[rf:rf + BP, :], ig_ref[rb:rb + BP, :])
            gates = rec + ig_t
            i_all = _sigmoid_fast(gates[:, 0 * H2:1 * H2])
            f_all = _sigmoid_fast(gates[:, 1 * H2:2 * H2])
            g_all = jnp.tanh(gates[:, 2 * H2:3 * H2])
            o_all = _sigmoid_fast(gates[:, 3 * H2:4 * H2])
            c_new = f_all * c + i_all * g_all
            h_new = o_all * jnp.tanh(c_new)

            # packed-sequence activity mask: fwd lanes compare against t, bwd against T-1-t
            thr = jnp.where(half_lane, t, tb)                 # (BP, 2H) int32 constants
            act = len_2h > thr                                # (BP, 2H) bool
            y = jnp.where(act, h_new, 0.0)                    # padded steps emit 0

            if 2 * t < T - 1:        # first writer of both row blocks -> plain store
                rnn_ref[rf:rf + BP, :] = y[:, :H]
                rnn_ref[rb:rb + BP, :] = y[:, H:]
            elif 2 * t > T - 1:      # second writer -> accumulate the fwd+bwd sum
                rnn_ref[rf:rf + BP, :] = rnn_ref[rf:rf + BP, :] + y[:, :H]
                rnn_ref[rb:rb + BP, :] = rnn_ref[rb:rb + BP, :] + y[:, H:]
            else:                    # odd-T middle step: fwd stores first, bwd accumulates
                rnn_ref[rf:rf + BP, :] = y[:, :H]
                rnn_ref[rb:rb + BP, :] = rnn_ref[rb:rb + BP, :] + y[:, H:]

            h = jnp.where(act, h_new, h)
            c = jnp.where(act, c_new, c)

        hn_ref[...] = h[:, :H]       # forward-direction final states == state[0][::2]
        cn_ref[...] = c[:, :H]       #                                    state[1][::2]

        # ---- dilated conv stack: each layer = ONE matmul over lane-concatenated taps ----
        def dconv(x_ref, t_in, dil, wc_ref, bc_ref, out_ref):
            t_out = t_in - 2 * dil
            n = t_out * BP
            for k in range(3):                               # gather the 3 taps along lanes
                cat_ref[0:n, k * H:(k + 1) * H] = x_ref[k * dil * BP:k * dil * BP + n, :]
            y = jnp.dot(cat_ref[0:n, :], wc_ref[...],
                        preferred_element_type=jnp.float32) + bc_ref[...]
            out_ref[0:n, :] = _selu(y)
            return t_out

        t1 = dconv(rnn_ref, T, 1, wc1_ref, bc1_ref, h1_ref)
        t2 = dconv(h1_ref, t1, 2, wc2_ref, bc2_ref, h2_ref)
        dconv(h2_ref, t2, 3, wc3_ref, bc3_ref, conv_ref)

    return kernel


def _interleave_gates(wf, wb, H):
    """(R,4H),(R,4H) -> (R,8H), columns [i_f,i_b, f_f,f_b, g_f,g_b, o_f,o_b]."""
    R = wf.shape[0]
    return jnp.stack([wf.reshape(R, 4, H), wb.reshape(R, 4, H)], axis=2).reshape(R, 8 * H)


def _full_spec(shape):
    return pl.BlockSpec(shape, lambda: (0,) * len(shape))


def rnn_encoder_forward(ids, lengths, params):
    """ids: (B, T) int32 token ids; lengths: (B,) int32 (max(lengths) == T)."""
    B, T = ids.shape
    H = params["table"].shape[1]
    T3 = T - 2 * (1 + 2 + 3)
    assert T3 > 0, "sequence too short for the three dilated convs"
    BP = ((B + 7) // 8) * 8      # pad batch to 8 so every row block is sublane-aligned

    # time-major flattened token ids (row = t*BP + b); padded batch rows: id 0 / len 0
    ids_tm = (jnp.zeros((T, BP), jnp.int32).at[:, :B].set(ids.T)).reshape(T * BP, 1)
    len_col = (jnp.zeros((BP,), jnp.int32).at[:B].set(lengths)).reshape(BP, 1)

    # ---- host-side weight packing (pure layout, done once) ----
    wih_cat = _interleave_gates(params["wih_f"], params["wih_b"], H)        # (H, 8H)
    b_cat = _interleave_gates(params["b_f"], params["b_b"], H)              # (1, 8H)
    zero = jnp.zeros_like(params["whh_f"])
    whh_blk = jnp.concatenate([_interleave_gates(params["whh_f"], zero, H),
                               _interleave_gates(zero, params["whh_b"], H)],
                              axis=0)                                       # (2H, 8H) blkdiag
    wc1 = params["w1"].reshape(3 * H, H)     # (k, Cin, Cout) -> (3H, H), tap-major rows
    wc2 = params["w2"].reshape(3 * H, H)
    wc3 = params["w3"].reshape(3 * H, H)

    inputs = (ids_tm, len_col, params["table"], wih_cat, whh_blk, b_cat,
              wc1, params["b1"], wc2, params["b2"], wc3, params["b3"])

    out_shape = (
        jax.ShapeDtypeStruct((T * BP, H), jnp.float32),    # rnn   (time-major flat)
        jax.ShapeDtypeStruct((BP, H), jnp.float32),        # h_n   (forward direction)
        jax.ShapeDtypeStruct((BP, H), jnp.float32),        # c_n   (forward direction)
        jax.ShapeDtypeStruct((T3 * BP, H), jnp.float32),   # conv  (time-major flat)
    )

    rnn_tm, hn, cn, conv_tm = pl.pallas_call(
        _make_kernel(BP, T, H, T3),
        out_shape=out_shape,
        in_specs=[_full_spec(a.shape) for a in inputs],
        out_specs=tuple(_full_spec(s.shape) for s in out_shape),
        scratch_shapes=[
            pltpu.VMEM((T * BP, 8 * H), jnp.float32),        # fused input projections
            pltpu.VMEM(((T - 2) * BP, 3 * H), jnp.float32),  # conv tap lane-concat buffer
            pltpu.VMEM(((T - 2) * BP, H), jnp.float32),      # conv layer-1 output
            pltpu.VMEM(((T - 6) * BP, H), jnp.float32),      # conv layer-2 output
        ],
        compiler_params=pltpu.CompilerParams(vmem_limit_bytes=32 * 1024 * 1024),
    )(*inputs)

    # cheap XLA-side layout fixups (outside the kernel)
    rnn = rnn_tm.reshape(T, BP, H)[:, :B, :].transpose(1, 0, 2)      # (B, T, H)
    conv = conv_tm.reshape(T3, BP, H)[:, :B, :].transpose(1, 0, 2)   # (B, T-12, H)
    state = (hn[:B][None, :, :], cn[:B][None, :, :])                 # (1, B, H) each
    return rnn, state, conv


def reference_forward(ids, lengths, params):
    """Pure-JAX/XLA reference (full-f32 matmul precision) with identical math."""
    table = params["table"]
    B, T = ids.shape
    H = table.shape[1]
    emb = table[ids]                                        # (B, T, H)
    hp = jax.lax.Precision.HIGHEST

    def run_dir(wih, whh, b, reverse):
        ig = jnp.einsum("bth,hg->btg", emb, wih, precision=hp) + b   # (B, T, 4H)

        def step(carry, t):
            h, c = carry
            gates = ig[:, t, :] + jnp.dot(h, whh, precision=hp)
            i = 1.0 / (1.0 + jnp.exp(-gates[:, 0 * H:1 * H]))
            f = 1.0 / (1.0 + jnp.exp(-gates[:, 1 * H:2 * H]))
            g = jnp.tanh(gates[:, 2 * H:3 * H])
            o = 1.0 / (1.0 + jnp.exp(-gates[:, 3 * H:4 * H]))
            c_new = f * c + i * g
            h_new = o * jnp.tanh(c_new)
            active = (lengths > t)[:, None]
            y = jnp.where(active, h_new, 0.0)
            return (jnp.where(active, h_new, h), jnp.where(active, c_new, c)), y

        ts = jnp.arange(T - 1, -1, -1) if reverse else jnp.arange(T)
        init = (jnp.zeros((B, H), jnp.float32), jnp.zeros((B, H), jnp.float32))
        (h, c), ys = lax.scan(step, init, ts)
        if reverse:
            ys = jnp.flip(ys, axis=0)
        return jnp.transpose(ys, (1, 0, 2)), h, c          # (B, T, H)

    yf, hf, cf = run_dir(params["wih_f"], params["whh_f"], params["b_f"], False)
    yb, _, _ = run_dir(params["wih_b"], params["whh_b"], params["b_b"], True)
    rnn = yf + yb

    def dconv(x, dil, w, bias):
        t_out = x.shape[1] - 2 * dil
        acc = bias + sum(
            jnp.einsum("bth,hg->btg", x[:, k * dil:k * dil + t_out, :], w[k],
                       precision=hp) for k in range(3))
        return _selu(acc)

    conv = dconv(dconv(dconv(rnn, 1, params["w1"], params["b1"]),
                       2, params["w2"], params["b2"]),
                 3, params["w3"], params["b3"])
    return rnn, (hf[None], cf[None]), conv


if __name__ == "__main__":
    B, T, H = 2, 16, 128        # batch, max seq len, embedding_size (= LSTM hidden)
    VOCAB = 32                  # real vocab; table padded to 128 rows (full lane tile)
    VPAD = 128
    # TODO(synk): rnn_num_layers > 1 (stacked BiLSTM + inter-layer dropout) not
    # implemented; this covers the 1-layer eval-mode forward, where all
    # Dropout / AlphaDropout layers are identity.

    key = jax.random.PRNGKey(0)
    k_ids, k_tab, k_lf, k_lb, k_c1, k_c2, k_c3 = jax.random.split(key, 7)

    lengths = jnp.array([T, T - 3], dtype=jnp.int32)       # max length == T
    ids = jax.random.randint(k_ids, (B, T), 1, VOCAB, dtype=jnp.int32)
    ids = jnp.where(jnp.arange(T)[None, :] < lengths[:, None], ids, 0)  # pad idx 0

    table = 0.1 * jax.random.normal(k_tab, (VPAD, H), jnp.float32)
    table = table.at[0].set(0.0)                           # padding_idx = 0
    table = table.at[VOCAB:].set(0.0)                      # unused padded vocab rows

    def lstm_dir_params(k):
        k1, k2, k3, k4 = jax.random.split(k, 4)
        bound = 1.0 / float(np.sqrt(H))
        wih = jax.random.uniform(k1, (H, 4 * H), jnp.float32, -bound, bound)
        whh = jax.random.uniform(k2, (H, 4 * H), jnp.float32, -bound, bound)
        b_ih = jax.random.uniform(k3, (4 * H,), jnp.float32, -bound, bound)
        b_hh = jax.random.uniform(k4, (4 * H,), jnp.float32, -bound, bound)
        return wih, whh, (b_ih + b_hh).reshape(1, 4 * H)

    def conv_params(k):
        k1, k2 = jax.random.split(k)
        bound = 1.0 / float(np.sqrt(H * 3))
        w = jax.random.uniform(k1, (3, H, H), jnp.float32, -bound, bound)  # (k, Cin, Cout)
        b = jax.random.uniform(k2, (1, H), jnp.float32, -bound, bound)
        return w, b

    wih_f, whh_f, b_f = lstm_dir_params(k_lf)
    wih_b, whh_b, b_b = lstm_dir_params(k_lb)
    w1, b1 = conv_params(k_c1)
    w2, b2 = conv_params(k_c2)
    w3, b3 = conv_params(k_c3)

    params = dict(table=table,
                  wih_f=wih_f, whh_f=whh_f, b_f=b_f,
                  wih_b=wih_b, whh_b=whh_b, b_b=b_b,
                  w1=w1, b1=b1, w2=w2, b2=b2, w3=w3, b3=b3)

    rnn, state, conv = rnn_encoder_forward(ids, lengths, params)
    rnn, state, conv = jax.block_until_ready((rnn, state, conv))

    rnn_ref, state_ref, conv_ref = reference_forward(ids, lengths, params)
    np.testing.assert_allclose(np.asarray(rnn), np.asarray(rnn_ref), rtol=1e-4, atol=1e-4)
    np.testing.assert_allclose(np.asarray(state[0]), np.asarray(state_ref[0]), rtol=1e-4, atol=1e-4)
    np.testing.assert_allclose(np.asarray(state[1]), np.asarray(state_ref[1]), rtol=1e-4, atol=1e-4)
    np.testing.assert_allclose(np.asarray(conv), np.asarray(conv_ref), rtol=1e-4, atol=1e-4)

    print("KERNEL_OK")
</pallas_src>

<mosaic_0001>
module attributes {stable_mosaic.version = 11 : i64} {
  func.func @kernel(%arg0: memref<128x1xi32, #tpu.memory_space<vmem>>, %arg1: memref<8x1xi32, #tpu.memory_space<vmem>>, %arg2: memref<128x128xf32, #tpu.memory_space<vmem>>, %arg3: memref<128x1024xf32, #tpu.memory_space<vmem>>, %arg4: memref<256x1024xf32, #tpu.memory_space<vmem>>, %arg5: memref<1x1024xf32, #tpu.memory_space<vmem>>, %arg6: memref<384x128xf32, #tpu.memory_space<vmem>>, %arg7: memref<1x128xf32, #tpu.memory_space<vmem>>, %arg8: memref<384x128xf32, #tpu.memory_space<vmem>>, %arg9: memref<1x128xf32, #tpu.memory_space<vmem>>, %arg10: memref<384x128xf32, #tpu.memory_space<vmem>>, %arg11: memref<1x128xf32, #tpu.memory_space<vmem>>, %arg12: memref<128x128xf32, #tpu.memory_space<vmem>>, %arg13: memref<8x128xf32, #tpu.memory_space<vmem>>, %arg14: memref<8x128xf32, #tpu.memory_space<vmem>>, %arg15: memref<32x128xf32, #tpu.memory_space<vmem>>, %arg16: memref<128x1024xf32, #tpu.memory_space<vmem>>, %arg17: memref<112x384xf32, #tpu.memory_space<vmem>>, %arg18: memref<112x128xf32, #tpu.memory_space<vmem>>, %arg19: memref<80x128xf32, #tpu.memory_space<vmem>>) attributes {dimension_semantics = [], scalar_prefetch = 0 : i64, scratch_operands = 4 : i64, tpu.core_type = #tpu.core_type<tc>} {
    %c0 = arith.constant 0 : index
    %c0_0 = arith.constant 0 : index
    %0 = vector.load %arg0[%c0, %c0_0] : memref<128x1xi32, #tpu.memory_space<vmem>>, vector<128x1xi32>
    %1 = tpu.iota {dimensions = array<i32: 1>} : vector<128x128xi32>
    %2 = vector.broadcast %0 : vector<128x1xi32> to vector<128x128xi32>
    %3 = arith.cmpi eq, %2, %1 : vector<128x128xi32>
    %4 = arith.extui %3 : vector<128x128xi1> to vector<128x128xi32>
    %5 = arith.sitofp %4 : vector<128x128xi32> to vector<128x128xf32>
    %c0_1 = arith.constant 0 : index
    %c0_2 = arith.constant 0 : index
    %6 = vector.load %arg2[%c0_1, %c0_2] : memref<128x128xf32, #tpu.memory_space<vmem>>, vector<128x128xf32>
    %cst = arith.constant dense<0.000000e+00> : vector<128x128xf32>
    %7 = tpu.matmul %5, %6, %cst {dimension_numbers = #tpu.dot_dimension_numbers<[1], [0], [0], [1], [0, 0, 1, 1], [], []>} : vector<128x128xf32>, vector<128x128xf32>, vector<128x128xf32> -> vector<128x128xf32>
    %c0_3 = arith.constant 0 : index
    %c0_4 = arith.constant 0 : index
    %8 = vector.load %arg3[%c0_3, %c0_4] : memref<128x1024xf32, #tpu.memory_space<vmem>>, vector<128x1024xf32>
    %cst_5 = arith.constant dense<0.000000e+00> : vector<128x1024xf32>
    %9 = tpu.matmul %7, %8, %cst_5 {dimension_numbers = #tpu.dot_dimension_numbers<[1], [0], [0], [1], [0, 0, 1, 1], [], []>} : vector<128x128xf32>, vector<128x1024xf32>, vector<128x1024xf32> -> vector<128x1024xf32>
    %c0_6 = arith.constant 0 : index
    %c0_7 = arith.constant 0 : index
    %10 = vector.load %arg5[%c0_6, %c0_7] : memref<1x1024xf32, #tpu.memory_space<vmem>>, vector<1x1024xf32>
    %11 = vector.broadcast %10 : vector<1x1024xf32> to vector<128x1024xf32>
    %12 = arith.addf %9, %11 : vector<128x1024xf32>
    %c0_8 = arith.constant 0 : index
    %c0_9 = arith.constant 0 : index
    %13 = vector.load %arg16[%c0_8, %c0_9] : memref<128x1024xf32, #tpu.memory_space<vmem>>, vector<128x1024xf32>
    tpu.vector_store %arg16[%c0_8, %c0_9], %12 {strides = array<i32>} : memref<128x1024xf32, #tpu.memory_space<vmem>>, vector<128x1024xf32>,
    %14 = tpu.iota {dimensions = array<i32: 1>} : vector<8x1024xi32>
    %c256_i32 = arith.constant 256 : i32
    %c0_i32 = arith.constant 0 : i32
    %15 = arith.cmpi eq, %c256_i32, %c0_i32 : i32
    %c1_i32 = arith.constant 1 : i32
    %16 = arith.select %15, %c1_i32, %c256_i32 : i32
    %17 = vector.broadcast %16 : i32 to vector<8x1024xi32>
    %18 = arith.remsi %14, %17 : vector<8x1024xi32>
    %c0_i32_10 = arith.constant 0 : i32
    %19 = vector.broadcast %c0_i32_10 : i32 to vector<8x1024xi32>
    %20 = arith.cmpi ne, %18, %19 : vector<8x1024xi32>
    %c0_i32_11 = arith.constant 0 : i32
    %21 = vector.broadcast %c0_i32_11 : i32 to vector<8x1024xi32>
    %22 = arith.cmpi slt, %18, %21 : vector<8x1024xi32>
    %c0_i32_12 = arith.constant 0 : i32
    %23 = arith.cmpi slt, %16, %c0_i32_12 : i32
    %24 = vector.broadcast %23 : i1 to vector<8x1024xi1>
    %25 = vector.broadcast %24 : vector<8x1024xi1> to vector<8x1024xi1>
    %26 = arith.xori %22, %25 : vector<8x1024xi1>
    %27 = arith.andi %26, %20 : vector<8x1024xi1>
    %28 = vector.broadcast %16 : i32 to vector<8x1024xi32>
    %29 = arith.addi %18, %28 : vector<8x1024xi32>
    %30 = arith.select %27, %29, %18 : vector<8x1024xi1>, vector<8x1024xi32>
    %c128_i32 = arith.constant 128 : i32
    %31 = vector.broadcast %c128_i32 : i32 to vector<8x1024xi32>
    %32 = arith.cmpi slt, %30, %31 : vector<8x1024xi32>
    %33 = tpu.iota {dimensions = array<i32: 1>} : vector<8x256xi32>
    %c128_i32_13 = arith.constant 128 : i32
    %34 = vector.broadcast %c128_i32_13 : i32 to vector<8x256xi32>
    %35 = arith.cmpi slt, %33, %34 : vector<8x256xi32>
    %c0_14 = arith.constant 0 : index
    %c0_15 = arith.constant 0 : index
    %36 = vector.load %arg1[%c0_14, %c0_15] : memref<8x1xi32, #tpu.memory_space<vmem>>, vector<8x1xi32>
    %37 = vector.shape_cast %36 : vector<8x1xi32> to vector<8x1xi32>
    %38 = vector.broadcast %37 : vector<8x1xi32> to vector<8x256xi32>
    %c0_16 = arith.constant 0 : index
    %c0_17 = arith.constant 0 : index
    %39 = vector.load %arg4[%c0_16, %c0_17] : memref<256x1024xf32, #tpu.memory_space<vmem>>, vector<256x1024xf32>
    %cst_18 = arith.constant 0.000000e+00 : f32
    %40 = vector.broadcast %cst_18 : f32 to vector<8x256xf32>
    %cst_19 = arith.constant 0.000000e+00 : f32
    %41 = vector.broadcast %cst_19 : f32 to vector<8x256xf32>
    %cst_20 = arith.constant dense<0.000000e+00> : vector<8x1024xf32>
    %42 = tpu.matmul %40, %39, %cst_20 {dimension_numbers = #tpu.dot_dimension_numbers<[1], [0], [0], [1], [0, 0, 1, 1], [], []>} : vector<8x256xf32>, vector<256x1024xf32>, vector<8x1024xf32> -> vector<8x1024xf32>
    %c0_21 = arith.constant 0 : index
    %c0_22 = arith.constant 0 : index
    %43 = vector.load %arg16[%c0_21, %c0_22] : memref<128x1024xf32, #tpu.memory_space<vmem>>, vector<8x1024xf32>
    %c120 = arith.constant 120 : index
    %c0_23 = arith.constant 0 : index
    %44 = vector.load %arg16[%c120, %c0_23] : memref<128x1024xf32, #tpu.memory_space<vmem>>, vector<8x1024xf32>
    %45 = arith.select %32, %43, %44 : vector<8x1024xi1>, vector<8x1024xf32>
    %46 = arith.addf %42, %45 : vector<8x1024xf32>
    %47 = vector.extract_strided_slice %46 {offsets = [0, 0], sizes = [8, 256], strides = [1, 1]} : vector<8x1024xf32> to vector<8x256xf32>
    %cst_24 = arith.constant 5.000000e-01 : f32
    %48 = vector.broadcast %cst_24 : f32 to vector<8x256xf32>
    %49 = arith.mulf %48, %47 : vector<8x256xf32>
    %50 = math.tanh %49 : vector<8x256xf32>
    %cst_25 = arith.constant 1.000000e+00 : f32
    %51 = vector.broadcast %cst_25 : f32 to vector<8x256xf32>
    %52 = arith.addf %50, %51 : vector<8x256xf32>
    %cst_26 = arith.constant 5.000000e-01 : f32
    %53 = vector.broadcast %cst_26 : f32 to vector<8x256xf32>
    %54 = arith.mulf %53, %52 : vector<8x256xf32>
    %55 = vector.extract_strided_slice %46 {offsets = [0, 256], sizes = [8, 256], strides = [1, 1]} : vector<8x1024xf32> to vector<8x256xf32>
    %cst_27 = arith.constant 5.000000e-01 : f32
    %56 = vector.broadcast %cst_27 : f32 to vector<8x256xf32>
    %57 = arith.mulf %56, %55 : vector<8x256xf32>
    %58 = math.tanh %57 : vector<8x256xf32>
    %cst_28 = arith.constant 1.000000e+00 : f32
    %59 = vector.broadcast %cst_28 : f32 to vector<8x256xf32>
    %60 = arith.addf %58, %59 : vector<8x256xf32>
    %cst_29 = arith.constant 5.000000e-01 : f32
    %61 = vector.broadcast %cst_29 : f32 to vector<8x256xf32>
    %62 = arith.mulf %61, %60 : vector<8x256xf32>
    %63 = vector.extract_strided_slice %46 {offsets = [0, 512], sizes = [8, 256], strides = [1, 1]} : vector<8x1024xf32> to vector<8x256xf32>
    %64 = math.tanh %63 : vector<8x256xf32>
    %65 = vector.extract_strided_slice %46 {offsets = [0, 768], sizes = [8, 256], strides = [1, 1]} : vector<8x1024xf32> to vector<8x256xf32>
    %cst_30 = arith.constant 5.000000e-01 : f32
    %66 = vector.broadcast %cst_30 : f32 to vector<8x256xf32>
    %67 = arith.mulf %66, %65 : vector<8x256xf32>
    %68 = math.tanh %67 : vector<8x256xf32>
    %cst_31 = arith.constant 1.000000e+00 : f32
    %69 = vector.broadcast %cst_31 : f32 to vector<8x256xf32>
    %70 = arith.addf %68, %69 : vector<8x256xf32>
    %cst_32 = arith.constant 5.000000e-01 : f32
    %71 = vector.broadcast %cst_32 : f32 to vector<8x256xf32>
    %72 = arith.mulf %71, %70 : vector<8x256xf32>
    %73 = arith.mulf %62, %41 : vector<8x256xf32>
    %74 = arith.mulf %54, %64 : vector<8x256xf32>
    %75 = arith.addf %73, %74 : vector<8x256xf32>
    %76 = math.tanh %75 : vector<8x256xf32>
    %77 = arith.mulf %72, %76 : vector<8x256xf32>
    %c0_i32_33 = arith.constant 0 : i32
    %c15_i32 = arith.constant 15 : i32
    %78 = vector.broadcast %c0_i32_33 : i32 to vector<8x256xi32>
    %79 = vector.broadcast %c15_i32 : i32 to vector<8x256xi32>
    %80 = arith.select %35, %78, %79 : vector<8x256xi1>, vector<8x256xi32>
    %81 = arith.cmpi sgt, %38, %80 : vector<8x256xi32>
    %cst_34 = arith.constant 0.000000e+00 : f32
    %82 = vector.broadcast %cst_34 : f32 to vector<8x256xf32>
    %83 = arith.select %81, %77, %82 : vector<8x256xi1>, vector<8x256xf32>
    %84 = vector.extract_strided_slice %83 {offsets = [0, 0], sizes = [8, 128], strides = [1, 1]} : vector<8x256xf32> to vector<8x128xf32>
    %c0_35 = arith.constant 0 : index
    %c0_36 = arith.constant 0 : index
    %85 = vector.load %arg12[%c0_35, %c0_36] : memref<128x128xf32, #tpu.memory_space<vmem>>, vector<8x128xf32>
    tpu.vector_store %arg12[%c0_35, %c0_36], %84 {strides = array<i32>} : memref<128x128xf32, #tpu.memory_space<vmem>>, vector<8x128xf32>,
    %86 = vector.extract_strided_slice %83 {offsets = [0, 128], sizes = [8, 128], strides = [1, 1]} : vector<8x256xf32> to vector<8x128xf32>
    %c120_37 = arith.constant 120 : index
    %c0_38 = arith.constant 0 : index
    %87 = vector.load %arg12[%c120_37, %c0_38] : memref<128x128xf32, #tpu.memory_space<vmem>>, vector<8x128xf32>
    tpu.vector_store %arg12[%c120_37, %c0_38], %86 {strides = array<i32>} : memref<128x128xf32, #tpu.memory_space<vmem>>, vector<8x128xf32>,
    %88 = arith.select %81, %77, %40 : vector<8x256xi1>, vector<8x256xf32>
    %89 = arith.select %81, %75, %41 : vector<8x256xi1>, vector<8x256xf32>
    %cst_39 = arith.constant dense<0.000000e+00> : vector<8x1024xf32>
    %90 = tpu.matmul %88, %39, %cst_39 {dimension_numbers = #tpu.dot_dimension_numbers<[1], [0], [0], [1], [0, 0, 1, 1], [], []>} : vector<8x256xf32>, vector<256x1024xf32>, vector<8x1024xf32> -> vector<8x1024xf32>
    %c8 = arith.constant 8 : index
    %c0_40 = arith.constant 0 : index
    %91 = vector.load %arg16[%c8, %c0_40] : memref<128x1024xf32, #tpu.memory_space<vmem>>, vector<8x1024xf32>
    %c112 = arith.constant 112 : index
    %c0_41 = arith.constant 0 : index
    %92 = vector.load %arg16[%c112, %c0_41] : memref<128x1024xf32, #tpu.memory_space<vmem>>, vector<8x1024xf32>
    %93 = arith.select %32, %91, %92 : vector<8x1024xi1>, vector<8x1024xf32>
    %94 = arith.addf %90, %93 : vector<8x1024xf32>
    %95 = vector.extract_strided_slice %94 {offsets = [0, 0], sizes = [8, 256], strides = [1, 1]} : vector<8x1024xf32> to vector<8x256xf32>
    %cst_42 = arith.constant 5.000000e-01 : f32
    %96 = vector.broadcast %cst_42 : f32 to vector<8x256xf32>
    %97 = arith.mulf %96, %95 : vector<8x256xf32>
    %98 = math.tanh %97 : vector<8x256xf32>
    %cst_43 = arith.constant 1.000000e+00 : f32
    %99 = vector.broadcast %cst_43 : f32 to vector<8x256xf32>
    %100 = arith.addf %98, %99 : vector<8x256xf32>
    %cst_44 = arith.constant 5.000000e-01 : f32
    %101 = vector.broadcast %cst_44 : f32 to vector<8x256xf32>
    %102 = arith.mulf %101, %100 : vector<8x256xf32>
    %103 = vector.extract_strided_slice %94 {offsets = [0, 256], sizes = [8, 256], strides = [1, 1]} : vector<8x1024xf32> to vector<8x256xf32>
    %cst_45 = arith.constant 5.000000e-01 : f32
    %104 = vector.broadcast %cst_45 : f32 to vector<8x256xf32>
    %105 = arith.mulf %104, %103 : vector<8x256xf32>
    %106 = math.tanh %105 : vector<8x256xf32>
    %cst_46 = arith.constant 1.000000e+00 : f32
    %107 = vector.broadcast %cst_46 : f32 to vector<8x256xf32>
    %108 = arith.addf %106, %107 : vector<8x256xf32>
    %cst_47 = arith.constant 5.000000e-01 : f32
    %109 = vector.broadcast %cst_47 : f32 to vector<8x256xf32>
    %110 = arith.mulf %109, %108 : vector<8x256xf32>
    %111 = vector.extract_strided_slice %94 {offsets = [0, 512], sizes = [8, 256], strides = [1, 1]} : vector<8x1024xf32> to vector<8x256xf32>
    %112 = math.tanh %111 : vector<8x256xf32>
    %113 = vector.extract_strided_slice %94 {offsets = [0, 768], sizes = [8, 256], strides = [1, 1]} : vector<8x1024xf32> to vector<8x256xf32>
    %cst_48 = arith.constant 5.000000e-01 : f32
    %114 = vector.broadcast %cst_48 : f32 to vector<8x256xf32>
    %115 = arith.mulf %114, %113 : vector<8x256xf32>
    %116 = math.tanh %115 : vector<8x256xf32>
    %cst_49 = arith.constant 1.000000e+00 : f32
    %117 = vector.broadcast %cst_49 : f32 to vector<8x256xf32>
    %118 = arith.addf %116, %117 : vector<8x256xf32>
    %cst_50 = arith.constant 5.000000e-01 : f32
    %119 = vector.broadcast %cst_50 : f32 to vector<8x256xf32>
    %120 = arith.mulf %119, %118 : vector<8x256xf32>
    %121 = arith.mulf %110, %89 : vector<8x256xf32>
    %122 = arith.mulf %102, %112 : vector<8x256xf32>
    %123 = arith.addf %121, %122 : vector<8x256xf32>
    %124 = math.tanh %123 : vector<8x256xf32>
    %125 = arith.mulf %120, %124 : vector<8x256xf32>
    %c1_i32_51 = arith.constant 1 : i32
    %c14_i32 = arith.constant 14 : i32
    %126 = vector.broadcast %c1_i32_51 : i32 to vector<8x256xi32>
    %127 = vector.broadcast %c14_i32 : i32 to vector<8x256xi32>
    %128 = arith.select %35, %126, %127 : vector<8x256xi1>, vector<8x256xi32>
    %129 = arith.cmpi sgt, %38, %128 : vector<8x256xi32>
    %cst_52 = arith.constant 0.000000e+00 : f32
    %130 = vector.broadcast %cst_52 : f32 to vector<8x256xf32>
    %131 = arith.select %129, %125, %130 : vector<8x256xi1>, vector<8x256xf32>
    %132 = vector.extract_strided_slice %131 {offsets = [0, 0], sizes = [8, 128], strides = [1, 1]} : vector<8x256xf32> to vector<8x128xf32>
    %c8_53 = arith.constant 8 : index
    %c0_54 = arith.constant 0 : index
    %133 = vector.load %arg12[%c8_53, %c0_54] : memref<128x128xf32, #tpu.memory_space<vmem>>, vector<8x128xf32>
    tpu.vector_store %arg12[%c8_53, %c0_54], %132 {strides = array<i32>} : memref<128x128xf32, #tpu.memory_space<vmem>>, vector<8x128xf32>,
    %134 = vector.extract_strided_slice %131 {offsets = [0, 128], sizes = [8, 128], strides = [1, 1]} : vector<8x256xf32> to vector<8x128xf32>
    %c112_55 = arith.constant 112 : index
    %c0_56 = arith.constant 0 : index
    %135 = vector.load %arg12[%c112_55, %c0_56] : memref<128x128xf32, #tpu.memory_space<vmem>>, vector<8x128xf32>
    tpu.vector_store %arg12[%c112_55, %c0_56], %134 {strides = array<i32>} : memref<128x128xf32, #tpu.memory_space<vmem>>, vector<8x128xf32>,
    %136 = arith.select %129, %125, %88 : vector<8x256xi1>, vector<8x256xf32>
    %137 = arith.select %129, %123, %89 : vector<8x256xi1>, vector<8x256xf32>
    %cst_57 = arith.constant dense<0.000000e+00> : vector<8x1024xf32>
    %138 = tpu.matmul %136, %39, %cst_57 {dimension_numbers = #tpu.dot_dimension_numbers<[1], [0], [0], [1], [0, 0, 1, 1], [], []>} : vector<8x256xf32>, vector<256x1024xf32>, vector<8x1024xf32> -> vector<8x1024xf32>
    %c16 = arith.constant 16 : index
    %c0_58 = arith.constant 0 : index
    %139 = vector.load %arg16[%c16, %c0_58] : memref<128x1024xf32, #tpu.memory_space<vmem>>, vector<8x1024xf32>
    %c104 = arith.constant 104 : index
    %c0_59 = arith.constant 0 : index
    %140 = vector.load %arg16[%c104, %c0_59] : memref<128x1024xf32, #tpu.memory_space<vmem>>, vector<8x1024xf32>
    %141 = arith.select %32, %139, %140 : vector<8x1024xi1>, vector<8x1024xf32>
    %142 = arith.addf %138, %141 : vector<8x1024xf32>
    %143 = vector.extract_strided_slice %142 {offsets = [0, 0], sizes = [8, 256], strides = [1, 1]} : vector<8x1024xf32> to vector<8x256xf32>
    %cst_60 = arith.constant 5.000000e-01 : f32
    %144 = vector.broadcast %cst_60 : f32 to vector<8x256xf32>
    %145 = arith.mulf %144, %143 : vector<8x256xf32>
    %146 = math.tanh %145 : vector<8x256xf32>
    %cst_61 = arith.constant 1.000000e+00 : f32
    %147 = vector.broadcast %cst_61 : f32 to vector<8x256xf32>
    %148 = arith.addf %146, %147 : vector<8x256xf32>
    %cst_62 = arith.constant 5.000000e-01 : f32
    %149 = vector.broadcast %cst_62 : f32 to vector<8x256xf32>
    %150 = arith.mulf %149, %148 : vector<8x256xf32>
    %151 = vector.extract_strided_slice %142 {offsets = [0, 256], sizes = [8, 256], strides = [1, 1]} : vector<8x1024xf32> to vector<8x256xf32>
    %cst_63 = arith.constant 5.000000e-01 : f32
    %152 = vector.broadcast %cst_63 : f32 to vector<8x256xf32>
    %153 = arith.mulf %152, %151 : vector<8x256xf32>
    %154 = math.tanh %153 : vector<8x256xf32>
    %cst_64 = arith.constant 1.000000e+00 : f32
    %155 = vector.broadcast %cst_64 : f32 to vector<8x256xf32>
    %156 = arith.addf %154, %155 : vector<8x256xf32>
    %cst_65 = arith.constant 5.000000e-01 : f32
    %157 = vector.broadcast %cst_65 : f32 to vector<8x256xf32>
    %158 = arith.mulf %157, %156 : vector<8x256xf32>
    %159 = vector.extract_strided_slice %142 {offsets = [0, 512], sizes = [8, 256], strides = [1, 1]} : vector<8x1024xf32> to vector<8x256xf32>
    %160 = math.tanh %159 : vector<8x256xf32>
    %161 = vector.extract_strided_slice %142 {offsets = [0, 768], sizes = [8, 256], strides = [1, 1]} : vector<8x1024xf32> to vector<8x256xf32>
    %cst_66 = arith.constant 5.000000e-01 : f32
    %162 = vector.broadcast %cst_66 : f32 to vector<8x256xf32>
    %163 = arith.mulf %162, %161 : vector<8x256xf32>
    %164 = math.tanh %163 : vector<8x256xf32>
    %cst_67 = arith.constant 1.000000e+00 : f32
    %165 = vector.broadcast %cst_67 : f32 to vector<8x256xf32>
    %166 = arith.addf %164, %165 : vector<8x256xf32>
    %cst_68 = arith.constant 5.000000e-01 : f32
    %167 = vector.broadcast %cst_68 : f32 to vector<8x256xf32>
    %168 = arith.mulf %167, %166 : vector<8x256xf32>
    %169 = arith.mulf %158, %137 : vector<8x256xf32>
    %170 = arith.mulf %150, %160 : vector<8x256xf32>
    %171 = arith.addf %169, %170 : vector<8x256xf32>
    %172 = math.tanh %171 : vector<8x256xf32>
    %173 = arith.mulf %168, %172 : vector<8x256xf32>
    %c2_i32 = arith.constant 2 : i32
    %c13_i32 = arith.constant 13 : i32
    %174 = vector.broadcast %c2_i32 : i32 to vector<8x256xi32>
    %175 = vector.broadcast %c13_i32 : i32 to vector<8x256xi32>
    %176 = arith.select %35, %174, %175 : vector<8x256xi1>, vector<8x256xi32>
    %177 = arith.cmpi sgt, %38, %176 : vector<8x256xi32>
    %cst_69 = arith.constant 0.000000e+00 : f32
    %178 = vector.broadcast %cst_69 : f32 to vector<8x256xf32>
    %179 = arith.select %177, %173, %178 : vector<8x256xi1>, vector<8x256xf32>
    %180 = vector.extract_strided_slice %179 {offsets = [0, 0], sizes = [8, 128], strides = [1, 1]} : vector<8x256xf32> to vector<8x128xf32>
    %c16_70 = arith.constant 16 : index
    %c0_71 = arith.constant 0 : index
    %181 = vector.load %arg12[%c16_70, %c0_71] : memref<128x128xf32, #tpu.memory_space<vmem>>, vector<8x128xf32>
    tpu.vector_store %arg12[%c16_70, %c0_71], %180 {strides = array<i32>} : memref<128x128xf32, #tpu.memory_space<vmem>>, vector<8x128xf32>,
    %182 = vector.extract_strided_slice %179 {offsets = [0, 128], sizes = [8, 128], strides = [1, 1]} : vector<8x256xf32> to vector<8x128xf32>
    %c104_72 = arith.constant 104 : index
    %c0_73 = arith.constant 0 : index
    %183 = vector.load %arg12[%c104_72, %c0_73] : memref<128x128xf32, #tpu.memory_space<vmem>>, vector<8x128xf32>
    tpu.vector_store %arg12[%c104_72, %c0_73], %182 {strides = array<i32>} : memref<128x128xf32, #tpu.memory_space<vmem>>, vector<8x128xf32>,
    %184 = arith.select %177, %173, %136 : vector<8x256xi1>, vector<8x256xf32>
    %185 = arith.select %177, %171, %137 : vector<8x256xi1>, vector<8x256xf32>
    %cst_74 = arith.constant dense<0.000000e+00> : vector<8x1024xf32>
    %186 = tpu.matmul %184, %39, %cst_74 {dimension_numbers = #tpu.dot_dimension_numbers<[1], [0], [0], [1], [0, 0, 1, 1], [], []>} : vector<8x256xf32>, vector<256x1024xf32>, vector<8x1024xf32> -> vector<8x1024xf32>
    %c24 = arith.constant 24 : index
    %c0_75 = arith.constant 0 : index
    %187 = vector.load %arg16[%c24, %c0_75] : memref<128x1024xf32, #tpu.memory_space<vmem>>, vector<8x1024xf32>
    %c96 = arith.constant 96 : index
    %c0_76 = arith.constant 0 : index
    %188 = vector.load %arg16[%c96, %c0_76] : memref<128x1024xf32, #tpu.memory_space<vmem>>, vector<8x1024xf32>
    %189 = arith.select %32, %187, %188 : vector<8x1024xi1>, vector<8x1024xf32>
    %190 = arith.addf %186, %189 : vector<8x1024xf32>
    %191 = vector.extract_strided_slice %190 {offsets = [0, 0], sizes = [8, 256], strides = [1, 1]} : vector<8x1024xf32> to vector<8x256xf32>
    %cst_77 = arith.constant 5.000000e-01 : f32
    %192 = vector.broadcast %cst_77 : f32 to vector<8x256xf32>
    %193 = arith.mulf %192, %191 : vector<8x256xf32>
    %194 = math.tanh %193 : vector<8x256xf32>
    %cst_78 = arith.constant 1.000000e+00 : f32
    %195 = vector.broadcast %cst_78 : f32 to vector<8x256xf32>
    %196 = arith.addf %194, %195 : vector<8x256xf32>
    %cst_79 = arith.constant 5.000000e-01 : f32
    %197 = vector.broadcast %cst_79 : f32 to vector<8x256xf32>
    %198 = arith.mulf %197, %196 : vector<8x256xf32>
    %199 = vector.extract_strided_slice %190 {offsets = [0, 256], sizes = [8, 256], strides = [1, 1]} : vector<8x1024xf32> to vector<8x256xf32>
    %cst_80 = arith.constant 5.000000e-01 : f32
    %200 = vector.broadcast %cst_80 : f32 to vector<8x256xf32>
    %201 = arith.mulf %200, %199 : vector<8x256xf32>
    %202 = math.tanh %201 : vector<8x256xf32>
    %cst_81 = arith.constant 1.000000e+00 : f32
    %203 = vector.broadcast %cst_81 : f32 to vector<8x256xf32>
    %204 = arith.addf %202, %203 : vector<8x256xf32>
    %cst_82 = arith.constant 5.000000e-01 : f32
    %205 = vector.broadcast %cst_82 : f32 to vector<8x256xf32>
    %206 = arith.mulf %205, %204 : vector<8x256xf32>
    %207 = vector.extract_strided_slice %190 {offsets = [0, 512], sizes = [8, 256], strides = [1, 1]} : vector<8x1024xf32> to vector<8x256xf32>
    %208 = math.tanh %207 : vector<8x256xf32>
    %209 = vector.extract_strided_slice %190 {offsets = [0, 768], sizes = [8, 256], strides = [1, 1]} : vector<8x1024xf32> to vector<8x256xf32>
    %cst_83 = arith.constant 5.000000e-01 : f32
    %210 = vector.broadcast %cst_83 : f32 to vector<8x256xf32>
    %211 = arith.mulf %210, %209 : vector<8x256xf32>
    %212 = math.tanh %211 : vector<8x256xf32>
    %cst_84 = arith.constant 1.000000e+00 : f32
    %213 = vector.broadcast %cst_84 : f32 to vector<8x256xf32>
    %214 = arith.addf %212, %213 : vector<8x256xf32>
    %cst_85 = arith.constant 5.000000e-01 : f32
    %215 = vector.broadcast %cst_85 : f32 to vector<8x256xf32>
    %216 = arith.mulf %215, %214 : vector<8x256xf32>
    %217 = arith.mulf %206, %185 : vector<8x256xf32>
    %218 = arith.mulf %198, %208 : vector<8x256xf32>
    %219 = arith.addf %217, %218 : vector<8x256xf32>
    %220 = math.tanh %219 : vector<8x256xf32>
    %221 = arith.mulf %216, %220 : vector<8x256xf32>
    %c3_i32 = arith.constant 3 : i32
    %c12_i32 = arith.constant 12 : i32
    %222 = vector.broadcast %c3_i32 : i32 to vector<8x256xi32>
    %223 = vector.broadcast %c12_i32 : i32 to vector<8x256xi32>
    %224 = arith.select %35, %222, %223 : vector<8x256xi1>, vector<8x256xi32>
    %225 = arith.cmpi sgt, %38, %224 : vector<8x256xi32>
    %cst_86 = arith.constant 0.000000e+00 : f32
    %226 = vector.broadcast %cst_86 : f32 to vector<8x256xf32>
    %227 = arith.select %225, %221, %226 : vector<8x256xi1>, vector<8x256xf32>
    %228 = vector.extract_strided_slice %227 {offsets = [0, 0], sizes = [8, 128], strides = [1, 1]} : vector<8x256xf32> to vector<8x128xf32>
    %c24_87 = arith.constant 24 : index
    %c0_88 = arith.constant 0 : index
    %229 = vector.load %arg12[%c24_87, %c0_88] : memref<128x128xf32, #tpu.memory_space<vmem>>, vector<8x128xf32>
    tpu.vector_store %arg12[%c24_87, %c0_88], %228 {strides = array<i32>} : memref<128x128xf32, #tpu.memory_space<vmem>>, vector<8x128xf32>,
    %230 = vector.extract_strided_slice %227 {offsets = [0, 128], sizes = [8, 128], strides = [1, 1]} : vector<8x256xf32> to vector<8x128xf32>
    %c96_89 = arith.constant 96 : index
    %c0_90 = arith.constant 0 : index
    %231 = vector.load %arg12[%c96_89, %c0_90] : memref<128x128xf32, #tpu.memory_space<vmem>>, vector<8x128xf32>
    tpu.vector_store %arg12[%c96_89, %c0_90], %230 {strides = array<i32>} : memref<128x128xf32, #tpu.memory_space<vmem>>, vector<8x128xf32>,
    %232 = arith.select %225, %221, %184 : vector<8x256xi1>, vector<8x256xf32>
    %233 = arith.select %225, %219, %185 : vector<8x256xi1>, vector<8x256xf32>
    %cst_91 = arith.constant dense<0.000000e+00> : vector<8x1024xf32>
    %234 = tpu.matmul %232, %39, %cst_91 {dimension_numbers = #tpu.dot_dimension_numbers<[1], [0], [0], [1], [0, 0, 1, 1], [], []>} : vector<8x256xf32>, vector<256x1024xf32>, vector<8x1024xf32> -> vector<8x1024xf32>
    %c32 = arith.constant 32 : index
    %c0_92 = arith.constant 0 : index
    %235 = vector.load %arg16[%c32, %c0_92] : memref<128x1024xf32, #tpu.memory_space<vmem>>, vector<8x1024xf32>
    %c88 = arith.constant 88 : index
    %c0_93 = arith.constant 0 : index
    %236 = vector.load %arg16[%c88, %c0_93] : memref<128x1024xf32, #tpu.memory_space<vmem>>, vector<8x1024xf32>
    %237 = arith.select %32, %235, %236 : vector<8x1024xi1>, vector<8x1024xf32>
    %238 = arith.addf %234, %237 : vector<8x1024xf32>
    %239 = vector.extract_strided_slice %238 {offsets = [0, 0], sizes = [8, 256], strides = [1, 1]} : vector<8x1024xf32> to vector<8x256xf32>
    %cst_94 = arith.constant 5.000000e-01 : f32
    %240 = vector.broadcast %cst_94 : f32 to vector<8x256xf32>
    %241 = arith.mulf %240, %239 : vector<8x256xf32>
    %242 = math.tanh %241 : vector<8x256xf32>
    %cst_95 = arith.constant 1.000000e+00 : f32
    %243 = vector.broadcast %cst_95 : f32 to vector<8x256xf32>
    %244 = arith.addf %242, %243 : vector<8x256xf32>
    %cst_96 = arith.constant 5.000000e-01 : f32
    %245 = vector.broadcast %cst_96 : f32 to vector<8x256xf32>
    %246 = arith.mulf %245, %244 : vector<8x256xf32>
    %247 = vector.extract_strided_slice %238 {offsets = [0, 256], sizes = [8, 256], strides = [1, 1]} : vector<8x1024xf32> to vector<8x256xf32>
    %cst_97 = arith.constant 5.000000e-01 : f32
    %248 = vector.broadcast %cst_97 : f32 to vector<8x256xf32>
    %249 = arith.mulf %248, %247 : vector<8x256xf32>
    %250 = math.tanh %249 : vector<8x256xf32>
    %cst_98 = arith.constant 1.000000e+00 : f32
    %251 = vector.broadcast %cst_98 : f32 to vector<8x256xf32>
    %252 = arith.addf %250, %251 : vector<8x256xf32>
    %cst_99 = arith.constant 5.000000e-01 : f32
    %253 = vector.broadcast %cst_99 : f32 to vector<8x256xf32>
    %254 = arith.mulf %253, %252 : vector<8x256xf32>
    %255 = vector.extract_strided_slice %238 {offsets = [0, 512], sizes = [8, 256], strides = [1, 1]} : vector<8x1024xf32> to vector<8x256xf32>
    %256 = math.tanh %255 : vector<8x256xf32>
    %257 = vector.extract_strided_slice %238 {offsets = [0, 768], sizes = [8, 256], strides = [1, 1]} : vector<8x1024xf32> to vector<8x256xf32>
    %cst_100 = arith.constant 5.000000e-01 : f32
    %258 = vector.broadcast %cst_100 : f32 to vector<8x256xf32>
    %259 = arith.mulf %258, %257 : vector<8x256xf32>
    %260 = math.tanh %259 : vector<8x256xf32>
    %cst_101 = arith.constant 1.000000e+00 : f32
    %261 = vector.broadcast %cst_101 : f32 to vector<8x256xf32>
    %262 = arith.addf %260, %261 : vector<8x256xf32>
    %cst_102 = arith.constant 5.000000e-01 : f32
    %263 = vector.broadcast %cst_102 : f32 to vector<8x256xf32>
    %264 = arith.mulf %263, %262 : vector<8x256xf32>
    %265 = arith.mulf %254, %233 : vector<8x256xf32>
    %266 = arith.mulf %246, %256 : vector<8x256xf32>
    %267 = arith.addf %265, %266 : vector<8x256xf32>
    %268 = math.tanh %267 : vector<8x256xf32>
    %269 = arith.mulf %264, %268 : vector<8x256xf32>
    %c4_i32 = arith.constant 4 : i32
    %c11_i32 = arith.constant 11 : i32
    %270 = vector.broadcast %c4_i32 : i32 to vector<8x256xi32>
    %271 = vector.broadcast %c11_i32 : i32 to vector<8x256xi32>
    %272 = arith.select %35, %270, %271 : vector<8x256xi1>, vector<8x256xi32>
    %273 = arith.cmpi sgt, %38, %272 : vector<8x256xi32>
    %cst_103 = arith.constant 0.000000e+00 : f32
    %274 = vector.broadcast %cst_103 : f32 to vector<8x256xf32>
    %275 = arith.select %273, %269, %274 : vector<8x256xi1>, vector<8x256xf32>
    %276 = vector.extract_strided_slice %275 {offsets = [0, 0], sizes = [8, 128], strides = [1, 1]} : vector<8x256xf32> to vector<8x128xf32>
    %c32_104 = arith.constant 32 : index
    %c0_105 = arith.constant 0 : index
    %277 = vector.load %arg12[%c32_104, %c0_105] : memref<128x128xf32, #tpu.memory_space<vmem>>, vector<8x128xf32>
    tpu.vector_store %arg12[%c32_104, %c0_105], %276 {strides = array<i32>} : memref<128x128xf32, #tpu.memory_space<vmem>>, vector<8x128xf32>,
    %278 = vector.extract_strided_slice %275 {offsets = [0, 128], sizes = [8, 128], strides = [1, 1]} : vector<8x256xf32> to vector<8x128xf32>
    %c88_106 = arith.constant 88 : index
    %c0_107 = arith.constant 0 : index
    %279 = vector.load %arg12[%c88_106, %c0_107] : memref<128x128xf32, #tpu.memory_space<vmem>>, vector<8x128xf32>
    tpu.vector_store %arg12[%c88_106, %c0_107], %278 {strides = array<i32>} : memref<128x128xf32, #tpu.memory_space<vmem>>, vector<8x128xf32>,
    %280 = arith.select %273, %269, %232 : vector<8x256xi1>, vector<8x256xf32>
    %281 = arith.select %273, %267, %233 : vector<8x256xi1>, vector<8x256xf32>
    %cst_108 = arith.constant dense<0.000000e+00> : vector<8x1024xf32>
    %282 = tpu.matmul %280, %39, %cst_108 {dimension_numbers = #tpu.dot_dimension_numbers<[1], [0], [0], [1], [0, 0, 1, 1], [], []>} : vector<8x256xf32>, vector<256x1024xf32>, vector<8x1024xf32> -> vector<8x1024xf32>
    %c40 = arith.constant 40 : index
    %c0_109 = arith.constant 0 : index
    %283 = vector.load %arg16[%c40, %c0_109] : memref<128x1024xf32, #tpu.memory_space<vmem>>, vector<8x1024xf32>
    %c80 = arith.constant 80 : index
    %c0_110 = arith.constant 0 : index
    %284 = vector.load %arg16[%c80, %c0_110] : memref<128x1024xf32, #tpu.memory_space<vmem>>, vector<8x1024xf32>
    %285 = arith.select %32, %283, %284 : vector<8x1024xi1>, vector<8x1024xf32>
    %286 = arith.addf %282, %285 : vector<8x1024xf32>
    %287 = vector.extract_strided_slice %286 {offsets = [0, 0], sizes = [8, 256], strides = [1, 1]} : vector<8x1024xf32> to vector<8x256xf32>
    %cst_111 = arith.constant 5.000000e-01 : f32
    %288 = vector.broadcast %cst_111 : f32 to vector<8x256xf32>
    %289 = arith.mulf %288, %287 : vector<8x256xf32>
    %290 = math.tanh %289 : vector<8x256xf32>
    %cst_112 = arith.constant 1.000000e+00 : f32
    %291 = vector.broadcast %cst_112 : f32 to vector<8x256xf32>
    %292 = arith.addf %290, %291 : vector<8x256xf32>
    %cst_113 = arith.constant 5.000000e-01 : f32
    %293 = vector.broadcast %cst_113 : f32 to vector<8x256xf32>
    %294 = arith.mulf %293, %292 : vector<8x256xf32>
    %295 = vector.extract_strided_slice %286 {offsets = [0, 256], sizes = [8, 256], strides = [1, 1]} : vector<8x1024xf32> to vector<8x256xf32>
    %cst_114 = arith.constant 5.000000e-01 : f32
    %296 = vector.broadcast %cst_114 : f32 to vector<8x256xf32>
    %297 = arith.mulf %296, %295 : vector<8x256xf32>
    %298 = math.tanh %297 : vector<8x256xf32>
    %cst_115 = arith.constant 1.000000e+00 : f32
    %299 = vector.broadcast %cst_115 : f32 to vector<8x256xf32>
    %300 = arith.addf %298, %299 : vector<8x256xf32>
    %cst_116 = arith.constant 5.000000e-01 : f32
    %301 = vector.broadcast %cst_116 : f32 to vector<8x256xf32>
    %302 = arith.mulf %301, %300 : vector<8x256xf32>
    %303 = vector.extract_strided_slice %286 {offsets = [0, 512], sizes = [8, 256], strides = [1, 1]} : vector<8x1024xf32> to vector<8x256xf32>
    %304 = math.tanh %303 : vector<8x256xf32>
    %305 = vector.extract_strided_slice %286 {offsets = [0, 768], sizes = [8, 256], strides = [1, 1]} : vector<8x1024xf32> to vector<8x256xf32>
    %cst_117 = arith.constant 5.000000e-01 : f32
    %306 = vector.broadcast %cst_117 : f32 to vector<8x256xf32>
    %307 = arith.mulf %306, %305 : vector<8x256xf32>
    %308 = math.tanh %307 : vector<8x256xf32>
    %cst_118 = arith.constant 1.000000e+00 : f32
    %309 = vector.broadcast %cst_118 : f32 to vector<8x256xf32>
    %310 = arith.addf %308, %309 : vector<8x256xf32>
    %cst_119 = arith.constant 5.000000e-01 : f32
    %311 = vector.broadcast %cst_119 : f32 to vector<8x256xf32>
    %312 = arith.mulf %311, %310 : vector<8x256xf32>
    %313 = arith.mulf %302, %281 : vector<8x256xf32>
    %314 = arith.mulf %294, %304 : vector<8x256xf32>
    %315 = arith.addf %313, %314 : vector<8x256xf32>
    %316 = math.tanh %315 : vector<8x256xf32>
    %317 = arith.mulf %312, %316 : vector<8x256xf32>
    %c5_i32 = arith.constant 5 : i32
    %c10_i32 = arith.constant 10 : i32
    %318 = vector.broadcast %c5_i32 : i32 to vector<8x256xi32>
    %319 = vector.broadcast %c10_i32 : i32 to vector<8x256xi32>
    %320 = arith.select %35, %318, %319 : vector<8x256xi1>, vector<8x256xi32>
    %321 = arith.cmpi sgt, %38, %320 : vector<8x256xi32>
    %cst_120 = arith.constant 0.000000e+00 : f32
    %322 = vector.broadcast %cst_120 : f32 to vector<8x256xf32>
    %323 = arith.select %321, %317, %322 : vector<8x256xi1>, vector<8x256xf32>
    %324 = vector.extract_strided_slice %323 {offsets = [0, 0], sizes = [8, 128], strides = [1, 1]} : vector<8x256xf32> to vector<8x128xf32>
    %c40_121 = arith.constant 40 : index
    %c0_122 = arith.constant 0 : index
    %325 = vector.load %arg12[%c40_121, %c0_122] : memref<128x128xf32, #tpu.memory_space<vmem>>, vector<8x128xf32>
    tpu.vector_store %arg12[%c40_121, %c0_122], %324 {strides = array<i32>} : memref<128x128xf32, #tpu.memory_space<vmem>>, vector<8x128xf32>,
    %326 = vector.extract_strided_slice %323 {offsets = [0, 128], sizes = [8, 128], strides = [1, 1]} : vector<8x256xf32> to vector<8x128xf32>
    %c80_123 = arith.constant 80 : index
    %c0_124 = arith.constant 0 : index
    %327 = vector.load %arg12[%c80_123, %c0_124] : memref<128x128xf32, #tpu.memory_space<vmem>>, vector<8x128xf32>
    tpu.vector_store %arg12[%c80_123, %c0_124], %326 {strides = array<i32>} : memref<128x128xf32, #tpu.memory_space<vmem>>, vector<8x128xf32>,
    %328 = arith.select %321, %317, %280 : vector<8x256xi1>, vector<8x256xf32>
    %329 = arith.select %321, %315, %281 : vector<8x256xi1>, vector<8x256xf32>
    %cst_125 = arith.constant dense<0.000000e+00> : vector<8x1024xf32>
    %330 = tpu.matmul %328, %39, %cst_125 {dimension_numbers = #tpu.dot_dimension_numbers<[1], [0], [0], [1], [0, 0, 1, 1], [], []>} : vector<8x256xf32>, vector<256x1024xf32>, vector<8x1024xf32> -> vector<8x1024xf32>
    %c48 = arith.constant 48 : index
    %c0_126 = arith.constant 0 : index
    %331 = vector.load %arg16[%c48, %c0_126] : memref<128x1024xf32, #tpu.memory_space<vmem>>, vector<8x1024xf32>
    %c72 = arith.constant 72 : index
    %c0_127 = arith.constant 0 : index
    %332 = vector.load %arg16[%c72, %c0_127] : memref<128x1024xf32, #tpu.memory_space<vmem>>, vector<8x1024xf32>
    %333 = arith.select %32, %331, %332 : vector<8x1024xi1>, vector<8x1024xf32>
    %334 = arith.addf %330, %333 : vector<8x1024xf32>
    %335 = vector.extract_strided_slice %334 {offsets = [0, 0], sizes = [8, 256], strides = [1, 1]} : vector<8x1024xf32> to vector<8x256xf32>
    %cst_128 = arith.constant 5.000000e-01 : f32
    %336 = vector.broadcast %cst_128 : f32 to vector<8x256xf32>
    %337 = arith.mulf %336, %335 : vector<8x256xf32>
    %338 = math.tanh %337 : vector<8x256xf32>
    %cst_129 = arith.constant 1.000000e+00 : f32
    %339 = vector.broadcast %cst_129 : f32 to vector<8x256xf32>
    %340 = arith.addf %338, %339 : vector<8x256xf32>
    %cst_130 = arith.constant 5.000000e-01 : f32
    %341 = vector.broadcast %cst_130 : f32 to vector<8x256xf32>
    %342 = arith.mulf %341, %340 : vector<8x256xf32>
    %343 = vector.extract_strided_slice %334 {offsets = [0, 256], sizes = [8, 256], strides = [1, 1]} : vector<8x1024xf32> to vector<8x256xf32>
    %cst_131 = arith.constant 5.000000e-01 : f32
    %344 = vector.broadcast %cst_131 : f32 to vector<8x256xf32>
    %345 = arith.mulf %344, %343 : vector<8x256xf32>
    %346 = math.tanh %345 : vector<8x256xf32>
    %cst_132 = arith.constant 1.000000e+00 : f32
    %347 = vector.broadcast %cst_132 : f32 to vector<8x256xf32>
    %348 = arith.addf %346, %347 : vector<8x256xf32>
    %cst_133 = arith.constant 5.000000e-01 : f32
    %349 = vector.broadcast %cst_133 : f32 to vector<8x256xf32>
    %350 = arith.mulf %349, %348 : vector<8x256xf32>
    %351 = vector.extract_strided_slice %334 {offsets = [0, 512], sizes = [8, 256], strides = [1, 1]} : vector<8x1024xf32> to vector<8x256xf32>
    %352 = math.tanh %351 : vector<8x256xf32>
    %353 = vector.extract_strided_slice %334 {offsets = [0, 768], sizes = [8, 256], strides = [1, 1]} : vector<8x1024xf32> to vector<8x256xf32>
    %cst_134 = arith.constant 5.000000e-01 : f32
    %354 = vector.broadcast %cst_134 : f32 to vector<8x256xf32>
    %355 = arith.mulf %354, %353 : vector<8x256xf32>
    %356 = math.tanh %355 : vector<8x256xf32>
    %cst_135 = arith.constant 1.000000e+00 : f32
    %357 = vector.broadcast %cst_135 : f32 to vector<8x256xf32>
    %358 = arith.addf %356, %357 : vector<8x256xf32>
    %cst_136 = arith.constant 5.000000e-01 : f32
    %359 = vector.broadcast %cst_136 : f32 to vector<8x256xf32>
    %360 = arith.mulf %359, %358 : vector<8x256xf32>
    %361 = arith.mulf %350, %329 : vector<8x256xf32>
    %362 = arith.mulf %342, %352 : vector<8x256xf32>
    %363 = arith.addf %361, %362 : vector<8x256xf32>
    %364 = math.tanh %363 : vector<8x256xf32>
    %365 = arith.mulf %360, %364 : vector<8x256xf32>
    %c6_i32 = arith.constant 6 : i32
    %c9_i32 = arith.constant 9 : i32
    %366 = vector.broadcast %c6_i32 : i32 to vector<8x256xi32>
    %367 = vector.broadcast %c9_i32 : i32 to vector<8x256xi32>
    %368 = arith.select %35, %366, %367 : vector<8x256xi1>, vector<8x256xi32>
    %369 = arith.cmpi sgt, %38, %368 : vector<8x256xi32>
    %cst_137 = arith.constant 0.000000e+00 : f32
    %370 = vector.broadcast %cst_137 : f32 to vector<8x256xf32>
    %371 = arith.select %369, %365, %370 : vector<8x256xi1>, vector<8x256xf32>
    %372 = vector.extract_strided_slice %371 {offsets = [0, 0], sizes = [8, 128], strides = [1, 1]} : vector<8x256xf32> to vector<8x128xf32>
    %c48_138 = arith.constant 48 : index
    %c0_139 = arith.constant 0 : index
    %373 = vector.load %arg12[%c48_138, %c0_139] : memref<128x128xf32, #tpu.memory_space<vmem>>, vector<8x128xf32>
    tpu.vector_store %arg12[%c48_138, %c0_139], %372 {strides = array<i32>} : memref<128x128xf32, #tpu.memory_space<vmem>>, vector<8x128xf32>,
    %374 = vector.extract_strided_slice %371 {offsets = [0, 128], sizes = [8, 128], strides = [1, 1]} : vector<8x256xf32> to vector<8x128xf32>
    %c72_140 = arith.constant 72 : index
    %c0_141 = arith.constant 0 : index
    %375 = vector.load %arg12[%c72_140, %c0_141] : memref<128x128xf32, #tpu.memory_space<vmem>>, vector<8x128xf32>
    tpu.vector_store %arg12[%c72_140, %c0_141], %374 {strides = array<i32>} : memref<128x128xf32, #tpu.memory_space<vmem>>, vector<8x128xf32>,
    %376 = arith.select %369, %365, %328 : vector<8x256xi1>, vector<8x256xf32>
    %377 = arith.select %369, %363, %329 : vector<8x256xi1>, vector<8x256xf32>
    %cst_142 = arith.constant dense<0.000000e+00> : vector<8x1024xf32>
    %378 = tpu.matmul %376, %39, %cst_142 {dimension_numbers = #tpu.dot_dimension_numbers<[1], [0], [0], [1], [0, 0, 1, 1], [], []>} : vector<8x256xf32>, vector<256x1024xf32>, vector<8x1024xf32> -> vector<8x1024xf32>
    %c56 = arith.constant 56 : index
    %c0_143 = arith.constant 0 : index
    %379 = vector.load %arg16[%c56, %c0_143] : memref<128x1024xf32, #tpu.memory_space<vmem>>, vector<8x1024xf32>
    %c64 = arith.constant 64 : index
    %c0_144 = arith.constant 0 : index
    %380 = vector.load %arg16[%c64, %c0_144] : memref<128x1024xf32, #tpu.memory_space<vmem>>, vector<8x1024xf32>
    %381 = arith.select %32, %379, %380 : vector<8x1024xi1>, vector<8x1024xf32>
    %382 = arith.addf %378, %381 : vector<8x1024xf32>
    %383 = vector.extract_strided_slice %382 {offsets = [0, 0], sizes = [8, 256], strides = [1, 1]} : vector<8x1024xf32> to vector<8x256xf32>
    %cst_145 = arith.constant 5.000000e-01 : f32
    %384 = vector.broadcast %cst_145 : f32 to vector<8x256xf32>
    %385 = arith.mulf %384, %383 : vector<8x256xf32>
    %386 = math.tanh %385 : vector<8x256xf32>
    %cst_146 = arith.constant 1.000000e+00 : f32
    %387 = vector.broadcast %cst_146 : f32 to vector<8x256xf32>
    %388 = arith.addf %386, %387 : vector<8x256xf32>
    %cst_147 = arith.constant 5.000000e-01 : f32
    %389 = vector.broadcast %cst_147 : f32 to vector<8x256xf32>
    %390 = arith.mulf %389, %388 : vector<8x256xf32>
    %391 = vector.extract_strided_slice %382 {offsets = [0, 256], sizes = [8, 256], strides = [1, 1]} : vector<8x1024xf32> to vector<8x256xf32>
    %cst_148 = arith.constant 5.000000e-01 : f32
    %392 = vector.broadcast %cst_148 : f32 to vector<8x256xf32>
    %393 = arith.mulf %392, %391 : vector<8x256xf32>
    %394 = math.tanh %393 : vector<8x256xf32>
    %cst_149 = arith.constant 1.000000e+00 : f32
    %395 = vector.broadcast %cst_149 : f32 to vector<8x256xf32>
    %396 = arith.addf %394, %395 : vector<8x256xf32>
    %cst_150 = arith.constant 5.000000e-01 : f32
    %397 = vector.broadcast %cst_150 : f32 to vector<8x256xf32>
    %398 = arith.mulf %397, %396 : vector<8x256xf32>
    %399 = vector.extract_strided_slice %382 {offsets = [0, 512], sizes = [8, 256], strides = [1, 1]} : vector<8x1024xf32> to vector<8x256xf32>
    %400 = math.tanh %399 : vector<8x256xf32>
    %401 = vector.extract_strided_slice %382 {offsets = [0, 768], sizes = [8, 256], strides = [1, 1]} : vector<8x1024xf32> to vector<8x256xf32>
    %cst_151 = arith.constant 5.000000e-01 : f32
    %402 = vector.broadcast %cst_151 : f32 to vector<8x256xf32>
    %403 = arith.mulf %402, %401 : vector<8x256xf32>
    %404 = math.tanh %403 : vector<8x256xf32>
    %cst_152 = arith.constant 1.000000e+00 : f32
    %405 = vector.broadcast %cst_152 : f32 to vector<8x256xf32>
    %406 = arith.addf %404, %405 : vector<8x256xf32>
    %cst_153 = arith.constant 5.000000e-01 : f32
    %407 = vector.broadcast %cst_153 : f32 to vector<8x256xf32>
    %408 = arith.mulf %407, %406 : vector<8x256xf32>
    %409 = arith.mulf %398, %377 : vector<8x256xf32>
    %410 = arith.mulf %390, %400 : vector<8x256xf32>
    %411 = arith.addf %409, %410 : vector<8x256xf32>
    %412 = math.tanh %411 : vector<8x256xf32>
    %413 = arith.mulf %408, %412 : vector<8x256xf32>
    %c7_i32 = arith.constant 7 : i32
    %c8_i32 = arith.constant 8 : i32
    %414 = vector.broadcast %c7_i32 : i32 to vector<8x256xi32>
    %415 = vector.broadcast %c8_i32 : i32 to vector<8x256xi32>
    %416 = arith.select %35, %414, %415 : vector<8x256xi1>, vector<8x256xi32>
    %417 = arith.cmpi sgt, %38, %416 : vector<8x256xi32>
    %cst_154 = arith.constant 0.000000e+00 : f32
    %418 = vector.broadcast %cst_154 : f32 to vector<8x256xf32>
    %419 = arith.select %417, %413, %418 : vector<8x256xi1>, vector<8x256xf32>
    %420 = vector.extract_strided_slice %419 {offsets = [0, 0], sizes = [8, 128], strides = [1, 1]} : vector<8x256xf32> to vector<8x128xf32>
    %c56_155 = arith.constant 56 : index
    %c0_156 = arith.constant 0 : index
    %421 = vector.load %arg12[%c56_155, %c0_156] : memref<128x128xf32, #tpu.memory_space<vmem>>, vector<8x128xf32>
    tpu.vector_store %arg12[%c56_155, %c0_156], %420 {strides = array<i32>} : memref<128x128xf32, #tpu.memory_space<vmem>>, vector<8x128xf32>,
    %422 = vector.extract_strided_slice %419 {offsets = [0, 128], sizes = [8, 128], strides = [1, 1]} : vector<8x256xf32> to vector<8x128xf32>
    %c64_157 = arith.constant 64 : index
    %c0_158 = arith.constant 0 : index
    %423 = vector.load %arg12[%c64_157, %c0_158] : memref<128x128xf32, #tpu.memory_space<vmem>>, vector<8x128xf32>
    tpu.vector_store %arg12[%c64_157, %c0_158], %422 {strides = array<i32>} : memref<128x128xf32, #tpu.memory_space<vmem>>, vector<8x128xf32>,
    %424 = arith.select %417, %413, %376 : vector<8x256xi1>, vector<8x256xf32>
    %425 = arith.select %417, %411, %377 : vector<8x256xi1>, vector<8x256xf32>
    %cst_159 = arith.constant dense<0.000000e+00> : vector<8x1024xf32>
    %426 = tpu.matmul %424, %39, %cst_159 {dimension_numbers = #tpu.dot_dimension_numbers<[1], [0], [0], [1], [0, 0, 1, 1], [], []>} : vector<8x256xf32>, vector<256x1024xf32>, vector<8x1024xf32> -> vector<8x1024xf32>
    %c64_160 = arith.constant 64 : index
    %c0_161 = arith.constant 0 : index
    %427 = vector.load %arg16[%c64_160, %c0_161] : memref<128x1024xf32, #tpu.memory_space<vmem>>, vector<8x1024xf32>
    %c56_162 = arith.constant 56 : index
    %c0_163 = arith.constant 0 : index
    %428 = vector.load %arg16[%c56_162, %c0_163] : memref<128x1024xf32, #tpu.memory_space<vmem>>, vector<8x1024xf32>
    %429 = arith.select %32, %427, %428 : vector<8x1024xi1>, vector<8x1024xf32>
    %430 = arith.addf %426, %429 : vector<8x1024xf32>
    %431 = vector.extract_strided_slice %430 {offsets = [0, 0], sizes = [8, 256], strides = [1, 1]} : vector<8x1024xf32> to vector<8x256xf32>
    %cst_164 = arith.constant 5.000000e-01 : f32
    %432 = vector.broadcast %cst_164 : f32 to vector<8x256xf32>
    %433 = arith.mulf %432, %431 : vector<8x256xf32>
    %434 = math.tanh %433 : vector<8x256xf32>
    %cst_165 = arith.constant 1.000000e+00 : f32
    %435 = vector.broadcast %cst_165 : f32 to vector<8x256xf32>
    %436 = arith.addf %434, %435 : vector<8x256xf32>
    %cst_166 = arith.constant 5.000000e-01 : f32
    %437 = vector.broadcast %cst_166 : f32 to vector<8x256xf32>
    %438 = arith.mulf %437, %436 : vector<8x256xf32>
    %439 = vector.extract_strided_slice %430 {offsets = [0, 256], sizes = [8, 256], strides = [1, 1]} : vector<8x1024xf32> to vector<8x256xf32>
    %cst_167 = arith.constant 5.000000e-01 : f32
    %440 = vector.broadcast %cst_167 : f32 to vector<8x256xf32>
    %441 = arith.mulf %440, %439 : vector<8x256xf32>
    %442 = math.tanh %441 : vector<8x256xf32>
    %cst_168 = arith.constant 1.000000e+00 : f32
    %443 = vector.broadcast %cst_168 : f32 to vector<8x256xf32>
    %444 = arith.addf %442, %443 : vector<8x256xf32>
    %cst_169 = arith.constant 5.000000e-01 : f32
    %445 = vector.broadcast %cst_169 : f32 to vector<8x256xf32>
    %446 = arith.mulf %445, %444 : vector<8x256xf32>
    %447 = vector.extract_strided_slice %430 {offsets = [0, 512], sizes = [8, 256], strides = [1, 1]} : vector<8x1024xf32> to vector<8x256xf32>
    %448 = math.tanh %447 : vector<8x256xf32>
    %449 = vector.extract_strided_slice %430 {offsets = [0, 768], sizes = [8, 256], strides = [1, 1]} : vector<8x1024xf32> to vector<8x256xf32>
    %cst_170 = arith.constant 5.000000e-01 : f32
    %450 = vector.broadcast %cst_170 : f32 to vector<8x256xf32>
    %451 = arith.mulf %450, %449 : vector<8x256xf32>
    %452 = math.tanh %451 : vector<8x256xf32>
    %cst_171 = arith.constant 1.000000e+00 : f32
    %453 = vector.broadcast %cst_171 : f32 to vector<8x256xf32>
    %454 = arith.addf %452, %453 : vector<8x256xf32>
    %cst_172 = arith.constant 5.000000e-01 : f32
    %455 = vector.broadcast %cst_172 : f32 to vector<8x256xf32>
    %456 = arith.mulf %455, %454 : vector<8x256xf32>
    %457 = arith.mulf %446, %425 : vector<8x256xf32>
    %458 = arith.mulf %438, %448 : vector<8x256xf32>
    %459 = arith.addf %457, %458 : vector<8x256xf32>
    %460 = math.tanh %459 : vector<8x256xf32>
    %461 = arith.mulf %456, %460 : vector<8x256xf32>
    %c8_i32_173 = arith.constant 8 : i32
    %c7_i32_174 = arith.constant 7 : i32
    %462 = vector.broadcast %c8_i32_173 : i32 to vector<8x256xi32>
    %463 = vector.broadcast %c7_i32_174 : i32 to vector<8x256xi32>
    %464 = arith.select %35, %462, %463 : vector<8x256xi1>, vector<8x256xi32>
    %465 = arith.cmpi sgt, %38, %464 : vector<8x256xi32>
    %cst_175 = arith.constant 0.000000e+00 : f32
    %466 = vector.broadcast %cst_175 : f32 to vector<8x256xf32>
    %467 = arith.select %465, %461, %466 : vector<8x256xi1>, vector<8x256xf32>
    %c64_176 = arith.constant 64 : index
    %c0_177 = arith.constant 0 : index
    %468 = vector.load %arg12[%c64_176, %c0_177] : memref<128x128xf32, #tpu.memory_space<vmem>>, vector<8x128xf32>
    %469 = vector.extract_strided_slice %467 {offsets = [0, 0], sizes = [8, 128], strides = [1, 1]} : vector<8x256xf32> to vector<8x128xf32>
    %470 = arith.addf %468, %469 : vector<8x128xf32>
    %c64_178 = arith.constant 64 : index
    %c0_179 = arith.constant 0 : index
    %471 = vector.load %arg12[%c64_178, %c0_179] : memref<128x128xf32, #tpu.memory_space<vmem>>, vector<8x128xf32>
    tpu.vector_store %arg12[%c64_178, %c0_179], %470 {strides = array<i32>} : memref<128x128xf32, #tpu.memory_space<vmem>>, vector<8x128xf32>,
    %c56_180 = arith.constant 56 : index
    %c0_181 = arith.constant 0 : index
    %472 = vector.load %arg12[%c56_180, %c0_181] : memref<128x128xf32, #tpu.memory_space<vmem>>, vector<8x128xf32>
    %473 = vector.extract_strided_slice %467 {offsets = [0, 128], sizes = [8, 128], strides = [1, 1]} : vector<8x256xf32> to vector<8x128xf32>
    %474 = arith.addf %472, %473 : vector<8x128xf32>
    %c56_182 = arith.constant 56 : index
    %c0_183 = arith.constant 0 : index
    %475 = vector.load %arg12[%c56_182, %c0_183] : memref<128x128xf32, #tpu.memory_space<vmem>>, vector<8x128xf32>
    tpu.vector_store %arg12[%c56_182, %c0_183], %474 {strides = array<i32>} : memref<128x128xf32, #tpu.memory_space<vmem>>, vector<8x128xf32>,
    %476 = arith.select %465, %461, %424 : vector<8x256xi1>, vector<8x256xf32>
    %477 = arith.select %465, %459, %425 : vector<8x256xi1>, vector<8x256xf32>
    %cst_184 = arith.constant dense<0.000000e+00> : vector<8x1024xf32>
    %478 = tpu.matmul %476, %39, %cst_184 {dimension_numbers = #tpu.dot_dimension_numbers<[1], [0], [0], [1], [0, 0, 1, 1], [], []>} : vector<8x256xf32>, vector<256x1024xf32>, vector<8x1024xf32> -> vector<8x1024xf32>
    %c72_185 = arith.constant 72 : index
    %c0_186 = arith.constant 0 : index
    %479 = vector.load %arg16[%c72_185, %c0_186] : memref<128x1024xf32, #tpu.memory_space<vmem>>, vector<8x1024xf32>
    %c48_187 = arith.constant 48 : index
    %c0_188 = arith.constant 0 : index
    %480 = vector.load %arg16[%c48_187, %c0_188] : memref<128x1024xf32, #tpu.memory_space<vmem>>, vector<8x1024xf32>
    %481 = arith.select %32, %479, %480 : vector<8x1024xi1>, vector<8x1024xf32>
    %482 = arith.addf %478, %481 : vector<8x1024xf32>
    %483 = vector.extract_strided_slice %482 {offsets = [0, 0], sizes = [8, 256], strides = [1, 1]} : vector<8x1024xf32> to vector<8x256xf32>
    %cst_189 = arith.constant 5.000000e-01 : f32
    %484 = vector.broadcast %cst_189 : f32 to vector<8x256xf32>
    %485 = arith.mulf %484, %483 : vector<8x256xf32>
    %486 = math.tanh %485 : vector<8x256xf32>
    %cst_190 = arith.constant 1.000000e+00 : f32
    %487 = vector.broadcast %cst_190 : f32 to vector<8x256xf32>
    %488 = arith.addf %486, %487 : vector<8x256xf32>
    %cst_191 = arith.constant 5.000000e-01 : f32
    %489 = vector.broadcast %cst_191 : f32 to vector<8x256xf32>
    %490 = arith.mulf %489, %488 : vector<8x256xf32>
    %491 = vector.extract_strided_slice %482 {offsets = [0, 256], sizes = [8, 256], strides = [1, 1]} : vector<8x1024xf32> to vector<8x256xf32>
    %cst_192 = arith.constant 5.000000e-01 : f32
    %492 = vector.broadcast %cst_192 : f32 to vector<8x256xf32>
    %493 = arith.mulf %492, %491 : vector<8x256xf32>
    %494 = math.tanh %493 : vector<8x256xf32>
    %cst_193 = arith.constant 1.000000e+00 : f32
    %495 = vector.broadcast %cst_193 : f32 to vector<8x256xf32>
    %496 = arith.addf %494, %495 : vector<8x256xf32>
    %cst_194 = arith.constant 5.000000e-01 : f32
    %497 = vector.broadcast %cst_194 : f32 to vector<8x256xf32>
    %498 = arith.mulf %497, %496 : vector<8x256xf32>
    %499 = vector.extract_strided_slice %482 {offsets = [0, 512], sizes = [8, 256], strides = [1, 1]} : vector<8x1024xf32> to vector<8x256xf32>
    %500 = math.tanh %499 : vector<8x256xf32>
    %501 = vector.extract_strided_slice %482 {offsets = [0, 768], sizes = [8, 256], strides = [1, 1]} : vector<8x1024xf32> to vector<8x256xf32>
    %cst_195 = arith.constant 5.000000e-01 : f32
    %502 = vector.broadcast %cst_195 : f32 to vector<8x256xf32>
    %503 = arith.mulf %502, %501 : vector<8x256xf32>
    %504 = math.tanh %503 : vector<8x256xf32>
    %cst_196 = arith.constant 1.000000e+00 : f32
    %505 = vector.broadcast %cst_196 : f32 to vector<8x256xf32>
    %506 = arith.addf %504, %505 : vector<8x256xf32>
    %cst_197 = arith.constant 5.000000e-01 : f32
    %507 = vector.broadcast %cst_197 : f32 to vector<8x256xf32>
    %508 = arith.mulf %507, %506 : vector<8x256xf32>
    %509 = arith.mulf %498, %477 : vector<8x256xf32>
    %510 = arith.mulf %490, %500 : vector<8x256xf32>
    %511 = arith.addf %509, %510 : vector<8x256xf32>
    %512 = math.tanh %511 : vector<8x256xf32>
    %513 = arith.mulf %508, %512 : vector<8x256xf32>
    %c9_i32_198 = arith.constant 9 : i32
    %c6_i32_199 = arith.constant 6 : i32
    %514 = vector.broadcast %c9_i32_198 : i32 to vector<8x256xi32>
    %515 = vector.broadcast %c6_i32_199 : i32 to vector<8x256xi32>
    %516 = arith.select %35, %514, %515 : vector<8x256xi1>, vector<8x256xi32>
    %517 = arith.cmpi sgt, %38, %516 : vector<8x256xi32>
    %cst_200 = arith.constant 0.000000e+00 : f32
    %518 = vector.broadcast %cst_200 : f32 to vector<8x256xf32>
    %519 = arith.select %517, %513, %518 : vector<8x256xi1>, vector<8x256xf32>
    %c72_201 = arith.constant 72 : index
    %c0_202 = arith.constant 0 : index
    %520 = vector.load %arg12[%c72_201, %c0_202] : memref<128x128xf32, #tpu.memory_space<vmem>>, vector<8x128xf32>
    %521 = vector.extract_strided_slice %519 {offsets = [0, 0], sizes = [8, 128], strides = [1, 1]} : vector<8x256xf32> to vector<8x128xf32>
    %522 = arith.addf %520, %521 : vector<8x128xf32>
    %c72_203 = arith.constant 72 : index
    %c0_204 = arith.constant 0 : index
    %523 = vector.load %arg12[%c72_203, %c0_204] : memref<128x128xf32, #tpu.memory_space<vmem>>, vector<8x128xf32>
    tpu.vector_store %arg12[%c72_203, %c0_204], %522 {strides = array<i32>} : memref<128x128xf32, #tpu.memory_space<vmem>>, vector<8x128xf32>,
    %c48_205 = arith.constant 48 : index
    %c0_206 = arith.constant 0 : index
    %524 = vector.load %arg12[%c48_205, %c0_206] : memref<128x128xf32, #tpu.memory_space<vmem>>, vector<8x128xf32>
    %525 = vector.extract_strided_slice %519 {offsets = [0, 128], sizes = [8, 128], strides = [1, 1]} : vector<8x256xf32> to vector<8x128xf32>
    %526 = arith.addf %524, %525 : vector<8x128xf32>
    %c48_207 = arith.constant 48 : index
    %c0_208 = arith.constant 0 : index
    %527 = vector.load %arg12[%c48_207, %c0_208] : memref<128x128xf32, #tpu.memory_space<vmem>>, vector<8x128xf32>
    tpu.vector_store %arg12[%c48_207, %c0_208], %526 {strides = array<i32>} : memref<128x128xf32, #tpu.memory_space<vmem>>, vector<8x128xf32>,
    %528 = arith.select %517, %513, %476 : vector<8x256xi1>, vector<8x256xf32>
    %529 = arith.select %517, %511, %477 : vector<8x256xi1>, vector<8x256xf32>
    %cst_209 = arith.constant dense<0.000000e+00> : vector<8x1024xf32>
    %530 = tpu.matmul %528, %39, %cst_209 {dimension_numbers = #tpu.dot_dimension_numbers<[1], [0], [0], [1], [0, 0, 1, 1], [], []>} : vector<8x256xf32>, vector<256x1024xf32>, vector<8x1024xf32> -> vector<8x1024xf32>
    %c80_210 = arith.constant 80 : index
    %c0_211 = arith.constant 0 : index
    %531 = vector.load %arg16[%c80_210, %c0_211] : memref<128x1024xf32, #tpu.memory_space<vmem>>, vector<8x1024xf32>
    %c40_212 = arith.constant 40 : index
    %c0_213 = arith.constant 0 : index
    %532 = vector.load %arg16[%c40_212, %c0_213] : memref<128x1024xf32, #tpu.memory_space<vmem>>, vector<8x1024xf32>
    %533 = arith.select %32, %531, %532 : vector<8x1024xi1>, vector<8x1024xf32>
    %534 = arith.addf %530, %533 : vector<8x1024xf32>
    %535 = vector.extract_strided_slice %534 {offsets = [0, 0], sizes = [8, 256], strides = [1, 1]} : vector<8x1024xf32> to vector<8x256xf32>
    %cst_214 = arith.constant 5.000000e-01 : f32
    %536 = vector.broadcast %cst_214 : f32 to vector<8x256xf32>
    %537 = arith.mulf %536, %535 : vector<8x256xf32>
    %538 = math.tanh %537 : vector<8x256xf32>
    %cst_215 = arith.constant 1.000000e+00 : f32
    %539 = vector.broadcast %cst_215 : f32 to vector<8x256xf32>
    %540 = arith.addf %538, %539 : vector<8x256xf32>
    %cst_216 = arith.constant 5.000000e-01 : f32
    %541 = vector.broadcast %cst_216 : f32 to vector<8x256xf32>
    %542 = arith.mulf %541, %540 : vector<8x256xf32>
    %543 = vector.extract_strided_slice %534 {offsets = [0, 256], sizes = [8, 256], strides = [1, 1]} : vector<8x1024xf32> to vector<8x256xf32>
    %cst_217 = arith.constant 5.000000e-01 : f32
    %544 = vector.broadcast %cst_217 : f32 to vector<8x256xf32>
    %545 = arith.mulf %544, %543 : vector<8x256xf32>
    %546 = math.tanh %545 : vector<8x256xf32>
    %cst_218 = arith.constant 1.000000e+00 : f32
    %547 = vector.broadcast %cst_218 : f32 to vector<8x256xf32>
    %548 = arith.addf %546, %547 : vector<8x256xf32>
    %cst_219 = arith.constant 5.000000e-01 : f32
    %549 = vector.broadcast %cst_219 : f32 to vector<8x256xf32>
    %550 = arith.mulf %549, %548 : vector<8x256xf32>
    %551 = vector.extract_strided_slice %534 {offsets = [0, 512], sizes = [8, 256], strides = [1, 1]} : vector<8x1024xf32> to vector<8x256xf32>
    %552 = math.tanh %551 : vector<8x256xf32>
    %553 = vector.extract_strided_slice %534 {offsets = [0, 768], sizes = [8, 256], strides = [1, 1]} : vector<8x1024xf32> to vector<8x256xf32>
    %cst_220 = arith.constant 5.000000e-01 : f32
    %554 = vector.broadcast %cst_220 : f32 to vector<8x256xf32>
    %555 = arith.mulf %554, %553 : vector<8x256xf32>
    %556 = math.tanh %555 : vector<8x256xf32>
    %cst_221 = arith.constant 1.000000e+00 : f32
    %557 = vector.broadcast %cst_221 : f32 to vector<8x256xf32>
    %558 = arith.addf %556, %557 : vector<8x256xf32>
    %cst_222 = arith.constant 5.000000e-01 : f32
    %559 = vector.broadcast %cst_222 : f32 to vector<8x256xf32>
    %560 = arith.mulf %559, %558 : vector<8x256xf32>
    %561 = arith.mulf %550, %529 : vector<8x256xf32>
    %562 = arith.mulf %542, %552 : vector<8x256xf32>
    %563 = arith.addf %561, %562 : vector<8x256xf32>
    %564 = math.tanh %563 : vector<8x256xf32>
    %565 = arith.mulf %560, %564 : vector<8x256xf32>
    %c10_i32_223 = arith.constant 10 : i32
    %c5_i32_224 = arith.constant 5 : i32
    %566 = vector.broadcast %c10_i32_223 : i32 to vector<8x256xi32>
    %567 = vector.broadcast %c5_i32_224 : i32 to vector<8x256xi32>
    %568 = arith.select %35, %566, %567 : vector<8x256xi1>, vector<8x256xi32>
    %569 = arith.cmpi sgt, %38, %568 : vector<8x256xi32>
    %cst_225 = arith.constant 0.000000e+00 : f32
    %570 = vector.broadcast %cst_225 : f32 to vector<8x256xf32>
    %571 = arith.select %569, %565, %570 : vector<8x256xi1>, vector<8x256xf32>
    %c80_226 = arith.constant 80 : index
    %c0_227 = arith.constant 0 : index
    %572 = vector.load %arg12[%c80_226, %c0_227] : memref<128x128xf32, #tpu.memory_space<vmem>>, vector<8x128xf32>
    %573 = vector.extract_strided_slice %571 {offsets = [0, 0], sizes = [8, 128], strides = [1, 1]} : vector<8x256xf32> to vector<8x128xf32>
    %574 = arith.addf %572, %573 : vector<8x128xf32>
    %c80_228 = arith.constant 80 : index
    %c0_229 = arith.constant 0 : index
    %575 = vector.load %arg12[%c80_228, %c0_229] : memref<128x128xf32, #tpu.memory_space<vmem>>, vector<8x128xf32>
    tpu.vector_store %arg12[%c80_228, %c0_229], %574 {strides = array<i32>} : memref<128x128xf32, #tpu.memory_space<vmem>>, vector<8x128xf32>,
    %c40_230 = arith.constant 40 : index
    %c0_231 = arith.constant 0 : index
    %576 = vector.load %arg12[%c40_230, %c0_231] : memref<128x128xf32, #tpu.memory_space<vmem>>, vector<8x128xf32>
    %577 = vector.extract_strided_slice %571 {offsets = [0, 128], sizes = [8, 128], strides = [1, 1]} : vector<8x256xf32> to vector<8x128xf32>
    %578 = arith.addf %576, %577 : vector<8x128xf32>
    %c40_232 = arith.constant 40 : index
    %c0_233 = arith.constant 0 : index
    %579 = vector.load %arg12[%c40_232, %c0_233] : memref<128x128xf32, #tpu.memory_space<vmem>>, vector<8x128xf32>
    tpu.vector_store %arg12[%c40_232, %c0_233], %578 {strides = array<i32>} : memref<128x128xf32, #tpu.memory_space<vmem>>, vector<8x128xf32>,
    %580 = arith.select %569, %565, %528 : vector<8x256xi1>, vector<8x256xf32>
    %581 = arith.select %569, %563, %529 : vector<8x256xi1>, vector<8x256xf32>
    %cst_234 = arith.constant dense<0.000000e+00> : vector<8x1024xf32>
    %582 = tpu.matmul %580, %39, %cst_234 {dimension_numbers = #tpu.dot_dimension_numbers<[1], [0], [0], [1], [0, 0, 1, 1], [], []>} : vector<8x256xf32>, vector<256x1024xf32>, vector<8x1024xf32> -> vector<8x1024xf32>
    %c88_235 = arith.constant 88 : index
    %c0_236 = arith.constant 0 : index
    %583 = vector.load %arg16[%c88_235, %c0_236] : memref<128x1024xf32, #tpu.memory_space<vmem>>, vector<8x1024xf32>
    %c32_237 = arith.constant 32 : index
    %c0_238 = arith.constant 0 : index
    %584 = vector.load %arg16[%c32_237, %c0_238] : memref<128x1024xf32, #tpu.memory_space<vmem>>, vector<8x1024xf32>
    %585 = arith.select %32, %583, %584 : vector<8x1024xi1>, vector<8x1024xf32>
    %586 = arith.addf %582, %585 : vector<8x1024xf32>
    %587 = vector.extract_strided_slice %586 {offsets = [0, 0], sizes = [8, 256], strides = [1, 1]} : vector<8x1024xf32> to vector<8x256xf32>
    %cst_239 = arith.constant 5.000000e-01 : f32
    %588 = vector.broadcast %cst_239 : f32 to vector<8x256xf32>
    %589 = arith.mulf %588, %587 : vector<8x256xf32>
    %590 = math.tanh %589 : vector<8x256xf32>
    %cst_240 = arith.constant 1.000000e+00 : f32
    %591 = vector.broadcast %cst_240 : f32 to vector<8x256xf32>
    %592 = arith.addf %590, %591 : vector<8x256xf32>
    %cst_241 = arith.constant 5.000000e-01 : f32
    %593 = vector.broadcast %cst_241 : f32 to vector<8x256xf32>
    %594 = arith.mulf %593, %592 : vector<8x256xf32>
    %595 = vector.extract_strided_slice %586 {offsets = [0, 256], sizes = [8, 256], strides = [1, 1]} : vector<8x1024xf32> to vector<8x256xf32>
    %cst_242 = arith.constant 5.000000e-01 : f32
    %596 = vector.broadcast %cst_242 : f32 to vector<8x256xf32>
    %597 = arith.mulf %596, %595 : vector<8x256xf32>
    %598 = math.tanh %597 : vector<8x256xf32>
    %cst_243 = arith.constant 1.000000e+00 : f32
    %599 = vector.broadcast %cst_243 : f32 to vector<8x256xf32>
    %600 = arith.addf %598, %599 : vector<8x256xf32>
    %cst_244 = arith.constant 5.000000e-01 : f32
    %601 = vector.broadcast %cst_244 : f32 to vector<8x256xf32>
    %602 = arith.mulf %601, %600 : vector<8x256xf32>
    %603 = vector.extract_strided_slice %586 {offsets = [0, 512], sizes = [8, 256], strides = [1, 1]} : vector<8x1024xf32> to vector<8x256xf32>
    %604 = math.tanh %603 : vector<8x256xf32>
    %605 = vector.extract_strided_slice %586 {offsets = [0, 768], sizes = [8, 256], strides = [1, 1]} : vector<8x1024xf32> to vector<8x256xf32>
    %cst_245 = arith.constant 5.000000e-01 : f32
    %606 = vector.broadcast %cst_245 : f32 to vector<8x256xf32>
    %607 = arith.mulf %606, %605 : vector<8x256xf32>
    %608 = math.tanh %607 : vector<8x256xf32>
    %cst_246 = arith.constant 1.000000e+00 : f32
    %609 = vector.broadcast %cst_246 : f32 to vector<8x256xf32>
    %610 = arith.addf %608, %609 : vector<8x256xf32>
    %cst_247 = arith.constant 5.000000e-01 : f32
    %611 = vector.broadcast %cst_247 : f32 to vector<8x256xf32>
    %612 = arith.mulf %611, %610 : vector<8x256xf32>
    %613 = arith.mulf %602, %581 : vector<8x256xf32>
    %614 = arith.mulf %594, %604 : vector<8x256xf32>
    %615 = arith.addf %613, %614 : vector<8x256xf32>
    %616 = math.tanh %615 : vector<8x256xf32>
    %617 = arith.mulf %612, %616 : vector<8x256xf32>
    %c11_i32_248 = arith.constant 11 : i32
    %c4_i32_249 = arith.constant 4 : i32
    %618 = vector.broadcast %c11_i32_248 : i32 to vector<8x256xi32>
    %619 = vector.broadcast %c4_i32_249 : i32 to vector<8x256xi32>
    %620 = arith.select %35, %618, %619 : vector<8x256xi1>, vector<8x256xi32>
    %621 = arith.cmpi sgt, %38, %620 : vector<8x256xi32>
    %cst_250 = arith.constant 0.000000e+00 : f32
    %622 = vector.broadcast %cst_250 : f32 to vector<8x256xf32>
    %623 = arith.select %621, %617, %622 : vector<8x256xi1>, vector<8x256xf32>
    %c88_251 = arith.constant 88 : index
    %c0_252 = arith.constant 0 : index
    %624 = vector.load %arg12[%c88_251, %c0_252] : memref<128x128xf32, #tpu.memory_space<vmem>>, vector<8x128xf32>
    %625 = vector.extract_strided_slice %623 {offsets = [0, 0], sizes = [8, 128], strides = [1, 1]} : vector<8x256xf32> to vector<8x128xf32>
    %626 = arith.addf %624, %625 : vector<8x128xf32>
    %c88_253 = arith.constant 88 : index
    %c0_254 = arith.constant 0 : index
    %627 = vector.load %arg12[%c88_253, %c0_254] : memref<128x128xf32, #tpu.memory_space<vmem>>, vector<8x128xf32>
    tpu.vector_store %arg12[%c88_253, %c0_254], %626 {strides = array<i32>} : memref<128x128xf32, #tpu.memory_space<vmem>>, vector<8x128xf32>,
    %c32_255 = arith.constant 32 : index
    %c0_256 = arith.constant 0 : index
    %628 = vector.load %arg12[%c32_255, %c0_256] : memref<128x128xf32, #tpu.memory_space<vmem>>, vector<8x128xf32>
    %629 = vector.extract_strided_slice %623 {offsets = [0, 128], sizes = [8, 128], strides = [1, 1]} : vector<8x256xf32> to vector<8x128xf32>
    %630 = arith.addf %628, %629 : vector<8x128xf32>
    %c32_257 = arith.constant 32 : index
    %c0_258 = arith.constant 0 : index
    %631 = vector.load %arg12[%c32_257, %c0_258] : memref<128x128xf32, #tpu.memory_space<vmem>>, vector<8x128xf32>
    tpu.vector_store %arg12[%c32_257, %c0_258], %630 {strides = array<i32>} : memref<128x128xf32, #tpu.memory_space<vmem>>, vector<8x128xf32>,
    %632 = arith.select %621, %617, %580 : vector<8x256xi1>, vector<8x256xf32>
    %633 = arith.select %621, %615, %581 : vector<8x256xi1>, vector<8x256xf32>
    %cst_259 = arith.constant dense<0.000000e+00> : vector<8x1024xf32>
    %634 = tpu.matmul %632, %39, %cst_259 {dimension_numbers = #tpu.dot_dimension_numbers<[1], [0], [0], [1], [0, 0, 1, 1], [], []>} : vector<8x256xf32>, vector<256x1024xf32>, vector<8x1024xf32> -> vector<8x1024xf32>
    %c96_260 = arith.constant 96 : index
    %c0_261 = arith.constant 0 : index
    %635 = vector.load %arg16[%c96_260, %c0_261] : memref<128x1024xf32, #tpu.memory_space<vmem>>, vector<8x1024xf32>
    %c24_262 = arith.constant 24 : index
    %c0_263 = arith.constant 0 : index
    %636 = vector.load %arg16[%c24_262, %c0_263] : memref<128x1024xf32, #tpu.memory_space<vmem>>, vector<8x1024xf32>
    %637 = arith.select %32, %635, %636 : vector<8x1024xi1>, vector<8x1024xf32>
    %638 = arith.addf %634, %637 : vector<8x1024xf32>
    %639 = vector.extract_strided_slice %638 {offsets = [0, 0], sizes = [8, 256], strides = [1, 1]} : vector<8x1024xf32> to vector<8x256xf32>
    %cst_264 = arith.constant 5.000000e-01 : f32
    %640 = vector.broadcast %cst_264 : f32 to vector<8x256xf32>
    %641 = arith.mulf %640, %639 : vector<8x256xf32>
    %642 = math.tanh %641 : vector<8x256xf32>
    %cst_265 = arith.constant 1.000000e+00 : f32
    %643 = vector.broadcast %cst_265 : f32 to vector<8x256xf32>
    %644 = arith.addf %642, %643 : vector<8x256xf32>
    %cst_266 = arith.constant 5.000000e-01 : f32
    %645 = vector.broadcast %cst_266 : f32 to vector<8x256xf32>
    %646 = arith.mulf %645, %644 : vector<8x256xf32>
    %647 = vector.extract_strided_slice %638 {offsets = [0, 256], sizes = [8, 256], strides = [1, 1]} : vector<8x1024xf32> to vector<8x256xf32>
    %cst_267 = arith.constant 5.000000e-01 : f32
    %648 = vector.broadcast %cst_267 : f32 to vector<8x256xf32>
    %649 = arith.mulf %648, %647 : vector<8x256xf32>
    %650 = math.tanh %649 : vector<8x256xf32>
    %cst_268 = arith.constant 1.000000e+00 : f32
    %651 = vector.broadcast %cst_268 : f32 to vector<8x256xf32>
    %652 = arith.addf %650, %651 : vector<8x256xf32>
    %cst_269 = arith.constant 5.000000e-01 : f32
    %653 = vector.broadcast %cst_269 : f32 to vector<8x256xf32>
    %654 = arith.mulf %653, %652 : vector<8x256xf32>
    %655 = vector.extract_strided_slice %638 {offsets = [0, 512], sizes = [8, 256], strides = [1, 1]} : vector<8x1024xf32> to vector<8x256xf32>
    %656 = math.tanh %655 : vector<8x256xf32>
    %657 = vector.extract_strided_slice %638 {offsets = [0, 768], sizes = [8, 256], strides = [1, 1]} : vector<8x1024xf32> to vector<8x256xf32>
    %cst_270 = arith.constant 5.000000e-01 : f32
    %658 = vector.broadcast %cst_270 : f32 to vector<8x256xf32>
    %659 = arith.mulf %658, %657 : vector<8x256xf32>
    %660 = math.tanh %659 : vector<8x256xf32>
    %cst_271 = arith.constant 1.000000e+00 : f32
    %661 = vector.broadcast %cst_271 : f32 to vector<8x256xf32>
    %662 = arith.addf %660, %661 : vector<8x256xf32>
    %cst_272 = arith.constant 5.000000e-01 : f32
    %663 = vector.broadcast %cst_272 : f32 to vector<8x256xf32>
    %664 = arith.mulf %663, %662 : vector<8x256xf32>
    %665 = arith.mulf %654, %633 : vector<8x256xf32>
    %666 = arith.mulf %646, %656 : vector<8x256xf32>
    %667 = arith.addf %665, %666 : vector<8x256xf32>
    %668 = math.tanh %667 : vector<8x256xf32>
    %669 = arith.mulf %664, %668 : vector<8x256xf32>
    %c12_i32_273 = arith.constant 12 : i32
    %c3_i32_274 = arith.constant 3 : i32
    %670 = vector.broadcast %c12_i32_273 : i32 to vector<8x256xi32>
    %671 = vector.broadcast %c3_i32_274 : i32 to vector<8x256xi32>
    %672 = arith.select %35, %670, %671 : vector<8x256xi1>, vector<8x256xi32>
    %673 = arith.cmpi sgt, %38, %672 : vector<8x256xi32>
    %cst_275 = arith.constant 0.000000e+00 : f32
    %674 = vector.broadcast %cst_275 : f32 to vector<8x256xf32>
    %675 = arith.select %673, %669, %674 : vector<8x256xi1>, vector<8x256xf32>
    %c96_276 = arith.constant 96 : index
    %c0_277 = arith.constant 0 : index
    %676 = vector.load %arg12[%c96_276, %c0_277] : memref<128x128xf32, #tpu.memory_space<vmem>>, vector<8x128xf32>
    %677 = vector.extract_strided_slice %675 {offsets = [0, 0], sizes = [8, 128], strides = [1, 1]} : vector<8x256xf32> to vector<8x128xf32>
    %678 = arith.addf %676, %677 : vector<8x128xf32>
    %c96_278 = arith.constant 96 : index
    %c0_279 = arith.constant 0 : index
    %679 = vector.load %arg12[%c96_278, %c0_279] : memref<128x128xf32, #tpu.memory_space<vmem>>, vector<8x128xf32>
    tpu.vector_store %arg12[%c96_278, %c0_279], %678 {strides = array<i32>} : memref<128x128xf32, #tpu.memory_space<vmem>>, vector<8x128xf32>,
    %c24_280 = arith.constant 24 : index
    %c0_281 = arith.constant 0 : index
    %680 = vector.load %arg12[%c24_280, %c0_281] : memref<128x128xf32, #tpu.memory_space<vmem>>, vector<8x128xf32>
    %681 = vector.extract_strided_slice %675 {offsets = [0, 128], sizes = [8, 128], strides = [1, 1]} : vector<8x256xf32> to vector<8x128xf32>
    %682 = arith.addf %680, %681 : vector<8x128xf32>
    %c24_282 = arith.constant 24 : index
    %c0_283 = arith.constant 0 : index
    %683 = vector.load %arg12[%c24_282, %c0_283] : memref<128x128xf32, #tpu.memory_space<vmem>>, vector<8x128xf32>
    tpu.vector_store %arg12[%c24_282, %c0_283], %682 {strides = array<i32>} : memref<128x128xf32, #tpu.memory_space<vmem>>, vector<8x128xf32>,
    %684 = arith.select %673, %669, %632 : vector<8x256xi1>, vector<8x256xf32>
    %685 = arith.select %673, %667, %633 : vector<8x256xi1>, vector<8x256xf32>
    %cst_284 = arith.constant dense<0.000000e+00> : vector<8x1024xf32>
    %686 = tpu.matmul %684, %39, %cst_284 {dimension_numbers = #tpu.dot_dimension_numbers<[1], [0], [0], [1], [0, 0, 1, 1], [], []>} : vector<8x256xf32>, vector<256x1024xf32>, vector<8x1024xf32> -> vector<8x1024xf32>
    %c104_285 = arith.constant 104 : index
    %c0_286 = arith.constant 0 : index
    %687 = vector.load %arg16[%c104_285, %c0_286] : memref<128x1024xf32, #tpu.memory_space<vmem>>, vector<8x1024xf32>
    %c16_287 = arith.constant 16 : index
    %c0_288 = arith.constant 0 : index
    %688 = vector.load %arg16[%c16_287, %c0_288] : memref<128x1024xf32, #tpu.memory_space<vmem>>, vector<8x1024xf32>
    %689 = arith.select %32, %687, %688 : vector<8x1024xi1>, vector<8x1024xf32>
    %690 = arith.addf %686, %689 : vector<8x1024xf32>
    %691 = vector.extract_strided_slice %690 {offsets = [0, 0], sizes = [8, 256], strides = [1, 1]} : vector<8x1024xf32> to vector<8x256xf32>
    %cst_289 = arith.constant 5.000000e-01 : f32
    %692 = vector.broadcast %cst_289 : f32 to vector<8x256xf32>
    %693 = arith.mulf %692, %691 : vector<8x256xf32>
    %694 = math.tanh %693 : vector<8x256xf32>
    %cst_290 = arith.constant 1.000000e+00 : f32
    %695 = vector.broadcast %cst_290 : f32 to vector<8x256xf32>
    %696 = arith.addf %694, %695 : vector<8x256xf32>
    %cst_291 = arith.constant 5.000000e-01 : f32
    %697 = vector.broadcast %cst_291 : f32 to vector<8x256xf32>
    %698 = arith.mulf %697, %696 : vector<8x256xf32>
    %699 = vector.extract_strided_slice %690 {offsets = [0, 256], sizes = [8, 256], strides = [1, 1]} : vector<8x1024xf32> to vector<8x256xf32>
    %cst_292 = arith.constant 5.000000e-01 : f32
    %700 = vector.broadcast %cst_292 : f32 to vector<8x256xf32>
    %701 = arith.mulf %700, %699 : vector<8x256xf32>
    %702 = math.tanh %701 : vector<8x256xf32>
    %cst_293 = arith.constant 1.000000e+00 : f32
    %703 = vector.broadcast %cst_293 : f32 to vector<8x256xf32>
    %704 = arith.addf %702, %703 : vector<8x256xf32>
    %cst_294 = arith.constant 5.000000e-01 : f32
    %705 = vector.broadcast %cst_294 : f32 to vector<8x256xf32>
    %706 = arith.mulf %705, %704 : vector<8x256xf32>
    %707 = vector.extract_strided_slice %690 {offsets = [0, 512], sizes = [8, 256], strides = [1, 1]} : vector<8x1024xf32> to vector<8x256xf32>
    %708 = math.tanh %707 : vector<8x256xf32>
    %709 = vector.extract_strided_slice %690 {offsets = [0, 768], sizes = [8, 256], strides = [1, 1]} : vector<8x1024xf32> to vector<8x256xf32>
    %cst_295 = arith.constant 5.000000e-01 : f32
    %710 = vector.broadcast %cst_295 : f32 to vector<8x256xf32>
    %711 = arith.mulf %710, %709 : vector<8x256xf32>
    %712 = math.tanh %711 : vector<8x256xf32>
    %cst_296 = arith.constant 1.000000e+00 : f32
    %713 = vector.broadcast %cst_296 : f32 to vector<8x256xf32>
    %714 = arith.addf %712, %713 : vector<8x256xf32>
    %cst_297 = arith.constant 5.000000e-01 : f32
    %715 = vector.broadcast %cst_297 : f32 to vector<8x256xf32>
    %716 = arith.mulf %715, %714 : vector<8x256xf32>
    %717 = arith.mulf %706, %685 : vector<8x256xf32>
    %718 = arith.mulf %698, %708 : vector<8x256xf32>
    %719 = arith.addf %717, %718 : vector<8x256xf32>
    %720 = math.tanh %719 : vector<8x256xf32>
    %721 = arith.mulf %716, %720 : vector<8x256xf32>
    %c13_i32_298 = arith.constant 13 : i32
    %c2_i32_299 = arith.constant 2 : i32
    %722 = vector.broadcast %c13_i32_298 : i32 to vector<8x256xi32>
    %723 = vector.broadcast %c2_i32_299 : i32 to vector<8x256xi32>
    %724 = arith.select %35, %722, %723 : vector<8x256xi1>, vector<8x256xi32>
    %725 = arith.cmpi sgt, %38, %724 : vector<8x256xi32>
    %cst_300 = arith.constant 0.000000e+00 : f32
    %726 = vector.broadcast %cst_300 : f32 to vector<8x256xf32>
    %727 = arith.select %725, %721, %726 : vector<8x256xi1>, vector<8x256xf32>
    %c104_301 = arith.constant 104 : index
    %c0_302 = arith.constant 0 : index
    %728 = vector.load %arg12[%c104_301, %c0_302] : memref<128x128xf32, #tpu.memory_space<vmem>>, vector<8x128xf32>
    %729 = vector.extract_strided_slice %727 {offsets = [0, 0], sizes = [8, 128], strides = [1, 1]} : vector<8x256xf32> to vector<8x128xf32>
    %730 = arith.addf %728, %729 : vector<8x128xf32>
    %c104_303 = arith.constant 104 : index
    %c0_304 = arith.constant 0 : index
    %731 = vector.load %arg12[%c104_303, %c0_304] : memref<128x128xf32, #tpu.memory_space<vmem>>, vector<8x128xf32>
    tpu.vector_store %arg12[%c104_303, %c0_304], %730 {strides = array<i32>} : memref<128x128xf32, #tpu.memory_space<vmem>>, vector<8x128xf32>,
    %c16_305 = arith.constant 16 : index
    %c0_306 = arith.constant 0 : index
    %732 = vector.load %arg12[%c16_305, %c0_306] : memref<128x128xf32, #tpu.memory_space<vmem>>, vector<8x128xf32>
    %733 = vector.extract_strided_slice %727 {offsets = [0, 128], sizes = [8, 128], strides = [1, 1]} : vector<8x256xf32> to vector<8x128xf32>
    %734 = arith.addf %732, %733 : vector<8x128xf32>
    %c16_307 = arith.constant 16 : index
    %c0_308 = arith.constant 0 : index
    %735 = vector.load %arg12[%c16_307, %c0_308] : memref<128x128xf32, #tpu.memory_space<vmem>>, vector<8x128xf32>
    tpu.vector_store %arg12[%c16_307, %c0_308], %734 {strides = array<i32>} : memref<128x128xf32, #tpu.memory_space<vmem>>, vector<8x128xf32>,
    %736 = arith.select %725, %721, %684 : vector<8x256xi1>, vector<8x256xf32>
    %737 = arith.select %725, %719, %685 : vector<8x256xi1>, vector<8x256xf32>
    %cst_309 = arith.constant dense<0.000000e+00> : vector<8x1024xf32>
    %738 = tpu.matmul %736, %39, %cst_309 {dimension_numbers = #tpu.dot_dimension_numbers<[1], [0], [0], [1], [0, 0, 1, 1], [], []>} : vector<8x256xf32>, vector<256x1024xf32>, vector<8x1024xf32> -> vector<8x1024xf32>
    %c112_310 = arith.constant 112 : index
    %c0_311 = arith.constant 0 : index
    %739 = vector.load %arg16[%c112_310, %c0_311] : memref<128x1024xf32, #tpu.memory_space<vmem>>, vector<8x1024xf32>
    %c8_312 = arith.constant 8 : index
    %c0_313 = arith.constant 0 : index
    %740 = vector.load %arg16[%c8_312, %c0_313] : memref<128x1024xf32, #tpu.memory_space<vmem>>, vector<8x1024xf32>
    %741 = arith.select %32, %739, %740 : vector<8x1024xi1>, vector<8x1024xf32>
    %742 = arith.addf %738, %741 : vector<8x1024xf32>
    %743 = vector.extract_strided_slice %742 {offsets = [0, 0], sizes = [8, 256], strides = [1, 1]} : vector<8x1024xf32> to vector<8x256xf32>
    %cst_314 = arith.constant 5.000000e-01 : f32
    %744 = vector.broadcast %cst_314 : f32 to vector<8x256xf32>
    %745 = arith.mulf %744, %743 : vector<8x256xf32>
    %746 = math.tanh %745 : vector<8x256xf32>
    %cst_315 = arith.constant 1.000000e+00 : f32
    %747 = vector.broadcast %cst_315 : f32 to vector<8x256xf32>
    %748 = arith.addf %746, %747 : vector<8x256xf32>
    %cst_316 = arith.constant 5.000000e-01 : f32
    %749 = vector.broadcast %cst_316 : f32 to vector<8x256xf32>
    %750 = arith.mulf %749, %748 : vector<8x256xf32>
    %751 = vector.extract_strided_slice %742 {offsets = [0, 256], sizes = [8, 256], strides = [1, 1]} : vector<8x1024xf32> to vector<8x256xf32>
    %cst_317 = arith.constant 5.000000e-01 : f32
    %752 = vector.broadcast %cst_317 : f32 to vector<8x256xf32>
    %753 = arith.mulf %752, %751 : vector<8x256xf32>
    %754 = math.tanh %753 : vector<8x256xf32>
    %cst_318 = arith.constant 1.000000e+00 : f32
    %755 = vector.broadcast %cst_318 : f32 to vector<8x256xf32>
    %756 = arith.addf %754, %755 : vector<8x256xf32>
    %cst_319 = arith.constant 5.000000e-01 : f32
    %757 = vector.broadcast %cst_319 : f32 to vector<8x256xf32>
    %758 = arith.mulf %757, %756 : vector<8x256xf32>
    %759 = vector.extract_strided_slice %742 {offsets = [0, 512], sizes = [8, 256], strides = [1, 1]} : vector<8x1024xf32> to vector<8x256xf32>
    %760 = math.tanh %759 : vector<8x256xf32>
    %761 = vector.extract_strided_slice %742 {offsets = [0, 768], sizes = [8, 256], strides = [1, 1]} : vector<8x1024xf32> to vector<8x256xf32>
    %cst_320 = arith.constant 5.000000e-01 : f32
    %762 = vector.broadcast %cst_320 : f32 to vector<8x256xf32>
    %763 = arith.mulf %762, %761 : vector<8x256xf32>
    %764 = math.tanh %763 : vector<8x256xf32>
    %cst_321 = arith.constant 1.000000e+00 : f32
    %765 = vector.broadcast %cst_321 : f32 to vector<8x256xf32>
    %766 = arith.addf %764, %765 : vector<8x256xf32>
    %cst_322 = arith.constant 5.000000e-01 : f32
    %767 = vector.broadcast %cst_322 : f32 to vector<8x256xf32>
    %768 = arith.mulf %767, %766 : vector<8x256xf32>
    %769 = arith.mulf %758, %737 : vector<8x256xf32>
    %770 = arith.mulf %750, %760 : vector<8x256xf32>
    %771 = arith.addf %769, %770 : vector<8x256xf32>
    %772 = math.tanh %771 : vector<8x256xf32>
    %773 = arith.mulf %768, %772 : vector<8x256xf32>
    %c14_i32_323 = arith.constant 14 : i32
    %c1_i32_324 = arith.constant 1 : i32
    %774 = vector.broadcast %c14_i32_323 : i32 to vector<8x256xi32>
    %775 = vector.broadcast %c1_i32_324 : i32 to vector<8x256xi32>
    %776 = arith.select %35, %774, %775 : vector<8x256xi1>, vector<8x256xi32>
    %777 = arith.cmpi sgt, %38, %776 : vector<8x256xi32>
    %cst_325 = arith.constant 0.000000e+00 : f32
    %778 = vector.broadcast %cst_325 : f32 to vector<8x256xf32>
    %779 = arith.select %777, %773, %778 : vector<8x256xi1>, vector<8x256xf32>
    %c112_326 = arith.constant 112 : index
    %c0_327 = arith.constant 0 : index
    %780 = vector.load %arg12[%c112_326, %c0_327] : memref<128x128xf32, #tpu.memory_space<vmem>>, vector<8x128xf32>
    %781 = vector.extract_strided_slice %779 {offsets = [0, 0], sizes = [8, 128], strides = [1, 1]} : vector<8x256xf32> to vector<8x128xf32>
    %782 = arith.addf %780, %781 : vector<8x128xf32>
    %c112_328 = arith.constant 112 : index
    %c0_329 = arith.constant 0 : index
    %783 = vector.load %arg12[%c112_328, %c0_329] : memref<128x128xf32, #tpu.memory_space<vmem>>, vector<8x128xf32>
    tpu.vector_store %arg12[%c112_328, %c0_329], %782 {strides = array<i32>} : memref<128x128xf32, #tpu.memory_space<vmem>>, vector<8x128xf32>,
    %c8_330 = arith.constant 8 : index
    %c0_331 = arith.constant 0 : index
    %784 = vector.load %arg12[%c8_330, %c0_331] : memref<128x128xf32, #tpu.memory_space<vmem>>, vector<8x128xf32>
    %785 = vector.extract_strided_slice %779 {offsets = [0, 128], sizes = [8, 128], strides = [1, 1]} : vector<8x256xf32> to vector<8x128xf32>
    %786 = arith.addf %784, %785 : vector<8x128xf32>
    %c8_332 = arith.constant 8 : index
    %c0_333 = arith.constant 0 : index
    %787 = vector.load %arg12[%c8_332, %c0_333] : memref<128x128xf32, #tpu.memory_space<vmem>>, vector<8x128xf32>
    tpu.vector_store %arg12[%c8_332, %c0_333], %786 {strides = array<i32>} : memref<128x128xf32, #tpu.memory_space<vmem>>, vector<8x128xf32>,
    %788 = arith.select %777, %773, %736 : vector<8x256xi1>, vector<8x256xf32>
    %789 = arith.select %777, %771, %737 : vector<8x256xi1>, vector<8x256xf32>
    %cst_334 = arith.constant dense<0.000000e+00> : vector<8x1024xf32>
    %790 = tpu.matmul %788, %39, %cst_334 {dimension_numbers = #tpu.dot_dimension_numbers<[1], [0], [0], [1], [0, 0, 1, 1], [], []>} : vector<8x256xf32>, vector<256x1024xf32>, vector<8x1024xf32> -> vector<8x1024xf32>
    %c120_335 = arith.constant 120 : index
    %c0_336 = arith.constant 0 : index
    %791 = vector.load %arg16[%c120_335, %c0_336] : memref<128x1024xf32, #tpu.memory_space<vmem>>, vector<8x1024xf32>
    %c0_337 = arith.constant 0 : index
    %c0_338 = arith.constant 0 : index
    %792 = vector.load %arg16[%c0_337, %c0_338] : memref<128x1024xf32, #tpu.memory_space<vmem>>, vector<8x1024xf32>
    %793 = arith.select %32, %791, %792 : vector<8x1024xi1>, vector<8x1024xf32>
    %794 = arith.addf %790, %793 : vector<8x1024xf32>
    %795 = vector.extract_strided_slice %794 {offsets = [0, 0], sizes = [8, 256], strides = [1, 1]} : vector<8x1024xf32> to vector<8x256xf32>
    %cst_339 = arith.constant 5.000000e-01 : f32
    %796 = vector.broadcast %cst_339 : f32 to vector<8x256xf32>
    %797 = arith.mulf %796, %795 : vector<8x256xf32>
    %798 = math.tanh %797 : vector<8x256xf32>
    %cst_340 = arith.constant 1.000000e+00 : f32
    %799 = vector.broadcast %cst_340 : f32 to vector<8x256xf32>
    %800 = arith.addf %798, %799 : vector<8x256xf32>
    %cst_341 = arith.constant 5.000000e-01 : f32
    %801 = vector.broadcast %cst_341 : f32 to vector<8x256xf32>
    %802 = arith.mulf %801, %800 : vector<8x256xf32>
    %803 = vector.extract_strided_slice %794 {offsets = [0, 256], sizes = [8, 256], strides = [1, 1]} : vector<8x1024xf32> to vector<8x256xf32>
    %cst_342 = arith.constant 5.000000e-01 : f32
    %804 = vector.broadcast %cst_342 : f32 to vector<8x256xf32>
    %805 = arith.mulf %804, %803 : vector<8x256xf32>
    %806 = math.tanh %805 : vector<8x256xf32>
    %cst_343 = arith.constant 1.000000e+00 : f32
    %807 = vector.broadcast %cst_343 : f32 to vector<8x256xf32>
    %808 = arith.addf %806, %807 : vector<8x256xf32>
    %cst_344 = arith.constant 5.000000e-01 : f32
    %809 = vector.broadcast %cst_344 : f32 to vector<8x256xf32>
    %810 = arith.mulf %809, %808 : vector<8x256xf32>
    %811 = vector.extract_strided_slice %794 {offsets = [0, 512], sizes = [8, 256], strides = [1, 1]} : vector<8x1024xf32> to vector<8x256xf32>
    %812 = math.tanh %811 : vector<8x256xf32>
    %813 = vector.extract_strided_slice %794 {offsets = [0, 768], sizes = [8, 256], strides = [1, 1]} : vector<8x1024xf32> to vector<8x256xf32>
    %cst_345 = arith.constant 5.000000e-01 : f32
    %814 = vector.broadcast %cst_345 : f32 to vector<8x256xf32>
    %815 = arith.mulf %814, %813 : vector<8x256xf32>
    %816 = math.tanh %815 : vector<8x256xf32>
    %cst_346 = arith.constant 1.000000e+00 : f32
    %817 = vector.broadcast %cst_346 : f32 to vector<8x256xf32>
    %818 = arith.addf %816, %817 : vector<8x256xf32>
    %cst_347 = arith.constant 5.000000e-01 : f32
    %819 = vector.broadcast %cst_347 : f32 to vector<8x256xf32>
    %820 = arith.mulf %819, %818 : vector<8x256xf32>
    %821 = arith.mulf %810, %789 : vector<8x256xf32>
    %822 = arith.mulf %802, %812 : vector<8x256xf32>
    %823 = arith.addf %821, %822 : vector<8x256xf32>
    %824 = math.tanh %823 : vector<8x256xf32>
    %825 = arith.mulf %820, %824 : vector<8x256xf32>
    %c15_i32_348 = arith.constant 15 : i32
    %c0_i32_349 = arith.constant 0 : i32
    %826 = vector.broadcast %c15_i32_348 : i32 to vector<8x256xi32>
    %827 = vector.broadcast %c0_i32_349 : i32 to vector<8x256xi32>
    %828 = arith.select %35, %826, %827 : vector<8x256xi1>, vector<8x256xi32>
    %829 = arith.cmpi sgt, %38, %828 : vector<8x256xi32>
    %cst_350 = arith.constant 0.000000e+00 : f32
    %830 = vector.broadcast %cst_350 : f32 to vector<8x256xf32>
    %831 = arith.select %829, %825, %830 : vector<8x256xi1>, vector<8x256xf32>
    %c120_351 = arith.constant 120 : index
    %c0_352 = arith.constant 0 : index
    %832 = vector.load %arg12[%c120_351, %c0_352] : memref<128x128xf32, #tpu.memory_space<vmem>>, vector<8x128xf32>
    %833 = vector.extract_strided_slice %831 {offsets = [0, 0], sizes = [8, 128], strides = [1, 1]} : vector<8x256xf32> to vector<8x128xf32>
    %834 = arith.addf %832, %833 : vector<8x128xf32>
    %c120_353 = arith.constant 120 : index
    %c0_354 = arith.constant 0 : index
    %835 = vector.load %arg12[%c120_353, %c0_354] : memref<128x128xf32, #tpu.memory_space<vmem>>, vector<8x128xf32>
    tpu.vector_store %arg12[%c120_353, %c0_354], %834 {strides = array<i32>} : memref<128x128xf32, #tpu.memory_space<vmem>>, vector<8x128xf32>,
    %c0_355 = arith.constant 0 : index
    %c0_356 = arith.constant 0 : index
    %836 = vector.load %arg12[%c0_355, %c0_356] : memref<128x128xf32, #tpu.memory_space<vmem>>, vector<8x128xf32>
    %837 = vector.extract_strided_slice %831 {offsets = [0, 128], sizes = [8, 128], strides = [1, 1]} : vector<8x256xf32> to vector<8x128xf32>
    %838 = arith.addf %836, %837 : vector<8x128xf32>
    %c0_357 = arith.constant 0 : index
    %c0_358 = arith.constant 0 : index
    %839 = vector.load %arg12[%c0_357, %c0_358] : memref<128x128xf32, #tpu.memory_space<vmem>>, vector<8x128xf32>
    tpu.vector_store %arg12[%c0_357, %c0_358], %838 {strides = array<i32>} : memref<128x128xf32, #tpu.memory_space<vmem>>, vector<8x128xf32>,
    %840 = arith.select %829, %825, %788 : vector<8x256xi1>, vector<8x256xf32>
    %841 = arith.select %829, %823, %789 : vector<8x256xi1>, vector<8x256xf32>
    %842 = vector.extract_strided_slice %840 {offsets = [0, 0], sizes = [8, 128], strides = [1, 1]} : vector<8x256xf32> to vector<8x128xf32>
    %c0_359 = arith.constant 0 : index
    %c0_360 = arith.constant 0 : index
    %843 = vector.load %arg13[%c0_359, %c0_360] : memref<8x128xf32, #tpu.memory_space<vmem>>, vector<8x128xf32>
    tpu.vector_store %arg13[%c0_359, %c0_360], %842 {strides = array<i32>} : memref<8x128xf32, #tpu.memory_space<vmem>>, vector<8x128xf32>,
    %844 = vector.extract_strided_slice %841 {offsets = [0, 0], sizes = [8, 128], strides = [1, 1]} : vector<8x256xf32> to vector<8x128xf32>
    %c0_361 = arith.constant 0 : index
    %c0_362 = arith.constant 0 : index
    %845 = vector.load %arg14[%c0_361, %c0_362] : memref<8x128xf32, #tpu.memory_space<vmem>>, vector<8x128xf32>
    tpu.vector_store %arg14[%c0_361, %c0_362], %844 {strides = array<i32>} : memref<8x128xf32, #tpu.memory_space<vmem>>, vector<8x128xf32>,
    %c0_363 = arith.constant 0 : index
    %c0_364 = arith.constant 0 : index
    %846 = vector.load %arg12[%c0_363, %c0_364] : memref<128x128xf32, #tpu.memory_space<vmem>>, vector<112x128xf32>
    %c0_365 = arith.constant 0 : index
    %c0_366 = arith.constant 0 : index
    %847 = vector.load %arg17[%c0_365, %c0_366] : memref<112x384xf32, #tpu.memory_space<vmem>>, vector<112x128xf32>
    tpu.vector_store %arg17[%c0_365, %c0_366], %846 {strides = array<i32>} : memref<112x384xf32, #tpu.memory_space<vmem>>, vector<112x128xf32>,
    %c8_367 = arith.constant 8 : index
    %c0_368 = arith.constant 0 : index
    %848 = vector.load %arg12[%c8_367, %c0_368] : memref<128x128xf32, #tpu.memory_space<vmem>>, vector<112x128xf32>
    %c0_369 = arith.constant 0 : index
    %c128 = arith.constant 128 : index
    %849 = vector.load %arg17[%c0_369, %c128] : memref<112x384xf32, #tpu.memory_space<vmem>>, vector<112x128xf32>
    tpu.vector_store %arg17[%c0_369, %c128], %848 {strides = array<i32>} : memref<112x384xf32, #tpu.memory_space<vmem>>, vector<112x128xf32>,
    %c16_370 = arith.constant 16 : index
    %c0_371 = arith.constant 0 : index
    %850 = vector.load %arg12[%c16_370, %c0_371] : memref<128x128xf32, #tpu.memory_space<vmem>>, vector<112x128xf32>
    %c0_372 = arith.constant 0 : index
    %c256 = arith.constant 256 : index
    %851 = vector.load %arg17[%c0_372, %c256] : memref<112x384xf32, #tpu.memory_space<vmem>>, vector<112x128xf32>
    tpu.vector_store %arg17[%c0_372, %c256], %850 {strides = array<i32>} : memref<112x384xf32, #tpu.memory_space<vmem>>, vector<112x128xf32>,
    %c0_373 = arith.constant 0 : index
    %c0_374 = arith.constant 0 : index
    %852 = vector.load %arg17[%c0_373, %c0_374] : memref<112x384xf32, #tpu.memory_space<vmem>>, vector<112x384xf32>
    %c0_375 = arith.constant 0 : index
    %c0_376 = arith.constant 0 : index
    %853 = vector.load %arg6[%c0_375, %c0_376] : memref<384x128xf32, #tpu.memory_space<vmem>>, vector<384x128xf32>
    %cst_377 = arith.constant dense<0.000000e+00> : vector<112x128xf32>
    %854 = tpu.matmul %852, %853, %cst_377 {dimension_numbers = #tpu.dot_dimension_numbers<[1], [0], [0], [1], [0, 0, 1, 1], [], []>} : vector<112x384xf32>, vector<384x128xf32>, vector<112x128xf32> -> vector<112x128xf32>
    %c0_378 = arith.constant 0 : index
    %c0_379 = arith.constant 0 : index
    %855 = vector.load %arg7[%c0_378, %c0_379] : memref<1x128xf32, #tpu.memory_space<vmem>>, vector<1x128xf32>
    %856 = vector.broadcast %855 : vector<1x128xf32> to vector<112x128xf32>
    %857 = arith.addf %854, %856 : vector<112x128xf32>
    %cst_380 = arith.constant 0.000000e+00 : f32
    %858 = vector.broadcast %cst_380 : f32 to vector<112x128xf32>
    %859 = arith.minimumf %857, %858 : vector<112x128xf32>
    %860 = math.exp %859 : vector<112x128xf32>
    %cst_381 = arith.constant 1.000000e+00 : f32
    %861 = vector.broadcast %cst_381 : f32 to vector<112x128xf32>
    %862 = arith.subf %860, %861 : vector<112x128xf32>
    %cst_382 = arith.constant 1.67326319 : f32
    %863 = vector.broadcast %cst_382 : f32 to vector<112x128xf32>
    %864 = arith.mulf %863, %862 : vector<112x128xf32>
    %cst_383 = arith.constant 0.000000e+00 : f32
    %865 = vector.broadcast %cst_383 : f32 to vector<112x128xf32>
    %866 = arith.cmpf ogt, %857, %865 : vector<112x128xf32>
    %867 = arith.select %866, %857, %864 : vector<112x128xi1>, vector<112x128xf32>
    %cst_384 = arith.constant 1.05070102 : f32
    %868 = vector.broadcast %cst_384 : f32 to vector<112x128xf32>
    %869 = arith.mulf %868, %867 : vector<112x128xf32>
    %c0_385 = arith.constant 0 : index
    %c0_386 = arith.constant 0 : index
    %870 = vector.load %arg18[%c0_385, %c0_386] : memref<112x128xf32, #tpu.memory_space<vmem>>, vector<112x128xf32>
    tpu.vector_store %arg18[%c0_385, %c0_386], %869 {strides = array<i32>} : memref<112x128xf32, #tpu.memory_space<vmem>>, vector<112x128xf32>,
    %c0_387 = arith.constant 0 : index
    %c0_388 = arith.constant 0 : index
    %871 = vector.load %arg18[%c0_387, %c0_388] : memref<112x128xf32, #tpu.memory_space<vmem>>, vector<80x128xf32>
    %c0_389 = arith.constant 0 : index
    %c0_390 = arith.constant 0 : index
    %872 = vector.load %arg17[%c0_389, %c0_390] : memref<112x384xf32, #tpu.memory_space<vmem>>, vector<80x128xf32>
    tpu.vector_store %arg17[%c0_389, %c0_390], %871 {strides = array<i32>} : memref<112x384xf32, #tpu.memory_space<vmem>>, vector<80x128xf32>,
    %c16_391 = arith.constant 16 : index
    %c0_392 = arith.constant 0 : index
    %873 = vector.load %arg18[%c16_391, %c0_392] : memref<112x128xf32, #tpu.memory_space<vmem>>, vector<80x128xf32>
    %c0_393 = arith.constant 0 : index
    %c128_394 = arith.constant 128 : index
    %874 = vector.load %arg17[%c0_393, %c128_394] : memref<112x384xf32, #tpu.memory_space<vmem>>, vector<80x128xf32>
    tpu.vector_store %arg17[%c0_393, %c128_394], %873 {strides = array<i32>} : memref<112x384xf32, #tpu.memory_space<vmem>>, vector<80x128xf32>,
    %c32_395 = arith.constant 32 : index
    %c0_396 = arith.constant 0 : index
    %875 = vector.load %arg18[%c32_395, %c0_396] : memref<112x128xf32, #tpu.memory_space<vmem>>, vector<80x128xf32>
    %c0_397 = arith.constant 0 : index
    %c256_398 = arith.constant 256 : index
    %876 = vector.load %arg17[%c0_397, %c256_398] : memref<112x384xf32, #tpu.memory_space<vmem>>, vector<80x128xf32>
    tpu.vector_store %arg17[%c0_397, %c256_398], %875 {strides = array<i32>} : memref<112x384xf32, #tpu.memory_space<vmem>>, vector<80x128xf32>,
    %c0_399 = arith.constant 0 : index
    %c0_400 = arith.constant 0 : index
    %877 = vector.load %arg17[%c0_399, %c0_400] : memref<112x384xf32, #tpu.memory_space<vmem>>, vector<80x384xf32>
    %c0_401 = arith.constant 0 : index
    %c0_402 = arith.constant 0 : index
    %878 = vector.load %arg8[%c0_401, %c0_402] : memref<384x128xf32, #tpu.memory_space<vmem>>, vector<384x128xf32>
    %cst_403 = arith.constant dense<0.000000e+00> : vector<80x128xf32>
    %879 = tpu.matmul %877, %878, %cst_403 {dimension_numbers = #tpu.dot_dimension_numbers<[1], [0], [0], [1], [0, 0, 1, 1], [], []>} : vector<80x384xf32>, vector<384x128xf32>, vector<80x128xf32> -> vector<80x128xf32>
    %c0_404 = arith.constant 0 : index
    %c0_405 = arith.constant 0 : index
    %880 = vector.load %arg9[%c0_404, %c0_405] : memref<1x128xf32, #tpu.memory_space<vmem>>, vector<1x128xf32>
    %881 = vector.broadcast %880 : vector<1x128xf32> to vector<80x128xf32>
    %882 = arith.addf %879, %881 : vector<80x128xf32>
    %cst_406 = arith.constant 0.000000e+00 : f32
    %883 = vector.broadcast %cst_406 : f32 to vector<80x128xf32>
    %884 = arith.minimumf %882, %883 : vector<80x128xf32>
    %885 = math.exp %884 : vector<80x128xf32>
    %cst_407 = arith.constant 1.000000e+00 : f32
    %886 = vector.broadcast %cst_407 : f32 to vector<80x128xf32>
    %887 = arith.subf %885, %886 : vector<80x128xf32>
    %cst_408 = arith.constant 1.67326319 : f32
    %888 = vector.broadcast %cst_408 : f32 to vector<80x128xf32>
    %889 = arith.mulf %888, %887 : vector<80x128xf32>
    %cst_409 = arith.constant 0.000000e+00 : f32
    %890 = vector.broadcast %cst_409 : f32 to vector<80x128xf32>
    %891 = arith.cmpf ogt, %882, %890 : vector<80x128xf32>
    %892 = arith.select %891, %882, %889 : vector<80x128xi1>, vector<80x128xf32>
    %cst_410 = arith.constant 1.05070102 : f32
    %893 = vector.broadcast %cst_410 : f32 to vector<80x128xf32>
    %894 = arith.mulf %893, %892 : vector<80x128xf32>
    %c0_411 = arith.constant 0 : index
    %c0_412 = arith.constant 0 : index
    %895 = vector.load %arg19[%c0_411, %c0_412] : memref<80x128xf32, #tpu.memory_space<vmem>>, vector<80x128xf32>
    tpu.vector_store %arg19[%c0_411, %c0_412], %894 {strides = array<i32>} : memref<80x128xf32, #tpu.memory_space<vmem>>, vector<80x128xf32>,
    %c0_413 = arith.constant 0 : index
    %c0_414 = arith.constant 0 : index
    %896 = vector.load %arg19[%c0_413, %c0_414] : memref<80x128xf32, #tpu.memory_space<vmem>>, vector<32x128xf32>
    %c0_415 = arith.constant 0 : index
    %c0_416 = arith.constant 0 : index
    %897 = vector.load %arg17[%c0_415, %c0_416] : memref<112x384xf32, #tpu.memory_space<vmem>>, vector<32x128xf32>
    tpu.vector_store %arg17[%c0_415, %c0_416], %896 {strides = array<i32>} : memref<112x384xf32, #tpu.memory_space<vmem>>, vector<32x128xf32>,
    %c24_417 = arith.constant 24 : index
    %c0_418 = arith.constant 0 : index
    %898 = vector.load %arg19[%c24_417, %c0_418] : memref<80x128xf32, #tpu.memory_space<vmem>>, vector<32x128xf32>
    %c0_419 = arith.constant 0 : index
    %c128_420 = arith.constant 128 : index
    %899 = vector.load %arg17[%c0_419, %c128_420] : memref<112x384xf32, #tpu.memory_space<vmem>>, vector<32x128xf32>
    tpu.vector_store %arg17[%c0_419, %c128_420], %898 {strides = array<i32>} : memref<112x384xf32, #tpu.memory_space<vmem>>, vector<32x128xf32>,
    %c48_421 = arith.constant 48 : index
    %c0_422 = arith.constant 0 : index
    %900 = vector.load %arg19[%c48_421, %c0_422] : memref<80x128xf32, #tpu.memory_space<vmem>>, vector<32x128xf32>
    %c0_423 = arith.constant 0 : index
    %c256_424 = arith.constant 256 : index
    %901 = vector.load %arg17[%c0_423, %c256_424] : memref<112x384xf32, #tpu.memory_space<vmem>>, vector<32x128xf32>
    tpu.vector_store %arg17[%c0_423, %c256_424], %900 {strides = array<i32>} : memref<112x384xf32, #tpu.memory_space<vmem>>, vector<32x128xf32>,
    %c0_425 = arith.constant 0 : index
    %c0_426 = arith.constant 0 : index
    %902 = vector.load %arg17[%c0_425, %c0_426] : memref<112x384xf32, #tpu.memory_space<vmem>>, vector<32x384xf32>
    %c0_427 = arith.constant 0 : index
    %c0_428 = arith.constant 0 : index
    %903 = vector.load %arg10[%c0_427, %c0_428] : memref<384x128xf32, #tpu.memory_space<vmem>>, vector<384x128xf32>
    %cst_429 = arith.constant dense<0.000000e+00> : vector<32x128xf32>
    %904 = tpu.matmul %902, %903, %cst_429 {dimension_numbers = #tpu.dot_dimension_numbers<[1], [0], [0], [1], [0, 0, 1, 1], [], []>} : vector<32x384xf32>, vector<384x128xf32>, vector<32x128xf32> -> vector<32x128xf32>
    %c0_430 = arith.constant 0 : index
    %c0_431 = arith.constant 0 : index
    %905 = vector.load %arg11[%c0_430, %c0_431] : memref<1x128xf32, #tpu.memory_space<vmem>>, vector<1x128xf32>
    %906 = vector.broadcast %905 : vector<1x128xf32> to vector<32x128xf32>
    %907 = arith.addf %904, %906 : vector<32x128xf32>
    %cst_432 = arith.constant 0.000000e+00 : f32
    %908 = vector.broadcast %cst_432 : f32 to vector<32x128xf32>
    %909 = arith.minimumf %907, %908 : vector<32x128xf32>
    %910 = math.exp %909 : vector<32x128xf32>
    %cst_433 = arith.constant 1.000000e+00 : f32
    %911 = vector.broadcast %cst_433 : f32 to vector<32x128xf32>
    %912 = arith.subf %910, %911 : vector<32x128xf32>
    %cst_434 = arith.constant 1.67326319 : f32
    %913 = vector.broadcast %cst_434 : f32 to vector<32x128xf32>
    %914 = arith.mulf %913, %912 : vector<32x128xf32>
    %cst_435 = arith.constant 0.000000e+00 : f32
    %915 = vector.broadcast %cst_435 : f32 to vector<32x128xf32>
    %916 = arith.cmpf ogt, %907, %915 : vector<32x128xf32>
    %917 = arith.select %916, %907, %914 : vector<32x128xi1>, vector<32x128xf32>
    %cst_436 = arith.constant 1.05070102 : f32
    %918 = vector.broadcast %cst_436 : f32 to vector<32x128xf32>
    %919 = arith.mulf %918, %917 : vector<32x128xf32>
    %c0_437 = arith.constant 0 : index
    %c0_438 = arith.constant 0 : index
    %920 = vector.load %arg15[%c0_437, %c0_438] : memref<32x128xf32, #tpu.memory_space<vmem>>, vector<32x128xf32>
    tpu.vector_store %arg15[%c0_437, %c0_438], %919 {strides = array<i32>} : memref<32x128xf32, #tpu.memory_space<vmem>>, vector<32x128xf32>,
    return
  }
}

</mosaic_0001>

<llo_original>
// kernel: tpu_custom_call.1
$region0: #{tpu_custom_call.1}
  #allocation0 [shape = 'u32[]', space=smem, size = 0x4, offset = 0x4, fixed_abs, tag = 'smem constant byte address 0x4 - core index']
  #allocation1 [shape = 'u32[144,128]{1,0:T(1,128)}', space=vmem, size = 0x12000, scoped, tag = 'internal scratch']
  #allocation2 [shape = 'f32[128,1024]{1,0:T(8,128)}', space=vmem, size = 0x80000, scoped, tag = 'scratch operand']
  #allocation3 [shape = 'f32[112,384]{1,0:T(8,128)}', space=vmem, size = 0x2a000, scoped, tag = 'scratch operand']
  #allocation4 [shape = 'f32[112,128]{1,0:T(8,128)}', space=vmem, size = 0xe000, scoped, tag = 'scratch operand']
  #allocation5 [shape = 'f32[80,128]{1,0:T(8,128)}', space=vmem, size = 0xa000, scoped, tag = 'scratch operand']
  %s0 = inlined_call_operand.vmem [shape: s32[128,1], index: 0, kind: input, shape index: {}]
  %s1 = inlined_call_operand.vmem [shape: s32[8,1], index: 1, kind: input, shape index: {}]
  %s2 = inlined_call_operand.vmem [shape: f32[128,128], index: 2, kind: input, shape index: {}]
  %s3 = inlined_call_operand.hbm [shape: f32[128,1024], index: 3, kind: input, shape index: {}]
  %s4 = inlined_call_operand.hbm [shape: f32[256,1024], index: 4, kind: input, shape index: {}]
  %s5 = inlined_call_operand.vmem [shape: f32[1,1024], index: 5, kind: input, shape index: {}]
  %s6 = inlined_call_operand.hbm [shape: f32[384,128], index: 6, kind: input, shape index: {}]
  %s7 = inlined_call_operand.vmem [shape: f32[1,128], index: 7, kind: input, shape index: {}]
  %s8 = inlined_call_operand.hbm [shape: f32[384,128], index: 8, kind: input, shape index: {}]
  %s9 = inlined_call_operand.vmem [shape: f32[1,128], index: 9, kind: input, shape index: {}]
  %s10 = inlined_call_operand.hbm [shape: f32[384,128], index: 10, kind: input, shape index: {}]
  %s11 = inlined_call_operand.vmem [shape: f32[1,128], index: 11, kind: input, shape index: {}]
  %s12 = inlined_call_operand.hbm [shape: f32[128,128], index: 12, kind: output, shape index: {0}]
  %s13 = inlined_call_operand.hbm [shape: f32[8,128], index: 13, kind: output, shape index: {1}]
  %s14 = inlined_call_operand.hbm [shape: f32[8,128], index: 14, kind: output, shape index: {2}]
  %s15 = inlined_call_operand.hbm [shape: f32[32,128], index: 15, kind: output, shape index: {3}]
  %16 = xla_tuple %s12, %s13, %s14, %s15
  %s17 = sld [smem:[#allocation0]]
  $region102: #{tpu_custom_call.1} parent=0
    _
  %s19 = ssub.s32 1, %s17
  %s20 = scalar_select 0, %s19, %s17
  $region1: #{tpu_custom_call.1} parent=0
    #allocation6 [shape = 'u8[524288]{0}', space=vmem, size = 0x80000, scoped, tag = 'input window, operand 3, single buffered']
    #allocation7 [shape = 's32[1]{0}', space=sflag, size = 0x4, scoped, tag = 'scoped memory for tpu_custom_call.1']
    #allocation8 [shape = 's32[1]{0}', space=sflag, size = 0x4, scoped, tag = 'scoped memory for tpu_custom_call.1']
    #allocation9 [shape = 'u8[1048576]{0}', space=vmem, size = 0x100000, scoped, tag = 'input window, operand 4, single buffered']
    #allocation10 [shape = 's32[1]{0}', space=sflag, size = 0x4, scoped, tag = 'scoped memory for tpu_custom_call.1']
    #allocation11 [shape = 'u8[196608]{0}', space=vmem, size = 0x30000, scoped, tag = 'input window, operand 6, single buffered']
    #allocation12 [shape = 'u8[196608]{0}', space=vmem, size = 0x30000, scoped, tag = 'input window, operand 8, single buffered']
    #allocation13 [shape = 's32[1]{0}', space=sflag, size = 0x4, scoped, tag = 'scoped memory for tpu_custom_call.1']
    #allocation14 [shape = 'u8[196608]{0}', space=vmem, size = 0x30000, scoped, tag = 'input window, operand 10, single buffered']
    #allocation15 [shape = 'u8[65536]{0}', space=vmem, size = 0x10000, scoped, tag = 'output window, operand 0, single buffered']
    #allocation16 [shape = 'u8[4096]{0}', space=vmem, size = 0x1000, scoped, tag = 'output window, operand 1, single buffered']
    #allocation17 [shape = 's32[1]{0}', space=sflag, size = 0x4, scoped, tag = 'scoped memory for tpu_custom_call.1']
    #allocation18 [shape = 'u8[4096]{0}', space=vmem, size = 0x1000, scoped, tag = 'output window, operand 2, single buffered']
    #allocation19 [shape = 'u8[16384]{0}', space=vmem, size = 0x4000, scoped, tag = 'output window, operand 3, single buffered']
    #allocation20 [shape = 's32[1]{0}', space=sflag, size = 0x4, scoped, tag = 'scoped memory for tpu_custom_call.1']
    %21 = vsyncpa [#allocation7], 0
    %22 = vsyncpa [#allocation10], 0
    %23 = vsyncpa [#allocation13], 0
    %24 = vsyncpa [#allocation8], 0
    %25 = vsyncpa [#allocation17], 0
    %26 = vsyncpa [#allocation20], 0
    // Predicated region
    $region2: #{tpu_custom_call.1} parent=1 // pred_check
      _
    $region3: #{tpu_custom_call.1} parent=1 // pred_check_branch
      %28 = sbr.rel (0) target = $region5
    $region4: #{tpu_custom_call.1} parent=1 // pred_region
      _
    $region5: #{tpu_custom_call.1} parent=1 // pred_fallthru
      _
    // Predicated region
    $region6: #{tpu_custom_call.1} parent=1 // pred_check
      _
    $region7: #{tpu_custom_call.1} parent=1 // pred_check_branch
      %30 = sbr.rel (0) target = $region9
    $region8: #{tpu_custom_call.1} parent=1 // pred_region
      _
    $region9: #{tpu_custom_call.1} parent=1 // pred_fallthru
      _
    // Predicated region
    $region10: #{tpu_custom_call.1} parent=1 // pred_check
      _
    $region11: #{tpu_custom_call.1} parent=1 // pred_check_branch
      %32 = sbr.rel (0) target = $region13
    $region12: #{tpu_custom_call.1} parent=1 // pred_region
      _
    $region13: #{tpu_custom_call.1} parent=1 // pred_fallthru
      _
    // Predicated region
    $region14: #{tpu_custom_call.1} parent=1 // pred_check
      _
    $region15: #{tpu_custom_call.1} parent=1 // pred_check_branch
      %34 = sbr.rel (0) target = $region17
    $region16: #{tpu_custom_call.1} parent=1 // pred_region
      %s36 = ssub.s32 16384, 16384
      %37 = vsyncadd [#allocation7], %s36
      %s38 = sshll.u32 [#allocation6], 4
      %s39 = int_to_ptr.vmem [resolvable:$true] %s38
      %44 = dma.hbm_to_vmem [thread:$0]  %s3, 16384, %s39, [#allocation7], 1024, 1024, 64
    $region17: #{tpu_custom_call.1} parent=1 // pred_fallthru
      _
    // Predicated region
    $region18: #{tpu_custom_call.1} parent=1 // pred_check
      _
    $region19: #{tpu_custom_call.1} parent=1 // pred_check_branch
      %46 = sbr.rel (0) target = $region21
    $region20: #{tpu_custom_call.1} parent=1 // pred_region
      %s48 = ssub.s32 32768, 32768
      %49 = vsyncadd [#allocation10], %s48
      %s50 = sshll.u32 [#allocation9], 4
      %s51 = int_to_ptr.vmem [resolvable:$true] %s50
      %56 = dma.hbm_to_vmem [thread:$0]  %s4, 32768, %s51, [#allocation10], 1024, 1024, 64
    $region21: #{tpu_custom_call.1} parent=1 // pred_fallthru
      _
    // Predicated region
    $region22: #{tpu_custom_call.1} parent=1 // pred_check
      _
    $region23: #{tpu_custom_call.1} parent=1 // pred_check_branch
      %58 = sbr.rel (0) target = $region25
    $region24: #{tpu_custom_call.1} parent=1 // pred_region
      _
    $region25: #{tpu_custom_call.1} parent=1 // pred_fallthru
      _
    // Predicated region
    $region26: #{tpu_custom_call.1} parent=1 // pred_check
      _
    $region27: #{tpu_custom_call.1} parent=1 // pred_check_branch
      %60 = sbr.rel (0) target = $region29
    $region28: #{tpu_custom_call.1} parent=1 // pred_region
      %s62 = ssub.s32 6144, 6144
      %63 = vsyncadd [#allocation10], %s62
      %s64 = sshll.u32 [#allocation11], 4
      %s65 = int_to_ptr.vmem [resolvable:$true] %s64
      %70 = dma.hbm_to_vmem [thread:$0]  %s6, 6144, %s65, [#allocation10], 128, 128, 8
    $region29: #{tpu_custom_call.1} parent=1 // pred_fallthru
      _
    // Predicated region
    $region30: #{tpu_custom_call.1} parent=1 // pred_check
      _
    $region31: #{tpu_custom_call.1} parent=1 // pred_check_branch
      %72 = sbr.rel (0) target = $region33
    $region32: #{tpu_custom_call.1} parent=1 // pred_region
      _
    $region33: #{tpu_custom_call.1} parent=1 // pred_fallthru
      _
    // Predicated region
    $region34: #{tpu_custom_call.1} parent=1 // pred_check
      _
    $region35: #{tpu_custom_call.1} parent=1 // pred_check_branch
      %74 = sbr.rel (0) target = $region37
    $region36: #{tpu_custom_call.1} parent=1 // pred_region
      %s76 = ssub.s32 6144, 6144
      %77 = vsyncadd [#allocation13], %s76
      %s78 = sshll.u32 [#allocation12], 4
      %s79 = int_to_ptr.vmem [resolvable:$true] %s78
      %84 = dma.hbm_to_vmem [thread:$0]  %s8, 6144, %s79, [#allocation13], 128, 128, 8
    $region37: #{tpu_custom_call.1} parent=1 // pred_fallthru
      _
    // Predicated region
    $region38: #{tpu_custom_call.1} parent=1 // pred_check
      _
    $region39: #{tpu_custom_call.1} parent=1 // pred_check_branch
      %86 = sbr.rel (0) target = $region41
    $region40: #{tpu_custom_call.1} parent=1 // pred_region
      _
    $region41: #{tpu_custom_call.1} parent=1 // pred_fallthru
      _
    // Predicated region
    $region42: #{tpu_custom_call.1} parent=1 // pred_check
      _
    $region43: #{tpu_custom_call.1} parent=1 // pred_check_branch
      %88 = sbr.rel (0) target = $region45
    $region44: #{tpu_custom_call.1} parent=1 // pred_region
      %s90 = ssub.s32 6144, 6144
      %91 = vsyncadd [#allocation13], %s90
      %s92 = sshll.u32 [#allocation14], 4
      %s93 = int_to_ptr.vmem [resolvable:$true] %s92
      %98 = dma.hbm_to_vmem [thread:$0]  %s10, 6144, %s93, [#allocation13], 128, 128, 8
    $region45: #{tpu_custom_call.1} parent=1 // pred_fallthru
      _
    // Predicated region
    $region46: #{tpu_custom_call.1} parent=1 // pred_check
      _
    $region47: #{tpu_custom_call.1} parent=1 // pred_check_branch
      %100 = sbr.rel (0) target = $region49
    $region48: #{tpu_custom_call.1} parent=1 // pred_region
      _
    $region49: #{tpu_custom_call.1} parent=1 // pred_fallthru
      _
    // Predicated region
    $region50: #{tpu_custom_call.1} parent=1 // pred_check
      _
    $region51: #{tpu_custom_call.1} parent=1 // pred_check_branch
      %102 = sbr.rel (0) target = $region53
    $region52: #{tpu_custom_call.1} parent=1 // pred_region
      %103 = dma.done [#allocation7], 16384
    $region53: #{tpu_custom_call.1} parent=1 // pred_fallthru
      _
    // Predicated region
    $region54: #{tpu_custom_call.1} parent=1 // pred_check
      _
    $region55: #{tpu_custom_call.1} parent=1 // pred_check_branch
      %105 = sbr.rel (0) target = $region57
    $region56: #{tpu_custom_call.1} parent=1 // pred_region
      %106 = dma.done [#allocation10], 32768
    $region57: #{tpu_custom_call.1} parent=1 // pred_fallthru
      _
    // Predicated region
    $region58: #{tpu_custom_call.1} parent=1 // pred_check
      _
    $region59: #{tpu_custom_call.1} parent=1 // pred_check_branch
      %108 = sbr.rel (0) target = $region61
    $region60: #{tpu_custom_call.1} parent=1 // pred_region
      %109 = dma.done [#allocation10], 6144
    $region61: #{tpu_custom_call.1} parent=1 // pred_fallthru
      _
    // Predicated region
    $region62: #{tpu_custom_call.1} parent=1 // pred_check
      _
    $region63: #{tpu_custom_call.1} parent=1 // pred_check_branch
      %111 = sbr.rel (0) target = $region65
    $region64: #{tpu_custom_call.1} parent=1 // pred_region
      %112 = dma.done [#allocation13], 6144
    $region65: #{tpu_custom_call.1} parent=1 // pred_fallthru
      _
    // Predicated region
    $region66: #{tpu_custom_call.1} parent=1 // pred_check
      _
    $region67: #{tpu_custom_call.1} parent=1 // pred_check_branch
      %114 = sbr.rel (0) target = $region69
    $region68: #{tpu_custom_call.1} parent=1 // pred_region
      %115 = dma.done [#allocation13], 6144
    $region69: #{tpu_custom_call.1} parent=1 // pred_fallthru
      _
    %v116 = vld [vmem:[%s0] sm:$0xff]
    %v117 = vld [vmem:[%s0 + $0x8] sm:$0xff]
    %v118 = vld [vmem:[%s0 + $0x10] sm:$0xff]
    %v119 = vld [vmem:[%s0 + $0x18] sm:$0xff]
    %v120 = vld [vmem:[%s0 + $0x20] sm:$0xff]
    %v121 = vld [vmem:[%s0 + $0x28] sm:$0xff]
    %v122 = vld [vmem:[%s0 + $0x30] sm:$0xff]
    %v123 = vld [vmem:[%s0 + $0x38] sm:$0xff]
    %v124 = vld [vmem:[%s0 + $0x40] sm:$0xff]
    %v125 = vld [vmem:[%s0 + $0x48] sm:$0xff]
    %v126 = vld [vmem:[%s0 + $0x50] sm:$0xff]
    %v127 = vld [vmem:[%s0 + $0x58] sm:$0xff]
    %v128 = vld [vmem:[%s0 + $0x60] sm:$0xff]
    %v129 = vld [vmem:[%s0 + $0x68] sm:$0xff]
    %v130 = vld [vmem:[%s0 + $0x70] sm:$0xff]
    %v131 = vld [vmem:[%s0 + $0x78] sm:$0xff]
    %v132 = vlaneseq
    %v133 = vand.u32 %v132, 127
    %134 = vset.pattern.permute.xlu0 0
    %135 = vperm.xlu0 %134, %v116
    %v136 = vpop.permute.xlu0 %135
    %137 = vset.pattern.permute.xlu0 0
    %138 = vperm.xlu0 %137, %v117
    %v139 = vpop.permute.xlu0 %138
    %140 = vset.pattern.permute.xlu0 0
    %141 = vperm.xlu0 %140, %v118
    %v142 = vpop.permute.xlu0 %141
    %143 = vset.pattern.permute.xlu0 0
    %144 = vperm.xlu0 %143, %v119
    %v145 = vpop.permute.xlu0 %144
    %146 = vset.pattern.permute.xlu0 0
    %147 = vperm.xlu0 %146, %v120
    %v148 = vpop.permute.xlu0 %147
    %149 = vset.pattern.permute.xlu0 0
    %150 = vperm.xlu0 %149, %v121
    %v151 = vpop.permute.xlu0 %150
    %152 = vset.pattern.permute.xlu0 0
    %153 = vperm.xlu0 %152, %v122
    %v154 = vpop.permute.xlu0 %153
    %155 = vset.pattern.permute.xlu0 0
    %156 = vperm.xlu0 %155, %v123
    %v157 = vpop.permute.xlu0 %156
    %158 = vset.pattern.permute.xlu0 0
    %159 = vperm.xlu0 %158, %v124
    %v160 = vpop.permute.xlu0 %159
    %161 = vset.pattern.permute.xlu0 0
    %162 = vperm.xlu0 %161, %v125
    %v163 = vpop.permute.xlu0 %162
    %164 = vset.pattern.permute.xlu0 0
    %165 = vperm.xlu0 %164, %v126
    %v166 = vpop.permute.xlu0 %165
    %167 = vset.pattern.permute.xlu0 0
    %168 = vperm.xlu0 %167, %v127
    %v169 = vpop.permute.xlu0 %168
    %170 = vset.pattern.permute.xlu0 0
    %171 = vperm.xlu0 %170, %v128
    %v172 = vpop.permute.xlu0 %171
    %173 = vset.pattern.permute.xlu0 0
    %174 = vperm.xlu0 %173, %v129
    %v175 = vpop.permute.xlu0 %174
    %176 = vset.pattern.permute.xlu0 0
    %177 = vperm.xlu0 %176, %v130
    %v178 = vpop.permute.xlu0 %177
    %179 = vset.pattern.permute.xlu0 0
    %180 = vperm.xlu0 %179, %v131
    %v181 = vpop.permute.xlu0 %180
    %vm182 = vcmp.eq.s32.totalorder %v136, %v133
    %vm183 = vcmp.eq.s32.totalorder %v139, %v133
    %vm184 = vcmp.eq.s32.totalorder %v142, %v133
    %vm185 = vcmp.eq.s32.totalorder %v145, %v133
    %vm186 = vcmp.eq.s32.totalorder %v148, %v133
    %vm187 = vcmp.eq.s32.totalorder %v151, %v133
    %vm188 = vcmp.eq.s32.totalorder %v154, %v133
    %vm189 = vcmp.eq.s32.totalorder %v157, %v133
    %vm190 = vcmp.eq.s32.totalorder %v160, %v133
    %vm191 = vcmp.eq.s32.totalorder %v163, %v133
    %vm192 = vcmp.eq.s32.totalorder %v166, %v133
    %vm193 = vcmp.eq.s32.totalorder %v169, %v133
    %vm194 = vcmp.eq.s32.totalorder %v172, %v133
    %vm195 = vcmp.eq.s32.totalorder %v175, %v133
    %vm196 = vcmp.eq.s32.totalorder %v178, %v133
    %vm197 = vcmp.eq.s32.totalorder %v181, %v133
    %v198 = vsel %vm182, 1, 0
    %v199 = vsel %vm183, 1, 0
    %v200 = vsel %vm184, 1, 0
    %v201 = vsel %vm185, 1, 0
    %v202 = vsel %vm186, 1, 0
    %v203 = vsel %vm187, 1, 0
    %v204 = vsel %vm188, 1, 0
    %v205 = vsel %vm189, 1, 0
    %v206 = vsel %vm190, 1, 0
    %v207 = vsel %vm191, 1, 0
    %v208 = vsel %vm192, 1, 0
    %v209 = vsel %vm193, 1, 0
    %v210 = vsel %vm194, 1, 0
    %v211 = vsel %vm195, 1, 0
    %v212 = vsel %vm196, 1, 0
    %v213 = vsel %vm197, 1, 0
    %v214 = vcvt.s32.f32 %v198
    %v215 = vcvt.s32.f32 %v199
    %v216 = vcvt.s32.f32 %v200
    %v217 = vcvt.s32.f32 %v201
    %v218 = vcvt.s32.f32 %v202
    %v219 = vcvt.s32.f32 %v203
    %v220 = vcvt.s32.f32 %v204
    %v221 = vcvt.s32.f32 %v205
    %v222 = vcvt.s32.f32 %v206
    %v223 = vcvt.s32.f32 %v207
    %v224 = vcvt.s32.f32 %v208
    %v225 = vcvt.s32.f32 %v209
    %v226 = vcvt.s32.f32 %v210
    %v227 = vcvt.s32.f32 %v211
    %v228 = vcvt.s32.f32 %v212
    %v229 = vcvt.s32.f32 %v213
    %v230 = vld [vmem:[%s2] sm:$0xff]
    %v231 = vld [vmem:[%s2 + $0x8] sm:$0xff]
    %v232 = vld [vmem:[%s2 + $0x10] sm:$0xff]
    %v233 = vld [vmem:[%s2 + $0x18] sm:$0xff]
    %v234 = vld [vmem:[%s2 + $0x20] sm:$0xff]
    %v235 = vld [vmem:[%s2 + $0x28] sm:$0xff]
    %v236 = vld [vmem:[%s2 + $0x30] sm:$0xff]
    %v237 = vld [vmem:[%s2 + $0x38] sm:$0xff]
    %v238 = vld [vmem:[%s2 + $0x40] sm:$0xff]
    %v239 = vld [vmem:[%s2 + $0x48] sm:$0xff]
    %v240 = vld [vmem:[%s2 + $0x50] sm:$0xff]
    %v241 = vld [vmem:[%s2 + $0x58] sm:$0xff]
    %v242 = vld [vmem:[%s2 + $0x60] sm:$0xff]
    %v243 = vld [vmem:[%s2 + $0x68] sm:$0xff]
    %v244 = vld [vmem:[%s2 + $0x70] sm:$0xff]
    %v245 = vld [vmem:[%s2 + $0x78] sm:$0xff]
    %246 = vmatprep.subr.mxu0 0.0
    %247 = vmatpush1.msra.mxu0 %v230
    %248 = vmatprep.subr.mxu0 0.0
    %249 = vmatpush1.msra.mxu0 %v231
    %250 = vmatprep.subr.mxu0 0.0
    %251 = vmatpush1.msra.mxu0 %v232
    %252 = vmatprep.subr.mxu0 0.0
    %253 = vmatpush1.msra.mxu0 %v233
    %254 = vmatprep.subr.mxu0 0.0
    %255 = vmatpush1.msra.mxu0 %v234
    %256 = vmatprep.subr.mxu0 0.0
    %257 = vmatpush1.msra.mxu0 %v235
    %258 = vmatprep.subr.mxu0 0.0
    %259 = vmatpush1.msra.mxu0 %v236
    %260 = vmatprep.subr.mxu0 0.0
    %261 = vmatpush1.msra.mxu0 %v237
    %262 = vmatprep.subr.mxu0 0.0
    %263 = vmatpush1.msra.mxu0 %v238
    %264 = vmatprep.subr.mxu0 0.0
    %265 = vmatpush1.msra.mxu0 %v239
    %266 = vmatprep.subr.mxu0 0.0
    %267 = vmatpush1.msra.mxu0 %v240
    %268 = vmatprep.subr.mxu0 0.0
    %269 = vmatpush1.msra.mxu0 %v241
    %270 = vmatprep.subr.mxu0 0.0
    %271 = vmatpush1.msra.mxu0 %v242
    %272 = vmatprep.subr.mxu0 0.0
    %273 = vmatpush1.msra.mxu0 %v243
    %274 = vmatprep.subr.mxu0 0.0
    %275 = vmatpush1.msra.mxu0 %v244
    %276 = vmatprep.subr.mxu0 0.0
    %277 = vmatpush1.msra.mxu0 %v245
    %278 = vmatprep.subr.mxu0 0.0
    %279 = vmatpush1.msra.mxu0 0.0
    %280 = vmatprep.subr.mxu0 0.0
    %281 = vmatpush1.msra.mxu0 0.0
    %282 = vmatprep.subr.mxu0 0.0
    %283 = vmatpush1.msra.mxu0 0.0
    %284 = vmatprep.subr.mxu0 0.0
    %285 = vmatpush1.msra.mxu0 0.0
    %286 = vmatprep.subr.mxu0 0.0
    %287 = vmatpush1.msra.mxu0 0.0
    %288 = vmatprep.subr.mxu0 0.0
    %289 = vmatpush1.msra.mxu0 0.0
    %290 = vmatprep.subr.mxu0 0.0
    %291 = vmatpush1.msra.mxu0 0.0
    %292 = vmatprep.subr.mxu0 0.0
    %293 = vmatpush1.msra.mxu0 0.0
    %294 = vmatprep.subr.mxu0 0.0
    %295 = vmatpush1.msra.mxu0 0.0
    %296 = vmatprep.subr.mxu0 0.0
    %297 = vmatpush1.msra.mxu0 0.0
    %298 = vmatprep.subr.mxu0 0.0
    %299 = vmatpush1.msra.mxu0 0.0
    %300 = vmatprep.subr.mxu0 0.0
    %301 = vmatpush1.msra.mxu0 0.0
    %302 = vmatprep.subr.mxu0 0.0
    %303 = vmatpush1.msra.mxu0 0.0
    %304 = vmatprep.subr.mxu0 0.0
    %305 = vmatpush1.msra.mxu0 0.0
    %306 = vmatprep.subr.mxu0 0.0
    %307 = vmatpush1.msra.mxu0 0.0
    %308 = vmatprep.subr.mxu0 0.0
    %309 = vmatpush1.msra.mxu0 0.0
    %310 = vmatprep.mubr.f32.mxu0 0.0
    %311 = vmatmul.mubr.f32.gmra.mrb[0].mxu0 %v214
    %v312 = vpop.f32.mrb[0].mxu0
    %v313 = vadd.f32 0.0, %v312
    %v314 = vpop.f32.mrb[0].mxu0
    %315 = vmatprep.mubr.f32.mxu0 0.0
    %316 = vmatmul.mubr.f32.gmra.mrb[0].mxu0 %v215
    %v317 = vpop.f32.mrb[0].mxu0
    %v318 = vadd.f32 0.0, %v317
    %v319 = vpop.f32.mrb[0].mxu0
    %320 = vmatprep.mubr.f32.mxu0 0.0
    %321 = vmatmul.mubr.f32.gmra.mrb[0].mxu0 %v216
    %v322 = vpop.f32.mrb[0].mxu0
    %v323 = vadd.f32 0.0, %v322
    %v324 = vpop.f32.mrb[0].mxu0
    %325 = vmatprep.mubr.f32.mxu0 0.0
    %326 = vmatmul.mubr.f32.gmra.mrb[0].mxu0 %v217
    %v327 = vpop.f32.mrb[0].mxu0
    %v328 = vadd.f32 0.0, %v327
    %v329 = vpop.f32.mrb[0].mxu0
    %330 = vmatprep.mubr.f32.mxu0 0.0
    %331 = vmatmul.mubr.f32.gmra.mrb[0].mxu0 %v218
    %v332 = vpop.f32.mrb[0].mxu0
    %v333 = vadd.f32 0.0, %v332
    %v334 = vpop.f32.mrb[0].mxu0
    %335 = vmatprep.mubr.f32.mxu0 0.0
    %336 = vmatmul.mubr.f32.gmra.mrb[0].mxu0 %v219
    %v337 = vpop.f32.mrb[0].mxu0
    %v338 = vadd.f32 0.0, %v337
    %v339 = vpop.f32.mrb[0].mxu0
    %340 = vmatprep.mubr.f32.mxu0 0.0
    %341 = vmatmul.mubr.f32.gmra.mrb[0].mxu0 %v220
    %v342 = vpop.f32.mrb[0].mxu0
    %v343 = vadd.f32 0.0, %v342
    %v344 = vpop.f32.mrb[0].mxu0
    %345 = vmatprep.mubr.f32.mxu0 0.0
    %346 = vmatmul.mubr.f32.gmra.mrb[0].mxu0 %v221
    %v347 = vpop.f32.mrb[0].mxu0
    %v348 = vadd.f32 0.0, %v347
    %v349 = vpop.f32.mrb[0].mxu0
    %350 = vmatprep.mubr.f32.mxu0 0.0
    %351 = vmatmul.mubr.f32.gmra.mrb[0].mxu0 %v222
    %v352 = vpop.f32.mrb[0].mxu0
    %v353 = vadd.f32 0.0, %v352
    %v354 = vpop.f32.mrb[0].mxu0
    %355 = vmatprep.mubr.f32.mxu0 0.0
    %356 = vmatmul.mubr.f32.gmra.mrb[0].mxu0 %v223
    %v357 = vpop.f32.mrb[0].mxu0
    %v358 = vadd.f32 0.0, %v357
    %v359 = vpop.f32.mrb[0].mxu0
    %360 = vmatprep.mubr.f32.mxu0 0.0
    %361 = vmatmul.mubr.f32.gmra.mrb[0].mxu0 %v224
    %v362 = vpop.f32.mrb[0].mxu0
    %v363 = vadd.f32 0.0, %v362
    %v364 = vpop.f32.mrb[0].mxu0
    %365 = vmatprep.mubr.f32.mxu0 0.0
    %366 = vmatmul.mubr.f32.gmra.mrb[0].mxu0 %v225
    %v367 = vpop.f32.mrb[0].mxu0
    %v368 = vadd.f32 0.0, %v367
    %v369 = vpop.f32.mrb[0].mxu0
    %370 = vmatprep.mubr.f32.mxu0 0.0
    %371 = vmatmul.mubr.f32.gmra.mrb[0].mxu0 %v226
    %v372 = vpop.f32.mrb[0].mxu0
    %v373 = vadd.f32 0.0, %v372
    %v374 = vpop.f32.mrb[0].mxu0
    %375 = vmatprep.mubr.f32.mxu0 0.0
    %376 = vmatmul.mubr.f32.gmra.mrb[0].mxu0 %v227
    %v377 = vpop.f32.mrb[0].mxu0
    %v378 = vadd.f32 0.0, %v377
    %v379 = vpop.f32.mrb[0].mxu0
    %380 = vmatprep.mubr.f32.mxu0 0.0
    %381 = vmatmul.mubr.f32.gmra.mrb[0].mxu0 %v228
    %v382 = vpop.f32.mrb[0].mxu0
    %v383 = vadd.f32 0.0, %v382
    %v384 = vpop.f32.mrb[0].mxu0
    %385 = vmatprep.mubr.f32.mxu0 0.0
    %386 = vmatmul.mubr.f32.gmra.mrb[0].mxu0 %v229
    %v387 = vpop.f32.mrb[0].mxu0
    %v388 = vadd.f32 0.0, %v387
    %v389 = vpop.f32.mrb[0].mxu0
    %390 = vdwg.mxu0
    %v391 = vld [vmem:[#allocation6] sm:$0xff]
    %v392 = vld [vmem:[#allocation6 + $0x8] sm:$0xff]
    %v393 = vld [vmem:[#allocation6 + $0x10] sm:$0xff]
    %v394 = vld [vmem:[#allocation6 + $0x18] sm:$0xff]
    %v395 = vld [vmem:[#allocation6 + $0x20] sm:$0xff]
    %v396 = vld [vmem:[#allocation6 + $0x28] sm:$0xff]
    %v397 = vld [vmem:[#allocation6 + $0x30] sm:$0xff]
    %v398 = vld [vmem:[#allocation6 + $0x38] sm:$0xff]
    %v399 = vld [vmem:[#allocation6 + $0x40] sm:$0xff]
    %v400 = vld [vmem:[#allocation6 + $0x48] sm:$0xff]
    %v401 = vld [vmem:[#allocation6 + $0x50] sm:$0xff]
    %v402 = vld [vmem:[#allocation6 + $0x58] sm:$0xff]
    %v403 = vld [vmem:[#allocation6 + $0x60] sm:$0xff]
    %v404 = vld [vmem:[#allocation6 + $0x68] sm:$0xff]
    %v405 = vld [vmem:[#allocation6 + $0x70] sm:$0xff]
    %v406 = vld [vmem:[#allocation6 + $0x78] sm:$0xff]
    %v407 = vld [vmem:[#allocation6 + $0x80] sm:$0xff]
    %v408 = vld [vmem:[#allocation6 + $0x88] sm:$0xff]
    %v409 = vld [vmem:[#allocation6 + $0x90] sm:$0xff]
    %v410 = vld [vmem:[#allocation6 + $0x98] sm:$0xff]
    %v411 = vld [vmem:[#allocation6 + $0xa0] sm:$0xff]
    %v412 = vld [vmem:[#allocation6 + $0xa8] sm:$0xff]
    %v413 = vld [vmem:[#allocation6 + $0xb0] sm:$0xff]
    %v414 = vld [vmem:[#allocation6 + $0xb8] sm:$0xff]
    %v415 = vld [vmem:[#allocation6 + $0xc0] sm:$0xff]
    %v416 = vld [vmem:[#allocation6 + $0xc8] sm:$0xff]
    %v417 = vld [vmem:[#allocation6 + $0xd0] sm:$0xff]
    %v418 = vld [vmem:[#allocation6 + $0xd8] sm:$0xff]
    %v419 = vld [vmem:[#allocation6 + $0xe0] sm:$0xff]
    %v420 = vld [vmem:[#allocation6 + $0xe8] sm:$0xff]
    %v421 = vld [vmem:[#allocation6 + $0xf0] sm:$0xff]
    %v422 = vld [vmem:[#allocation6 + $0xf8] sm:$0xff]
    %v423 = vld [vmem:[#allocation6 + $0x100] sm:$0xff]
    %v424 = vld [vmem:[#allocation6 + $0x108] sm:$0xff]
    %v425 = vld [vmem:[#allocation6 + $0x110] sm:$0xff]
    %v426 = vld [vmem:[#allocation6 + $0x118] sm:$0xff]
    %v427 = vld [vmem:[#allocation6 + $0x120] sm:$0xff]
    %v428 = vld [vmem:[#allocation6 + $0x128] sm:$0xff]
    %v429 = vld [vmem:[#allocation6 + $0x130] sm:$0xff]
    %v430 = vld [vmem:[#allocation6 + $0x138] sm:$0xff]
    %v431 = vld [vmem:[#allocation6 + $0x140] sm:$0xff]
    %v432 = vld [vmem:[#allocation6 + $0x148] sm:$0xff]
    %v433 = vld [vmem:[#allocation6 + $0x150] sm:$0xff]
    %v434 = vld [vmem:[#allocation6 + $0x158] sm:$0xff]
    %v435 = vld [vmem:[#allocation6 + $0x160] sm:$0xff]
    %v436 = vld [vmem:[#allocation6 + $0x168] sm:$0xff]
    %v437 = vld [vmem:[#allocation6 + $0x170] sm:$0xff]
    %v438 = vld [vmem:[#allocation6 + $0x178] sm:$0xff]
    %v439 = vld [vmem:[#allocation6 + $0x180] sm:$0xff]
    %v440 = vld [vmem:[#allocation6 + $0x188] sm:$0xff]
    %v441 = vld [vmem:[#allocation6 + $0x190] sm:$0xff]
    %v442 = vld [vmem:[#allocation6 + $0x198] sm:$0xff]
    %v443 = vld [vmem:[#allocation6 + $0x1a0] sm:$0xff]
    %v444 = vld [vmem:[#allocation6 + $0x1a8] sm:$0xff]
    %v445 = vld [vmem:[#allocation6 + $0x1b0] sm:$0xff]
    %v446 = vld [vmem:[#allocation6 + $0x1b8] sm:$0xff]
    %v447 = vld [vmem:[#allocation6 + $0x1c0] sm:$0xff]
    %v448 = vld [vmem:[#allocation6 + $0x1c8] sm:$0xff]
    %v449 = vld [vmem:[#allocation6 + $0x1d0] sm:$0xff]
    %v450 = vld [vmem:[#allocation6 + $0x1d8] sm:$0xff]
    %v451 = vld [vmem:[#allocation6 + $0x1e0] sm:$0xff]
    %v452 = vld [vmem:[#allocation6 + $0x1e8] sm:$0xff]
    %v453 = vld [vmem:[#allocation6 + $0x1f0] sm:$0xff]
    %v454 = vld [vmem:[#allocation6 + $0x1f8] sm:$0xff]
    %v455 = vld [vmem:[#allocation6 + $0x200] sm:$0xff]
    %v456 = vld [vmem:[#allocation6 + $0x208] sm:$0xff]
    %v457 = vld [vmem:[#allocation6 + $0x210] sm:$0xff]
    %v458 = vld [vmem:[#allocation6 + $0x218] sm:$0xff]
    %v459 = vld [vmem:[#allocation6 + $0x220] sm:$0xff]
    %v460 = vld [vmem:[#allocation6 + $0x228] sm:$0xff]
    %v461 = vld [vmem:[#allocation6 + $0x230] sm:$0xff]
    %v462 = vld [vmem:[#allocation6 + $0x238] sm:$0xff]
    %v463 = vld [vmem:[#allocation6 + $0x240] sm:$0xff]
    %v464 = vld [vmem:[#allocation6 + $0x248] sm:$0xff]
    %v465 = vld [vmem:[#allocation6 + $0x250] sm:$0xff]
    %v466 = vld [vmem:[#allocation6 + $0x258] sm:$0xff]
    %v467 = vld [vmem:[#allocation6 + $0x260] sm:$0xff]
    %v468 = vld [vmem:[#allocation6 + $0x268] sm:$0xff]
    %v469 = vld [vmem:[#allocation6 + $0x270] sm:$0xff]
    %v470 = vld [vmem:[#allocation6 + $0x278] sm:$0xff]
    %v471 = vld [vmem:[#allocation6 + $0x280] sm:$0xff]
    %v472 = vld [vmem:[#allocation6 + $0x288] sm:$0xff]
    %v473 = vld [vmem:[#allocation6 + $0x290] sm:$0xff]
    %v474 = vld [vmem:[#allocation6 + $0x298] sm:$0xff]
    %v475 = vld [vmem:[#allocation6 + $0x2a0] sm:$0xff]
    %v476 = vld [vmem:[#allocation6 + $0x2a8] sm:$0xff]
    %v477 = vld [vmem:[#allocation6 + $0x2b0] sm:$0xff]
    %v478 = vld [vmem:[#allocation6 + $0x2b8] sm:$0xff]
    %v479 = vld [vmem:[#allocation6 + $0x2c0] sm:$0xff]
    %v480 = vld [vmem:[#allocation6 + $0x2c8] sm:$0xff]
    %v481 = vld [vmem:[#allocation6 + $0x2d0] sm:$0xff]
    %v482 = vld [vmem:[#allocation6 + $0x2d8] sm:$0xff]
    %v483 = vld [vmem:[#allocation6 + $0x2e0] sm:$0xff]
    %v484 = vld [vmem:[#allocation6 + $0x2e8] sm:$0xff]
    %v485 = vld [vmem:[#allocation6 + $0x2f0] sm:$0xff]
    %v486 = vld [vmem:[#allocation6 + $0x2f8] sm:$0xff]
    %v487 = vld [vmem:[#allocation6 + $0x300] sm:$0xff]
    %v488 = vld [vmem:[#allocation6 + $0x308] sm:$0xff]
    %v489 = vld [vmem:[#allocation6 + $0x310] sm:$0xff]
    %v490 = vld [vmem:[#allocation6 + $0x318] sm:$0xff]
    %v491 = vld [vmem:[#allocation6 + $0x320] sm:$0xff]
    %v492 = vld [vmem:[#allocation6 + $0x328] sm:$0xff]
    %v493 = vld [vmem:[#allocation6 + $0x330] sm:$0xff]
    %v494 = vld [vmem:[#allocation6 + $0x338] sm:$0xff]
    %v495 = vld [vmem:[#allocation6 + $0x340] sm:$0xff]
    %v496 = vld [vmem:[#allocation6 + $0x348] sm:$0xff]
    %v497 = vld [vmem:[#allocation6 + $0x350] sm:$0xff]
    %v498 = vld [vmem:[#allocation6 + $0x358] sm:$0xff]
    %v499 = vld [vmem:[#allocation6 + $0x360] sm:$0xff]
    %v500 = vld [vmem:[#allocation6 + $0x368] sm:$0xff]
    %v501 = vld [vmem:[#allocation6 + $0x370] sm:$0xff]
    %v502 = vld [vmem:[#allocation6 + $0x378] sm:$0xff]
    %v503 = vld [vmem:[#allocation6 + $0x380] sm:$0xff]
    %v504 = vld [vmem:[#allocation6 + $0x388] sm:$0xff]
    %v505 = vld [vmem:[#allocation6 + $0x390] sm:$0xff]
    %v506 = vld [vmem:[#allocation6 + $0x398] sm:$0xff]
    %v507 = vld [vmem:[#allocation6 + $0x3a0] sm:$0xff]
    %v508 = vld [vmem:[#allocation6 + $0x3a8] sm:$0xff]
    %v509 = vld [vmem:[#allocation6 + $0x3b0] sm:$0xff]
    %v510 = vld [vmem:[#allocation6 + $0x3b8] sm:$0xff]
    %v511 = vld [vmem:[#allocation6 + $0x3c0] sm:$0xff]
    %v512 = vld [vmem:[#allocation6 + $0x3c8] sm:$0xff]
    %v513 = vld [vmem:[#allocation6 + $0x3d0] sm:$0xff]
    %v514 = vld [vmem:[#allocation6 + $0x3d8] sm:$0xff]
    %v515 = vld [vmem:[#allocation6 + $0x3e0] sm:$0xff]
    %v516 = vld [vmem:[#allocation6 + $0x3e8] sm:$0xff]
    %v517 = vld [vmem:[#allocation6 + $0x3f0] sm:$0xff]
    %v518 = vld [vmem:[#allocation6 + $0x3f8] sm:$0xff]
    %v519 = vld [vmem:[%s5] sm:$0xff]
    %v521 = vlaneseq
    %v522 = vshrl.u32 %v521, 7
    %v523 = vsub.s32 0, %v522
    %v524 = vrot.slane %v519, %v523
    %v525 = vlaneseq
    %v526 = vshrl.u32 %v525, 7
    %v527 = vsub.s32 1, %v526
    %v528 = vrot.slane %v519, %v527
    %v529 = vlaneseq
    %v530 = vshrl.u32 %v529, 7
    %v531 = vsub.s32 2, %v530
    %v532 = vrot.slane %v519, %v531
    %v533 = vlaneseq
    %v534 = vshrl.u32 %v533, 7
    %v535 = vsub.s32 3, %v534
    %v536 = vrot.slane %v519, %v535
    %v537 = vlaneseq
    %v538 = vshrl.u32 %v537, 7
    %v539 = vsub.s32 4, %v538
    %v540 = vrot.slane %v519, %v539
    %v541 = vlaneseq
    %v542 = vshrl.u32 %v541, 7
    %v543 = vsub.s32 5, %v542
    %v544 = vrot.slane %v519, %v543
    %v545 = vlaneseq
    %v546 = vshrl.u32 %v545, 7
    %v547 = vsub.s32 6, %v546
    %v548 = vrot.slane %v519, %v547
    %v549 = vlaneseq
    %v550 = vshrl.u32 %v549, 7
    %v551 = vsub.s32 7, %v550
    %v552 = vrot.slane %v519, %v551
    %561 = vmatprep.subr.mxu0 %v392
    %562 = vmatpush1.msra.mxu0 %v391
    %563 = vmatprep.subr.mxu0 %v400
    %564 = vmatpush1.msra.mxu0 %v399
    %565 = vmatprep.subr.mxu0 %v408
    %566 = vmatpush1.msra.mxu0 %v407
    %567 = vmatprep.subr.mxu0 %v416
    %568 = vmatpush1.msra.mxu0 %v415
    %569 = vmatprep.subr.mxu0 %v424
    %570 = vmatpush1.msra.mxu0 %v423
    %571 = vmatprep.subr.mxu0 %v432
    %572 = vmatpush1.msra.mxu0 %v431
    %573 = vmatprep.subr.mxu0 %v440
    %574 = vmatpush1.msra.mxu0 %v439
    %575 = vmatprep.subr.mxu0 %v448
    %576 = vmatpush1.msra.mxu0 %v447
    %577 = vmatprep.subr.mxu0 %v456
    %578 = vmatpush1.msra.mxu0 %v455
    %579 = vmatprep.subr.mxu0 %v464
    %580 = vmatpush1.msra.mxu0 %v463
    %581 = vmatprep.subr.mxu0 %v472
    %582 = vmatpush1.msra.mxu0 %v471
    %583 = vmatprep.subr.mxu0 %v480
    %584 = vmatpush1.msra.mxu0 %v479
    %585 = vmatprep.subr.mxu0 %v488
    %586 = vmatpush1.msra.mxu0 %v487
    %587 = vmatprep.subr.mxu0 %v496
    %588 = vmatpush1.msra.mxu0 %v495
    %589 = vmatprep.subr.mxu0 %v504
    %590 = vmatpush1.msra.mxu0 %v503
    %591 = vmatprep.subr.mxu0 %v512
    %592 = vmatpush1.msra.mxu0 %v511
    %593 = vmatprep.subr.mxu0 0.0
    %594 = vmatpush1.msra.mxu0 0.0
    %595 = vmatprep.subr.mxu0 0.0
    %596 = vmatpush1.msra.mxu0 0.0
    %597 = vmatprep.subr.mxu0 0.0
    %598 = vmatpush1.msra.mxu0 0.0
    %599 = vmatprep.subr.mxu0 0.0
    %600 = vmatpush1.msra.mxu0 0.0
    %601 = vmatprep.subr.mxu0 0.0
    %602 = vmatpush1.msra.mxu0 0.0
    %603 = vmatprep.subr.mxu0 0.0
    %604 = vmatpush1.msra.mxu0 0.0
    %605 = vmatprep.subr.mxu0 0.0
    %606 = vmatpush1.msra.mxu0 0.0
    %607 = vmatprep.subr.mxu0 0.0
    %608 = vmatpush1.msra.mxu0 0.0
    %609 = vmatprep.subr.mxu0 0.0
    %610 = vmatpush1.msra.mxu0 0.0
    %611 = vmatprep.subr.mxu0 0.0
    %612 = vmatpush1.msra.mxu0 0.0
    %613 = vmatprep.subr.mxu0 0.0
    %614 = vmatpush1.msra.mxu0 0.0
    %615 = vmatprep.subr.mxu0 0.0
    %616 = vmatpush1.msra.mxu0 0.0
    %617 = vmatprep.subr.mxu0 0.0
    %618 = vmatpush1.msra.mxu0 0.0
    %619 = vmatprep.subr.mxu0 0.0
    %620 = vmatpush1.msra.mxu0 0.0
    %621 = vmatprep.subr.mxu0 0.0
    %622 = vmatpush1.msra.mxu0 0.0
    %623 = vmatprep.subr.mxu0 0.0
    %624 = vmatpush1.msra.mxu0 0.0
    %625 = vmatprep.mubr.f32.mxu0 0.0
    %626 = vmatmul.mubr.f32.gmra.mrb[0].mxu0 %v313
    %v627 = vpop.f32.mrb[0].mxu0
    %v628 = vadd.f32 %v524, %v627
    %v629 = vpop.f32.mrb[0].mxu0
    %v630 = vadd.f32 %v528, %v629
    %631 = vmatprep.mubr.f32.mxu0 0.0
    %632 = vmatmul.mubr.f32.gmra.mrb[0].mxu0 %v318
    %v633 = vpop.f32.mrb[0].mxu0
    %v634 = vadd.f32 %v524, %v633
    %v635 = vpop.f32.mrb[0].mxu0
    %v636 = vadd.f32 %v528, %v635
    %637 = vmatprep.mubr.f32.mxu0 0.0
    %638 = vmatmul.mubr.f32.gmra.mrb[0].mxu0 %v323
    %v639 = vpop.f32.mrb[0].mxu0
    %v640 = vadd.f32 %v524, %v639
    %v641 = vpop.f32.mrb[0].mxu0
    %v642 = vadd.f32 %v528, %v641
    %643 = vmatprep.mubr.f32.mxu0 0.0
    %644 = vmatmul.mubr.f32.gmra.mrb[0].mxu0 %v328
    %v645 = vpop.f32.mrb[0].mxu0
    %v646 = vadd.f32 %v524, %v645
    %v647 = vpop.f32.mrb[0].mxu0
    %v648 = vadd.f32 %v528, %v647
    %649 = vmatprep.mubr.f32.mxu0 0.0
    %650 = vmatmul.mubr.f32.gmra.mrb[0].mxu0 %v333
    %v651 = vpop.f32.mrb[0].mxu0
    %v652 = vadd.f32 %v524, %v651
    %v653 = vpop.f32.mrb[0].mxu0
    %v654 = vadd.f32 %v528, %v653
    %655 = vmatprep.mubr.f32.mxu0 0.0
    %656 = vmatmul.mubr.f32.gmra.mrb[0].mxu0 %v338
    %v657 = vpop.f32.mrb[0].mxu0
    %v658 = vadd.f32 %v524, %v657
    %v659 = vpop.f32.mrb[0].mxu0
    %v660 = vadd.f32 %v528, %v659
    %661 = vmatprep.mubr.f32.mxu0 0.0
    %662 = vmatmul.mubr.f32.gmra.mrb[0].mxu0 %v343
    %v663 = vpop.f32.mrb[0].mxu0
    %v664 = vadd.f32 %v524, %v663
    %v665 = vpop.f32.mrb[0].mxu0
    %v666 = vadd.f32 %v528, %v665
    %667 = vmatprep.mubr.f32.mxu0 0.0
    %668 = vmatmul.mubr.f32.gmra.mrb[0].mxu0 %v348
    %v669 = vpop.f32.mrb[0].mxu0
    %v670 = vadd.f32 %v524, %v669
    %v671 = vpop.f32.mrb[0].mxu0
    %v672 = vadd.f32 %v528, %v671
    %673 = vmatprep.mubr.f32.mxu0 0.0
    %674 = vmatmul.mubr.f32.gmra.mrb[0].mxu0 %v353
    %v675 = vpop.f32.mrb[0].mxu0
    %v676 = vadd.f32 %v524, %v675
    %v677 = vpop.f32.mrb[0].mxu0
    %v678 = vadd.f32 %v528, %v677
    %679 = vmatprep.mubr.f32.mxu0 0.0
    %680 = vmatmul.mubr.f32.gmra.mrb[0].mxu0 %v358
    %v681 = vpop.f32.mrb[0].mxu0
    %v682 = vadd.f32 %v524, %v681
    %v683 = vpop.f32.mrb[0].mxu0
    %v684 = vadd.f32 %v528, %v683
    %685 = vmatprep.mubr.f32.mxu0 0.0
    %686 = vmatmul.mubr.f32.gmra.mrb[0].mxu0 %v363
    %v687 = vpop.f32.mrb[0].mxu0
    %v688 = vadd.f32 %v524, %v687
    %v689 = vpop.f32.mrb[0].mxu0
    %v690 = vadd.f32 %v528, %v689
    %691 = vmatprep.mubr.f32.mxu0 0.0
    %692 = vmatmul.mubr.f32.gmra.mrb[0].mxu0 %v368
    %v693 = vpop.f32.mrb[0].mxu0
    %v694 = vadd.f32 %v524, %v693
    %v695 = vpop.f32.mrb[0].mxu0
    %v696 = vadd.f32 %v528, %v695
    %697 = vmatprep.mubr.f32.mxu0 0.0
    %698 = vmatmul.mubr.f32.gmra.mrb[0].mxu0 %v373
    %v699 = vpop.f32.mrb[0].mxu0
    %v700 = vadd.f32 %v524, %v699
    %v701 = vpop.f32.mrb[0].mxu0
    %v702 = vadd.f32 %v528, %v701
    %703 = vmatprep.mubr.f32.mxu0 0.0
    %704 = vmatmul.mubr.f32.gmra.mrb[0].mxu0 %v378
    %v705 = vpop.f32.mrb[0].mxu0
    %v706 = vadd.f32 %v524, %v705
    %v707 = vpop.f32.mrb[0].mxu0
    %v708 = vadd.f32 %v528, %v707
    %709 = vmatprep.mubr.f32.mxu0 0.0
    %710 = vmatmul.mubr.f32.gmra.mrb[0].mxu0 %v383
    %v711 = vpop.f32.mrb[0].mxu0
    %v712 = vadd.f32 %v524, %v711
    %v713 = vpop.f32.mrb[0].mxu0
    %v714 = vadd.f32 %v528, %v713
    %715 = vmatprep.mubr.f32.mxu0 0.0
    %716 = vmatmul.mubr.f32.gmra.mrb[0].mxu0 %v388
    %v717 = vpop.f32.mrb[0].mxu0
    %v718 = vadd.f32 %v524, %v717
    %v719 = vpop.f32.mrb[0].mxu0
    %v720 = vadd.f32 %v528, %v719
    %721 = vdwg.mxu0
    %722 = vmatprep.subr.mxu0 %v394
    %723 = vmatpush1.msra.mxu0 %v393
    %724 = vmatprep.subr.mxu0 %v402
    %725 = vmatpush1.msra.mxu0 %v401
    %726 = vmatprep.subr.mxu0 %v410
    %727 = vmatpush1.msra.mxu0 %v409
    %728 = vmatprep.subr.mxu0 %v418
    %729 = vmatpush1.msra.mxu0 %v417
    %730 = vmatprep.subr.mxu0 %v426
    %731 = vmatpush1.msra.mxu0 %v425
    %732 = vmatprep.subr.mxu0 %v434
    %733 = vmatpush1.msra.mxu0 %v433
    %734 = vmatprep.subr.mxu0 %v442
    %735 = vmatpush1.msra.mxu0 %v441
    %736 = vmatprep.subr.mxu0 %v450
    %737 = vmatpush1.msra.mxu0 %v449
    %738 = vmatprep.subr.mxu0 %v458
    %739 = vmatpush1.msra.mxu0 %v457
    %740 = vmatprep.subr.mxu0 %v466
    %741 = vmatpush1.msra.mxu0 %v465
    %742 = vmatprep.subr.mxu0 %v474
    %743 = vmatpush1.msra.mxu0 %v473
    %744 = vmatprep.subr.mxu0 %v482
    %745 = vmatpush1.msra.mxu0 %v481
    %746 = vmatprep.subr.mxu0 %v490
    %747 = vmatpush1.msra.mxu0 %v489
    %748 = vmatprep.subr.mxu0 %v498
    %749 = vmatpush1.msra.mxu0 %v497
    %750 = vmatprep.subr.mxu0 %v506
    %751 = vmatpush1.msra.mxu0 %v505
    %752 = vmatprep.subr.mxu0 %v514
    %753 = vmatpush1.msra.mxu0 %v513
    %754 = vmatprep.subr.mxu0 0.0
    %755 = vmatpush1.msra.mxu0 0.0
    %756 = vmatprep.subr.mxu0 0.0
    %757 = vmatpush1.msra.mxu0 0.0
    %758 = vmatprep.subr.mxu0 0.0
    %759 = vmatpush1.msra.mxu0 0.0
    %760 = vmatprep.subr.mxu0 0.0
    %761 = vmatpush1.msra.mxu0 0.0
    %762 = vmatprep.subr.mxu0 0.0
    %763 = vmatpush1.msra.mxu0 0.0
    %764 = vmatprep.subr.mxu0 0.0
    %765 = vmatpush1.msra.mxu0 0.0
    %766 = vmatprep.subr.mxu0 0.0
    %767 = vmatpush1.msra.mxu0 0.0
    %768 = vmatprep.subr.mxu0 0.0
    %769 = vmatpush1.msra.mxu0 0.0
    %770 = vmatprep.subr.mxu0 0.0
    %771 = vmatpush1.msra.mxu0 0.0
    %772 = vmatprep.subr.mxu0 0.0
    %773 = vmatpush1.msra.mxu0 0.0
    %774 = vmatprep.subr.mxu0 0.0
    %775 = vmatpush1.msra.mxu0 0.0
    %776 = vmatprep.subr.mxu0 0.0
    %777 = vmatpush1.msra.mxu0 0.0
    %778 = vmatprep.subr.mxu0 0.0
    %779 = vmatpush1.msra.mxu0 0.0
    %780 = vmatprep.subr.mxu0 0.0
    %781 = vmatpush1.msra.mxu0 0.0
    %782 = vmatprep.subr.mxu0 0.0
    %783 = vmatpush1.msra.mxu0 0.0
    %784 = vmatprep.subr.mxu0 0.0
    %785 = vmatpush1.msra.mxu0 0.0
    %786 = vmatprep.mubr.f32.mxu0 0.0
    %787 = vmatmul.mubr.f32.gmra.mrb[0].mxu0 %v313
    %v788 = vpop.f32.mrb[0].mxu0
    %v789 = vadd.f32 %v532, %v788
    %v790 = vpop.f32.mrb[0].mxu0
    %v791 = vadd.f32 %v536, %v790
    %792 = vmatprep.mubr.f32.mxu0 0.0
    %793 = vmatmul.mubr.f32.gmra.mrb[0].mxu0 %v318
    %v794 = vpop.f32.mrb[0].mxu0
    %v795 = vadd.f32 %v532, %v794
    %v796 = vpop.f32.mrb[0].mxu0
    %v797 = vadd.f32 %v536, %v796
    %798 = vmatprep.mubr.f32.mxu0 0.0
    %799 = vmatmul.mubr.f32.gmra.mrb[0].mxu0 %v323
    %v800 = vpop.f32.mrb[0].mxu0
    %v801 = vadd.f32 %v532, %v800
    %v802 = vpop.f32.mrb[0].mxu0
    %v803 = vadd.f32 %v536, %v802
    %804 = vmatprep.mubr.f32.mxu0 0.0
    %805 = vmatmul.mubr.f32.gmra.mrb[0].mxu0 %v328
    %v806 = vpop.f32.mrb[0].mxu0
    %v807 = vadd.f32 %v532, %v806
    %v808 = vpop.f32.mrb[0].mxu0
    %v809 = vadd.f32 %v536, %v808
    %810 = vmatprep.mubr.f32.mxu0 0.0
    %811 = vmatmul.mubr.f32.gmra.mrb[0].mxu0 %v333
    %v812 = vpop.f32.mrb[0].mxu0
    %v813 = vadd.f32 %v532, %v812
    %v814 = vpop.f32.mrb[0].mxu0
    %v815 = vadd.f32 %v536, %v814
    %816 = vmatprep.mubr.f32.mxu0 0.0
    %817 = vmatmul.mubr.f32.gmra.mrb[0].mxu0 %v338
    %v818 = vpop.f32.mrb[0].mxu0
    %v819 = vadd.f32 %v532, %v818
    %v820 = vpop.f32.mrb[0].mxu0
    %v821 = vadd.f32 %v536, %v820
    %822 = vmatprep.mubr.f32.mxu0 0.0
    %823 = vmatmul.mubr.f32.gmra.mrb[0].mxu0 %v343
    %v824 = vpop.f32.mrb[0].mxu0
    %v825 = vadd.f32 %v532, %v824
    %v826 = vpop.f32.mrb[0].mxu0
    %v827 = vadd.f32 %v536, %v826
    %828 = vmatprep.mubr.f32.mxu0 0.0
    %829 = vmatmul.mubr.f32.gmra.mrb[0].mxu0 %v348
    %v830 = vpop.f32.mrb[0].mxu0
    %v831 = vadd.f32 %v532, %v830
    %v832 = vpop.f32.mrb[0].mxu0
    %v833 = vadd.f32 %v536, %v832
    %834 = vmatprep.mubr.f32.mxu0 0.0
    %835 = vmatmul.mubr.f32.gmra.mrb[0].mxu0 %v353
    %v836 = vpop.f32.mrb[0].mxu0
    %v837 = vadd.f32 %v532, %v836
    %v838 = vpop.f32.mrb[0].mxu0
    %v839 = vadd.f32 %v536, %v838
    %840 = vmatprep.mubr.f32.mxu0 0.0
    %841 = vmatmul.mubr.f32.gmra.mrb[0].mxu0 %v358
    %v842 = vpop.f32.mrb[0].mxu0
    %v843 = vadd.f32 %v532, %v842
    %v844 = vpop.f32.mrb[0].mxu0
    %v845 = vadd.f32 %v536, %v844
    %846 = vmatprep.mubr.f32.mxu0 0.0
    %847 = vmatmul.mubr.f32.gmra.mrb[0].mxu0 %v363
    %v848 = vpop.f32.mrb[0].mxu0
    %v849 = vadd.f32 %v532, %v848
    %v850 = vpop.f32.mrb[0].mxu0
    %v851 = vadd.f32 %v536, %v850
    %852 = vmatprep.mubr.f32.mxu0 0.0
    %853 = vmatmul.mubr.f32.gmra.mrb[0].mxu0 %v368
    %v854 = vpop.f32.mrb[0].mxu0
    %v855 = vadd.f32 %v532, %v854
    %v856 = vpop.f32.mrb[0].mxu0
    %v857 = vadd.f32 %v536, %v856
    %858 = vmatprep.mubr.f32.mxu0 0.0
    %859 = vmatmul.mubr.f32.gmra.mrb[0].mxu0 %v373
    %v860 = vpop.f32.mrb[0].mxu0
    %v861 = vadd.f32 %v532, %v860
    %v862 = vpop.f32.mrb[0].mxu0
    %v863 = vadd.f32 %v536, %v862
    %864 = vmatprep.mubr.f32.mxu0 0.0
    %865 = vmatmul.mubr.f32.gmra.mrb[0].mxu0 %v378
    %v866 = vpop.f32.mrb[0].mxu0
    %v867 = vadd.f32 %v532, %v866
    %v868 = vpop.f32.mrb[0].mxu0
    %v869 = vadd.f32 %v536, %v868
    %870 = vmatprep.mubr.f32.mxu0 0.0
    %871 = vmatmul.mubr.f32.gmra.mrb[0].mxu0 %v383
    %v872 = vpop.f32.mrb[0].mxu0
    %v873 = vadd.f32 %v532, %v872
    %v874 = vpop.f32.mrb[0].mxu0
    %v875 = vadd.f32 %v536, %v874
    %876 = vmatprep.mubr.f32.mxu0 0.0
    %877 = vmatmul.mubr.f32.gmra.mrb[0].mxu0 %v388
    %v878 = vpop.f32.mrb[0].mxu0
    %v879 = vadd.f32 %v532, %v878
    %v880 = vpop.f32.mrb[0].mxu0
    %v881 = vadd.f32 %v536, %v880
    %882 = vdwg.mxu0
    %883 = vmatprep.subr.mxu0 %v396
    %884 = vmatpush1.msra.mxu0 %v395
    %885 = vmatprep.subr.mxu0 %v404
    %886 = vmatpush1.msra.mxu0 %v403
    %887 = vmatprep.subr.mxu0 %v412
    %888 = vmatpush1.msra.mxu0 %v411
    %889 = vmatprep.subr.mxu0 %v420
    %890 = vmatpush1.msra.mxu0 %v419
    %891 = vmatprep.subr.mxu0 %v428
    %892 = vmatpush1.msra.mxu0 %v427
    %893 = vmatprep.subr.mxu0 %v436
    %894 = vmatpush1.msra.mxu0 %v435
    %895 = vmatprep.subr.mxu0 %v444
    %896 = vmatpush1.msra.mxu0 %v443
    %897 = vmatprep.subr.mxu0 %v452
    %898 = vmatpush1.msra.mxu0 %v451
    %899 = vmatprep.subr.mxu0 %v460
    %900 = vmatpush1.msra.mxu0 %v459
    %901 = vmatprep.subr.mxu0 %v468
    %902 = vmatpush1.msra.mxu0 %v467
    %903 = vmatprep.subr.mxu0 %v476
    %904 = vmatpush1.msra.mxu0 %v475
    %905 = vmatprep.subr.mxu0 %v484
    %906 = vmatpush1.msra.mxu0 %v483
    %907 = vmatprep.subr.mxu0 %v492
    %908 = vmatpush1.msra.mxu0 %v491
    %909 = vmatprep.subr.mxu0 %v500
    %910 = vmatpush1.msra.mxu0 %v499
    %911 = vmatprep.subr.mxu0 %v508
    %912 = vmatpush1.msra.mxu0 %v507
    %913 = vmatprep.subr.mxu0 %v516
    %914 = vmatpush1.msra.mxu0 %v515
    %915 = vmatprep.subr.mxu0 0.0
    %916 = vmatpush1.msra.mxu0 0.0
    %917 = vmatprep.subr.mxu0 0.0
    %918 = vmatpush1.msra.mxu0 0.0
    %919 = vmatprep.subr.mxu0 0.0
    %920 = vmatpush1.msra.mxu0 0.0
    %921 = vmatprep.subr.mxu0 0.0
    %922 = vmatpush1.msra.mxu0 0.0
    %923 = vmatprep.subr.mxu0 0.0
    %924 = vmatpush1.msra.mxu0 0.0
    %925 = vmatprep.subr.mxu0 0.0
    %926 = vmatpush1.msra.mxu0 0.0
    %927 = vmatprep.subr.mxu0 0.0
    %928 = vmatpush1.msra.mxu0 0.0
    %929 = vmatprep.subr.mxu0 0.0
    %930 = vmatpush1.msra.mxu0 0.0
    %931 = vmatprep.subr.mxu0 0.0
    %932 = vmatpush1.msra.mxu0 0.0
    %933 = vmatprep.subr.mxu0 0.0
    %934 = vmatpush1.msra.mxu0 0.0
    %935 = vmatprep.subr.mxu0 0.0
    %936 = vmatpush1.msra.mxu0 0.0
    %937 = vmatprep.subr.mxu0 0.0
    %938 = vmatpush1.msra.mxu0 0.0
    %939 = vmatprep.subr.mxu0 0.0
    %940 = vmatpush1.msra.mxu0 0.0
    %941 = vmatprep.subr.mxu0 0.0
    %942 = vmatpush1.msra.mxu0 0.0
    %943 = vmatprep.subr.mxu0 0.0
    %944 = vmatpush1.msra.mxu0 0.0
    %945 = vmatprep.subr.mxu0 0.0
    %946 = vmatpush1.msra.mxu0 0.0
    %947 = vmatprep.mubr.f32.mxu0 0.0
    %948 = vmatmul.mubr.f32.gmra.mrb[0].mxu0 %v313
    %v949 = vpop.f32.mrb[0].mxu0
    %v950 = vadd.f32 %v540, %v949
    %v951 = vpop.f32.mrb[0].mxu0
    %v952 = vadd.f32 %v544, %v951
    %953 = vmatprep.mubr.f32.mxu0 0.0
    %954 = vmatmul.mubr.f32.gmra.mrb[0].mxu0 %v318
    %v955 = vpop.f32.mrb[0].mxu0
    %v956 = vadd.f32 %v540, %v955
    %v957 = vpop.f32.mrb[0].mxu0
    %v958 = vadd.f32 %v544, %v957
    %959 = vmatprep.mubr.f32.mxu0 0.0
    %960 = vmatmul.mubr.f32.gmra.mrb[0].mxu0 %v323
    %v961 = vpop.f32.mrb[0].mxu0
    %v962 = vadd.f32 %v540, %v961
    %v963 = vpop.f32.mrb[0].mxu0
    %v964 = vadd.f32 %v544, %v963
    %965 = vmatprep.mubr.f32.mxu0 0.0
    %966 = vmatmul.mubr.f32.gmra.mrb[0].mxu0 %v328
    %v967 = vpop.f32.mrb[0].mxu0
    %v968 = vadd.f32 %v540, %v967
    %v969 = vpop.f32.mrb[0].mxu0
    %v970 = vadd.f32 %v544, %v969
    %971 = vmatprep.mubr.f32.mxu0 0.0
    %972 = vmatmul.mubr.f32.gmra.mrb[0].mxu0 %v333
    %v973 = vpop.f32.mrb[0].mxu0
    %v974 = vadd.f32 %v540, %v973
    %v975 = vpop.f32.mrb[0].mxu0
    %v976 = vadd.f32 %v544, %v975
    %977 = vmatprep.mubr.f32.mxu0 0.0
    %978 = vmatmul.mubr.f32.gmra.mrb[0].mxu0 %v338
    %v979 = vpop.f32.mrb[0].mxu0
    %v980 = vadd.f32 %v540, %v979
    %v981 = vpop.f32.mrb[0].mxu0
    %v982 = vadd.f32 %v544, %v981
    %983 = vmatprep.mubr.f32.mxu0 0.0
    %984 = vmatmul.mubr.f32.gmra.mrb[0].mxu0 %v343
    %v985 = vpop.f32.mrb[0].mxu0
    %v986 = vadd.f32 %v540, %v985
    %v987 = vpop.f32.mrb[0].mxu0
    %v988 = vadd.f32 %v544, %v987
    %989 = vmatprep.mubr.f32.mxu0 0.0
    %990 = vmatmul.mubr.f32.gmra.mrb[0].mxu0 %v348
    %v991 = vpop.f32.mrb[0].mxu0
    %v992 = vadd.f32 %v540, %v991
    %v993 = vpop.f32.mrb[0].mxu0
    %v994 = vadd.f32 %v544, %v993
    %995 = vmatprep.mubr.f32.mxu0 0.0
    %996 = vmatmul.mubr.f32.gmra.mrb[0].mxu0 %v353
    %v997 = vpop.f32.mrb[0].mxu0
    %v998 = vadd.f32 %v540, %v997
    %v999 = vpop.f32.mrb[0].mxu0
    %v1000 = vadd.f32 %v544, %v999
    %1001 = vmatprep.mubr.f32.mxu0 0.0
    %1002 = vmatmul.mubr.f32.gmra.mrb[0].mxu0 %v358
    %v1003 = vpop.f32.mrb[0].mxu0
    %v1004 = vadd.f32 %v540, %v1003
    %v1005 = vpop.f32.mrb[0].mxu0
    %v1006 = vadd.f32 %v544, %v1005
    %1007 = vmatprep.mubr.f32.mxu0 0.0
    %1008 = vmatmul.mubr.f32.gmra.mrb[0].mxu0 %v363
    %v1009 = vpop.f32.mrb[0].mxu0
    %v1010 = vadd.f32 %v540, %v1009
    %v1011 = vpop.f32.mrb[0].mxu0
    %v1012 = vadd.f32 %v544, %v1011
    %1013 = vmatprep.mubr.f32.mxu0 0.0
    %1014 = vmatmul.mubr.f32.gmra.mrb[0].mxu0 %v368
    %v1015 = vpop.f32.mrb[0].mxu0
    %v1016 = vadd.f32 %v540, %v1015
    %v1017 = vpop.f32.mrb[0].mxu0
    %v1018 = vadd.f32 %v544, %v1017
    %1019 = vmatprep.mubr.f32.mxu0 0.0
    %1020 = vmatmul.mubr.f32.gmra.mrb[0].mxu0 %v373
    %v1021 = vpop.f32.mrb[0].mxu0
    %v1022 = vadd.f32 %v540, %v1021
    %v1023 = vpop.f32.mrb[0].mxu0
    %v1024 = vadd.f32 %v544, %v1023
    %1025 = vmatprep.mubr.f32.mxu0 0.0
    %1026 = vmatmul.mubr.f32.gmra.mrb[0].mxu0 %v378
    %v1027 = vpop.f32.mrb[0].mxu0
    %v1028 = vadd.f32 %v540, %v1027
    %v1029 = vpop.f32.mrb[0].mxu0
    %v1030 = vadd.f32 %v544, %v1029
    %1031 = vmatprep.mubr.f32.mxu0 0.0
    %1032 = vmatmul.mubr.f32.gmra.mrb[0].mxu0 %v383
    %v1033 = vpop.f32.mrb[0].mxu0
    %v1034 = vadd.f32 %v540, %v1033
    %v1035 = vpop.f32.mrb[0].mxu0
    %v1036 = vadd.f32 %v544, %v1035
    %1037 = vmatprep.mubr.f32.mxu0 0.0
    %1038 = vmatmul.mubr.f32.gmra.mrb[0].mxu0 %v388
    %v1039 = vpop.f32.mrb[0].mxu0
    %v1040 = vadd.f32 %v540, %v1039
    %v1041 = vpop.f32.mrb[0].mxu0
    %v1042 = vadd.f32 %v544, %v1041
    %1043 = vdwg.mxu0
    %1044 = vmatprep.subr.mxu0 %v398
    %1045 = vmatpush1.msra.mxu0 %v397
    %1046 = vmatprep.subr.mxu0 %v406
    %1047 = vmatpush1.msra.mxu0 %v405
    %1048 = vmatprep.subr.mxu0 %v414
    %1049 = vmatpush1.msra.mxu0 %v413
    %1050 = vmatprep.subr.mxu0 %v422
    %1051 = vmatpush1.msra.mxu0 %v421
    %1052 = vmatprep.subr.mxu0 %v430
    %1053 = vmatpush1.msra.mxu0 %v429
    %1054 = vmatprep.subr.mxu0 %v438
    %1055 = vmatpush1.msra.mxu0 %v437
    %1056 = vmatprep.subr.mxu0 %v446
    %1057 = vmatpush1.msra.mxu0 %v445
    %1058 = vmatprep.subr.mxu0 %v454
    %1059 = vmatpush1.msra.mxu0 %v453
    %1060 = vmatprep.subr.mxu0 %v462
    %1061 = vmatpush1.msra.mxu0 %v461
    %1062 = vmatprep.subr.mxu0 %v470
    %1063 = vmatpush1.msra.mxu0 %v469
    %1064 = vmatprep.subr.mxu0 %v478
    %1065 = vmatpush1.msra.mxu0 %v477
    %1066 = vmatprep.subr.mxu0 %v486
    %1067 = vmatpush1.msra.mxu0 %v485
    %1068 = vmatprep.subr.mxu0 %v494
    %1069 = vmatpush1.msra.mxu0 %v493
    %1070 = vmatprep.subr.mxu0 %v502
    %1071 = vmatpush1.msra.mxu0 %v501
    %1072 = vmatprep.subr.mxu0 %v510
    %1073 = vmatpush1.msra.mxu0 %v509
    %1074 = vmatprep.subr.mxu0 %v518
    %1075 = vmatpush1.msra.mxu0 %v517
    %1076 = vmatprep.subr.mxu0 0.0
    %1077 = vmatpush1.msra.mxu0 0.0
    %1078 = vmatprep.subr.mxu0 0.0
    %1079 = vmatpush1.msra.mxu0 0.0
    %1080 = vmatprep.subr.mxu0 0.0
    %1081 = vmatpush1.msra.mxu0 0.0
    %1082 = vmatprep.subr.mxu0 0.0
    %1083 = vmatpush1.msra.mxu0 0.0
    %1084 = vmatprep.subr.mxu0 0.0
    %1085 = vmatpush1.msra.mxu0 0.0
    %1086 = vmatprep.subr.mxu0 0.0
    %1087 = vmatpush1.msra.mxu0 0.0
    %1088 = vmatprep.subr.mxu0 0.0
    %1089 = vmatpush1.msra.mxu0 0.0
    %1090 = vmatprep.subr.mxu0 0.0
    %1091 = vmatpush1.msra.mxu0 0.0
    %1092 = vmatprep.subr.mxu0 0.0
    %1093 = vmatpush1.msra.mxu0 0.0
    %1094 = vmatprep.subr.mxu0 0.0
    %1095 = vmatpush1.msra.mxu0 0.0
    %1096 = vmatprep.subr.mxu0 0.0
    %1097 = vmatpush1.msra.mxu0 0.0
    %1098 = vmatprep.subr.mxu0 0.0
    %1099 = vmatpush1.msra.mxu0 0.0
    %1100 = vmatprep.subr.mxu0 0.0
    %1101 = vmatpush1.msra.mxu0 0.0
    %1102 = vmatprep.subr.mxu0 0.0
    %1103 = vmatpush1.msra.mxu0 0.0
    %1104 = vmatprep.subr.mxu0 0.0
    %1105 = vmatpush1.msra.mxu0 0.0
    %1106 = vmatprep.subr.mxu0 0.0
    %1107 = vmatpush1.msra.mxu0 0.0
    %1108 = vmatprep.mubr.f32.mxu0 0.0
    %1109 = vmatmul.mubr.f32.gmra.mrb[0].mxu0 %v313
    %v1110 = vpop.f32.mrb[0].mxu0
    %v1111 = vadd.f32 %v548, %v1110
    %v1112 = vpop.f32.mrb[0].mxu0
    %v1113 = vadd.f32 %v552, %v1112
    %1114 = vmatprep.mubr.f32.mxu0 0.0
    %1115 = vmatmul.mubr.f32.gmra.mrb[0].mxu0 %v318
    %v1116 = vpop.f32.mrb[0].mxu0
    %v1117 = vadd.f32 %v548, %v1116
    %v1118 = vpop.f32.mrb[0].mxu0
    %v1119 = vadd.f32 %v552, %v1118
    %1120 = vmatprep.mubr.f32.mxu0 0.0
    %1121 = vmatmul.mubr.f32.gmra.mrb[0].mxu0 %v323
    %v1122 = vpop.f32.mrb[0].mxu0
    %v1123 = vadd.f32 %v548, %v1122
    %v1124 = vpop.f32.mrb[0].mxu0
    %v1125 = vadd.f32 %v552, %v1124
    %1126 = vmatprep.mubr.f32.mxu0 0.0
    %1127 = vmatmul.mubr.f32.gmra.mrb[0].mxu0 %v328
    %v1128 = vpop.f32.mrb[0].mxu0
    %v1129 = vadd.f32 %v548, %v1128
    %v1130 = vpop.f32.mrb[0].mxu0
    %v1131 = vadd.f32 %v552, %v1130
    %1132 = vmatprep.mubr.f32.mxu0 0.0
    %1133 = vmatmul.mubr.f32.gmra.mrb[0].mxu0 %v333
    %v1134 = vpop.f32.mrb[0].mxu0
    %v1135 = vadd.f32 %v548, %v1134
    %v1136 = vpop.f32.mrb[0].mxu0
    %v1137 = vadd.f32 %v552, %v1136
    %1138 = vmatprep.mubr.f32.mxu0 0.0
    %1139 = vmatmul.mubr.f32.gmra.mrb[0].mxu0 %v338
    %v1140 = vpop.f32.mrb[0].mxu0
    %v1141 = vadd.f32 %v548, %v1140
    %v1142 = vpop.f32.mrb[0].mxu0
    %v1143 = vadd.f32 %v552, %v1142
    %1144 = vmatprep.mubr.f32.mxu0 0.0
    %1145 = vmatmul.mubr.f32.gmra.mrb[0].mxu0 %v343
    %v1146 = vpop.f32.mrb[0].mxu0
    %v1147 = vadd.f32 %v548, %v1146
    %v1148 = vpop.f32.mrb[0].mxu0
    %v1149 = vadd.f32 %v552, %v1148
    %1150 = vmatprep.mubr.f32.mxu0 0.0
    %1151 = vmatmul.mubr.f32.gmra.mrb[0].mxu0 %v348
    %v1152 = vpop.f32.mrb[0].mxu0
    %v1153 = vadd.f32 %v548, %v1152
    %v1154 = vpop.f32.mrb[0].mxu0
    %v1155 = vadd.f32 %v552, %v1154
    %1156 = vmatprep.mubr.f32.mxu0 0.0
    %1157 = vmatmul.mubr.f32.gmra.mrb[0].mxu0 %v353
    %v1158 = vpop.f32.mrb[0].mxu0
    %v1159 = vadd.f32 %v548, %v1158
    %v1160 = vpop.f32.mrb[0].mxu0
    %v1161 = vadd.f32 %v552, %v1160
    %1162 = vmatprep.mubr.f32.mxu0 0.0
    %1163 = vmatmul.mubr.f32.gmra.mrb[0].mxu0 %v358
    %v1164 = vpop.f32.mrb[0].mxu0
    %v1165 = vadd.f32 %v548, %v1164
    %v1166 = vpop.f32.mrb[0].mxu0
    %v1167 = vadd.f32 %v552, %v1166
    %1168 = vmatprep.mubr.f32.mxu0 0.0
    %1169 = vmatmul.mubr.f32.gmra.mrb[0].mxu0 %v363
    %v1170 = vpop.f32.mrb[0].mxu0
    %v1171 = vadd.f32 %v548, %v1170
    %v1172 = vpop.f32.mrb[0].mxu0
    %v1173 = vadd.f32 %v552, %v1172
    %1174 = vmatprep.mubr.f32.mxu0 0.0
    %1175 = vmatmul.mubr.f32.gmra.mrb[0].mxu0 %v368
    %v1176 = vpop.f32.mrb[0].mxu0
    %v1177 = vadd.f32 %v548, %v1176
    %v1178 = vpop.f32.mrb[0].mxu0
    %v1179 = vadd.f32 %v552, %v1178
    %1180 = vmatprep.mubr.f32.mxu0 0.0
    %1181 = vmatmul.mubr.f32.gmra.mrb[0].mxu0 %v373
    %v1182 = vpop.f32.mrb[0].mxu0
    %v1183 = vadd.f32 %v548, %v1182
    %v1184 = vpop.f32.mrb[0].mxu0
    %v1185 = vadd.f32 %v552, %v1184
    %1186 = vmatprep.mubr.f32.mxu0 0.0
    %1187 = vmatmul.mubr.f32.gmra.mrb[0].mxu0 %v378
    %v1188 = vpop.f32.mrb[0].mxu0
    %v1189 = vadd.f32 %v548, %v1188
    %v1190 = vpop.f32.mrb[0].mxu0
    %v1191 = vadd.f32 %v552, %v1190
    %1192 = vmatprep.mubr.f32.mxu0 0.0
    %1193 = vmatmul.mubr.f32.gmra.mrb[0].mxu0 %v383
    %v1194 = vpop.f32.mrb[0].mxu0
    %v1195 = vadd.f32 %v548, %v1194
    %v1196 = vpop.f32.mrb[0].mxu0
    %v1197 = vadd.f32 %v552, %v1196
    %1198 = vmatprep.mubr.f32.mxu0 0.0
    %1199 = vmatmul.mubr.f32.gmra.mrb[0].mxu0 %v388
    %v1200 = vpop.f32.mrb[0].mxu0
    %v1201 = vadd.f32 %v548, %v1200
    %v1202 = vpop.f32.mrb[0].mxu0
    %v1203 = vadd.f32 %v552, %v1202
    %1204 = vdwg.mxu0
    %1205 = vst [vmem:[#allocation2] sm:$0xff] %v628
    %1206 = vst [vmem:[#allocation2 + $0x8] sm:$0xff] %v630
    %1207 = vst [vmem:[#allocation2 + $0x10] sm:$0xff] %v789
    %1208 = vst [vmem:[#allocation2 + $0x18] sm:$0xff] %v791
    %1209 = vst [vmem:[#allocation2 + $0x20] sm:$0xff] %v950
    %1210 = vst [vmem:[#allocation2 + $0x28] sm:$0xff] %v952
    %1211 = vst [vmem:[#allocation2 + $0x30] sm:$0xff] %v1111
    %1212 = vst [vmem:[#allocation2 + $0x38] sm:$0xff] %v1113
    %1213 = vst [vmem:[#allocation2 + $0x40] sm:$0xff] %v634
    %1214 = vst [vmem:[#allocation2 + $0x48] sm:$0xff] %v636
    %1215 = vst [vmem:[#allocation2 + $0x50] sm:$0xff] %v795
    %1216 = vst [vmem:[#allocation2 + $0x58] sm:$0xff] %v797
    %1217 = vst [vmem:[#allocation2 + $0x60] sm:$0xff] %v956
    %1218 = vst [vmem:[#allocation2 + $0x68] sm:$0xff] %v958
    %1219 = vst [vmem:[#allocation2 + $0x70] sm:$0xff] %v1117
    %1220 = vst [vmem:[#allocation2 + $0x78] sm:$0xff] %v1119
    %1221 = vst [vmem:[#allocation2 + $0x80] sm:$0xff] %v640
    %1222 = vst [vmem:[#allocation2 + $0x88] sm:$0xff] %v642
    %1223 = vst [vmem:[#allocation2 + $0x90] sm:$0xff] %v801
    %1224 = vst [vmem:[#allocation2 + $0x98] sm:$0xff] %v803
    %1225 = vst [vmem:[#allocation2 + $0xa0] sm:$0xff] %v962
    %1226 = vst [vmem:[#allocation2 + $0xa8] sm:$0xff] %v964
    %1227 = vst [vmem:[#allocation2 + $0xb0] sm:$0xff] %v1123
    %1228 = vst [vmem:[#allocation2 + $0xb8] sm:$0xff] %v1125
    %1229 = vst [vmem:[#allocation2 + $0xc0] sm:$0xff] %v646
    %1230 = vst [vmem:[#allocation2 + $0xc8] sm:$0xff] %v648
    %1231 = vst [vmem:[#allocation2 + $0xd0] sm:$0xff] %v807
    %1232 = vst [vmem:[#allocation2 + $0xd8] sm:$0xff] %v809
    %1233 = vst [vmem:[#allocation2 + $0xe0] sm:$0xff] %v968
    %1234 = vst [vmem:[#allocation2 + $0xe8] sm:$0xff] %v970
    %1235 = vst [vmem:[#allocation2 + $0xf0] sm:$0xff] %v1129
    %1236 = vst [vmem:[#allocation2 + $0xf8] sm:$0xff] %v1131
    %1237 = vst [vmem:[#allocation2 + $0x100] sm:$0xff] %v652
    %1238 = vst [vmem:[#allocation2 + $0x108] sm:$0xff] %v654
    %1239 = vst [vmem:[#allocation2 + $0x110] sm:$0xff] %v813
    %1240 = vst [vmem:[#allocation2 + $0x118] sm:$0xff] %v815
    %1241 = vst [vmem:[#allocation2 + $0x120] sm:$0xff] %v974
    %1242 = vst [vmem:[#allocation2 + $0x128] sm:$0xff] %v976
    %1243 = vst [vmem:[#allocation2 + $0x130] sm:$0xff] %v1135
    %1244 = vst [vmem:[#allocation2 + $0x138] sm:$0xff] %v1137
    %1245 = vst [vmem:[#allocation2 + $0x140] sm:$0xff] %v658
    %1246 = vst [vmem:[#allocation2 + $0x148] sm:$0xff] %v660
    %1247 = vst [vmem:[#allocation2 + $0x150] sm:$0xff] %v819
    %1248 = vst [vmem:[#allocation2 + $0x158] sm:$0xff] %v821
    %1249 = vst [vmem:[#allocation2 + $0x160] sm:$0xff] %v980
    %1250 = vst [vmem:[#allocation2 + $0x168] sm:$0xff] %v982
    %1251 = vst [vmem:[#allocation2 + $0x170] sm:$0xff] %v1141
    %1252 = vst [vmem:[#allocation2 + $0x178] sm:$0xff] %v1143
    %1253 = vst [vmem:[#allocation2 + $0x180] sm:$0xff] %v664
    %1254 = vst [vmem:[#allocation2 + $0x188] sm:$0xff] %v666
    %1255 = vst [vmem:[#allocation2 + $0x190] sm:$0xff] %v825
    %1256 = vst [vmem:[#allocation2 + $0x198] sm:$0xff] %v827
    %1257 = vst [vmem:[#allocation2 + $0x1a0] sm:$0xff] %v986
    %1258 = vst [vmem:[#allocation2 + $0x1a8] sm:$0xff] %v988
    %1259 = vst [vmem:[#allocation2 + $0x1b0] sm:$0xff] %v1147
    %1260 = vst [vmem:[#allocation2 + $0x1b8] sm:$0xff] %v1149
    %1261 = vst [vmem:[#allocation2 + $0x1c0] sm:$0xff] %v670
    %1262 = vst [vmem:[#allocation2 + $0x1c8] sm:$0xff] %v672
    %1263 = vst [vmem:[#allocation2 + $0x1d0] sm:$0xff] %v831
    %1264 = vst [vmem:[#allocation2 + $0x1d8] sm:$0xff] %v833
    %1265 = vst [vmem:[#allocation2 + $0x1e0] sm:$0xff] %v992
    %1266 = vst [vmem:[#allocation2 + $0x1e8] sm:$0xff] %v994
    %1267 = vst [vmem:[#allocation2 + $0x1f0] sm:$0xff] %v1153
    %1268 = vst [vmem:[#allocation2 + $0x1f8] sm:$0xff] %v1155
    %1269 = vst [vmem:[#allocation2 + $0x200] sm:$0xff] %v676
    %1270 = vst [vmem:[#allocation2 + $0x208] sm:$0xff] %v678
    %1271 = vst [vmem:[#allocation2 + $0x210] sm:$0xff] %v837
    %1272 = vst [vmem:[#allocation2 + $0x218] sm:$0xff] %v839
    %1273 = vst [vmem:[#allocation2 + $0x220] sm:$0xff] %v998
    %1274 = vst [vmem:[#allocation2 + $0x228] sm:$0xff] %v1000
    %1275 = vst [vmem:[#allocation2 + $0x230] sm:$0xff] %v1159
    %1276 = vst [vmem:[#allocation2 + $0x238] sm:$0xff] %v1161
    %1277 = vst [vmem:[#allocation2 + $0x240] sm:$0xff] %v682
    %1278 = vst [vmem:[#allocation2 + $0x248] sm:$0xff] %v684
    %1279 = vst [vmem:[#allocation2 + $0x250] sm:$0xff] %v843
    %1280 = vst [vmem:[#allocation2 + $0x258] sm:$0xff] %v845
    %1281 = vst [vmem:[#allocation2 + $0x260] sm:$0xff] %v1004
    %1282 = vst [vmem:[#allocation2 + $0x268] sm:$0xff] %v1006
    %1283 = vst [vmem:[#allocation2 + $0x270] sm:$0xff] %v1165
    %1284 = vst [vmem:[#allocation2 + $0x278] sm:$0xff] %v1167
    %1285 = vst [vmem:[#allocation2 + $0x280] sm:$0xff] %v688
    %1286 = vst [vmem:[#allocation2 + $0x288] sm:$0xff] %v690
    %1287 = vst [vmem:[#allocation2 + $0x290] sm:$0xff] %v849
    %1288 = vst [vmem:[#allocation2 + $0x298] sm:$0xff] %v851
    %1289 = vst [vmem:[#allocation2 + $0x2a0] sm:$0xff] %v1010
    %1290 = vst [vmem:[#allocation2 + $0x2a8] sm:$0xff] %v1012
    %1291 = vst [vmem:[#allocation2 + $0x2b0] sm:$0xff] %v1171
    %1292 = vst [vmem:[#allocation2 + $0x2b8] sm:$0xff] %v1173
    %1293 = vst [vmem:[#allocation2 + $0x2c0] sm:$0xff] %v694
    %1294 = vst [vmem:[#allocation2 + $0x2c8] sm:$0xff] %v696
    %1295 = vst [vmem:[#allocation2 + $0x2d0] sm:$0xff] %v855
    %1296 = vst [vmem:[#allocation2 + $0x2d8] sm:$0xff] %v857
    %1297 = vst [vmem:[#allocation2 + $0x2e0] sm:$0xff] %v1016
    %1298 = vst [vmem:[#allocation2 + $0x2e8] sm:$0xff] %v1018
    %1299 = vst [vmem:[#allocation2 + $0x2f0] sm:$0xff] %v1177
    %1300 = vst [vmem:[#allocation2 + $0x2f8] sm:$0xff] %v1179
    %1301 = vst [vmem:[#allocation2 + $0x300] sm:$0xff] %v700
    %1302 = vst [vmem:[#allocation2 + $0x308] sm:$0xff] %v702
    %1303 = vst [vmem:[#allocation2 + $0x310] sm:$0xff] %v861
    %1304 = vst [vmem:[#allocation2 + $0x318] sm:$0xff] %v863
    %1305 = vst [vmem:[#allocation2 + $0x320] sm:$0xff] %v1022
    %1306 = vst [vmem:[#allocation2 + $0x328] sm:$0xff] %v1024
    %1307 = vst [vmem:[#allocation2 + $0x330] sm:$0xff] %v1183
    %1308 = vst [vmem:[#allocation2 + $0x338] sm:$0xff] %v1185
    %1309 = vst [vmem:[#allocation2 + $0x340] sm:$0xff] %v706
    %1310 = vst [vmem:[#allocation2 + $0x348] sm:$0xff] %v708
    %1311 = vst [vmem:[#allocation2 + $0x350] sm:$0xff] %v867
    %1312 = vst [vmem:[#allocation2 + $0x358] sm:$0xff] %v869
    %1313 = vst [vmem:[#allocation2 + $0x360] sm:$0xff] %v1028
    %1314 = vst [vmem:[#allocation2 + $0x368] sm:$0xff] %v1030
    %1315 = vst [vmem:[#allocation2 + $0x370] sm:$0xff] %v1189
    %1316 = vst [vmem:[#allocation2 + $0x378] sm:$0xff] %v1191
    %1317 = vst [vmem:[#allocation2 + $0x380] sm:$0xff] %v712
    %1318 = vst [vmem:[#allocation2 + $0x388] sm:$0xff] %v714
    %1319 = vst [vmem:[#allocation2 + $0x390] sm:$0xff] %v873
    %1320 = vst [vmem:[#allocation2 + $0x398] sm:$0xff] %v875
    %1321 = vst [vmem:[#allocation2 + $0x3a0] sm:$0xff] %v1034
    %1322 = vst [vmem:[#allocation2 + $0x3a8] sm:$0xff] %v1036
    %1323 = vst [vmem:[#allocation2 + $0x3b0] sm:$0xff] %v1195
    %1324 = vst [vmem:[#allocation2 + $0x3b8] sm:$0xff] %v1197
    %1325 = vst [vmem:[#allocation2 + $0x3c0] sm:$0xff] %v718
    %1326 = vst [vmem:[#allocation2 + $0x3c8] sm:$0xff] %v720
    %1327 = vst [vmem:[#allocation2 + $0x3d0] sm:$0xff] %v879
    %1328 = vst [vmem:[#allocation2 + $0x3d8] sm:$0xff] %v881
    %1329 = vst [vmem:[#allocation2 + $0x3e0] sm:$0xff] %v1040
    %1330 = vst [vmem:[#allocation2 + $0x3e8] sm:$0xff] %v1042
    %1331 = vst [vmem:[#allocation2 + $0x3f0] sm:$0xff] %v1201
    %1332 = vst [vmem:[#allocation2 + $0x3f8] sm:$0xff] %v1203
    %v1333 = vadd.s32 %v133, 128
    %v1334 = vadd.s32 %v133, 256
    %v1335 = vadd.s32 %v133, 384
    %v1336 = vadd.s32 %v133, 512
    %v1337 = vadd.s32 %v133, 640
    %v1338 = vadd.s32 %v133, 768
    %v1339 = vadd.s32 %v133, 896
    %vm1340 = vcmp.lt.s32.totalorder %v133, 0
    %v1341 = vsub.s32 0, %v133
    %v1342 = vsel %vm1340, %v1341, %v133
    %v1343 = vshrl.u32 %v1342, 8
    %v1344 = vand.u32 %v1342, 255
    %v1345 = vsub.s32 0, %v1344
    %v1346 = vsel %vm1340, %v1345, %v1344
    %vm1347 = vcmp.lt.s32.totalorder %v1333, 0
    %v1348 = vsub.s32 0, %v1333
    %v1349 = vsel %vm1347, %v1348, %v1333
    %v1350 = vshrl.u32 %v1349, 8
    %v1351 = vand.u32 %v1349, 255
    %v1352 = vsub.s32 0, %v1351
    %v1353 = vsel %vm1347, %v1352, %v1351
    %vm1354 = vcmp.lt.s32.totalorder %v1334, 0
    %v1355 = vsub.s32 0, %v1334
    %v1356 = vsel %vm1354, %v1355, %v1334
    %v1357 = vshrl.u32 %v1356, 8
    %v1358 = vand.u32 %v1356, 255
    %v1359 = vsub.s32 0, %v1358
    %v1360 = vsel %vm1354, %v1359, %v1358
    %vm1361 = vcmp.lt.s32.totalorder %v1335, 0
    %v1362 = vsub.s32 0, %v1335
    %v1363 = vsel %vm1361, %v1362, %v1335
    %v1364 = vshrl.u32 %v1363, 8
    %v1365 = vand.u32 %v1363, 255
    %v1366 = vsub.s32 0, %v1365
    %v1367 = vsel %vm1361, %v1366, %v1365
    %vm1368 = vcmp.lt.s32.totalorder %v1336, 0
    %v1369 = vsub.s32 0, %v1336
    %v1370 = vsel %vm1368, %v1369, %v1336
    %v1371 = vshrl.u32 %v1370, 8
    %v1372 = vand.u32 %v1370, 255
    %v1373 = vsub.s32 0, %v1372
    %v1374 = vsel %vm1368, %v1373, %v1372
    %vm1375 = vcmp.lt.s32.totalorder %v1337, 0
    %v1376 = vsub.s32 0, %v1337
    %v1377 = vsel %vm1375, %v1376, %v1337
    %v1378 = vshrl.u32 %v1377, 8
    %v1379 = vand.u32 %v1377, 255
    %v1380 = vsub.s32 0, %v1379
    %v1381 = vsel %vm1375, %v1380, %v1379
    %vm1382 = vcmp.lt.s32.totalorder %v1338, 0
    %v1383 = vsub.s32 0, %v1338
    %v1384 = vsel %vm1382, %v1383, %v1338
    %v1385 = vshrl.u32 %v1384, 8
    %v1386 = vand.u32 %v1384, 255
    %v1387 = vsub.s32 0, %v1386
    %v1388 = vsel %vm1382, %v1387, %v1386
    %vm1389 = vcmp.lt.s32.totalorder %v1339, 0
    %v1390 = vsub.s32 0, %v1339
    %v1391 = vsel %vm1389, %v1390, %v1339
    %v1392 = vshrl.u32 %v1391, 8
    %v1393 = vand.u32 %v1391, 255
    %v1394 = vsub.s32 0, %v1393
    %v1395 = vsel %vm1389, %v1394, %v1393
    %vm1396 = vcmp.ne.s32.totalorder %v1346, 0
    %vm1397 = vcmp.ne.s32.totalorder %v1353, 0
    %vm1398 = vcmp.ne.s32.totalorder %v1360, 0
    %vm1399 = vcmp.ne.s32.totalorder %v1367, 0
    %vm1400 = vcmp.ne.s32.totalorder %v1374, 0
    %vm1401 = vcmp.ne.s32.totalorder %v1381, 0
    %vm1402 = vcmp.ne.s32.totalorder %v1388, 0
    %vm1403 = vcmp.ne.s32.totalorder %v1395, 0
    %vm1404 = vcmp.lt.s32.totalorder %v1346, 0
    %vm1405 = vcmp.lt.s32.totalorder %v1353, 0
    %vm1406 = vcmp.lt.s32.totalorder %v1360, 0
    %vm1407 = vcmp.lt.s32.totalorder %v1367, 0
    %vm1408 = vcmp.lt.s32.totalorder %v1374, 0
    %vm1409 = vcmp.lt.s32.totalorder %v1381, 0
    %vm1410 = vcmp.lt.s32.totalorder %v1388, 0
    %vm1411 = vcmp.lt.s32.totalorder %v1395, 0
    %vm1412 = vmand %vm1404, %vm1396
    %vm1413 = vmand %vm1405, %vm1397
    %vm1414 = vmand %vm1406, %vm1398
    %vm1415 = vmand %vm1407, %vm1399
    %vm1416 = vmand %vm1408, %vm1400
    %vm1417 = vmand %vm1409, %vm1401
    %vm1418 = vmand %vm1410, %vm1402
    %vm1419 = vmand %vm1411, %vm1403
    %v1420 = vadd.s32 %v1346, 256
    %v1421 = vadd.s32 %v1353, 256
    %v1422 = vadd.s32 %v1360, 256
    %v1423 = vadd.s32 %v1367, 256
    %v1424 = vadd.s32 %v1374, 256
    %v1425 = vadd.s32 %v1381, 256
    %v1426 = vadd.s32 %v1388, 256
    %v1427 = vadd.s32 %v1395, 256
    %v1428 = vsel %vm1412, %v1420, %v1346
    %v1429 = vsel %vm1413, %v1421, %v1353
    %v1430 = vsel %vm1414, %v1422, %v1360
    %v1431 = vsel %vm1415, %v1423, %v1367
    %v1432 = vsel %vm1416, %v1424, %v1374
    %v1433 = vsel %vm1417, %v1425, %v1381
    %v1434 = vsel %vm1418, %v1426, %v1388
    %v1435 = vsel %vm1419, %v1427, %v1395
    %vm1436 = vcmp.lt.s32.totalorder %v1428, 128
    %vm1437 = vcmp.lt.s32.totalorder %v1429, 128
    %vm1438 = vcmp.lt.s32.totalorder %v1430, 128
    %vm1439 = vcmp.lt.s32.totalorder %v1431, 128
    %vm1440 = vcmp.lt.s32.totalorder %v1432, 128
    %vm1441 = vcmp.lt.s32.totalorder %v1433, 128
    %vm1442 = vcmp.lt.s32.totalorder %v1434, 128
    %vm1443 = vcmp.lt.s32.totalorder %v1435, 128
    %vm1444 = vcmp.lt.s32.totalorder %v133, 128
    %vm1445 = vcmp.lt.s32.totalorder %v1333, 128
    %v1446 = vld [vmem:[%s1] sm:$0xff]
    %1447 = vset.pattern.permute.xlu0 0
    %1448 = vperm.xlu0 %1447, %v1446
    %v1449 = vpop.permute.xlu0 %1448
    %v1450 = vld [vmem:[#allocation9] sm:$0xff]
    %v1451 = vld [vmem:[#allocation9 + $0x8] sm:$0xff]
    %v1452 = vld [vmem:[#allocation9 + $0x10] sm:$0xff]
    %v1453 = vld [vmem:[#allocation9 + $0x18] sm:$0xff]
    %v1454 = vld [vmem:[#allocation9 + $0x20] sm:$0xff]
    %v1455 = vld [vmem:[#allocation9 + $0x28] sm:$0xff]
    %v1456 = vld [vmem:[#allocation9 + $0x30] sm:$0xff]
    %v1457 = vld [vmem:[#allocation9 + $0x38] sm:$0xff]
    %v1458 = vld [vmem:[#allocation9 + $0x40] sm:$0xff]
    %v1459 = vld [vmem:[#allocation9 + $0x48] sm:$0xff]
    %v1460 = vld [vmem:[#allocation9 + $0x50] sm:$0xff]
    %v1461 = vld [vmem:[#allocation9 + $0x58] sm:$0xff]
    %v1462 = vld [vmem:[#allocation9 + $0x60] sm:$0xff]
    %v1463 = vld [vmem:[#allocation9 + $0x68] sm:$0xff]
    %v1464 = vld [vmem:[#allocation9 + $0x70] sm:$0xff]
    %v1465 = vld [vmem:[#allocation9 + $0x78] sm:$0xff]
    %v1466 = vld [vmem:[#allocation9 + $0x80] sm:$0xff]
    %v1467 = vld [vmem:[#allocation9 + $0x88] sm:$0xff]
    %v1468 = vld [vmem:[#allocation9 + $0x90] sm:$0xff]
    %v1469 = vld [vmem:[#allocation9 + $0x98] sm:$0xff]
    %v1470 = vld [vmem:[#allocation9 + $0xa0] sm:$0xff]
    %v1471 = vld [vmem:[#allocation9 + $0xa8] sm:$0xff]
    %v1472 = vld [vmem:[#allocation9 + $0xb0] sm:$0xff]
    %v1473 = vld [vmem:[#allocation9 + $0xb8] sm:$0xff]
    %v1474 = vld [vmem:[#allocation9 + $0xc0] sm:$0xff]
    %v1475 = vld [vmem:[#allocation9 + $0xc8] sm:$0xff]
    %v1476 = vld [vmem:[#allocation9 + $0xd0] sm:$0xff]
    %v1477 = vld [vmem:[#allocation9 + $0xd8] sm:$0xff]
    %v1478 = vld [vmem:[#allocation9 + $0xe0] sm:$0xff]
    %v1479 = vld [vmem:[#allocation9 + $0xe8] sm:$0xff]
    %v1480 = vld [vmem:[#allocation9 + $0xf0] sm:$0xff]
    %v1481 = vld [vmem:[#allocation9 + $0xf8] sm:$0xff]
    %v1482 = vld [vmem:[#allocation9 + $0x100] sm:$0xff]
    %v1483 = vld [vmem:[#allocation9 + $0x108] sm:$0xff]
    %v1484 = vld [vmem:[#allocation9 + $0x110] sm:$0xff]
    %v1485 = vld [vmem:[#allocation9 + $0x118] sm:$0xff]
    %v1486 = vld [vmem:[#allocation9 + $0x120] sm:$0xff]
    %v1487 = vld [vmem:[#allocation9 + $0x128] sm:$0xff]
    %v1488 = vld [vmem:[#allocation9 + $0x130] sm:$0xff]
    %v1489 = vld [vmem:[#allocation9 + $0x138] sm:$0xff]
    %v1490 = vld [vmem:[#allocation9 + $0x140] sm:$0xff]
    %v1491 = vld [vmem:[#allocation9 + $0x148] sm:$0xff]
    %v1492 = vld [vmem:[#allocation9 + $0x150] sm:$0xff]
    %v1493 = vld [vmem:[#allocation9 + $0x158] sm:$0xff]
    %v1494 = vld [vmem:[#allocation9 + $0x160] sm:$0xff]
    %v1495 = vld [vmem:[#allocation9 + $0x168] sm:$0xff]
    %v1496 = vld [vmem:[#allocation9 + $0x170] sm:$0xff]
    %v1497 = vld [vmem:[#allocation9 + $0x178] sm:$0xff]
    %v1498 = vld [vmem:[#allocation9 + $0x180] sm:$0xff]
    %v1499 = vld [vmem:[#allocation9 + $0x188] sm:$0xff]
    %v1500 = vld [vmem:[#allocation9 + $0x190] sm:$0xff]
    %v1501 = vld [vmem:[#allocation9 + $0x198] sm:$0xff]
    %v1502 = vld [vmem:[#allocation9 + $0x1a0] sm:$0xff]
    %v1503 = vld [vmem:[#allocation9 + $0x1a8] sm:$0xff]
    %v1504 = vld [vmem:[#allocation9 + $0x1b0] sm:$0xff]
    %v1505 = vld [vmem:[#allocation9 + $0x1b8] sm:$0xff]
    %v1506 = vld [vmem:[#allocation9 + $0x1c0] sm:$0xff]
    %v1507 = vld [vmem:[#allocation9 + $0x1c8] sm:$0xff]
    %v1508 = vld [vmem:[#allocation9 + $0x1d0] sm:$0xff]
    %v1509 = vld [vmem:[#allocation9 + $0x1d8] sm:$0xff]
    %v1510 = vld [vmem:[#allocation9 + $0x1e0] sm:$0xff]
    %v1511 = vld [vmem:[#allocation9 + $0x1e8] sm:$0xff]
    %v1512 = vld [vmem:[#allocation9 + $0x1f0] sm:$0xff]
    %v1513 = vld [vmem:[#allocation9 + $0x1f8] sm:$0xff]
    %v1514 = vld [vmem:[#allocation9 + $0x200] sm:$0xff]
    %v1515 = vld [vmem:[#allocation9 + $0x208] sm:$0xff]
    %v1516 = vld [vmem:[#allocation9 + $0x210] sm:$0xff]
    %v1517 = vld [vmem:[#allocation9 + $0x218] sm:$0xff]
    %v1518 = vld [vmem:[#allocation9 + $0x220] sm:$0xff]
    %v1519 = vld [vmem:[#allocation9 + $0x228] sm:$0xff]
    %v1520 = vld [vmem:[#allocation9 + $0x230] sm:$0xff]
    %v1521 = vld [vmem:[#allocation9 + $0x238] sm:$0xff]
    %v1522 = vld [vmem:[#allocation9 + $0x240] sm:$0xff]
    %v1523 = vld [vmem:[#allocation9 + $0x248] sm:$0xff]
    %v1524 = vld [vmem:[#allocation9 + $0x250] sm:$0xff]
    %v1525 = vld [vmem:[#allocation9 + $0x258] sm:$0xff]
    %v1526 = vld [vmem:[#allocation9 + $0x260] sm:$0xff]
    %v1527 = vld [vmem:[#allocation9 + $0x268] sm:$0xff]
    %v1528 = vld [vmem:[#allocation9 + $0x270] sm:$0xff]
    %v1529 = vld [vmem:[#allocation9 + $0x278] sm:$0xff]
    %v1530 = vld [vmem:[#allocation9 + $0x280] sm:$0xff]
    %v1531 = vld [vmem:[#allocation9 + $0x288] sm:$0xff]
    %v1532 = vld [vmem:[#allocation9 + $0x290] sm:$0xff]
    %v1533 = vld [vmem:[#allocation9 + $0x298] sm:$0xff]
    %v1534 = vld [vmem:[#allocation9 + $0x2a0] sm:$0xff]
    %v1535 = vld [vmem:[#allocation9 + $0x2a8] sm:$0xff]
    %v1536 = vld [vmem:[#allocation9 + $0x2b0] sm:$0xff]
    %v1537 = vld [vmem:[#allocation9 + $0x2b8] sm:$0xff]
    %v1538 = vld [vmem:[#allocation9 + $0x2c0] sm:$0xff]
    %v1539 = vld [vmem:[#allocation9 + $0x2c8] sm:$0xff]
    %v1540 = vld [vmem:[#allocation9 + $0x2d0] sm:$0xff]
    %v1541 = vld [vmem:[#allocation9 + $0x2d8] sm:$0xff]
    %v1542 = vld [vmem:[#allocation9 + $0x2e0] sm:$0xff]
    %v1543 = vld [vmem:[#allocation9 + $0x2e8] sm:$0xff]
    %v1544 = vld [vmem:[#allocation9 + $0x2f0] sm:$0xff]
    %v1545 = vld [vmem:[#allocation9 + $0x2f8] sm:$0xff]
    %v1546 = vld [vmem:[#allocation9 + $0x300] sm:$0xff]
    %v1547 = vld [vmem:[#allocation9 + $0x308] sm:$0xff]
    %v1548 = vld [vmem:[#allocation9 + $0x310] sm:$0xff]
    %v1549 = vld [vmem:[#allocation9 + $0x318] sm:$0xff]
    %v1550 = vld [vmem:[#allocation9 + $0x320] sm:$0xff]
    %v1551 = vld [vmem:[#allocation9 + $0x328] sm:$0xff]
    %v1552 = vld [vmem:[#allocation9 + $0x330] sm:$0xff]
    %v1553 = vld [vmem:[#allocation9 + $0x338] sm:$0xff]
    %v1554 = vld [vmem:[#allocation9 + $0x340] sm:$0xff]
    %v1555 = vld [vmem:[#allocation9 + $0x348] sm:$0xff]
    %v1556 = vld [vmem:[#allocation9 + $0x350] sm:$0xff]
    %v1557 = vld [vmem:[#allocation9 + $0x358] sm:$0xff]
    %v1558 = vld [vmem:[#allocation9 + $0x360] sm:$0xff]
    %v1559 = vld [vmem:[#allocation9 + $0x368] sm:$0xff]
    %v1560 = vld [vmem:[#allocation9 + $0x370] sm:$0xff]
    %v1561 = vld [vmem:[#allocation9 + $0x378] sm:$0xff]
    %v1562 = vld [vmem:[#allocation9 + $0x380] sm:$0xff]
    %v1563 = vld [vmem:[#allocation9 + $0x388] sm:$0xff]
    %v1564 = vld [vmem:[#allocation9 + $0x390] sm:$0xff]
    %v1565 = vld [vmem:[#allocation9 + $0x398] sm:$0xff]
    %v1566 = vld [vmem:[#allocation9 + $0x3a0] sm:$0xff]
    %v1567 = vld [vmem:[#allocation9 + $0x3a8] sm:$0xff]
    %v1568 = vld [vmem:[#allocation9 + $0x3b0] sm:$0xff]
    %v1569 = vld [vmem:[#allocation9 + $0x3b8] sm:$0xff]
    %v1570 = vld [vmem:[#allocation9 + $0x3c0] sm:$0xff]
    %v1571 = vld [vmem:[#allocation9 + $0x3c8] sm:$0xff]
    %v1572 = vld [vmem:[#allocation9 + $0x3d0] sm:$0xff]
    %v1573 = vld [vmem:[#allocation9 + $0x3d8] sm:$0xff]
    %v1574 = vld [vmem:[#allocation9 + $0x3e0] sm:$0xff]
    %v1575 = vld [vmem:[#allocation9 + $0x3e8] sm:$0xff]
    %v1576 = vld [vmem:[#allocation9 + $0x3f0] sm:$0xff]
    %v1577 = vld [vmem:[#allocation9 + $0x3f8] sm:$0xff]
    %v1578 = vld [vmem:[#allocation9 + $0x400] sm:$0xff]
    %v1579 = vld [vmem:[#allocation9 + $0x408] sm:$0xff]
    %v1580 = vld [vmem:[#allocation9 + $0x410] sm:$0xff]
    %v1581 = vld [vmem:[#allocation9 + $0x418] sm:$0xff]
    %v1582 = vld [vmem:[#allocation9 + $0x420] sm:$0xff]
    %v1583 = vld [vmem:[#allocation9 + $0x428] sm:$0xff]
    %v1584 = vld [vmem:[#allocation9 + $0x430] sm:$0xff]
    %v1585 = vld [vmem:[#allocation9 + $0x438] sm:$0xff]
    %v1586 = vld [vmem:[#allocation9 + $0x440] sm:$0xff]
    %v1587 = vld [vmem:[#allocation9 + $0x448] sm:$0xff]
    %v1588 = vld [vmem:[#allocation9 + $0x450] sm:$0xff]
    %v1589 = vld [vmem:[#allocation9 + $0x458] sm:$0xff]
    %v1590 = vld [vmem:[#allocation9 + $0x460] sm:$0xff]
    %v1591 = vld [vmem:[#allocation9 + $0x468] sm:$0xff]
    %v1592 = vld [vmem:[#allocation9 + $0x470] sm:$0xff]
    %v1593 = vld [vmem:[#allocation9 + $0x478] sm:$0xff]
    %v1594 = vld [vmem:[#allocation9 + $0x480] sm:$0xff]
    %v1595 = vld [vmem:[#allocation9 + $0x488] sm:$0xff]
    %v1596 = vld [vmem:[#allocation9 + $0x490] sm:$0xff]
    %v1597 = vld [vmem:[#allocation9 + $0x498] sm:$0xff]
    %v1598 = vld [vmem:[#allocation9 + $0x4a0] sm:$0xff]
    %v1599 = vld [vmem:[#allocation9 + $0x4a8] sm:$0xff]
    %v1600 = vld [vmem:[#allocation9 + $0x4b0] sm:$0xff]
    %v1601 = vld [vmem:[#allocation9 + $0x4b8] sm:$0xff]
    %v1602 = vld [vmem:[#allocation9 + $0x4c0] sm:$0xff]
    %v1603 = vld [vmem:[#allocation9 + $0x4c8] sm:$0xff]
    %v1604 = vld [vmem:[#allocation9 + $0x4d0] sm:$0xff]
    %v1605 = vld [vmem:[#allocation9 + $0x4d8] sm:$0xff]
    %v1606 = vld [vmem:[#allocation9 + $0x4e0] sm:$0xff]
    %v1607 = vld [vmem:[#allocation9 + $0x4e8] sm:$0xff]
    %v1608 = vld [vmem:[#allocation9 + $0x4f0] sm:$0xff]
    %v1609 = vld [vmem:[#allocation9 + $0x4f8] sm:$0xff]
    %v1610 = vld [vmem:[#allocation9 + $0x500] sm:$0xff]
    %v1611 = vld [vmem:[#allocation9 + $0x508] sm:$0xff]
    %v1612 = vld [vmem:[#allocation9 + $0x510] sm:$0xff]
    %v1613 = vld [vmem:[#allocation9 + $0x518] sm:$0xff]
    %v1614 = vld [vmem:[#allocation9 + $0x520] sm:$0xff]
    %v1615 = vld [vmem:[#allocation9 + $0x528] sm:$0xff]
    %v1616 = vld [vmem:[#allocation9 + $0x530] sm:$0xff]
    %v1617 = vld [vmem:[#allocation9 + $0x538] sm:$0xff]
    %v1618 = vld [vmem:[#allocation9 + $0x540] sm:$0xff]
    %v1619 = vld [vmem:[#allocation9 + $0x548] sm:$0xff]
    %v1620 = vld [vmem:[#allocation9 + $0x550] sm:$0xff]
    %v1621 = vld [vmem:[#allocation9 + $0x558] sm:$0xff]
    %v1622 = vld [vmem:[#allocation9 + $0x560] sm:$0xff]
    %v1623 = vld [vmem:[#allocation9 + $0x568] sm:$0xff]
    %v1624 = vld [vmem:[#allocation9 + $0x570] sm:$0xff]
    %v1625 = vld [vmem:[#allocation9 + $0x578] sm:$0xff]
    %v1626 = vld [vmem:[#allocation9 + $0x580] sm:$0xff]
    %v1627 = vld [vmem:[#allocation9 + $0x588] sm:$0xff]
    %v1628 = vld [vmem:[#allocation9 + $0x590] sm:$0xff]
    %v1629 = vld [vmem:[#allocation9 + $0x598] sm:$0xff]
    %v1630 = vld [vmem:[#allocation9 + $0x5a0] sm:$0xff]
    %v1631 = vld [vmem:[#allocation9 + $0x5a8] sm:$0xff]
    %v1632 = vld [vmem:[#allocation9 + $0x5b0] sm:$0xff]
    %v1633 = vld [vmem:[#allocation9 + $0x5b8] sm:$0xff]
    %v1634 = vld [vmem:[#allocation9 + $0x5c0] sm:$0xff]
    %v1635 = vld [vmem:[#allocation9 + $0x5c8] sm:$0xff]
    %v1636 = vld [vmem:[#allocation9 + $0x5d0] sm:$0xff]
    %v1637 = vld [vmem:[#allocation9 + $0x5d8] sm:$0xff]
    %v1638 = vld [vmem:[#allocation9 + $0x5e0] sm:$0xff]
    %v1639 = vld [vmem:[#allocation9 + $0x5e8] sm:$0xff]
    %v1640 = vld [vmem:[#allocation9 + $0x5f0] sm:$0xff]
    %v1641 = vld [vmem:[#allocation9 + $0x5f8] sm:$0xff]
    %v1642 = vld [vmem:[#allocation9 + $0x600] sm:$0xff]
    %v1643 = vld [vmem:[#allocation9 + $0x608] sm:$0xff]
    %v1644 = vld [vmem:[#allocation9 + $0x610] sm:$0xff]
    %v1645 = vld [vmem:[#allocation9 + $0x618] sm:$0xff]
    %v1646 = vld [vmem:[#allocation9 + $0x620] sm:$0xff]
    %v1647 = vld [vmem:[#allocation9 + $0x628] sm:$0xff]
    %v1648 = vld [vmem:[#allocation9 + $0x630] sm:$0xff]
    %v1649 = vld [vmem:[#allocation9 + $0x638] sm:$0xff]
    %v1650 = vld [vmem:[#allocation9 + $0x640] sm:$0xff]
    %v1651 = vld [vmem:[#allocation9 + $0x648] sm:$0xff]
    %v1652 = vld [vmem:[#allocation9 + $0x650] sm:$0xff]
    %v1653 = vld [vmem:[#allocation9 + $0x658] sm:$0xff]
    %v1654 = vld [vmem:[#allocation9 + $0x660] sm:$0xff]
    %v1655 = vld [vmem:[#allocation9 + $0x668] sm:$0xff]
    %v1656 = vld [vmem:[#allocation9 + $0x670] sm:$0xff]
    %v1657 = vld [vmem:[#allocation9 + $0x678] sm:$0xff]
    %v1658 = vld [vmem:[#allocation9 + $0x680] sm:$0xff]
    %v1659 = vld [vmem:[#allocation9 + $0x688] sm:$0xff]
    %v1660 = vld [vmem:[#allocation9 + $0x690] sm:$0xff]
    %v1661 = vld [vmem:[#allocation9 + $0x698] sm:$0xff]
    %v1662 = vld [vmem:[#allocation9 + $0x6a0] sm:$0xff]
    %v1663 = vld [vmem:[#allocation9 + $0x6a8] sm:$0xff]
    %v1664 = vld [vmem:[#allocation9 + $0x6b0] sm:$0xff]
    %v1665 = vld [vmem:[#allocation9 + $0x6b8] sm:$0xff]
    %v1666 = vld [vmem:[#allocation9 + $0x6c0] sm:$0xff]
    %v1667 = vld [vmem:[#allocation9 + $0x6c8] sm:$0xff]
    %v1668 = vld [vmem:[#allocation9 + $0x6d0] sm:$0xff]
    %v1669 = vld [vmem:[#allocation9 + $0x6d8] sm:$0xff]
    %v1670 = vld [vmem:[#allocation9 + $0x6e0] sm:$0xff]
    %v1671 = vld [vmem:[#allocation9 + $0x6e8] sm:$0xff]
    %v1672 = vld [vmem:[#allocation9 + $0x6f0] sm:$0xff]
    %v1673 = vld [vmem:[#allocation9 + $0x6f8] sm:$0xff]
    %v1674 = vld [vmem:[#allocation9 + $0x700] sm:$0xff]
    %v1675 = vld [vmem:[#allocation9 + $0x708] sm:$0xff]
    %v1676 = vld [vmem:[#allocation9 + $0x710] sm:$0xff]
    %v1677 = vld [vmem:[#allocation9 + $0x718] sm:$0xff]
    %v1678 = vld [vmem:[#allocation9 + $0x720] sm:$0xff]
    %v1679 = vld [vmem:[#allocation9 + $0x728] sm:$0xff]
    %v1680 = vld [vmem:[#allocation9 + $0x730] sm:$0xff]
    %v1681 = vld [vmem:[#allocation9 + $0x738] sm:$0xff]
    %v1682 = vld [vmem:[#allocation9 + $0x740] sm:$0xff]
    %v1683 = vld [vmem:[#allocation9 + $0x748] sm:$0xff]
    %v1684 = vld [vmem:[#allocation9 + $0x750] sm:$0xff]
    %v1685 = vld [vmem:[#allocation9 + $0x758] sm:$0xff]
    %v1686 = vld [vmem:[#allocation9 + $0x760] sm:$0xff]
    %v1687 = vld [vmem:[#allocation9 + $0x768] sm:$0xff]
    %v1688 = vld [vmem:[#allocation9 + $0x770] sm:$0xff]
    %v1689 = vld [vmem:[#allocation9 + $0x778] sm:$0xff]
    %v1690 = vld [vmem:[#allocation9 + $0x780] sm:$0xff]
    %v1691 = vld [vmem:[#allocation9 + $0x788] sm:$0xff]
    %v1692 = vld [vmem:[#allocation9 + $0x790] sm:$0xff]
    %v1693 = vld [vmem:[#allocation9 + $0x798] sm:$0xff]
    %v1694 = vld [vmem:[#allocation9 + $0x7a0] sm:$0xff]
    %v1695 = vld [vmem:[#allocation9 + $0x7a8] sm:$0xff]
    %v1696 = vld [vmem:[#allocation9 + $0x7b0] sm:$0xff]
    %v1697 = vld [vmem:[#allocation9 + $0x7b8] sm:$0xff]
    %v1698 = vld [vmem:[#allocation9 + $0x7c0] sm:$0xff]
    %v1699 = vld [vmem:[#allocation9 + $0x7c8] sm:$0xff]
    %v1700 = vld [vmem:[#allocation9 + $0x7d0] sm:$0xff]
    %v1701 = vld [vmem:[#allocation9 + $0x7d8] sm:$0xff]
    %v1702 = vld [vmem:[#allocation9 + $0x7e0] sm:$0xff]
    %v1703 = vld [vmem:[#allocation9 + $0x7e8] sm:$0xff]
    %v1704 = vld [vmem:[#allocation9 + $0x7f0] sm:$0xff]
    %v1705 = vld [vmem:[#allocation9 + $0x7f8] sm:$0xff]
    %v1706 = vld [vmem:[#allocation2] sm:$0xff]
    %v1707 = vld [vmem:[#allocation2 + $0x8] sm:$0xff]
    %v1708 = vld [vmem:[#allocation2 + $0x10] sm:$0xff]
    %v1709 = vld [vmem:[#allocation2 + $0x18] sm:$0xff]
    %v1710 = vld [vmem:[#allocation2 + $0x20] sm:$0xff]
    %v1711 = vld [vmem:[#allocation2 + $0x28] sm:$0xff]
    %v1712 = vld [vmem:[#allocation2 + $0x30] sm:$0xff]
    %v1713 = vld [vmem:[#allocation2 + $0x38] sm:$0xff]
    %v1714 = vld [vmem:[#allocation2 + $0x3c0] sm:$0xff]
    %v1715 = vld [vmem:[#allocation2 + $0x3c8] sm:$0xff]
    %v1716 = vld [vmem:[#allocation2 + $0x3d0] sm:$0xff]
    %v1717 = vld [vmem:[#allocation2 + $0x3d8] sm:$0xff]
    %v1718 = vld [vmem:[#allocation2 + $0x3e0] sm:$0xff]
    %v1719 = vld [vmem:[#allocation2 + $0x3e8] sm:$0xff]
    %v1720 = vld [vmem:[#allocation2 + $0x3f0] sm:$0xff]
    %v1721 = vld [vmem:[#allocation2 + $0x3f8] sm:$0xff]
    %v1722 = vsel %vm1436, %v1706, %v1714
    %v1723 = vsel %vm1437, %v1707, %v1715
    %v1724 = vsel %vm1438, %v1708, %v1716
    %v1725 = vsel %vm1439, %v1709, %v1717
    %v1726 = vsel %vm1440, %v1710, %v1718
    %v1727 = vsel %vm1441, %v1711, %v1719
    %v1728 = vsel %vm1442, %v1712, %v1720
    %v1729 = vsel %vm1443, %v1713, %v1721
    %1730 = vmatprep.subr.mxu0 %v1451
    %1731 = vmatpush1.msra.mxu0 %v1450
    %1732 = vmatprep.subr.mxu0 %v1459
    %1733 = vmatpush1.msra.mxu0 %v1458
    %1734 = vmatprep.subr.mxu0 %v1467
    %1735 = vmatpush1.msra.mxu0 %v1466
    %1736 = vmatprep.subr.mxu0 %v1475
    %1737 = vmatpush1.msra.mxu0 %v1474
    %1738 = vmatprep.subr.mxu0 %v1483
    %1739 = vmatpush1.msra.mxu0 %v1482
    %1740 = vmatprep.subr.mxu0 %v1491
    %1741 = vmatpush1.msra.mxu0 %v1490
    %1742 = vmatprep.subr.mxu0 %v1499
    %1743 = vmatpush1.msra.mxu0 %v1498
    %1744 = vmatprep.subr.mxu0 %v1507
    %1745 = vmatpush1.msra.mxu0 %v1506
    %1746 = vmatprep.subr.mxu0 %v1515
    %1747 = vmatpush1.msra.mxu0 %v1514
    %1748 = vmatprep.subr.mxu0 %v1523
    %1749 = vmatpush1.msra.mxu0 %v1522
    %1750 = vmatprep.subr.mxu0 %v1531
    %1751 = vmatpush1.msra.mxu0 %v1530
    %1752 = vmatprep.subr.mxu0 %v1539
    %1753 = vmatpush1.msra.mxu0 %v1538
    %1754 = vmatprep.subr.mxu0 %v1547
    %1755 = vmatpush1.msra.mxu0 %v1546
    %1756 = vmatprep.subr.mxu0 %v1555
    %1757 = vmatpush1.msra.mxu0 %v1554
    %1758 = vmatprep.subr.mxu0 %v1563
    %1759 = vmatpush1.msra.mxu0 %v1562
    %1760 = vmatprep.subr.mxu0 %v1571
    %1761 = vmatpush1.msra.mxu0 %v1570
    %1762 = vmatprep.subr.mxu0 %v1579
    %1763 = vmatpush1.msra.mxu0 %v1578
    %1764 = vmatprep.subr.mxu0 %v1587
    %1765 = vmatpush1.msra.mxu0 %v1586
    %1766 = vmatprep.subr.mxu0 %v1595
    %1767 = vmatpush1.msra.mxu0 %v1594
    %1768 = vmatprep.subr.mxu0 %v1603
    %1769 = vmatpush1.msra.mxu0 %v1602
    %1770 = vmatprep.subr.mxu0 %v1611
    %1771 = vmatpush1.msra.mxu0 %v1610
    %1772 = vmatprep.subr.mxu0 %v1619
    %1773 = vmatpush1.msra.mxu0 %v1618
    %1774 = vmatprep.subr.mxu0 %v1627
    %1775 = vmatpush1.msra.mxu0 %v1626
    %1776 = vmatprep.subr.mxu0 %v1635
    %1777 = vmatpush1.msra.mxu0 %v1634
    %1778 = vmatprep.subr.mxu0 %v1643
    %1779 = vmatpush1.msra.mxu0 %v1642
    %1780 = vmatprep.subr.mxu0 %v1651
    %1781 = vmatpush1.msra.mxu0 %v1650
    %1782 = vmatprep.subr.mxu0 %v1659
    %1783 = vmatpush1.msra.mxu0 %v1658
    %1784 = vmatprep.subr.mxu0 %v1667
    %1785 = vmatpush1.msra.mxu0 %v1666
    %1786 = vmatprep.subr.mxu0 %v1675
    %1787 = vmatpush1.msra.mxu0 %v1674
    %1788 = vmatprep.subr.mxu0 %v1683
    %1789 = vmatpush1.msra.mxu0 %v1682
    %1790 = vmatprep.subr.mxu0 %v1691
    %1791 = vmatpush1.msra.mxu0 %v1690
    %1792 = vmatprep.subr.mxu0 %v1699
    %1793 = vmatpush1.msra.mxu0 %v1698
    %1794 = vmatprep.mubr.f32.mxu0 0.0
    %1795 = vmatmul.mubr.f32.gmra.mrb[0].mxu0 0.0
    %v1796 = vpop.f32.mrb[0].mxu0
    %v1797 = vadd.f32 %v1722, %v1796
    %v1798 = vpop.f32.mrb[0].mxu0
    %v1799 = vadd.f32 %v1723, %v1798
    %1800 = vdwg.mxu0
    %1801 = vmatprep.subr.mxu0 %v1453
    %1802 = vmatpush1.msra.mxu0 %v1452
    %1803 = vmatprep.subr.mxu0 %v1461
    %1804 = vmatpush1.msra.mxu0 %v1460
    %1805 = vmatprep.subr.mxu0 %v1469
    %1806 = vmatpush1.msra.mxu0 %v1468
    %1807 = vmatprep.subr.mxu0 %v1477
    %1808 = vmatpush1.msra.mxu0 %v1476
    %1809 = vmatprep.subr.mxu0 %v1485
    %1810 = vmatpush1.msra.mxu0 %v1484
    %1811 = vmatprep.subr.mxu0 %v1493
    %1812 = vmatpush1.msra.mxu0 %v1492
    %1813 = vmatprep.subr.mxu0 %v1501
    %1814 = vmatpush1.msra.mxu0 %v1500
    %1815 = vmatprep.subr.mxu0 %v1509
    %1816 = vmatpush1.msra.mxu0 %v1508
    %1817 = vmatprep.subr.mxu0 %v1517
    %1818 = vmatpush1.msra.mxu0 %v1516
    %1819 = vmatprep.subr.mxu0 %v1525
    %1820 = vmatpush1.msra.mxu0 %v1524
    %1821 = vmatprep.subr.mxu0 %v1533
    %1822 = vmatpush1.msra.mxu0 %v1532
    %1823 = vmatprep.subr.mxu0 %v1541
    %1824 = vmatpush1.msra.mxu0 %v1540
    %1825 = vmatprep.subr.mxu0 %v1549
    %1826 = vmatpush1.msra.mxu0 %v1548
    %1827 = vmatprep.subr.mxu0 %v1557
    %1828 = vmatpush1.msra.mxu0 %v1556
    %1829 = vmatprep.subr.mxu0 %v1565
    %1830 = vmatpush1.msra.mxu0 %v1564
    %1831 = vmatprep.subr.mxu0 %v1573
    %1832 = vmatpush1.msra.mxu0 %v1572
    %1833 = vmatprep.subr.mxu0 %v1581
    %1834 = vmatpush1.msra.mxu0 %v1580
    %1835 = vmatprep.subr.mxu0 %v1589
    %1836 = vmatpush1.msra.mxu0 %v1588
    %1837 = vmatprep.subr.mxu0 %v1597
    %1838 = vmatpush1.msra.mxu0 %v1596
    %1839 = vmatprep.subr.mxu0 %v1605
    %1840 = vmatpush1.msra.mxu0 %v1604
    %1841 = vmatprep.subr.mxu0 %v1613
    %1842 = vmatpush1.msra.mxu0 %v1612
    %1843 = vmatprep.subr.mxu0 %v1621
    %1844 = vmatpush1.msra.mxu0 %v1620
    %1845 = vmatprep.subr.mxu0 %v1629
    %1846 = vmatpush1.msra.mxu0 %v1628
    %1847 = vmatprep.subr.mxu0 %v1637
    %1848 = vmatpush1.msra.mxu0 %v1636
    %1849 = vmatprep.subr.mxu0 %v1645
    %1850 = vmatpush1.msra.mxu0 %v1644
    %1851 = vmatprep.subr.mxu0 %v1653
    %1852 = vmatpush1.msra.mxu0 %v1652
    %1853 = vmatprep.subr.mxu0 %v1661
    %1854 = vmatpush1.msra.mxu0 %v1660
    %1855 = vmatprep.subr.mxu0 %v1669
    %1856 = vmatpush1.msra.mxu0 %v1668
    %1857 = vmatprep.subr.mxu0 %v1677
    %1858 = vmatpush1.msra.mxu0 %v1676
    %1859 = vmatprep.subr.mxu0 %v1685
    %1860 = vmatpush1.msra.mxu0 %v1684
    %1861 = vmatprep.subr.mxu0 %v1693
    %1862 = vmatpush1.msra.mxu0 %v1692
    %1863 = vmatprep.subr.mxu0 %v1701
    %1864 = vmatpush1.msra.mxu0 %v1700
    %1865 = vmatprep.mubr.f32.mxu0 0.0
    %1866 = vmatmul.mubr.f32.gmra.mrb[0].mxu0 0.0
    %v1867 = vpop.f32.mrb[0].mxu0
    %v1868 = vadd.f32 %v1724, %v1867
    %v1869 = vpop.f32.mrb[0].mxu0
    %v1870 = vadd.f32 %v1725, %v1869
    %1871 = vdwg.mxu0
    %1872 = vmatprep.subr.mxu0 %v1455
    %1873 = vmatpush1.msra.mxu0 %v1454
    %1874 = vmatprep.subr.mxu0 %v1463
    %1875 = vmatpush1.msra.mxu0 %v1462
    %1876 = vmatprep.subr.mxu0 %v1471
    %1877 = vmatpush1.msra.mxu0 %v1470
    %1878 = vmatprep.subr.mxu0 %v1479
    %1879 = vmatpush1.msra.mxu0 %v1478
    %1880 = vmatprep.subr.mxu0 %v1487
    %1881 = vmatpush1.msra.mxu0 %v1486
    %1882 = vmatprep.subr.mxu0 %v1495
    %1883 = vmatpush1.msra.mxu0 %v1494
    %1884 = vmatprep.subr.mxu0 %v1503
    %1885 = vmatpush1.msra.mxu0 %v1502
    %1886 = vmatprep.subr.mxu0 %v1511
    %1887 = vmatpush1.msra.mxu0 %v1510
    %1888 = vmatprep.subr.mxu0 %v1519
    %1889 = vmatpush1.msra.mxu0 %v1518
    %1890 = vmatprep.subr.mxu0 %v1527
    %1891 = vmatpush1.msra.mxu0 %v1526
    %1892 = vmatprep.subr.mxu0 %v1535
    %1893 = vmatpush1.msra.mxu0 %v1534
    %1894 = vmatprep.subr.mxu0 %v1543
    %1895 = vmatpush1.msra.mxu0 %v1542
    %1896 = vmatprep.subr.mxu0 %v1551
    %1897 = vmatpush1.msra.mxu0 %v1550
    %1898 = vmatprep.subr.mxu0 %v1559
    %1899 = vmatpush1.msra.mxu0 %v1558
    %1900 = vmatprep.subr.mxu0 %v1567
    %1901 = vmatpush1.msra.mxu0 %v1566
    %1902 = vmatprep.subr.mxu0 %v1575
    %1903 = vmatpush1.msra.mxu0 %v1574
    %1904 = vmatprep.subr.mxu0 %v1583
    %1905 = vmatpush1.msra.mxu0 %v1582
    %1906 = vmatprep.subr.mxu0 %v1591
    %1907 = vmatpush1.msra.mxu0 %v1590
    %1908 = vmatprep.subr.mxu0 %v1599
    %1909 = vmatpush1.msra.mxu0 %v1598
    %1910 = vmatprep.subr.mxu0 %v1607
    %1911 = vmatpush1.msra.mxu0 %v1606
    %1912 = vmatprep.subr.mxu0 %v1615
    %1913 = vmatpush1.msra.mxu0 %v1614
    %1914 = vmatprep.subr.mxu0 %v1623
    %1915 = vmatpush1.msra.mxu0 %v1622
    %1916 = vmatprep.subr.mxu0 %v1631
    %1917 = vmatpush1.msra.mxu0 %v1630
    %1918 = vmatprep.subr.mxu0 %v1639
    %1919 = vmatpush1.msra.mxu0 %v1638
    %1920 = vmatprep.subr.mxu0 %v1647
    %1921 = vmatpush1.msra.mxu0 %v1646
    %1922 = vmatprep.subr.mxu0 %v1655
    %1923 = vmatpush1.msra.mxu0 %v1654
    %1924 = vmatprep.subr.mxu0 %v1663
    %1925 = vmatpush1.msra.mxu0 %v1662
    %1926 = vmatprep.subr.mxu0 %v1671
    %1927 = vmatpush1.msra.mxu0 %v1670
    %1928 = vmatprep.subr.mxu0 %v1679
    %1929 = vmatpush1.msra.mxu0 %v1678
    %1930 = vmatprep.subr.mxu0 %v1687
    %1931 = vmatpush1.msra.mxu0 %v1686
    %1932 = vmatprep.subr.mxu0 %v1695
    %1933 = vmatpush1.msra.mxu0 %v1694
    %1934 = vmatprep.subr.mxu0 %v1703
    %1935 = vmatpush1.msra.mxu0 %v1702
    %1936 = vmatprep.mubr.f32.mxu0 0.0
    %1937 = vmatmul.mubr.f32.gmra.mrb[0].mxu0 0.0
    %v1938 = vpop.f32.mrb[0].mxu0
    %v1939 = vadd.f32 %v1726, %v1938
    %v1940 = vpop.f32.mrb[0].mxu0
    %v1941 = vadd.f32 %v1727, %v1940
    %1942 = vdwg.mxu0
    %1943 = vmatprep.subr.mxu0 %v1457
    %1944 = vmatpush1.msra.mxu0 %v1456
    %1945 = vmatprep.subr.mxu0 %v1465
    %1946 = vmatpush1.msra.mxu0 %v1464
    %1947 = vmatprep.subr.mxu0 %v1473
    %1948 = vmatpush1.msra.mxu0 %v1472
    %1949 = vmatprep.subr.mxu0 %v1481
    %1950 = vmatpush1.msra.mxu0 %v1480
    %1951 = vmatprep.subr.mxu0 %v1489
    %1952 = vmatpush1.msra.mxu0 %v1488
    %1953 = vmatprep.subr.mxu0 %v1497
    %1954 = vmatpush1.msra.mxu0 %v1496
    %1955 = vmatprep.subr.mxu0 %v1505
    %1956 = vmatpush1.msra.mxu0 %v1504
    %1957 = vmatprep.subr.mxu0 %v1513
    %1958 = vmatpush1.msra.mxu0 %v1512
    %1959 = vmatprep.subr.mxu0 %v1521
    %1960 = vmatpush1.msra.mxu0 %v1520
    %1961 = vmatprep.subr.mxu0 %v1529
    %1962 = vmatpush1.msra.mxu0 %v1528
    %1963 = vmatprep.subr.mxu0 %v1537
    %1964 = vmatpush1.msra.mxu0 %v1536
    %1965 = vmatprep.subr.mxu0 %v1545
    %1966 = vmatpush1.msra.mxu0 %v1544
    %1967 = vmatprep.subr.mxu0 %v1553
    %1968 = vmatpush1.msra.mxu0 %v1552
    %1969 = vmatprep.subr.mxu0 %v1561
    %1970 = vmatpush1.msra.mxu0 %v1560
    %1971 = vmatprep.subr.mxu0 %v1569
    %1972 = vmatpush1.msra.mxu0 %v1568
    %1973 = vmatprep.subr.mxu0 %v1577
    %1974 = vmatpush1.msra.mxu0 %v1576
    %1975 = vmatprep.subr.mxu0 %v1585
    %1976 = vmatpush1.msra.mxu0 %v1584
    %1977 = vmatprep.subr.mxu0 %v1593
    %1978 = vmatpush1.msra.mxu0 %v1592
    %1979 = vmatprep.subr.mxu0 %v1601
    %1980 = vmatpush1.msra.mxu0 %v1600
    %1981 = vmatprep.subr.mxu0 %v1609
    %1982 = vmatpush1.msra.mxu0 %v1608
    %1983 = vmatprep.subr.mxu0 %v1617
    %1984 = vmatpush1.msra.mxu0 %v1616
    %1985 = vmatprep.subr.mxu0 %v1625
    %1986 = vmatpush1.msra.mxu0 %v1624
    %1987 = vmatprep.subr.mxu0 %v1633
    %1988 = vmatpush1.msra.mxu0 %v1632
    %1989 = vmatprep.subr.mxu0 %v1641
    %1990 = vmatpush1.msra.mxu0 %v1640
    %1991 = vmatprep.subr.mxu0 %v1649
    %1992 = vmatpush1.msra.mxu0 %v1648
    %1993 = vmatprep.subr.mxu0 %v1657
    %1994 = vmatpush1.msra.mxu0 %v1656
    %1995 = vmatprep.subr.mxu0 %v1665
    %1996 = vmatpush1.msra.mxu0 %v1664
    %1997 = vmatprep.subr.mxu0 %v1673
    %1998 = vmatpush1.msra.mxu0 %v1672
    %1999 = vmatprep.subr.mxu0 %v1681
    %2000 = vmatpush1.msra.mxu0 %v1680
    %2001 = vmatprep.subr.mxu0 %v1689
    %2002 = vmatpush1.msra.mxu0 %v1688
    %2003 = vmatprep.subr.mxu0 %v1697
    %2004 = vmatpush1.msra.mxu0 %v1696
    %2005 = vmatprep.subr.mxu0 %v1705
    %2006 = vmatpush1.msra.mxu0 %v1704
    %2007 = vmatprep.mubr.f32.mxu0 0.0
    %2008 = vmatmul.mubr.f32.gmra.mrb[0].mxu0 0.0
    %v2009 = vpop.f32.mrb[0].mxu0
    %v2010 = vadd.f32 %v1728, %v2009
    %v2011 = vpop.f32.mrb[0].mxu0
    %v2012 = vadd.f32 %v1729, %v2011
    %2013 = vdwg.mxu0
    %v2014 = vmul.f32 %v1797, 0.5
    %v2015 = vmul.f32 %v1799, 0.5
    %v2016 = vtanh.pop %v2014
    %v2017 = vtanh.pop %v2015
    %v2018 = vadd.f32 %v2016, 1.0
    %v2019 = vadd.f32 %v2017, 1.0
    %v2020 = vmul.f32 %v2018, 0.5
    %v2021 = vmul.f32 %v2019, 0.5
    %v2022 = vmul.f32 %v1868, 0.5
    %v2023 = vmul.f32 %v1870, 0.5
    %v2024 = vtanh.pop %v2022
    %v2025 = vtanh.pop %v2023
    %v2026 = vadd.f32 %v2024, 1.0
    %v2027 = vadd.f32 %v2025, 1.0
    %v2028 = vmul.f32 %v2026, 0.5
    %v2029 = vmul.f32 %v2027, 0.5
    %v2030 = vtanh.pop %v1939
    %v2031 = vtanh.pop %v1941
    %v2032 = vmul.f32 %v2010, 0.5
    %v2033 = vmul.f32 %v2012, 0.5
    %v2034 = vtanh.pop %v2032
    %v2035 = vtanh.pop %v2033
    %v2036 = vadd.f32 %v2034, 1.0
    %v2037 = vadd.f32 %v2035, 1.0
    %v2038 = vmul.f32 %v2036, 0.5
    %v2039 = vmul.f32 %v2037, 0.5
    %v2040 = vmul.f32 %v2028, 0.0
    %v2041 = vmul.f32 %v2029, 0.0
    %v2042 = vmul.f32 %v2020, %v2030
    %v2043 = vmul.f32 %v2021, %v2031
    %v2044 = vadd.f32 %v2040, %v2042
    %v2045 = vadd.f32 %v2041, %v2043
    %v2046 = vtanh.pop %v2044
    %v2047 = vtanh.pop %v2045
    %v2048 = vmul.f32 %v2038, %v2046
    %v2049 = vmul.f32 %v2039, %v2047
    %v2050 = vsel %vm1444, 0, 15
    %v2051 = vsel %vm1445, 0, 15
    %vm2052 = vcmp.gt.s32.totalorder %v1449, %v2050
    %vm2053 = vcmp.gt.s32.totalorder %v1449, %v2051
    %v2054 = vsel %vm2052, %v2048, 0.0
    %v2055 = vsel %vm2053, %v2049, 0.0
    %2056 = vst [vmem:[#allocation15] sm:$0xff] %v2054
    %2057 = vst [vmem:[#allocation15 + $0x78] sm:$0xff] %v2055
    %v2058 = vsel %vm2052, %v2044, 0.0
    %v2059 = vsel %vm2053, %v2045, 0.0
    %v2060 = vld [vmem:[#allocation2 + $0x40] sm:$0xff]
    %v2061 = vld [vmem:[#allocation2 + $0x48] sm:$0xff]
    %v2062 = vld [vmem:[#allocation2 + $0x50] sm:$0xff]
    %v2063 = vld [vmem:[#allocation2 + $0x58] sm:$0xff]
    %v2064 = vld [vmem:[#allocation2 + $0x60] sm:$0xff]
    %v2065 = vld [vmem:[#allocation2 + $0x68] sm:$0xff]
    %v2066 = vld [vmem:[#allocation2 + $0x70] sm:$0xff]
    %v2067 = vld [vmem:[#allocation2 + $0x78] sm:$0xff]
    %v2068 = vld [vmem:[#allocation2 + $0x380] sm:$0xff]
    %v2069 = vld [vmem:[#allocation2 + $0x388] sm:$0xff]
    %v2070 = vld [vmem:[#allocation2 + $0x390] sm:$0xff]
    %v2071 = vld [vmem:[#allocation2 + $0x398] sm:$0xff]
    %v2072 = vld [vmem:[#allocation2 + $0x3a0] sm:$0xff]
    %v2073 = vld [vmem:[#allocation2 + $0x3a8] sm:$0xff]
    %v2074 = vld [vmem:[#allocation2 + $0x3b0] sm:$0xff]
    %v2075 = vld [vmem:[#allocation2 + $0x3b8] sm:$0xff]
    %v2076 = vsel %vm1436, %v2060, %v2068
    %v2077 = vsel %vm1437, %v2061, %v2069
    %v2078 = vsel %vm1438, %v2062, %v2070
    %v2079 = vsel %vm1439, %v2063, %v2071
    %v2080 = vsel %vm1440, %v2064, %v2072
    %v2081 = vsel %vm1441, %v2065, %v2073
    %v2082 = vsel %vm1442, %v2066, %v2074
    %v2083 = vsel %vm1443, %v2067, %v2075
    %2084 = vmatprep.subr.mxu0 %v1451
    %2085 = vmatpush1.msra.mxu0 %v1450
    %2086 = vmatprep.subr.mxu0 %v1459
    %2087 = vmatpush1.msra.mxu0 %v1458
    %2088 = vmatprep.subr.mxu0 %v1467
    %2089 = vmatpush1.msra.mxu0 %v1466
    %2090 = vmatprep.subr.mxu0 %v1475
    %2091 = vmatpush1.msra.mxu0 %v1474
    %2092 = vmatprep.subr.mxu0 %v1483
    %2093 = vmatpush1.msra.mxu0 %v1482
    %2094 = vmatprep.subr.mxu0 %v1491
    %2095 = vmatpush1.msra.mxu0 %v1490
    %2096 = vmatprep.subr.mxu0 %v1499
    %2097 = vmatpush1.msra.mxu0 %v1498
    %2098 = vmatprep.subr.mxu0 %v1507
    %2099 = vmatpush1.msra.mxu0 %v1506
    %2100 = vmatprep.subr.mxu0 %v1515
    %2101 = vmatpush1.msra.mxu0 %v1514
    %2102 = vmatprep.subr.mxu0 %v1523
    %2103 = vmatpush1.msra.mxu0 %v1522
    %2104 = vmatprep.subr.mxu0 %v1531
    %2105 = vmatpush1.msra.mxu0 %v1530
    %2106 = vmatprep.subr.mxu0 %v1539
    %2107 = vmatpush1.msra.mxu0 %v1538
    %2108 = vmatprep.subr.mxu0 %v1547
    %2109 = vmatpush1.msra.mxu0 %v1546
    %2110 = vmatprep.subr.mxu0 %v1555
    %2111 = vmatpush1.msra.mxu0 %v1554
    %2112 = vmatprep.subr.mxu0 %v1563
    %2113 = vmatpush1.msra.mxu0 %v1562
    %2114 = vmatprep.subr.mxu0 %v1571
    %2115 = vmatpush1.msra.mxu0 %v1570
    %2116 = vmatprep.subr.mxu0 %v1579
    %2117 = vmatpush1.msra.mxu0 %v1578
    %2118 = vmatprep.subr.mxu0 %v1587
    %2119 = vmatpush1.msra.mxu0 %v1586
    %2120 = vmatprep.subr.mxu0 %v1595
    %2121 = vmatpush1.msra.mxu0 %v1594
    %2122 = vmatprep.subr.mxu0 %v1603
    %2123 = vmatpush1.msra.mxu0 %v1602
    %2124 = vmatprep.subr.mxu0 %v1611
    %2125 = vmatpush1.msra.mxu0 %v1610
    %2126 = vmatprep.subr.mxu0 %v1619
    %2127 = vmatpush1.msra.mxu0 %v1618
    %2128 = vmatprep.subr.mxu0 %v1627
    %2129 = vmatpush1.msra.mxu0 %v1626
    %2130 = vmatprep.subr.mxu0 %v1635
    %2131 = vmatpush1.msra.mxu0 %v1634
    %2132 = vmatprep.subr.mxu0 %v1643
    %2133 = vmatpush1.msra.mxu0 %v1642
    %2134 = vmatprep.subr.mxu0 %v1651
    %2135 = vmatpush1.msra.mxu0 %v1650
    %2136 = vmatprep.subr.mxu0 %v1659
    %2137 = vmatpush1.msra.mxu0 %v1658
    %2138 = vmatprep.subr.mxu0 %v1667
    %2139 = vmatpush1.msra.mxu0 %v1666
    %2140 = vmatprep.subr.mxu0 %v1675
    %2141 = vmatpush1.msra.mxu0 %v1674
    %2142 = vmatprep.subr.mxu0 %v1683
    %2143 = vmatpush1.msra.mxu0 %v1682
    %2144 = vmatprep.subr.mxu0 %v1691
    %2145 = vmatpush1.msra.mxu0 %v1690
    %2146 = vmatprep.subr.mxu0 %v1699
    %2147 = vmatpush1.msra.mxu0 %v1698
    %2148 = vmatprep.mubr.f32.mxu0 %v2055
    %2149 = vmatmul.mubr.f32.gmra.mrb[0].mxu0 %v2054
    %v2150 = vpop.f32.mrb[0].mxu0
    %v2151 = vadd.f32 %v2076, %v2150
    %v2152 = vpop.f32.mrb[0].mxu0
    %v2153 = vadd.f32 %v2077, %v2152
    %2154 = vdwg.mxu0
    %2155 = vmatprep.subr.mxu0 %v1453
    %2156 = vmatpush1.msra.mxu0 %v1452
    %2157 = vmatprep.subr.mxu0 %v1461
    %2158 = vmatpush1.msra.mxu0 %v1460
    %2159 = vmatprep.subr.mxu0 %v1469
    %2160 = vmatpush1.msra.mxu0 %v1468
    %2161 = vmatprep.subr.mxu0 %v1477
    %2162 = vmatpush1.msra.mxu0 %v1476
    %2163 = vmatprep.subr.mxu0 %v1485
    %2164 = vmatpush1.msra.mxu0 %v1484
    %2165 = vmatprep.subr.mxu0 %v1493
    %2166 = vmatpush1.msra.mxu0 %v1492
    %2167 = vmatprep.subr.mxu0 %v1501
    %2168 = vmatpush1.msra.mxu0 %v1500
    %2169 = vmatprep.subr.mxu0 %v1509
    %2170 = vmatpush1.msra.mxu0 %v1508
    %2171 = vmatprep.subr.mxu0 %v1517
    %2172 = vmatpush1.msra.mxu0 %v1516
    %2173 = vmatprep.subr.mxu0 %v1525
    %2174 = vmatpush1.msra.mxu0 %v1524
    %2175 = vmatprep.subr.mxu0 %v1533
    %2176 = vmatpush1.msra.mxu0 %v1532
    %2177 = vmatprep.subr.mxu0 %v1541
    %2178 = vmatpush1.msra.mxu0 %v1540
    %2179 = vmatprep.subr.mxu0 %v1549
    %2180 = vmatpush1.msra.mxu0 %v1548
    %2181 = vmatprep.subr.mxu0 %v1557
    %2182 = vmatpush1.msra.mxu0 %v1556
    %2183 = vmatprep.subr.mxu0 %v1565
    %2184 = vmatpush1.msra.mxu0 %v1564
    %2185 = vmatprep.subr.mxu0 %v1573
    %2186 = vmatpush1.msra.mxu0 %v1572
    %2187 = vmatprep.subr.mxu0 %v1581
    %2188 = vmatpush1.msra.mxu0 %v1580
    %2189 = vmatprep.subr.mxu0 %v1589
    %2190 = vmatpush1.msra.mxu0 %v1588
    %2191 = vmatprep.subr.mxu0 %v1597
    %2192 = vmatpush1.msra.mxu0 %v1596
    %2193 = vmatprep.subr.mxu0 %v1605
    %2194 = vmatpush1.msra.mxu0 %v1604
    %2195 = vmatprep.subr.mxu0 %v1613
    %2196 = vmatpush1.msra.mxu0 %v1612
    %2197 = vmatprep.subr.mxu0 %v1621
    %2198 = vmatpush1.msra.mxu0 %v1620
    %2199 = vmatprep.subr.mxu0 %v1629
    %2200 = vmatpush1.msra.mxu0 %v1628
    %2201 = vmatprep.subr.mxu0 %v1637
    %2202 = vmatpush1.msra.mxu0 %v1636
    %2203 = vmatprep.subr.mxu0 %v1645
    %2204 = vmatpush1.msra.mxu0 %v1644
    %2205 = vmatprep.subr.mxu0 %v1653
    %2206 = vmatpush1.msra.mxu0 %v1652
    %2207 = vmatprep.subr.mxu0 %v1661
    %2208 = vmatpush1.msra.mxu0 %v1660
    %2209 = vmatprep.subr.mxu0 %v1669
    %2210 = vmatpush1.msra.mxu0 %v1668
    %2211 = vmatprep.subr.mxu0 %v1677
    %2212 = vmatpush1.msra.mxu0 %v1676
    %2213 = vmatprep.subr.mxu0 %v1685
    %2214 = vmatpush1.msra.mxu0 %v1684
    %2215 = vmatprep.subr.mxu0 %v1693
    %2216 = vmatpush1.msra.mxu0 %v1692
    %2217 = vmatprep.subr.mxu0 %v1701
    %2218 = vmatpush1.msra.mxu0 %v1700
    %2219 = vmatprep.mubr.f32.mxu0 %v2055
    %2220 = vmatmul.mubr.f32.gmra.mrb[0].mxu0 %v2054
    %v2221 = vpop.f32.mrb[0].mxu0
    %v2222 = vadd.f32 %v2078, %v2221
    %v2223 = vpop.f32.mrb[0].mxu0
    %v2224 = vadd.f32 %v2079, %v2223
    %2225 = vdwg.mxu0
    %2226 = vmatprep.subr.mxu0 %v1455
    %2227 = vmatpush1.msra.mxu0 %v1454
    %2228 = vmatprep.subr.mxu0 %v1463
    %2229 = vmatpush1.msra.mxu0 %v1462
    %2230 = vmatprep.subr.mxu0 %v1471
    %2231 = vmatpush1.msra.mxu0 %v1470
    %2232 = vmatprep.subr.mxu0 %v1479
    %2233 = vmatpush1.msra.mxu0 %v1478
    %2234 = vmatprep.subr.mxu0 %v1487
    %2235 = vmatpush1.msra.mxu0 %v1486
    %2236 = vmatprep.subr.mxu0 %v1495
    %2237 = vmatpush1.msra.mxu0 %v1494
    %2238 = vmatprep.subr.mxu0 %v1503
    %2239 = vmatpush1.msra.mxu0 %v1502
    %2240 = vmatprep.subr.mxu0 %v1511
    %2241 = vmatpush1.msra.mxu0 %v1510
    %2242 = vmatprep.subr.mxu0 %v1519
    %2243 = vmatpush1.msra.mxu0 %v1518
    %2244 = vmatprep.subr.mxu0 %v1527
    %2245 = vmatpush1.msra.mxu0 %v1526
    %2246 = vmatprep.subr.mxu0 %v1535
    %2247 = vmatpush1.msra.mxu0 %v1534
    %2248 = vmatprep.subr.mxu0 %v1543
    %2249 = vmatpush1.msra.mxu0 %v1542
    %2250 = vmatprep.subr.mxu0 %v1551
    %2251 = vmatpush1.msra.mxu0 %v1550
    %2252 = vmatprep.subr.mxu0 %v1559
    %2253 = vmatpush1.msra.mxu0 %v1558
    %2254 = vmatprep.subr.mxu0 %v1567
    %2255 = vmatpush1.msra.mxu0 %v1566
    %2256 = vmatprep.subr.mxu0 %v1575
    %2257 = vmatpush1.msra.mxu0 %v1574
    %2258 = vmatprep.subr.mxu0 %v1583
    %2259 = vmatpush1.msra.mxu0 %v1582
    %2260 = vmatprep.subr.mxu0 %v1591
    %2261 = vmatpush1.msra.mxu0 %v1590
    %2262 = vmatprep.subr.mxu0 %v1599
    %2263 = vmatpush1.msra.mxu0 %v1598
    %2264 = vmatprep.subr.mxu0 %v1607
    %2265 = vmatpush1.msra.mxu0 %v1606
    %2266 = vmatprep.subr.mxu0 %v1615
    %2267 = vmatpush1.msra.mxu0 %v1614
    %2268 = vmatprep.subr.mxu0 %v1623
    %2269 = vmatpush1.msra.mxu0 %v1622
    %2270 = vmatprep.subr.mxu0 %v1631
    %2271 = vmatpush1.msra.mxu0 %v1630
    %2272 = vmatprep.subr.mxu0 %v1639
    %2273 = vmatpush1.msra.mxu0 %v1638
    %2274 = vmatprep.subr.mxu0 %v1647
    %2275 = vmatpush1.msra.mxu0 %v1646
    %2276 = vmatprep.subr.mxu0 %v1655
    %2277 = vmatpush1.msra.mxu0 %v1654
    %2278 = vmatprep.subr.mxu0 %v1663
    %2279 = vmatpush1.msra.mxu0 %v1662
    %2280 = vmatprep.subr.mxu0 %v1671
    %2281 = vmatpush1.msra.mxu0 %v1670
    %2282 = vmatprep.subr.mxu0 %v1679
    %2283 = vmatpush1.msra.mxu0 %v1678
    %2284 = vmatprep.subr.mxu0 %v1687
    %2285 = vmatpush1.msra.mxu0 %v1686
    %2286 = vmatprep.subr.mxu0 %v1695
    %2287 = vmatpush1.msra.mxu0 %v1694
    %2288 = vmatprep.subr.mxu0 %v1703
    %2289 = vmatpush1.msra.mxu0 %v1702
    %2290 = vmatprep.mubr.f32.mxu0 %v2055
    %2291 = vmatmul.mubr.f32.gmra.mrb[0].mxu0 %v2054
    %v2292 = vpop.f32.mrb[0].mxu0
    %v2293 = vadd.f32 %v2080, %v2292
    %v2294 = vpop.f32.mrb[0].mxu0
    %v2295 = vadd.f32 %v2081, %v2294
    %2296 = vdwg.mxu0
    %2297 = vmatprep.subr.mxu0 %v1457
    %2298 = vmatpush1.msra.mxu0 %v1456
    %2299 = vmatprep.subr.mxu0 %v1465
    %2300 = vmatpush1.msra.mxu0 %v1464
    %2301 = vmatprep.subr.mxu0 %v1473
    %2302 = vmatpush1.msra.mxu0 %v1472
    %2303 = vmatprep.subr.mxu0 %v1481
    %2304 = vmatpush1.msra.mxu0 %v1480
    %2305 = vmatprep.subr.mxu0 %v1489
    %2306 = vmatpush1.msra.mxu0 %v1488
    %2307 = vmatprep.subr.mxu0 %v1497
    %2308 = vmatpush1.msra.mxu0 %v1496
    %2309 = vmatprep.subr.mxu0 %v1505
    %2310 = vmatpush1.msra.mxu0 %v1504
    %2311 = vmatprep.subr.mxu0 %v1513
    %2312 = vmatpush1.msra.mxu0 %v1512
    %2313 = vmatprep.subr.mxu0 %v1521
    %2314 = vmatpush1.msra.mxu0 %v1520
    %2315 = vmatprep.subr.mxu0 %v1529
    %2316 = vmatpush1.msra.mxu0 %v1528
    %2317 = vmatprep.subr.mxu0 %v1537
    %2318 = vmatpush1.msra.mxu0 %v1536
    %2319 = vmatprep.subr.mxu0 %v1545
    %2320 = vmatpush1.msra.mxu0 %v1544
    %2321 = vmatprep.subr.mxu0 %v1553
    %2322 = vmatpush1.msra.mxu0 %v1552
    %2323 = vmatprep.subr.mxu0 %v1561
    %2324 = vmatpush1.msra.mxu0 %v1560
    %2325 = vmatprep.subr.mxu0 %v1569
    %2326 = vmatpush1.msra.mxu0 %v1568
    %2327 = vmatprep.subr.mxu0 %v1577
    %2328 = vmatpush1.msra.mxu0 %v1576
    %2329 = vmatprep.subr.mxu0 %v1585
    %2330 = vmatpush1.msra.mxu0 %v1584
    %2331 = vmatprep.subr.mxu0 %v1593
    %2332 = vmatpush1.msra.mxu0 %v1592
    %2333 = vmatprep.subr.mxu0 %v1601
    %2334 = vmatpush1.msra.mxu0 %v1600
    %2335 = vmatprep.subr.mxu0 %v1609
    %2336 = vmatpush1.msra.mxu0 %v1608
    %2337 = vmatprep.subr.mxu0 %v1617
    %2338 = vmatpush1.msra.mxu0 %v1616
    %2339 = vmatprep.subr.mxu0 %v1625
    %2340 = vmatpush1.msra.mxu0 %v1624
    %2341 = vmatprep.subr.mxu0 %v1633
    %2342 = vmatpush1.msra.mxu0 %v1632
    %2343 = vmatprep.subr.mxu0 %v1641
    %2344 = vmatpush1.msra.mxu0 %v1640
    %2345 = vmatprep.subr.mxu0 %v1649
    %2346 = vmatpush1.msra.mxu0 %v1648
    %2347 = vmatprep.subr.mxu0 %v1657
    %2348 = vmatpush1.msra.mxu0 %v1656
    %2349 = vmatprep.subr.mxu0 %v1665
    %2350 = vmatpush1.msra.mxu0 %v1664
    %2351 = vmatprep.subr.mxu0 %v1673
    %2352 = vmatpush1.msra.mxu0 %v1672
    %2353 = vmatprep.subr.mxu0 %v1681
    %2354 = vmatpush1.msra.mxu0 %v1680
    %2355 = vmatprep.subr.mxu0 %v1689
    %2356 = vmatpush1.msra.mxu0 %v1688
    %2357 = vmatprep.subr.mxu0 %v1697
    %2358 = vmatpush1.msra.mxu0 %v1696
    %2359 = vmatprep.subr.mxu0 %v1705
    %2360 = vmatpush1.msra.mxu0 %v1704
    %2361 = vmatprep.mubr.f32.mxu0 %v2055
    %2362 = vmatmul.mubr.f32.gmra.mrb[0].mxu0 %v2054
    %v2363 = vpop.f32.mrb[0].mxu0
    %v2364 = vadd.f32 %v2082, %v2363
    %v2365 = vpop.f32.mrb[0].mxu0
    %v2366 = vadd.f32 %v2083, %v2365
    %2367 = vdwg.mxu0
    %v2368 = vmul.f32 %v2151, 0.5
    %v2369 = vmul.f32 %v2153, 0.5
    %v2370 = vtanh.pop %v2368
    %v2371 = vtanh.pop %v2369
    %v2372 = vadd.f32 %v2370, 1.0
    %v2373 = vadd.f32 %v2371, 1.0
    %v2374 = vmul.f32 %v2372, 0.5
    %v2375 = vmul.f32 %v2373, 0.5
    %v2376 = vmul.f32 %v2222, 0.5
    %v2377 = vmul.f32 %v2224, 0.5
    %v2378 = vtanh.pop %v2376
    %v2379 = vtanh.pop %v2377
    %v2380 = vadd.f32 %v2378, 1.0
    %v2381 = vadd.f32 %v2379, 1.0
    %v2382 = vmul.f32 %v2380, 0.5
    %v2383 = vmul.f32 %v2381, 0.5
    %v2384 = vtanh.pop %v2293
    %v2385 = vtanh.pop %v2295
    %v2386 = vmul.f32 %v2364, 0.5
    %v2387 = vmul.f32 %v2366, 0.5
    %v2388 = vtanh.pop %v2386
    %v2389 = vtanh.pop %v2387
    %v2390 = vadd.f32 %v2388, 1.0
    %v2391 = vadd.f32 %v2389, 1.0
    %v2392 = vmul.f32 %v2390, 0.5
    %v2393 = vmul.f32 %v2391, 0.5
    %v2394 = vmul.f32 %v2382, %v2058
    %v2395 = vmul.f32 %v2383, %v2059
    %v2396 = vmul.f32 %v2374, %v2384
    %v2397 = vmul.f32 %v2375, %v2385
    %v2398 = vadd.f32 %v2394, %v2396
    %v2399 = vadd.f32 %v2395, %v2397
    %v2400 = vtanh.pop %v2398
    %v2401 = vtanh.pop %v2399
    %v2402 = vmul.f32 %v2392, %v2400
    %v2403 = vmul.f32 %v2393, %v2401
    %v2404 = vsel %vm1444, 1, 14
    %v2405 = vsel %vm1445, 1, 14
    %vm2406 = vcmp.gt.s32.totalorder %v1449, %v2404
    %vm2407 = vcmp.gt.s32.totalorder %v1449, %v2405
    %v2408 = vsel %vm2406, %v2402, 0.0
    %v2409 = vsel %vm2407, %v2403, 0.0
    %2410 = vst [vmem:[#allocation15 + $0x8] sm:$0xff] %v2408
    %2411 = vst [vmem:[#allocation15 + $0x70] sm:$0xff] %v2409
    %v2412 = vsel %vm2406, %v2402, %v2054
    %v2413 = vsel %vm2407, %v2403, %v2055
    %v2414 = vsel %vm2406, %v2398, %v2058
    %v2415 = vsel %vm2407, %v2399, %v2059
    %v2416 = vld [vmem:[#allocation2 + $0x80] sm:$0xff]
    %v2417 = vld [vmem:[#allocation2 + $0x88] sm:$0xff]
    %v2418 = vld [vmem:[#allocation2 + $0x90] sm:$0xff]
    %v2419 = vld [vmem:[#allocation2 + $0x98] sm:$0xff]
    %v2420 = vld [vmem:[#allocation2 + $0xa0] sm:$0xff]
    %v2421 = vld [vmem:[#allocation2 + $0xa8] sm:$0xff]
    %v2422 = vld [vmem:[#allocation2 + $0xb0] sm:$0xff]
    %v2423 = vld [vmem:[#allocation2 + $0xb8] sm:$0xff]
    %v2424 = vld [vmem:[#allocation2 + $0x340] sm:$0xff]
    %v2425 = vld [vmem:[#allocation2 + $0x348] sm:$0xff]
    %v2426 = vld [vmem:[#allocation2 + $0x350] sm:$0xff]
    %v2427 = vld [vmem:[#allocation2 + $0x358] sm:$0xff]
    %v2428 = vld [vmem:[#allocation2 + $0x360] sm:$0xff]
    %v2429 = vld [vmem:[#allocation2 + $0x368] sm:$0xff]
    %v2430 = vld [vmem:[#allocation2 + $0x370] sm:$0xff]
    %v2431 = vld [vmem:[#allocation2 + $0x378] sm:$0xff]
    %v2432 = vsel %vm1436, %v2416, %v2424
    %v2433 = vsel %vm1437, %v2417, %v2425
    %v2434 = vsel %vm1438, %v2418, %v2426
    %v2435 = vsel %vm1439, %v2419, %v2427
    %v2436 = vsel %vm1440, %v2420, %v2428
    %v2437 = vsel %vm1441, %v2421, %v2429
    %v2438 = vsel %vm1442, %v2422, %v2430
    %v2439 = vsel %vm1443, %v2423, %v2431
    %2440 = vmatprep.subr.mxu0 %v1451
    %2441 = vmatpush1.msra.mxu0 %v1450
    %2442 = vmatprep.subr.mxu0 %v1459
    %2443 = vmatpush1.msra.mxu0 %v1458
    %2444 = vmatprep.subr.mxu0 %v1467
    %2445 = vmatpush1.msra.mxu0 %v1466
    %2446 = vmatprep.subr.mxu0 %v1475
    %2447 = vmatpush1.msra.mxu0 %v1474
    %2448 = vmatprep.subr.mxu0 %v1483
    %2449 = vmatpush1.msra.mxu0 %v1482
    %2450 = vmatprep.subr.mxu0 %v1491
    %2451 = vmatpush1.msra.mxu0 %v1490
    %2452 = vmatprep.subr.mxu0 %v1499
    %2453 = vmatpush1.msra.mxu0 %v1498
    %2454 = vmatprep.subr.mxu0 %v1507
    %2455 = vmatpush1.msra.mxu0 %v1506
    %2456 = vmatprep.subr.mxu0 %v1515
    %2457 = vmatpush1.msra.mxu0 %v1514
    %2458 = vmatprep.subr.mxu0 %v1523
    %2459 = vmatpush1.msra.mxu0 %v1522
    %2460 = vmatprep.subr.mxu0 %v1531
    %2461 = vmatpush1.msra.mxu0 %v1530
    %2462 = vmatprep.subr.mxu0 %v1539
    %2463 = vmatpush1.msra.mxu0 %v1538
    %2464 = vmatprep.subr.mxu0 %v1547
    %2465 = vmatpush1.msra.mxu0 %v1546
    %2466 = vmatprep.subr.mxu0 %v1555
    %2467 = vmatpush1.msra.mxu0 %v1554
    %2468 = vmatprep.subr.mxu0 %v1563
    %2469 = vmatpush1.msra.mxu0 %v1562
    %2470 = vmatprep.subr.mxu0 %v1571
    %2471 = vmatpush1.msra.mxu0 %v1570
    %2472 = vmatprep.subr.mxu0 %v1579
    %2473 = vmatpush1.msra.mxu0 %v1578
    %2474 = vmatprep.subr.mxu0 %v1587
    %2475 = vmatpush1.msra.mxu0 %v1586
    %2476 = vmatprep.subr.mxu0 %v1595
    %2477 = vmatpush1.msra.mxu0 %v1594
    %2478 = vmatprep.subr.mxu0 %v1603
    %2479 = vmatpush1.msra.mxu0 %v1602
    %2480 = vmatprep.subr.mxu0 %v1611
    %2481 = vmatpush1.msra.mxu0 %v1610
    %2482 = vmatprep.subr.mxu0 %v1619
    %2483 = vmatpush1.msra.mxu0 %v1618
    %2484 = vmatprep.subr.mxu0 %v1627
    %2485 = vmatpush1.msra.mxu0 %v1626
    %2486 = vmatprep.subr.mxu0 %v1635
    %2487 = vmatpush1.msra.mxu0 %v1634
    %2488 = vmatprep.subr.mxu0 %v1643
    %2489 = vmatpush1.msra.mxu0 %v1642
    %2490 = vmatprep.subr.mxu0 %v1651
    %2491 = vmatpush1.msra.mxu0 %v1650
    %2492 = vmatprep.subr.mxu0 %v1659
    %2493 = vmatpush1.msra.mxu0 %v1658
    %2494 = vmatprep.subr.mxu0 %v1667
    %2495 = vmatpush1.msra.mxu0 %v1666
    %2496 = vmatprep.subr.mxu0 %v1675
    %2497 = vmatpush1.msra.mxu0 %v1674
    %2498 = vmatprep.subr.mxu0 %v1683
    %2499 = vmatpush1.msra.mxu0 %v1682
    %2500 = vmatprep.subr.mxu0 %v1691
    %2501 = vmatpush1.msra.mxu0 %v1690
    %2502 = vmatprep.subr.mxu0 %v1699
    %2503 = vmatpush1.msra.mxu0 %v1698
    %2504 = vmatprep.mubr.f32.mxu0 %v2413
    %2505 = vmatmul.mubr.f32.gmra.mrb[0].mxu0 %v2412
    %v2506 = vpop.f32.mrb[0].mxu0
    %v2507 = vadd.f32 %v2432, %v2506
    %v2508 = vpop.f32.mrb[0].mxu0
    %v2509 = vadd.f32 %v2433, %v2508
    %2510 = vdwg.mxu0
    %2511 = vmatprep.subr.mxu0 %v1453
    %2512 = vmatpush1.msra.mxu0 %v1452
    %2513 = vmatprep.subr.mxu0 %v1461
    %2514 = vmatpush1.msra.mxu0 %v1460
    %2515 = vmatprep.subr.mxu0 %v1469
    %2516 = vmatpush1.msra.mxu0 %v1468
    %2517 = vmatprep.subr.mxu0 %v1477
    %2518 = vmatpush1.msra.mxu0 %v1476
    %2519 = vmatprep.subr.mxu0 %v1485
    %2520 = vmatpush1.msra.mxu0 %v1484
    %2521 = vmatprep.subr.mxu0 %v1493
    %2522 = vmatpush1.msra.mxu0 %v1492
    %2523 = vmatprep.subr.mxu0 %v1501
    %2524 = vmatpush1.msra.mxu0 %v1500
    %2525 = vmatprep.subr.mxu0 %v1509
    %2526 = vmatpush1.msra.mxu0 %v1508
    %2527 = vmatprep.subr.mxu0 %v1517
    %2528 = vmatpush1.msra.mxu0 %v1516
    %2529 = vmatprep.subr.mxu0 %v1525
    %2530 = vmatpush1.msra.mxu0 %v1524
    %2531 = vmatprep.subr.mxu0 %v1533
    %2532 = vmatpush1.msra.mxu0 %v1532
    %2533 = vmatprep.subr.mxu0 %v1541
    %2534 = vmatpush1.msra.mxu0 %v1540
    %2535 = vmatprep.subr.mxu0 %v1549
    %2536 = vmatpush1.msra.mxu0 %v1548
    %2537 = vmatprep.subr.mxu0 %v1557
    %2538 = vmatpush1.msra.mxu0 %v1556
    %2539 = vmatprep.subr.mxu0 %v1565
    %2540 = vmatpush1.msra.mxu0 %v1564
    %2541 = vmatprep.subr.mxu0 %v1573
    %2542 = vmatpush1.msra.mxu0 %v1572
    %2543 = vmatprep.subr.mxu0 %v1581
    %2544 = vmatpush1.msra.mxu0 %v1580
    %2545 = vmatprep.subr.mxu0 %v1589
    %2546 = vmatpush1.msra.mxu0 %v1588
    %2547 = vmatprep.subr.mxu0 %v1597
    %2548 = vmatpush1.msra.mxu0 %v1596
    %2549 = vmatprep.subr.mxu0 %v1605
    %2550 = vmatpush1.msra.mxu0 %v1604
    %2551 = vmatprep.subr.mxu0 %v1613
    %2552 = vmatpush1.msra.mxu0 %v1612
    %2553 = vmatprep.subr.mxu0 %v1621
    %2554 = vmatpush1.msra.mxu0 %v1620
    %2555 = vmatprep.subr.mxu0 %v1629
    %2556 = vmatpush1.msra.mxu0 %v1628
    %2557 = vmatprep.subr.mxu0 %v1637
    %2558 = vmatpush1.msra.mxu0 %v1636
    %2559 = vmatprep.subr.mxu0 %v1645
    %2560 = vmatpush1.msra.mxu0 %v1644
    %2561 = vmatprep.subr.mxu0 %v1653
    %2562 = vmatpush1.msra.mxu0 %v1652
    %2563 = vmatprep.subr.mxu0 %v1661
    %2564 = vmatpush1.msra.mxu0 %v1660
    %2565 = vmatprep.subr.mxu0 %v1669
    %2566 = vmatpush1.msra.mxu0 %v1668
    %2567 = vmatprep.subr.mxu0 %v1677
    %2568 = vmatpush1.msra.mxu0 %v1676
    %2569 = vmatprep.subr.mxu0 %v1685
    %2570 = vmatpush1.msra.mxu0 %v1684
    %2571 = vmatprep.subr.mxu0 %v1693
    %2572 = vmatpush1.msra.mxu0 %v1692
    %2573 = vmatprep.subr.mxu0 %v1701
    %2574 = vmatpush1.msra.mxu0 %v1700
    %2575 = vmatprep.mubr.f32.mxu0 %v2413
    %2576 = vmatmul.mubr.f32.gmra.mrb[0].mxu0 %v2412
    %v2577 = vpop.f32.mrb[0].mxu0
    %v2578 = vadd.f32 %v2434, %v2577
    %v2579 = vpop.f32.mrb[0].mxu0
    %v2580 = vadd.f32 %v2435, %v2579
    %2581 = vdwg.mxu0
    %2582 = vmatprep.subr.mxu0 %v1455
    %2583 = vmatpush1.msra.mxu0 %v1454
    %2584 = vmatprep.subr.mxu0 %v1463
    %2585 = vmatpush1.msra.mxu0 %v1462
    %2586 = vmatprep.subr.mxu0 %v1471
    %2587 = vmatpush1.msra.mxu0 %v1470
    %2588 = vmatprep.subr.mxu0 %v1479
    %2589 = vmatpush1.msra.mxu0 %v1478
    %2590 = vmatprep.subr.mxu0 %v1487
    %2591 = vmatpush1.msra.mxu0 %v1486
    %2592 = vmatprep.subr.mxu0 %v1495
    %2593 = vmatpush1.msra.mxu0 %v1494
    %2594 = vmatprep.subr.mxu0 %v1503
    %2595 = vmatpush1.msra.mxu0 %v1502
    %2596 = vmatprep.subr.mxu0 %v1511
    %2597 = vmatpush1.msra.mxu0 %v1510
    %2598 = vmatprep.subr.mxu0 %v1519
    %2599 = vmatpush1.msra.mxu0 %v1518
    %2600 = vmatprep.subr.mxu0 %v1527
    %2601 = vmatpush1.msra.mxu0 %v1526
    %2602 = vmatprep.subr.mxu0 %v1535
    %2603 = vmatpush1.msra.mxu0 %v1534
    %2604 = vmatprep.subr.mxu0 %v1543
    %2605 = vmatpush1.msra.mxu0 %v1542
    %2606 = vmatprep.subr.mxu0 %v1551
    %2607 = vmatpush1.msra.mxu0 %v1550
    %2608 = vmatprep.subr.mxu0 %v1559
    %2609 = vmatpush1.msra.mxu0 %v1558
    %2610 = vmatprep.subr.mxu0 %v1567
    %2611 = vmatpush1.msra.mxu0 %v1566
    %2612 = vmatprep.subr.mxu0 %v1575
    %2613 = vmatpush1.msra.mxu0 %v1574
    %2614 = vmatprep.subr.mxu0 %v1583
    %2615 = vmatpush1.msra.mxu0 %v1582
    %2616 = vmatprep.subr.mxu0 %v1591
    %2617 = vmatpush1.msra.mxu0 %v1590
    %2618 = vmatprep.subr.mxu0 %v1599
    %2619 = vmatpush1.msra.mxu0 %v1598
    %2620 = vmatprep.subr.mxu0 %v1607
    %2621 = vmatpush1.msra.mxu0 %v1606
    %2622 = vmatprep.subr.mxu0 %v1615
    %2623 = vmatpush1.msra.mxu0 %v1614
    %2624 = vmatprep.subr.mxu0 %v1623
    %2625 = vmatpush1.msra.mxu0 %v1622
    %2626 = vmatprep.subr.mxu0 %v1631
    %2627 = vmatpush1.msra.mxu0 %v1630
    %2628 = vmatprep.subr.mxu0 %v1639
    %2629 = vmatpush1.msra.mxu0 %v1638
    %2630 = vmatprep.subr.mxu0 %v1647
    %2631 = vmatpush1.msra.mxu0 %v1646
    %2632 = vmatprep.subr.mxu0 %v1655
    %2633 = vmatpush1.msra.mxu0 %v1654
    %2634 = vmatprep.subr.mxu0 %v1663
    %2635 = vmatpush1.msra.mxu0 %v1662
    %2636 = vmatprep.subr.mxu0 %v1671
    %2637 = vmatpush1.msra.mxu0 %v1670
    %2638 = vmatprep.subr.mxu0 %v1679
    %2639 = vmatpush1.msra.mxu0 %v1678
    %2640 = vmatprep.subr.mxu0 %v1687
    %2641 = vmatpush1.msra.mxu0 %v1686
    %2642 = vmatprep.subr.mxu0 %v1695
    %2643 = vmatpush1.msra.mxu0 %v1694
    %2644 = vmatprep.subr.mxu0 %v1703
    %2645 = vmatpush1.msra.mxu0 %v1702
    %2646 = vmatprep.mubr.f32.mxu0 %v2413
    %2647 = vmatmul.mubr.f32.gmra.mrb[0].mxu0 %v2412
    %v2648 = vpop.f32.mrb[0].mxu0
    %v2649 = vadd.f32 %v2436, %v2648
    %v2650 = vpop.f32.mrb[0].mxu0
    %v2651 = vadd.f32 %v2437, %v2650
    %2652 = vdwg.mxu0
    %2653 = vmatprep.subr.mxu0 %v1457
    %2654 = vmatpush1.msra.mxu0 %v1456
    %2655 = vmatprep.subr.mxu0 %v1465
    %2656 = vmatpush1.msra.mxu0 %v1464
    %2657 = vmatprep.subr.mxu0 %v1473
    %2658 = vmatpush1.msra.mxu0 %v1472
    %2659 = vmatprep.subr.mxu0 %v1481
    %2660 = vmatpush1.msra.mxu0 %v1480
    %2661 = vmatprep.subr.mxu0 %v1489
    %2662 = vmatpush1.msra.mxu0 %v1488
    %2663 = vmatprep.subr.mxu0 %v1497
    %2664 = vmatpush1.msra.mxu0 %v1496
    %2665 = vmatprep.subr.mxu0 %v1505
    %2666 = vmatpush1.msra.mxu0 %v1504
    %2667 = vmatprep.subr.mxu0 %v1513
    %2668 = vmatpush1.msra.mxu0 %v1512
    %2669 = vmatprep.subr.mxu0 %v1521
    %2670 = vmatpush1.msra.mxu0 %v1520
    %2671 = vmatprep.subr.mxu0 %v1529
    %2672 = vmatpush1.msra.mxu0 %v1528
    %2673 = vmatprep.subr.mxu0 %v1537
    %2674 = vmatpush1.msra.mxu0 %v1536
    %2675 = vmatprep.subr.mxu0 %v1545
    %2676 = vmatpush1.msra.mxu0 %v1544
    %2677 = vmatprep.subr.mxu0 %v1553
    %2678 = vmatpush1.msra.mxu0 %v1552
    %2679 = vmatprep.subr.mxu0 %v1561
    %2680 = vmatpush1.msra.mxu0 %v1560
    %2681 = vmatprep.subr.mxu0 %v1569
    %2682 = vmatpush1.msra.mxu0 %v1568
    %2683 = vmatprep.subr.mxu0 %v1577
    %2684 = vmatpush1.msra.mxu0 %v1576
    %2685 = vmatprep.subr.mxu0 %v1585
    %2686 = vmatpush1.msra.mxu0 %v1584
    %2687 = vmatprep.subr.mxu0 %v1593
    %2688 = vmatpush1.msra.mxu0 %v1592
    %2689 = vmatprep.subr.mxu0 %v1601
    %2690 = vmatpush1.msra.mxu0 %v1600
    %2691 = vmatprep.subr.mxu0 %v1609
    %2692 = vmatpush1.msra.mxu0 %v1608
    %2693 = vmatprep.subr.mxu0 %v1617
    %2694 = vmatpush1.msra.mxu0 %v1616
    %2695 = vmatprep.subr.mxu0 %v1625
    %2696 = vmatpush1.msra.mxu0 %v1624
    %2697 = vmatprep.subr.mxu0 %v1633
    %2698 = vmatpush1.msra.mxu0 %v1632
    %2699 = vmatprep.subr.mxu0 %v1641
    %2700 = vmatpush1.msra.mxu0 %v1640
    %2701 = vmatprep.subr.mxu0 %v1649
    %2702 = vmatpush1.msra.mxu0 %v1648
    %2703 = vmatprep.subr.mxu0 %v1657
    %2704 = vmatpush1.msra.mxu0 %v1656
    %2705 = vmatprep.subr.mxu0 %v1665
    %2706 = vmatpush1.msra.mxu0 %v1664
    %2707 = vmatprep.subr.mxu0 %v1673
    %2708 = vmatpush1.msra.mxu0 %v1672
    %2709 = vmatprep.subr.mxu0 %v1681
    %2710 = vmatpush1.msra.mxu0 %v1680
    %2711 = vmatprep.subr.mxu0 %v1689
    %2712 = vmatpush1.msra.mxu0 %v1688
    %2713 = vmatprep.subr.mxu0 %v1697
    %2714 = vmatpush1.msra.mxu0 %v1696
    %2715 = vmatprep.subr.mxu0 %v1705
    %2716 = vmatpush1.msra.mxu0 %v1704
    %2717 = vmatprep.mubr.f32.mxu0 %v2413
    %2718 = vmatmul.mubr.f32.gmra.mrb[0].mxu0 %v2412
    %v2719 = vpop.f32.mrb[0].mxu0
    %v2720 = vadd.f32 %v2438, %v2719
    %v2721 = vpop.f32.mrb[0].mxu0
    %v2722 = vadd.f32 %v2439, %v2721
    %2723 = vdwg.mxu0
    %v2724 = vmul.f32 %v2507, 0.5
    %v2725 = vmul.f32 %v2509, 0.5
    %v2726 = vtanh.pop %v2724
    %v2727 = vtanh.pop %v2725
    %v2728 = vadd.f32 %v2726, 1.0
    %v2729 = vadd.f32 %v2727, 1.0
    %v2730 = vmul.f32 %v2728, 0.5
    %v2731 = vmul.f32 %v2729, 0.5
    %v2732 = vmul.f32 %v2578, 0.5
    %v2733 = vmul.f32 %v2580, 0.5
    %v2734 = vtanh.pop %v2732
    %v2735 = vtanh.pop %v2733
    %v2736 = vadd.f32 %v2734, 1.0
    %v2737 = vadd.f32 %v2735, 1.0
    %v2738 = vmul.f32 %v2736, 0.5
    %v2739 = vmul.f32 %v2737, 0.5
    %v2740 = vtanh.pop %v2649
    %v2741 = vtanh.pop %v2651
    %v2742 = vmul.f32 %v2720, 0.5
    %v2743 = vmul.f32 %v2722, 0.5
    %v2744 = vtanh.pop %v2742
    %v2745 = vtanh.pop %v2743
    %v2746 = vadd.f32 %v2744, 1.0
    %v2747 = vadd.f32 %v2745, 1.0
    %v2748 = vmul.f32 %v2746, 0.5
    %v2749 = vmul.f32 %v2747, 0.5
    %v2750 = vmul.f32 %v2738, %v2414
    %v2751 = vmul.f32 %v2739, %v2415
    %v2752 = vmul.f32 %v2730, %v2740
    %v2753 = vmul.f32 %v2731, %v2741
    %v2754 = vadd.f32 %v2750, %v2752
    %v2755 = vadd.f32 %v2751, %v2753
    %v2756 = vtanh.pop %v2754
    %v2757 = vtanh.pop %v2755
    %v2758 = vmul.f32 %v2748, %v2756
    %v2759 = vmul.f32 %v2749, %v2757
    %v2760 = vsel %vm1444, 2, 13
    %v2761 = vsel %vm1445, 2, 13
    %vm2762 = vcmp.gt.s32.totalorder %v1449, %v2760
    %vm2763 = vcmp.gt.s32.totalorder %v1449, %v2761
    %v2764 = vsel %vm2762, %v2758, 0.0
    %v2765 = vsel %vm2763, %v2759, 0.0
    %2766 = vst [vmem:[#allocation15 + $0x10] sm:$0xff] %v2764
    %2767 = vst [vmem:[#allocation15 + $0x68] sm:$0xff] %v2765
    %v2768 = vsel %vm2762, %v2758, %v2412
    %v2769 = vsel %vm2763, %v2759, %v2413
    %v2770 = vsel %vm2762, %v2754, %v2414
    %v2771 = vsel %vm2763, %v2755, %v2415
    %v2772 = vld [vmem:[#allocation2 + $0xc0] sm:$0xff]
    %v2773 = vld [vmem:[#allocation2 + $0xc8] sm:$0xff]
    %v2774 = vld [vmem:[#allocation2 + $0xd0] sm:$0xff]
    %v2775 = vld [vmem:[#allocation2 + $0xd8] sm:$0xff]
    %v2776 = vld [vmem:[#allocation2 + $0xe0] sm:$0xff]
    %v2777 = vld [vmem:[#allocation2 + $0xe8] sm:$0xff]
    %v2778 = vld [vmem:[#allocation2 + $0xf0] sm:$0xff]
    %v2779 = vld [vmem:[#allocation2 + $0xf8] sm:$0xff]
    %v2780 = vld [vmem:[#allocation2 + $0x300] sm:$0xff]
    %v2781 = vld [vmem:[#allocation2 + $0x308] sm:$0xff]
    %v2782 = vld [vmem:[#allocation2 + $0x310] sm:$0xff]
    %v2783 = vld [vmem:[#allocation2 + $0x318] sm:$0xff]
    %v2784 = vld [vmem:[#allocation2 + $0x320] sm:$0xff]
    %v2785 = vld [vmem:[#allocation2 + $0x328] sm:$0xff]
    %v2786 = vld [vmem:[#allocation2 + $0x330] sm:$0xff]
    %v2787 = vld [vmem:[#allocation2 + $0x338] sm:$0xff]
    %v2788 = vsel %vm1436, %v2772, %v2780
    %v2789 = vsel %vm1437, %v2773, %v2781
    %v2790 = vsel %vm1438, %v2774, %v2782
    %v2791 = vsel %vm1439, %v2775, %v2783
    %v2792 = vsel %vm1440, %v2776, %v2784
    %v2793 = vsel %vm1441, %v2777, %v2785
    %v2794 = vsel %vm1442, %v2778, %v2786
    %v2795 = vsel %vm1443, %v2779, %v2787
    %2796 = vmatprep.subr.mxu0 %v1451
    %2797 = vmatpush1.msra.mxu0 %v1450
    %2798 = vmatprep.subr.mxu0 %v1459
    %2799 = vmatpush1.msra.mxu0 %v1458
    %2800 = vmatprep.subr.mxu0 %v1467
    %2801 = vmatpush1.msra.mxu0 %v1466
    %2802 = vmatprep.subr.mxu0 %v1475
    %2803 = vmatpush1.msra.mxu0 %v1474
    %2804 = vmatprep.subr.mxu0 %v1483
    %2805 = vmatpush1.msra.mxu0 %v1482
    %2806 = vmatprep.subr.mxu0 %v1491
    %2807 = vmatpush1.msra.mxu0 %v1490
    %2808 = vmatprep.subr.mxu0 %v1499
    %2809 = vmatpush1.msra.mxu0 %v1498
    %2810 = vmatprep.subr.mxu0 %v1507
    %2811 = vmatpush1.msra.mxu0 %v1506
    %2812 = vmatprep.subr.mxu0 %v1515
    %2813 = vmatpush1.msra.mxu0 %v1514
    %2814 = vmatprep.subr.mxu0 %v1523
    %2815 = vmatpush1.msra.mxu0 %v1522
    %2816 = vmatprep.subr.mxu0 %v1531
    %2817 = vmatpush1.msra.mxu0 %v1530
    %2818 = vmatprep.subr.mxu0 %v1539
    %2819 = vmatpush1.msra.mxu0 %v1538
    %2820 = vmatprep.subr.mxu0 %v1547
    %2821 = vmatpush1.msra.mxu0 %v1546
    %2822 = vmatprep.subr.mxu0 %v1555
    %2823 = vmatpush1.msra.mxu0 %v1554
    %2824 = vmatprep.subr.mxu0 %v1563
    %2825 = vmatpush1.msra.mxu0 %v1562
    %2826 = vmatprep.subr.mxu0 %v1571
    %2827 = vmatpush1.msra.mxu0 %v1570
    %2828 = vmatprep.subr.mxu0 %v1579
    %2829 = vmatpush1.msra.mxu0 %v1578
    %2830 = vmatprep.subr.mxu0 %v1587
    %2831 = vmatpush1.msra.mxu0 %v1586
    %2832 = vmatprep.subr.mxu0 %v1595
    %2833 = vmatpush1.msra.mxu0 %v1594
    %2834 = vmatprep.subr.mxu0 %v1603
    %2835 = vmatpush1.msra.mxu0 %v1602
    %2836 = vmatprep.subr.mxu0 %v1611
    %2837 = vmatpush1.msra.mxu0 %v1610
    %2838 = vmatprep.subr.mxu0 %v1619
    %2839 = vmatpush1.msra.mxu0 %v1618
    %2840 = vmatprep.subr.mxu0 %v1627
    %2841 = vmatpush1.msra.mxu0 %v1626
    %2842 = vmatprep.subr.mxu0 %v1635
    %2843 = vmatpush1.msra.mxu0 %v1634
    %2844 = vmatprep.subr.mxu0 %v1643
    %2845 = vmatpush1.msra.mxu0 %v1642
    %2846 = vmatprep.subr.mxu0 %v1651
    %2847 = vmatpush1.msra.mxu0 %v1650
    %2848 = vmatprep.subr.mxu0 %v1659
    %2849 = vmatpush1.msra.mxu0 %v1658
    %2850 = vmatprep.subr.mxu0 %v1667
    %2851 = vmatpush1.msra.mxu0 %v1666
    %2852 = vmatprep.subr.mxu0 %v1675
    %2853 = vmatpush1.msra.mxu0 %v1674
    %2854 = vmatprep.subr.mxu0 %v1683
    %2855 = vmatpush1.msra.mxu0 %v1682
    %2856 = vmatprep.subr.mxu0 %v1691
    %2857 = vmatpush1.msra.mxu0 %v1690
    %2858 = vmatprep.subr.mxu0 %v1699
    %2859 = vmatpush1.msra.mxu0 %v1698
    %2860 = vmatprep.mubr.f32.mxu0 %v2769
    %2861 = vmatmul.mubr.f32.gmra.mrb[0].mxu0 %v2768
    %v2862 = vpop.f32.mrb[0].mxu0
    %v2863 = vadd.f32 %v2788, %v2862
    %v2864 = vpop.f32.mrb[0].mxu0
    %v2865 = vadd.f32 %v2789, %v2864
    %2866 = vdwg.mxu0
    %2867 = vmatprep.subr.mxu0 %v1453
    %2868 = vmatpush1.msra.mxu0 %v1452
    %2869 = vmatprep.subr.mxu0 %v1461
    %2870 = vmatpush1.msra.mxu0 %v1460
    %2871 = vmatprep.subr.mxu0 %v1469
    %2872 = vmatpush1.msra.mxu0 %v1468
    %2873 = vmatprep.subr.mxu0 %v1477
    %2874 = vmatpush1.msra.mxu0 %v1476
    %2875 = vmatprep.subr.mxu0 %v1485
    %2876 = vmatpush1.msra.mxu0 %v1484
    %2877 = vmatprep.subr.mxu0 %v1493
    %2878 = vmatpush1.msra.mxu0 %v1492
    %2879 = vmatprep.subr.mxu0 %v1501
    %2880 = vmatpush1.msra.mxu0 %v1500
    %2881 = vmatprep.subr.mxu0 %v1509
    %2882 = vmatpush1.msra.mxu0 %v1508
    %2883 = vmatprep.subr.mxu0 %v1517
    %2884 = vmatpush1.msra.mxu0 %v1516
    %2885 = vmatprep.subr.mxu0 %v1525
    %2886 = vmatpush1.msra.mxu0 %v1524
    %2887 = vmatprep.subr.mxu0 %v1533
    %2888 = vmatpush1.msra.mxu0 %v1532
    %2889 = vmatprep.subr.mxu0 %v1541
    %2890 = vmatpush1.msra.mxu0 %v1540
    %2891 = vmatprep.subr.mxu0 %v1549
    %2892 = vmatpush1.msra.mxu0 %v1548
    %2893 = vmatprep.subr.mxu0 %v1557
    %2894 = vmatpush1.msra.mxu0 %v1556
    %2895 = vmatprep.subr.mxu0 %v1565
    %2896 = vmatpush1.msra.mxu0 %v1564
    %2897 = vmatprep.subr.mxu0 %v1573
    %2898 = vmatpush1.msra.mxu0 %v1572
    %2899 = vmatprep.subr.mxu0 %v1581
    %2900 = vmatpush1.msra.mxu0 %v1580
    %2901 = vmatprep.subr.mxu0 %v1589
    %2902 = vmatpush1.msra.mxu0 %v1588
    %2903 = vmatprep.subr.mxu0 %v1597
    %2904 = vmatpush1.msra.mxu0 %v1596
    %2905 = vmatprep.subr.mxu0 %v1605
    %2906 = vmatpush1.msra.mxu0 %v1604
    %2907 = vmatprep.subr.mxu0 %v1613
    %2908 = vmatpush1.msra.mxu0 %v1612
    %2909 = vmatprep.subr.mxu0 %v1621
    %2910 = vmatpush1.msra.mxu0 %v1620
    %2911 = vmatprep.subr.mxu0 %v1629
    %2912 = vmatpush1.msra.mxu0 %v1628
    %2913 = vmatprep.subr.mxu0 %v1637
    %2914 = vmatpush1.msra.mxu0 %v1636
    %2915 = vmatprep.subr.mxu0 %v1645
    %2916 = vmatpush1.msra.mxu0 %v1644
    %2917 = vmatprep.subr.mxu0 %v1653
    %2918 = vmatpush1.msra.mxu0 %v1652
    %2919 = vmatprep.subr.mxu0 %v1661
    %2920 = vmatpush1.msra.mxu0 %v1660
    %2921 = vmatprep.subr.mxu0 %v1669
    %2922 = vmatpush1.msra.mxu0 %v1668
    %2923 = vmatprep.subr.mxu0 %v1677
    %2924 = vmatpush1.msra.mxu0 %v1676
    %2925 = vmatprep.subr.mxu0 %v1685
    %2926 = vmatpush1.msra.mxu0 %v1684
    %2927 = vmatprep.subr.mxu0 %v1693
    %2928 = vmatpush1.msra.mxu0 %v1692
    %2929 = vmatprep.subr.mxu0 %v1701
    %2930 = vmatpush1.msra.mxu0 %v1700
    %2931 = vmatprep.mubr.f32.mxu0 %v2769
    %2932 = vmatmul.mubr.f32.gmra.mrb[0].mxu0 %v2768
    %v2933 = vpop.f32.mrb[0].mxu0
    %v2934 = vadd.f32 %v2790, %v2933
    %v2935 = vpop.f32.mrb[0].mxu0
    %v2936 = vadd.f32 %v2791, %v2935
    %2937 = vdwg.mxu0
    %2938 = vmatprep.subr.mxu0 %v1455
    %2939 = vmatpush1.msra.mxu0 %v1454
    %2940 = vmatprep.subr.mxu0 %v1463
    %2941 = vmatpush1.msra.mxu0 %v1462
    %2942 = vmatprep.subr.mxu0 %v1471
    %2943 = vmatpush1.msra.mxu0 %v1470
    %2944 = vmatprep.subr.mxu0 %v1479
    %2945 = vmatpush1.msra.mxu0 %v1478
    %2946 = vmatprep.subr.mxu0 %v1487
    %2947 = vmatpush1.msra.mxu0 %v1486
    %2948 = vmatprep.subr.mxu0 %v1495
    %2949 = vmatpush1.msra.mxu0 %v1494
    %2950 = vmatprep.subr.mxu0 %v1503
    %2951 = vmatpush1.msra.mxu0 %v1502
    %2952 = vmatprep.subr.mxu0 %v1511
    %2953 = vmatpush1.msra.mxu0 %v1510
    %2954 = vmatprep.subr.mxu0 %v1519
    %2955 = vmatpush1.msra.mxu0 %v1518
    %2956 = vmatprep.subr.mxu0 %v1527
    %2957 = vmatpush1.msra.mxu0 %v1526
    %2958 = vmatprep.subr.mxu0 %v1535
    %2959 = vmatpush1.msra.mxu0 %v1534
    %2960 = vmatprep.subr.mxu0 %v1543
    %2961 = vmatpush1.msra.mxu0 %v1542
    %2962 = vmatprep.subr.mxu0 %v1551
    %2963 = vmatpush1.msra.mxu0 %v1550
    %2964 = vmatprep.subr.mxu0 %v1559
    %2965 = vmatpush1.msra.mxu0 %v1558
    %2966 = vmatprep.subr.mxu0 %v1567
    %2967 = vmatpush1.msra.mxu0 %v1566
    %2968 = vmatprep.subr.mxu0 %v1575
    %2969 = vmatpush1.msra.mxu0 %v1574
    %2970 = vmatprep.subr.mxu0 %v1583
    %2971 = vmatpush1.msra.mxu0 %v1582
    %2972 = vmatprep.subr.mxu0 %v1591
    %2973 = vmatpush1.msra.mxu0 %v1590
    %2974 = vmatprep.subr.mxu0 %v1599
    %2975 = vmatpush1.msra.mxu0 %v1598
    %2976 = vmatprep.subr.mxu0 %v1607
    %2977 = vmatpush1.msra.mxu0 %v1606
    %2978 = vmatprep.subr.mxu0 %v1615
    %2979 = vmatpush1.msra.mxu0 %v1614
    %2980 = vmatprep.subr.mxu0 %v1623
    %2981 = vmatpush1.msra.mxu0 %v1622
    %2982 = vmatprep.subr.mxu0 %v1631
    %2983 = vmatpush1.msra.mxu0 %v1630
    %2984 = vmatprep.subr.mxu0 %v1639
    %2985 = vmatpush1.msra.mxu0 %v1638
    %2986 = vmatprep.subr.mxu0 %v1647
    %2987 = vmatpush1.msra.mxu0 %v1646
    %2988 = vmatprep.subr.mxu0 %v1655
    %2989 = vmatpush1.msra.mxu0 %v1654
    %2990 = vmatprep.subr.mxu0 %v1663
    %2991 = vmatpush1.msra.mxu0 %v1662
    %2992 = vmatprep.subr.mxu0 %v1671
    %2993 = vmatpush1.msra.mxu0 %v1670
    %2994 = vmatprep.subr.mxu0 %v1679
    %2995 = vmatpush1.msra.mxu0 %v1678
    %2996 = vmatprep.subr.mxu0 %v1687
    %2997 = vmatpush1.msra.mxu0 %v1686
    %2998 = vmatprep.subr.mxu0 %v1695
    %2999 = vmatpush1.msra.mxu0 %v1694
    %3000 = vmatprep.subr.mxu0 %v1703
    %3001 = vmatpush1.msra.mxu0 %v1702
    %3002 = vmatprep.mubr.f32.mxu0 %v2769
    %3003 = vmatmul.mubr.f32.gmra.mrb[0].mxu0 %v2768
    %v3004 = vpop.f32.mrb[0].mxu0
    %v3005 = vadd.f32 %v2792, %v3004
    %v3006 = vpop.f32.mrb[0].mxu0
    %v3007 = vadd.f32 %v2793, %v3006
    %3008 = vdwg.mxu0
    %3009 = vmatprep.subr.mxu0 %v1457
    %3010 = vmatpush1.msra.mxu0 %v1456
    %3011 = vmatprep.subr.mxu0 %v1465
    %3012 = vmatpush1.msra.mxu0 %v1464
    %3013 = vmatprep.subr.mxu0 %v1473
    %3014 = vmatpush1.msra.mxu0 %v1472
    %3015 = vmatprep.subr.mxu0 %v1481
    %3016 = vmatpush1.msra.mxu0 %v1480
    %3017 = vmatprep.subr.mxu0 %v1489
    %3018 = vmatpush1.msra.mxu0 %v1488
    %3019 = vmatprep.subr.mxu0 %v1497
    %3020 = vmatpush1.msra.mxu0 %v1496
    %3021 = vmatprep.subr.mxu0 %v1505
    %3022 = vmatpush1.msra.mxu0 %v1504
    %3023 = vmatprep.subr.mxu0 %v1513
    %3024 = vmatpush1.msra.mxu0 %v1512
    %3025 = vmatprep.subr.mxu0 %v1521
    %3026 = vmatpush1.msra.mxu0 %v1520
    %3027 = vmatprep.subr.mxu0 %v1529
    %3028 = vmatpush1.msra.mxu0 %v1528
    %3029 = vmatprep.subr.mxu0 %v1537
    %3030 = vmatpush1.msra.mxu0 %v1536
    %3031 = vmatprep.subr.mxu0 %v1545
    %3032 = vmatpush1.msra.mxu0 %v1544
    %3033 = vmatprep.subr.mxu0 %v1553
    %3034 = vmatpush1.msra.mxu0 %v1552
    %3035 = vmatprep.subr.mxu0 %v1561
    %3036 = vmatpush1.msra.mxu0 %v1560
    %3037 = vmatprep.subr.mxu0 %v1569
    %3038 = vmatpush1.msra.mxu0 %v1568
    %3039 = vmatprep.subr.mxu0 %v1577
    %3040 = vmatpush1.msra.mxu0 %v1576
    %3041 = vmatprep.subr.mxu0 %v1585
    %3042 = vmatpush1.msra.mxu0 %v1584
    %3043 = vmatprep.subr.mxu0 %v1593
    %3044 = vmatpush1.msra.mxu0 %v1592
    %3045 = vmatprep.subr.mxu0 %v1601
    %3046 = vmatpush1.msra.mxu0 %v1600
    %3047 = vmatprep.subr.mxu0 %v1609
    %3048 = vmatpush1.msra.mxu0 %v1608
    %3049 = vmatprep.subr.mxu0 %v1617
    %3050 = vmatpush1.msra.mxu0 %v1616
    %3051 = vmatprep.subr.mxu0 %v1625
    %3052 = vmatpush1.msra.mxu0 %v1624
    %3053 = vmatprep.subr.mxu0 %v1633
    %3054 = vmatpush1.msra.mxu0 %v1632
    %3055 = vmatprep.subr.mxu0 %v1641
    %3056 = vmatpush1.msra.mxu0 %v1640
    %3057 = vmatprep.subr.mxu0 %v1649
    %3058 = vmatpush1.msra.mxu0 %v1648
    %3059 = vmatprep.subr.mxu0 %v1657
    %3060 = vmatpush1.msra.mxu0 %v1656
    %3061 = vmatprep.subr.mxu0 %v1665
    %3062 = vmatpush1.msra.mxu0 %v1664
    %3063 = vmatprep.subr.mxu0 %v1673
    %3064 = vmatpush1.msra.mxu0 %v1672
    %3065 = vmatprep.subr.mxu0 %v1681
    %3066 = vmatpush1.msra.mxu0 %v1680
    %3067 = vmatprep.subr.mxu0 %v1689
    %3068 = vmatpush1.msra.mxu0 %v1688
    %3069 = vmatprep.subr.mxu0 %v1697
    %3070 = vmatpush1.msra.mxu0 %v1696
    %3071 = vmatprep.subr.mxu0 %v1705
    %3072 = vmatpush1.msra.mxu0 %v1704
    %3073 = vmatprep.mubr.f32.mxu0 %v2769
    %3074 = vmatmul.mubr.f32.gmra.mrb[0].mxu0 %v2768
    %v3075 = vpop.f32.mrb[0].mxu0
    %v3076 = vadd.f32 %v2794, %v3075
    %v3077 = vpop.f32.mrb[0].mxu0
    %v3078 = vadd.f32 %v2795, %v3077
    %3079 = vdwg.mxu0
    %v3080 = vmul.f32 %v2863, 0.5
    %v3081 = vmul.f32 %v2865, 0.5
    %v3082 = vtanh.pop %v3080
    %v3083 = vtanh.pop %v3081
    %v3084 = vadd.f32 %v3082, 1.0
    %v3085 = vadd.f32 %v3083, 1.0
    %v3086 = vmul.f32 %v3084, 0.5
    %v3087 = vmul.f32 %v3085, 0.5
    %v3088 = vmul.f32 %v2934, 0.5
    %v3089 = vmul.f32 %v2936, 0.5
    %v3090 = vtanh.pop %v3088
    %v3091 = vtanh.pop %v3089
    %v3092 = vadd.f32 %v3090, 1.0
    %v3093 = vadd.f32 %v3091, 1.0
    %v3094 = vmul.f32 %v3092, 0.5
    %v3095 = vmul.f32 %v3093, 0.5
    %v3096 = vtanh.pop %v3005
    %v3097 = vtanh.pop %v3007
    %v3098 = vmul.f32 %v3076, 0.5
    %v3099 = vmul.f32 %v3078, 0.5
    %v3100 = vtanh.pop %v3098
    %v3101 = vtanh.pop %v3099
    %v3102 = vadd.f32 %v3100, 1.0
    %v3103 = vadd.f32 %v3101, 1.0
    %v3104 = vmul.f32 %v3102, 0.5
    %v3105 = vmul.f32 %v3103, 0.5
    %v3106 = vmul.f32 %v3094, %v2770
    %v3107 = vmul.f32 %v3095, %v2771
    %v3108 = vmul.f32 %v3086, %v3096
    %v3109 = vmul.f32 %v3087, %v3097
    %v3110 = vadd.f32 %v3106, %v3108
    %v3111 = vadd.f32 %v3107, %v3109
    %v3112 = vtanh.pop %v3110
    %v3113 = vtanh.pop %v3111
    %v3114 = vmul.f32 %v3104, %v3112
    %v3115 = vmul.f32 %v3105, %v3113
    %v3116 = vsel %vm1444, 3, 12
    %v3117 = vsel %vm1445, 3, 12
    %vm3118 = vcmp.gt.s32.totalorder %v1449, %v3116
    %vm3119 = vcmp.gt.s32.totalorder %v1449, %v3117
    %v3120 = vsel %vm3118, %v3114, 0.0
    %v3121 = vsel %vm3119, %v3115, 0.0
    %3122 = vst [vmem:[#allocation15 + $0x18] sm:$0xff] %v3120
    %3123 = vst [vmem:[#allocation15 + $0x60] sm:$0xff] %v3121
    %v3124 = vsel %vm3118, %v3114, %v2768
    %v3125 = vsel %vm3119, %v3115, %v2769
    %v3126 = vsel %vm3118, %v3110, %v2770
    %v3127 = vsel %vm3119, %v3111, %v2771
    %v3128 = vld [vmem:[#allocation2 + $0x100] sm:$0xff]
    %v3129 = vld [vmem:[#allocation2 + $0x108] sm:$0xff]
    %v3130 = vld [vmem:[#allocation2 + $0x110] sm:$0xff]
    %v3131 = vld [vmem:[#allocation2 + $0x118] sm:$0xff]
    %v3132 = vld [vmem:[#allocation2 + $0x120] sm:$0xff]
    %v3133 = vld [vmem:[#allocation2 + $0x128] sm:$0xff]
    %v3134 = vld [vmem:[#allocation2 + $0x130] sm:$0xff]
    %v3135 = vld [vmem:[#allocation2 + $0x138] sm:$0xff]
    %v3136 = vld [vmem:[#allocation2 + $0x2c0] sm:$0xff]
    %v3137 = vld [vmem:[#allocation2 + $0x2c8] sm:$0xff]
    %v3138 = vld [vmem:[#allocation2 + $0x2d0] sm:$0xff]
    %v3139 = vld [vmem:[#allocation2 + $0x2d8] sm:$0xff]
    %v3140 = vld [vmem:[#allocation2 + $0x2e0] sm:$0xff]
    %v3141 = vld [vmem:[#allocation2 + $0x2e8] sm:$0xff]
    %v3142 = vld [vmem:[#allocation2 + $0x2f0] sm:$0xff]
    %v3143 = vld [vmem:[#allocation2 + $0x2f8] sm:$0xff]
    %v3144 = vsel %vm1436, %v3128, %v3136
    %v3145 = vsel %vm1437, %v3129, %v3137
    %v3146 = vsel %vm1438, %v3130, %v3138
    %v3147 = vsel %vm1439, %v3131, %v3139
    %v3148 = vsel %vm1440, %v3132, %v3140
    %v3149 = vsel %vm1441, %v3133, %v3141
    %v3150 = vsel %vm1442, %v3134, %v3142
    %v3151 = vsel %vm1443, %v3135, %v3143
    %3152 = vmatprep.subr.mxu0 %v1451
    %3153 = vmatpush1.msra.mxu0 %v1450
    %3154 = vmatprep.subr.mxu0 %v1459
    %3155 = vmatpush1.msra.mxu0 %v1458
    %3156 = vmatprep.subr.mxu0 %v1467
    %3157 = vmatpush1.msra.mxu0 %v1466
    %3158 = vmatprep.subr.mxu0 %v1475
    %3159 = vmatpush1.msra.mxu0 %v1474
    %3160 = vmatprep.subr.mxu0 %v1483
    %3161 = vmatpush1.msra.mxu0 %v1482
    %3162 = vmatprep.subr.mxu0 %v1491
    %3163 = vmatpush1.msra.mxu0 %v1490
    %3164 = vmatprep.subr.mxu0 %v1499
    %3165 = vmatpush1.msra.mxu0 %v1498
    %3166 = vmatprep.subr.mxu0 %v1507
    %3167 = vmatpush1.msra.mxu0 %v1506
    %3168 = vmatprep.subr.mxu0 %v1515
    %3169 = vmatpush1.msra.mxu0 %v1514
    %3170 = vmatprep.subr.mxu0 %v1523
    %3171 = vmatpush1.msra.mxu0 %v1522
    %3172 = vmatprep.subr.mxu0 %v1531
    %3173 = vmatpush1.msra.mxu0 %v1530
    %3174 = vmatprep.subr.mxu0 %v1539
    %3175 = vmatpush1.msra.mxu0 %v1538
    %3176 = vmatprep.subr.mxu0 %v1547
    %3177 = vmatpush1.msra.mxu0 %v1546
    %3178 = vmatprep.subr.mxu0 %v1555
    %3179 = vmatpush1.msra.mxu0 %v1554
    %3180 = vmatprep.subr.mxu0 %v1563
    %3181 = vmatpush1.msra.mxu0 %v1562
    %3182 = vmatprep.subr.mxu0 %v1571
    %3183 = vmatpush1.msra.mxu0 %v1570
    %3184 = vmatprep.subr.mxu0 %v1579
    %3185 = vmatpush1.msra.mxu0 %v1578
    %3186 = vmatprep.subr.mxu0 %v1587
    %3187 = vmatpush1.msra.mxu0 %v1586
    %3188 = vmatprep.subr.mxu0 %v1595
    %3189 = vmatpush1.msra.mxu0 %v1594
    %3190 = vmatprep.subr.mxu0 %v1603
    %3191 = vmatpush1.msra.mxu0 %v1602
    %3192 = vmatprep.subr.mxu0 %v1611
    %3193 = vmatpush1.msra.mxu0 %v1610
    %3194 = vmatprep.subr.mxu0 %v1619
    %3195 = vmatpush1.msra.mxu0 %v1618
    %3196 = vmatprep.subr.mxu0 %v1627
    %3197 = vmatpush1.msra.mxu0 %v1626
    %3198 = vmatprep.subr.mxu0 %v1635
    %3199 = vmatpush1.msra.mxu0 %v1634
    %3200 = vmatprep.subr.mxu0 %v1643
    %3201 = vmatpush1.msra.mxu0 %v1642
    %3202 = vmatprep.subr.mxu0 %v1651
    %3203 = vmatpush1.msra.mxu0 %v1650
    %3204 = vmatprep.subr.mxu0 %v1659
    %3205 = vmatpush1.msra.mxu0 %v1658
    %3206 = vmatprep.subr.mxu0 %v1667
    %3207 = vmatpush1.msra.mxu0 %v1666
    %3208 = vmatprep.subr.mxu0 %v1675
    %3209 = vmatpush1.msra.mxu0 %v1674
    %3210 = vmatprep.subr.mxu0 %v1683
    %3211 = vmatpush1.msra.mxu0 %v1682
    %3212 = vmatprep.subr.mxu0 %v1691
    %3213 = vmatpush1.msra.mxu0 %v1690
    %3214 = vmatprep.subr.mxu0 %v1699
    %3215 = vmatpush1.msra.mxu0 %v1698
    %3216 = vmatprep.mubr.f32.mxu0 %v3125
    %3217 = vmatmul.mubr.f32.gmra.mrb[0].mxu0 %v3124
    %v3218 = vpop.f32.mrb[0].mxu0
    %v3219 = vadd.f32 %v3144, %v3218
    %v3220 = vpop.f32.mrb[0].mxu0
    %v3221 = vadd.f32 %v3145, %v3220
    %3222 = vdwg.mxu0
    %3223 = vmatprep.subr.mxu0 %v1453
    %3224 = vmatpush1.msra.mxu0 %v1452
    %3225 = vmatprep.subr.mxu0 %v1461
    %3226 = vmatpush1.msra.mxu0 %v1460
    %3227 = vmatprep.subr.mxu0 %v1469
    %3228 = vmatpush1.msra.mxu0 %v1468
    %3229 = vmatprep.subr.mxu0 %v1477
    %3230 = vmatpush1.msra.mxu0 %v1476
    %3231 = vmatprep.subr.mxu0 %v1485
    %3232 = vmatpush1.msra.mxu0 %v1484
    %3233 = vmatprep.subr.mxu0 %v1493
    %3234 = vmatpush1.msra.mxu0 %v1492
    %3235 = vmatprep.subr.mxu0 %v1501
    %3236 = vmatpush1.msra.mxu0 %v1500
    %3237 = vmatprep.subr.mxu0 %v1509
    %3238 = vmatpush1.msra.mxu0 %v1508
    %3239 = vmatprep.subr.mxu0 %v1517
    %3240 = vmatpush1.msra.mxu0 %v1516
    %3241 = vmatprep.subr.mxu0 %v1525
    %3242 = vmatpush1.msra.mxu0 %v1524
    %3243 = vmatprep.subr.mxu0 %v1533
    %3244 = vmatpush1.msra.mxu0 %v1532
    %3245 = vmatprep.subr.mxu0 %v1541
    %3246 = vmatpush1.msra.mxu0 %v1540
    %3247 = vmatprep.subr.mxu0 %v1549
    %3248 = vmatpush1.msra.mxu0 %v1548
    %3249 = vmatprep.subr.mxu0 %v1557
    %3250 = vmatpush1.msra.mxu0 %v1556
    %3251 = vmatprep.subr.mxu0 %v1565
    %3252 = vmatpush1.msra.mxu0 %v1564
    %3253 = vmatprep.subr.mxu0 %v1573
    %3254 = vmatpush1.msra.mxu0 %v1572
    %3255 = vmatprep.subr.mxu0 %v1581
    %3256 = vmatpush1.msra.mxu0 %v1580
    %3257 = vmatprep.subr.mxu0 %v1589
    %3258 = vmatpush1.msra.mxu0 %v1588
    %3259 = vmatprep.subr.mxu0 %v1597
    %3260 = vmatpush1.msra.mxu0 %v1596
    %3261 = vmatprep.subr.mxu0 %v1605
    %3262 = vmatpush1.msra.mxu0 %v1604
    %3263 = vmatprep.subr.mxu0 %v1613
    %3264 = vmatpush1.msra.mxu0 %v1612
    %3265 = vmatprep.subr.mxu0 %v1621
    %3266 = vmatpush1.msra.mxu0 %v1620
    %3267 = vmatprep.subr.mxu0 %v1629
    %3268 = vmatpush1.msra.mxu0 %v1628
    %3269 = vmatprep.subr.mxu0 %v1637
    %3270 = vmatpush1.msra.mxu0 %v1636
    %3271 = vmatprep.subr.mxu0 %v1645
    %3272 = vmatpush1.msra.mxu0 %v1644
    %3273 = vmatprep.subr.mxu0 %v1653
    %3274 = vmatpush1.msra.mxu0 %v1652
    %3275 = vmatprep.subr.mxu0 %v1661
    %3276 = vmatpush1.msra.mxu0 %v1660
    %3277 = vmatprep.subr.mxu0 %v1669
    %3278 = vmatpush1.msra.mxu0 %v1668
    %3279 = vmatprep.subr.mxu0 %v1677
    %3280 = vmatpush1.msra.mxu0 %v1676
    %3281 = vmatprep.subr.mxu0 %v1685
    %3282 = vmatpush1.msra.mxu0 %v1684
    %3283 = vmatprep.subr.mxu0 %v1693
    %3284 = vmatpush1.msra.mxu0 %v1692
    %3285 = vmatprep.subr.mxu0 %v1701
    %3286 = vmatpush1.msra.mxu0 %v1700
    %3287 = vmatprep.mubr.f32.mxu0 %v3125
    %3288 = vmatmul.mubr.f32.gmra.mrb[0].mxu0 %v3124
    %v3289 = vpop.f32.mrb[0].mxu0
    %v3290 = vadd.f32 %v3146, %v3289
    %v3291 = vpop.f32.mrb[0].mxu0
    %v3292 = vadd.f32 %v3147, %v3291
    %3293 = vdwg.mxu0
    %3294 = vmatprep.subr.mxu0 %v1455
    %3295 = vmatpush1.msra.mxu0 %v1454
    %3296 = vmatprep.subr.mxu0 %v1463
    %3297 = vmatpush1.msra.mxu0 %v1462
    %3298 = vmatprep.subr.mxu0 %v1471
    %3299 = vmatpush1.msra.mxu0 %v1470
    %3300 = vmatprep.subr.mxu0 %v1479
    %3301 = vmatpush1.msra.mxu0 %v1478
    %3302 = vmatprep.subr.mxu0 %v1487
    %3303 = vmatpush1.msra.mxu0 %v1486
    %3304 = vmatprep.subr.mxu0 %v1495
    %3305 = vmatpush1.msra.mxu0 %v1494
    %3306 = vmatprep.subr.mxu0 %v1503
    %3307 = vmatpush1.msra.mxu0 %v1502
    %3308 = vmatprep.subr.mxu0 %v1511
    %3309 = vmatpush1.msra.mxu0 %v1510
    %3310 = vmatprep.subr.mxu0 %v1519
    %3311 = vmatpush1.msra.mxu0 %v1518
    %3312 = vmatprep.subr.mxu0 %v1527
    %3313 = vmatpush1.msra.mxu0 %v1526
    %3314 = vmatprep.subr.mxu0 %v1535
    %3315 = vmatpush1.msra.mxu0 %v1534
    %3316 = vmatprep.subr.mxu0 %v1543
    %3317 = vmatpush1.msra.mxu0 %v1542
    %3318 = vmatprep.subr.mxu0 %v1551
    %3319 = vmatpush1.msra.mxu0 %v1550
    %3320 = vmatprep.subr.mxu0 %v1559
    %3321 = vmatpush1.msra.mxu0 %v1558
    %3322 = vmatprep.subr.mxu0 %v1567
    %3323 = vmatpush1.msra.mxu0 %v1566
    %3324 = vmatprep.subr.mxu0 %v1575
    %3325 = vmatpush1.msra.mxu0 %v1574
    %3326 = vmatprep.subr.mxu0 %v1583
    %3327 = vmatpush1.msra.mxu0 %v1582
    %3328 = vmatprep.subr.mxu0 %v1591
    %3329 = vmatpush1.msra.mxu0 %v1590
    %3330 = vmatprep.subr.mxu0 %v1599
    %3331 = vmatpush1.msra.mxu0 %v1598
    %3332 = vmatprep.subr.mxu0 %v1607
    %3333 = vmatpush1.msra.mxu0 %v1606
    %3334 = vmatprep.subr.mxu0 %v1615
    %3335 = vmatpush1.msra.mxu0 %v1614
    %3336 = vmatprep.subr.mxu0 %v1623
    %3337 = vmatpush1.msra.mxu0 %v1622
    %3338 = vmatprep.subr.mxu0 %v1631
    %3339 = vmatpush1.msra.mxu0 %v1630
    %3340 = vmatprep.subr.mxu0 %v1639
    %3341 = vmatpush1.msra.mxu0 %v1638
    %3342 = vmatprep.subr.mxu0 %v1647
    %3343 = vmatpush1.msra.mxu0 %v1646
    %3344 = vmatprep.subr.mxu0 %v1655
    %3345 = vmatpush1.msra.mxu0 %v1654
    %3346 = vmatprep.subr.mxu0 %v1663
    %3347 = vmatpush1.msra.mxu0 %v1662
    %3348 = vmatprep.subr.mxu0 %v1671
    %3349 = vmatpush1.msra.mxu0 %v1670
    %3350 = vmatprep.subr.mxu0 %v1679
    %3351 = vmatpush1.msra.mxu0 %v1678
    %3352 = vmatprep.subr.mxu0 %v1687
    %3353 = vmatpush1.msra.mxu0 %v1686
    %3354 = vmatprep.subr.mxu0 %v1695
    %3355 = vmatpush1.msra.mxu0 %v1694
    %3356 = vmatprep.subr.mxu0 %v1703
    %3357 = vmatpush1.msra.mxu0 %v1702
    %3358 = vmatprep.mubr.f32.mxu0 %v3125
    %3359 = vmatmul.mubr.f32.gmra.mrb[0].mxu0 %v3124
    %v3360 = vpop.f32.mrb[0].mxu0
    %v3361 = vadd.f32 %v3148, %v3360
    %v3362 = vpop.f32.mrb[0].mxu0
    %v3363 = vadd.f32 %v3149, %v3362
    %3364 = vdwg.mxu0
    %3365 = vmatprep.subr.mxu0 %v1457
    %3366 = vmatpush1.msra.mxu0 %v1456
    %3367 = vmatprep.subr.mxu0 %v1465
    %3368 = vmatpush1.msra.mxu0 %v1464
    %3369 = vmatprep.subr.mxu0 %v1473
    %3370 = vmatpush1.msra.mxu0 %v1472
    %3371 = vmatprep.subr.mxu0 %v1481
    %3372 = vmatpush1.msra.mxu0 %v1480
    %3373 = vmatprep.subr.mxu0 %v1489
    %3374 = vmatpush1.msra.mxu0 %v1488
    %3375 = vmatprep.subr.mxu0 %v1497
    %3376 = vmatpush1.msra.mxu0 %v1496
    %3377 = vmatprep.subr.mxu0 %v1505
    %3378 = vmatpush1.msra.mxu0 %v1504
    %3379 = vmatprep.subr.mxu0 %v1513
    %3380 = vmatpush1.msra.mxu0 %v1512
    %3381 = vmatprep.subr.mxu0 %v1521
    %3382 = vmatpush1.msra.mxu0 %v1520
    %3383 = vmatprep.subr.mxu0 %v1529
    %3384 = vmatpush1.msra.mxu0 %v1528
    %3385 = vmatprep.subr.mxu0 %v1537
    %3386 = vmatpush1.msra.mxu0 %v1536
    %3387 = vmatprep.subr.mxu0 %v1545
    %3388 = vmatpush1.msra.mxu0 %v1544
    %3389 = vmatprep.subr.mxu0 %v1553
    %3390 = vmatpush1.msra.mxu0 %v1552
    %3391 = vmatprep.subr.mxu0 %v1561
    %3392 = vmatpush1.msra.mxu0 %v1560
    %3393 = vmatprep.subr.mxu0 %v1569
    %3394 = vmatpush1.msra.mxu0 %v1568
    %3395 = vmatprep.subr.mxu0 %v1577
    %3396 = vmatpush1.msra.mxu0 %v1576
    %3397 = vmatprep.subr.mxu0 %v1585
    %3398 = vmatpush1.msra.mxu0 %v1584
    %3399 = vmatprep.subr.mxu0 %v1593
    %3400 = vmatpush1.msra.mxu0 %v1592
    %3401 = vmatprep.subr.mxu0 %v1601
    %3402 = vmatpush1.msra.mxu0 %v1600
    %3403 = vmatprep.subr.mxu0 %v1609
    %3404 = vmatpush1.msra.mxu0 %v1608
    %3405 = vmatprep.subr.mxu0 %v1617
    %3406 = vmatpush1.msra.mxu0 %v1616
    %3407 = vmatprep.subr.mxu0 %v1625
    %3408 = vmatpush1.msra.mxu0 %v1624
    %3409 = vmatprep.subr.mxu0 %v1633
    %3410 = vmatpush1.msra.mxu0 %v1632
    %3411 = vmatprep.subr.mxu0 %v1641
    %3412 = vmatpush1.msra.mxu0 %v1640
    %3413 = vmatprep.subr.mxu0 %v1649
    %3414 = vmatpush1.msra.mxu0 %v1648
    %3415 = vmatprep.subr.mxu0 %v1657
    %3416 = vmatpush1.msra.mxu0 %v1656
    %3417 = vmatprep.subr.mxu0 %v1665
    %3418 = vmatpush1.msra.mxu0 %v1664
    %3419 = vmatprep.subr.mxu0 %v1673
    %3420 = vmatpush1.msra.mxu0 %v1672
    %3421 = vmatprep.subr.mxu0 %v1681
    %3422 = vmatpush1.msra.mxu0 %v1680
    %3423 = vmatprep.subr.mxu0 %v1689
    %3424 = vmatpush1.msra.mxu0 %v1688
    %3425 = vmatprep.subr.mxu0 %v1697
    %3426 = vmatpush1.msra.mxu0 %v1696
    %3427 = vmatprep.subr.mxu0 %v1705
    %3428 = vmatpush1.msra.mxu0 %v1704
    %3429 = vmatprep.mubr.f32.mxu0 %v3125
    %3430 = vmatmul.mubr.f32.gmra.mrb[0].mxu0 %v3124
    %v3431 = vpop.f32.mrb[0].mxu0
    %v3432 = vadd.f32 %v3150, %v3431
    %v3433 = vpop.f32.mrb[0].mxu0
    %v3434 = vadd.f32 %v3151, %v3433
    %3435 = vdwg.mxu0
    %v3436 = vmul.f32 %v3219, 0.5
    %v3437 = vmul.f32 %v3221, 0.5
    %v3438 = vtanh.pop %v3436
    %v3439 = vtanh.pop %v3437
    %v3440 = vadd.f32 %v3438, 1.0
    %v3441 = vadd.f32 %v3439, 1.0
    %v3442 = vmul.f32 %v3440, 0.5
    %v3443 = vmul.f32 %v3441, 0.5
    %v3444 = vmul.f32 %v3290, 0.5
    %v3445 = vmul.f32 %v3292, 0.5
    %v3446 = vtanh.pop %v3444
    %v3447 = vtanh.pop %v3445
    %v3448 = vadd.f32 %v3446, 1.0
    %v3449 = vadd.f32 %v3447, 1.0
    %v3450 = vmul.f32 %v3448, 0.5
    %v3451 = vmul.f32 %v3449, 0.5
    %v3452 = vtanh.pop %v3361
    %v3453 = vtanh.pop %v3363
    %v3454 = vmul.f32 %v3432, 0.5
    %v3455 = vmul.f32 %v3434, 0.5
    %v3456 = vtanh.pop %v3454
    %v3457 = vtanh.pop %v3455
    %v3458 = vadd.f32 %v3456, 1.0
    %v3459 = vadd.f32 %v3457, 1.0
    %v3460 = vmul.f32 %v3458, 0.5
    %v3461 = vmul.f32 %v3459, 0.5
    %v3462 = vmul.f32 %v3450, %v3126
    %v3463 = vmul.f32 %v3451, %v3127
    %v3464 = vmul.f32 %v3442, %v3452
    %v3465 = vmul.f32 %v3443, %v3453
    %v3466 = vadd.f32 %v3462, %v3464
    %v3467 = vadd.f32 %v3463, %v3465
    %v3468 = vtanh.pop %v3466
    %v3469 = vtanh.pop %v3467
    %v3470 = vmul.f32 %v3460, %v3468
    %v3471 = vmul.f32 %v3461, %v3469
    %v3472 = vsel %vm1444, 4, 11
    %v3473 = vsel %vm1445, 4, 11
    %vm3474 = vcmp.gt.s32.totalorder %v1449, %v3472
    %vm3475 = vcmp.gt.s32.totalorder %v1449, %v3473
    %v3476 = vsel %vm3474, %v3470, 0.0
    %v3477 = vsel %vm3475, %v3471, 0.0
    %3478 = vst [vmem:[#allocation15 + $0x20] sm:$0xff] %v3476
    %3479 = vst [vmem:[#allocation15 + $0x58] sm:$0xff] %v3477
    %v3480 = vsel %vm3474, %v3470, %v3124
    %v3481 = vsel %vm3475, %v3471, %v3125
    %v3482 = vsel %vm3474, %v3466, %v3126
    %v3483 = vsel %vm3475, %v3467, %v3127
    %v3484 = vld [vmem:[#allocation2 + $0x140] sm:$0xff]
    %v3485 = vld [vmem:[#allocation2 + $0x148] sm:$0xff]
    %v3486 = vld [vmem:[#allocation2 + $0x150] sm:$0xff]
    %v3487 = vld [vmem:[#allocation2 + $0x158] sm:$0xff]
    %v3488 = vld [vmem:[#allocation2 + $0x160] sm:$0xff]
    %v3489 = vld [vmem:[#allocation2 + $0x168] sm:$0xff]
    %v3490 = vld [vmem:[#allocation2 + $0x170] sm:$0xff]
    %v3491 = vld [vmem:[#allocation2 + $0x178] sm:$0xff]
    %v3492 = vld [vmem:[#allocation2 + $0x280] sm:$0xff]
    %v3493 = vld [vmem:[#allocation2 + $0x288] sm:$0xff]
    %v3494 = vld [vmem:[#allocation2 + $0x290] sm:$0xff]
    %v3495 = vld [vmem:[#allocation2 + $0x298] sm:$0xff]
    %v3496 = vld [vmem:[#allocation2 + $0x2a0] sm:$0xff]
    %v3497 = vld [vmem:[#allocation2 + $0x2a8] sm:$0xff]
    %v3498 = vld [vmem:[#allocation2 + $0x2b0] sm:$0xff]
    %v3499 = vld [vmem:[#allocation2 + $0x2b8] sm:$0xff]
    %v3500 = vsel %vm1436, %v3484, %v3492
    %v3501 = vsel %vm1437, %v3485, %v3493
    %v3502 = vsel %vm1438, %v3486, %v3494
    %v3503 = vsel %vm1439, %v3487, %v3495
    %v3504 = vsel %vm1440, %v3488, %v3496
    %v3505 = vsel %vm1441, %v3489, %v3497
    %v3506 = vsel %vm1442, %v3490, %v3498
    %v3507 = vsel %vm1443, %v3491, %v3499
    %3508 = vmatprep.subr.mxu0 %v1451
    %3509 = vmatpush1.msra.mxu0 %v1450
    %3510 = vmatprep.subr.mxu0 %v1459
    %3511 = vmatpush1.msra.mxu0 %v1458
    %3512 = vmatprep.subr.mxu0 %v1467
    %3513 = vmatpush1.msra.mxu0 %v1466
    %3514 = vmatprep.subr.mxu0 %v1475
    %3515 = vmatpush1.msra.mxu0 %v1474
    %3516 = vmatprep.subr.mxu0 %v1483
    %3517 = vmatpush1.msra.mxu0 %v1482
    %3518 = vmatprep.subr.mxu0 %v1491
    %3519 = vmatpush1.msra.mxu0 %v1490
    %3520 = vmatprep.subr.mxu0 %v1499
    %3521 = vmatpush1.msra.mxu0 %v1498
    %3522 = vmatprep.subr.mxu0 %v1507
    %3523 = vmatpush1.msra.mxu0 %v1506
    %3524 = vmatprep.subr.mxu0 %v1515
    %3525 = vmatpush1.msra.mxu0 %v1514
    %3526 = vmatprep.subr.mxu0 %v1523
    %3527 = vmatpush1.msra.mxu0 %v1522
    %3528 = vmatprep.subr.mxu0 %v1531
    %3529 = vmatpush1.msra.mxu0 %v1530
    %3530 = vmatprep.subr.mxu0 %v1539
    %3531 = vmatpush1.msra.mxu0 %v1538
    %3532 = vmatprep.subr.mxu0 %v1547
    %3533 = vmatpush1.msra.mxu0 %v1546
    %3534 = vmatprep.subr.mxu0 %v1555
    %3535 = vmatpush1.msra.mxu0 %v1554
    %3536 = vmatprep.subr.mxu0 %v1563
    %3537 = vmatpush1.msra.mxu0 %v1562
    %3538 = vmatprep.subr.mxu0 %v1571
    %3539 = vmatpush1.msra.mxu0 %v1570
    %3540 = vmatprep.subr.mxu0 %v1579
    %3541 = vmatpush1.msra.mxu0 %v1578
    %3542 = vmatprep.subr.mxu0 %v1587
    %3543 = vmatpush1.msra.mxu0 %v1586
    %3544 = vmatprep.subr.mxu0 %v1595
    %3545 = vmatpush1.msra.mxu0 %v1594
    %3546 = vmatprep.subr.mxu0 %v1603
    %3547 = vmatpush1.msra.mxu0 %v1602
    %3548 = vmatprep.subr.mxu0 %v1611
    %3549 = vmatpush1.msra.mxu0 %v1610
    %3550 = vmatprep.subr.mxu0 %v1619
    %3551 = vmatpush1.msra.mxu0 %v1618
    %3552 = vmatprep.subr.mxu0 %v1627
    %3553 = vmatpush1.msra.mxu0 %v1626
    %3554 = vmatprep.subr.mxu0 %v1635
    %3555 = vmatpush1.msra.mxu0 %v1634
    %3556 = vmatprep.subr.mxu0 %v1643
    %3557 = vmatpush1.msra.mxu0 %v1642
    %3558 = vmatprep.subr.mxu0 %v1651
    %3559 = vmatpush1.msra.mxu0 %v1650
    %3560 = vmatprep.subr.mxu0 %v1659
    %3561 = vmatpush1.msra.mxu0 %v1658
    %3562 = vmatprep.subr.mxu0 %v1667
    %3563 = vmatpush1.msra.mxu0 %v1666
    %3564 = vmatprep.subr.mxu0 %v1675
    %3565 = vmatpush1.msra.mxu0 %v1674
    %3566 = vmatprep.subr.mxu0 %v1683
    %3567 = vmatpush1.msra.mxu0 %v1682
    %3568 = vmatprep.subr.mxu0 %v1691
    %3569 = vmatpush1.msra.mxu0 %v1690
    %3570 = vmatprep.subr.mxu0 %v1699
    %3571 = vmatpush1.msra.mxu0 %v1698
    %3572 = vmatprep.mubr.f32.mxu0 %v3481
    %3573 = vmatmul.mubr.f32.gmra.mrb[0].mxu0 %v3480
    %v3574 = vpop.f32.mrb[0].mxu0
    %v3575 = vadd.f32 %v3500, %v3574
    %v3576 = vpop.f32.mrb[0].mxu0
    %v3577 = vadd.f32 %v3501, %v3576
    %3578 = vdwg.mxu0
    %3579 = vmatprep.subr.mxu0 %v1453
    %3580 = vmatpush1.msra.mxu0 %v1452
    %3581 = vmatprep.subr.mxu0 %v1461
    %3582 = vmatpush1.msra.mxu0 %v1460
    %3583 = vmatprep.subr.mxu0 %v1469
    %3584 = vmatpush1.msra.mxu0 %v1468
    %3585 = vmatprep.subr.mxu0 %v1477
    %3586 = vmatpush1.msra.mxu0 %v1476
    %3587 = vmatprep.subr.mxu0 %v1485
    %3588 = vmatpush1.msra.mxu0 %v1484
    %3589 = vmatprep.subr.mxu0 %v1493
    %3590 = vmatpush1.msra.mxu0 %v1492
    %3591 = vmatprep.subr.mxu0 %v1501
    %3592 = vmatpush1.msra.mxu0 %v1500
    %3593 = vmatprep.subr.mxu0 %v1509
    %3594 = vmatpush1.msra.mxu0 %v1508
    %3595 = vmatprep.subr.mxu0 %v1517
    %3596 = vmatpush1.msra.mxu0 %v1516
    %3597 = vmatprep.subr.mxu0 %v1525
    %3598 = vmatpush1.msra.mxu0 %v1524
    %3599 = vmatprep.subr.mxu0 %v1533
    %3600 = vmatpush1.msra.mxu0 %v1532
    %3601 = vmatprep.subr.mxu0 %v1541
    %3602 = vmatpush1.msra.mxu0 %v1540
    %3603 = vmatprep.subr.mxu0 %v1549
    %3604 = vmatpush1.msra.mxu0 %v1548
    %3605 = vmatprep.subr.mxu0 %v1557
    %3606 = vmatpush1.msra.mxu0 %v1556
    %3607 = vmatprep.subr.mxu0 %v1565
    %3608 = vmatpush1.msra.mxu0 %v1564
    %3609 = vmatprep.subr.mxu0 %v1573
    %3610 = vmatpush1.msra.mxu0 %v1572
    %3611 = vmatprep.subr.mxu0 %v1581
    %3612 = vmatpush1.msra.mxu0 %v1580
    %3613 = vmatprep.subr.mxu0 %v1589
    %3614 = vmatpush1.msra.mxu0 %v1588
    %3615 = vmatprep.subr.mxu0 %v1597
    %3616 = vmatpush1.msra.mxu0 %v1596
    %3617 = vmatprep.subr.mxu0 %v1605
    %3618 = vmatpush1.msra.mxu0 %v1604
    %3619 = vmatprep.subr.mxu0 %v1613
    %3620 = vmatpush1.msra.mxu0 %v1612
    %3621 = vmatprep.subr.mxu0 %v1621
    %3622 = vmatpush1.msra.mxu0 %v1620
    %3623 = vmatprep.subr.mxu0 %v1629
    %3624 = vmatpush1.msra.mxu0 %v1628
    %3625 = vmatprep.subr.mxu0 %v1637
    %3626 = vmatpush1.msra.mxu0 %v1636
    %3627 = vmatprep.subr.mxu0 %v1645
    %3628 = vmatpush1.msra.mxu0 %v1644
    %3629 = vmatprep.subr.mxu0 %v1653
    %3630 = vmatpush1.msra.mxu0 %v1652
    %3631 = vmatprep.subr.mxu0 %v1661
    %3632 = vmatpush1.msra.mxu0 %v1660
    %3633 = vmatprep.subr.mxu0 %v1669
    %3634 = vmatpush1.msra.mxu0 %v1668
    %3635 = vmatprep.subr.mxu0 %v1677
    %3636 = vmatpush1.msra.mxu0 %v1676
    %3637 = vmatprep.subr.mxu0 %v1685
    %3638 = vmatpush1.msra.mxu0 %v1684
    %3639 = vmatprep.subr.mxu0 %v1693
    %3640 = vmatpush1.msra.mxu0 %v1692
    %3641 = vmatprep.subr.mxu0 %v1701
    %3642 = vmatpush1.msra.mxu0 %v1700
    %3643 = vmatprep.mubr.f32.mxu0 %v3481
    %3644 = vmatmul.mubr.f32.gmra.mrb[0].mxu0 %v3480
    %v3645 = vpop.f32.mrb[0].mxu0
    %v3646 = vadd.f32 %v3502, %v3645
    %v3647 = vpop.f32.mrb[0].mxu0
    %v3648 = vadd.f32 %v3503, %v3647
    %3649 = vdwg.mxu0
    %3650 = vmatprep.subr.mxu0 %v1455
    %3651 = vmatpush1.msra.mxu0 %v1454
    %3652 = vmatprep.subr.mxu0 %v1463
    %3653 = vmatpush1.msra.mxu0 %v1462
    %3654 = vmatprep.subr.mxu0 %v1471
    %3655 = vmatpush1.msra.mxu0 %v1470
    %3656 = vmatprep.subr.mxu0 %v1479
    %3657 = vmatpush1.msra.mxu0 %v1478
    %3658 = vmatprep.subr.mxu0 %v1487
    %3659 = vmatpush1.msra.mxu0 %v1486
    %3660 = vmatprep.subr.mxu0 %v1495
    %3661 = vmatpush1.msra.mxu0 %v1494
    %3662 = vmatprep.subr.mxu0 %v1503
    %3663 = vmatpush1.msra.mxu0 %v1502
    %3664 = vmatprep.subr.mxu0 %v1511
    %3665 = vmatpush1.msra.mxu0 %v1510
    %3666 = vmatprep.subr.mxu0 %v1519
    %3667 = vmatpush1.msra.mxu0 %v1518
    %3668 = vmatprep.subr.mxu0 %v1527
    %3669 = vmatpush1.msra.mxu0 %v1526
    %3670 = vmatprep.subr.mxu0 %v1535
    %3671 = vmatpush1.msra.mxu0 %v1534
    %3672 = vmatprep.subr.mxu0 %v1543
    %3673 = vmatpush1.msra.mxu0 %v1542
    %3674 = vmatprep.subr.mxu0 %v1551
    %3675 = vmatpush1.msra.mxu0 %v1550
    %3676 = vmatprep.subr.mxu0 %v1559
    %3677 = vmatpush1.msra.mxu0 %v1558
    %3678 = vmatprep.subr.mxu0 %v1567
    %3679 = vmatpush1.msra.mxu0 %v1566
    %3680 = vmatprep.subr.mxu0 %v1575
    %3681 = vmatpush1.msra.mxu0 %v1574
    %3682 = vmatprep.subr.mxu0 %v1583
    %3683 = vmatpush1.msra.mxu0 %v1582
    %3684 = vmatprep.subr.mxu0 %v1591
    %3685 = vmatpush1.msra.mxu0 %v1590
    %3686 = vmatprep.subr.mxu0 %v1599
    %3687 = vmatpush1.msra.mxu0 %v1598
    %3688 = vmatprep.subr.mxu0 %v1607
    %3689 = vmatpush1.msra.mxu0 %v1606
    %3690 = vmatprep.subr.mxu0 %v1615
    %3691 = vmatpush1.msra.mxu0 %v1614
    %3692 = vmatprep.subr.mxu0 %v1623
    %3693 = vmatpush1.msra.mxu0 %v1622
    %3694 = vmatprep.subr.mxu0 %v1631
    %3695 = vmatpush1.msra.mxu0 %v1630
    %3696 = vmatprep.subr.mxu0 %v1639
    %3697 = vmatpush1.msra.mxu0 %v1638
    %3698 = vmatprep.subr.mxu0 %v1647
    %3699 = vmatpush1.msra.mxu0 %v1646
    %3700 = vmatprep.subr.mxu0 %v1655
    %3701 = vmatpush1.msra.mxu0 %v1654
    %3702 = vmatprep.subr.mxu0 %v1663
    %3703 = vmatpush1.msra.mxu0 %v1662
    %3704 = vmatprep.subr.mxu0 %v1671
    %3705 = vmatpush1.msra.mxu0 %v1670
    %3706 = vmatprep.subr.mxu0 %v1679
    %3707 = vmatpush1.msra.mxu0 %v1678
    %3708 = vmatprep.subr.mxu0 %v1687
    %3709 = vmatpush1.msra.mxu0 %v1686
    %3710 = vmatprep.subr.mxu0 %v1695
    %3711 = vmatpush1.msra.mxu0 %v1694
    %3712 = vmatprep.subr.mxu0 %v1703
    %3713 = vmatpush1.msra.mxu0 %v1702
    %3714 = vmatprep.mubr.f32.mxu0 %v3481
    %3715 = vmatmul.mubr.f32.gmra.mrb[0].mxu0 %v3480
    %v3716 = vpop.f32.mrb[0].mxu0
    %v3717 = vadd.f32 %v3504, %v3716
    %v3718 = vpop.f32.mrb[0].mxu0
    %v3719 = vadd.f32 %v3505, %v3718
    %3720 = vdwg.mxu0
    %3721 = vmatprep.subr.mxu0 %v1457
    %3722 = vmatpush1.msra.mxu0 %v1456
    %3723 = vmatprep.subr.mxu0 %v1465
    %3724 = vmatpush1.msra.mxu0 %v1464
    %3725 = vmatprep.subr.mxu0 %v1473
    %3726 = vmatpush1.msra.mxu0 %v1472
    %3727 = vmatprep.subr.mxu0 %v1481
    %3728 = vmatpush1.msra.mxu0 %v1480
    %3729 = vmatprep.subr.mxu0 %v1489
    %3730 = vmatpush1.msra.mxu0 %v1488
    %3731 = vmatprep.subr.mxu0 %v1497
    %3732 = vmatpush1.msra.mxu0 %v1496
    %3733 = vmatprep.subr.mxu0 %v1505
    %3734 = vmatpush1.msra.mxu0 %v1504
    %3735 = vmatprep.subr.mxu0 %v1513
    %3736 = vmatpush1.msra.mxu0 %v1512
    %3737 = vmatprep.subr.mxu0 %v1521
    %3738 = vmatpush1.msra.mxu0 %v1520
    %3739 = vmatprep.subr.mxu0 %v1529
    %3740 = vmatpush1.msra.mxu0 %v1528
    %3741 = vmatprep.subr.mxu0 %v1537
    %3742 = vmatpush1.msra.mxu0 %v1536
    %3743 = vmatprep.subr.mxu0 %v1545
    %3744 = vmatpush1.msra.mxu0 %v1544
    %3745 = vmatprep.subr.mxu0 %v1553
    %3746 = vmatpush1.msra.mxu0 %v1552
    %3747 = vmatprep.subr.mxu0 %v1561
    %3748 = vmatpush1.msra.mxu0 %v1560
    %3749 = vmatprep.subr.mxu0 %v1569
    %3750 = vmatpush1.msra.mxu0 %v1568
    %3751 = vmatprep.subr.mxu0 %v1577
    %3752 = vmatpush1.msra.mxu0 %v1576
    %3753 = vmatprep.subr.mxu0 %v1585
    %3754 = vmatpush1.msra.mxu0 %v1584
    %3755 = vmatprep.subr.mxu0 %v1593
    %3756 = vmatpush1.msra.mxu0 %v1592
    %3757 = vmatprep.subr.mxu0 %v1601
    %3758 = vmatpush1.msra.mxu0 %v1600
    %3759 = vmatprep.subr.mxu0 %v1609
    %3760 = vmatpush1.msra.mxu0 %v1608
    %3761 = vmatprep.subr.mxu0 %v1617
    %3762 = vmatpush1.msra.mxu0 %v1616
    %3763 = vmatprep.subr.mxu0 %v1625
    %3764 = vmatpush1.msra.mxu0 %v1624
    %3765 = vmatprep.subr.mxu0 %v1633
    %3766 = vmatpush1.msra.mxu0 %v1632
    %3767 = vmatprep.subr.mxu0 %v1641
    %3768 = vmatpush1.msra.mxu0 %v1640
    %3769 = vmatprep.subr.mxu0 %v1649
    %3770 = vmatpush1.msra.mxu0 %v1648
    %3771 = vmatprep.subr.mxu0 %v1657
    %3772 = vmatpush1.msra.mxu0 %v1656
    %3773 = vmatprep.subr.mxu0 %v1665
    %3774 = vmatpush1.msra.mxu0 %v1664
    %3775 = vmatprep.subr.mxu0 %v1673
    %3776 = vmatpush1.msra.mxu0 %v1672
    %3777 = vmatprep.subr.mxu0 %v1681
    %3778 = vmatpush1.msra.mxu0 %v1680
    %3779 = vmatprep.subr.mxu0 %v1689
    %3780 = vmatpush1.msra.mxu0 %v1688
    %3781 = vmatprep.subr.mxu0 %v1697
    %3782 = vmatpush1.msra.mxu0 %v1696
    %3783 = vmatprep.subr.mxu0 %v1705
    %3784 = vmatpush1.msra.mxu0 %v1704
    %3785 = vmatprep.mubr.f32.mxu0 %v3481
    %3786 = vmatmul.mubr.f32.gmra.mrb[0].mxu0 %v3480
    %v3787 = vpop.f32.mrb[0].mxu0
    %v3788 = vadd.f32 %v3506, %v3787
    %v3789 = vpop.f32.mrb[0].mxu0
    %v3790 = vadd.f32 %v3507, %v3789
    %3791 = vdwg.mxu0
    %v3792 = vmul.f32 %v3575, 0.5
    %v3793 = vmul.f32 %v3577, 0.5
    %v3794 = vtanh.pop %v3792
    %v3795 = vtanh.pop %v3793
    %v3796 = vadd.f32 %v3794, 1.0
    %v3797 = vadd.f32 %v3795, 1.0
    %v3798 = vmul.f32 %v3796, 0.5
    %v3799 = vmul.f32 %v3797, 0.5
    %v3800 = vmul.f32 %v3646, 0.5
    %v3801 = vmul.f32 %v3648, 0.5
    %v3802 = vtanh.pop %v3800
    %v3803 = vtanh.pop %v3801
    %v3804 = vadd.f32 %v3802, 1.0
    %v3805 = vadd.f32 %v3803, 1.0
    %v3806 = vmul.f32 %v3804, 0.5
    %v3807 = vmul.f32 %v3805, 0.5
    %v3808 = vtanh.pop %v3717
    %v3809 = vtanh.pop %v3719
    %v3810 = vmul.f32 %v3788, 0.5
    %v3811 = vmul.f32 %v3790, 0.5
    %v3812 = vtanh.pop %v3810
    %v3813 = vtanh.pop %v3811
    %v3814 = vadd.f32 %v3812, 1.0
    %v3815 = vadd.f32 %v3813, 1.0
    %v3816 = vmul.f32 %v3814, 0.5
    %v3817 = vmul.f32 %v3815, 0.5
    %v3818 = vmul.f32 %v3806, %v3482
    %v3819 = vmul.f32 %v3807, %v3483
    %v3820 = vmul.f32 %v3798, %v3808
    %v3821 = vmul.f32 %v3799, %v3809
    %v3822 = vadd.f32 %v3818, %v3820
    %v3823 = vadd.f32 %v3819, %v3821
    %v3824 = vtanh.pop %v3822
    %v3825 = vtanh.pop %v3823
    %v3826 = vmul.f32 %v3816, %v3824
    %v3827 = vmul.f32 %v3817, %v3825
    %v3828 = vsel %vm1444, 5, 10
    %v3829 = vsel %vm1445, 5, 10
    %vm3830 = vcmp.gt.s32.totalorder %v1449, %v3828
    %vm3831 = vcmp.gt.s32.totalorder %v1449, %v3829
    %v3832 = vsel %vm3830, %v3826, 0.0
    %v3833 = vsel %vm3831, %v3827, 0.0
    %3834 = vst [vmem:[#allocation15 + $0x28] sm:$0xff] %v3832
    %3835 = vst [vmem:[#allocation15 + $0x50] sm:$0xff] %v3833
    %v3836 = vsel %vm3830, %v3826, %v3480
    %v3837 = vsel %vm3831, %v3827, %v3481
    %v3838 = vsel %vm3830, %v3822, %v3482
    %v3839 = vsel %vm3831, %v3823, %v3483
    %v3840 = vld [vmem:[#allocation2 + $0x180] sm:$0xff]
    %v3841 = vld [vmem:[#allocation2 + $0x188] sm:$0xff]
    %v3842 = vld [vmem:[#allocation2 + $0x190] sm:$0xff]
    %v3843 = vld [vmem:[#allocation2 + $0x198] sm:$0xff]
    %v3844 = vld [vmem:[#allocation2 + $0x1a0] sm:$0xff]
    %v3845 = vld [vmem:[#allocation2 + $0x1a8] sm:$0xff]
    %v3846 = vld [vmem:[#allocation2 + $0x1b0] sm:$0xff]
    %v3847 = vld [vmem:[#allocation2 + $0x1b8] sm:$0xff]
    %v3848 = vld [vmem:[#allocation2 + $0x240] sm:$0xff]
    %v3849 = vld [vmem:[#allocation2 + $0x248] sm:$0xff]
    %v3850 = vld [vmem:[#allocation2 + $0x250] sm:$0xff]
    %v3851 = vld [vmem:[#allocation2 + $0x258] sm:$0xff]
    %v3852 = vld [vmem:[#allocation2 + $0x260] sm:$0xff]
    %v3853 = vld [vmem:[#allocation2 + $0x268] sm:$0xff]
    %v3854 = vld [vmem:[#allocation2 + $0x270] sm:$0xff]
    %v3855 = vld [vmem:[#allocation2 + $0x278] sm:$0xff]
    %v3856 = vsel %vm1436, %v3840, %v3848
    %v3857 = vsel %vm1437, %v3841, %v3849
    %v3858 = vsel %vm1438, %v3842, %v3850
    %v3859 = vsel %vm1439, %v3843, %v3851
    %v3860 = vsel %vm1440, %v3844, %v3852
    %v3861 = vsel %vm1441, %v3845, %v3853
    %v3862 = vsel %vm1442, %v3846, %v3854
    %v3863 = vsel %vm1443, %v3847, %v3855
    %3864 = vmatprep.subr.mxu0 %v1451
    %3865 = vmatpush1.msra.mxu0 %v1450
    %3866 = vmatprep.subr.mxu0 %v1459
    %3867 = vmatpush1.msra.mxu0 %v1458
    %3868 = vmatprep.subr.mxu0 %v1467
    %3869 = vmatpush1.msra.mxu0 %v1466
    %3870 = vmatprep.subr.mxu0 %v1475
    %3871 = vmatpush1.msra.mxu0 %v1474
    %3872 = vmatprep.subr.mxu0 %v1483
    %3873 = vmatpush1.msra.mxu0 %v1482
    %3874 = vmatprep.subr.mxu0 %v1491
    %3875 = vmatpush1.msra.mxu0 %v1490
    %3876 = vmatprep.subr.mxu0 %v1499
    %3877 = vmatpush1.msra.mxu0 %v1498
    %3878 = vmatprep.subr.mxu0 %v1507
    %3879 = vmatpush1.msra.mxu0 %v1506
    %3880 = vmatprep.subr.mxu0 %v1515
    %3881 = vmatpush1.msra.mxu0 %v1514
    %3882 = vmatprep.subr.mxu0 %v1523
    %3883 = vmatpush1.msra.mxu0 %v1522
    %3884 = vmatprep.subr.mxu0 %v1531
    %3885 = vmatpush1.msra.mxu0 %v1530
    %3886 = vmatprep.subr.mxu0 %v1539
    %3887 = vmatpush1.msra.mxu0 %v1538
    %3888 = vmatprep.subr.mxu0 %v1547
    %3889 = vmatpush1.msra.mxu0 %v1546
    %3890 = vmatprep.subr.mxu0 %v1555
    %3891 = vmatpush1.msra.mxu0 %v1554
    %3892 = vmatprep.subr.mxu0 %v1563
    %3893 = vmatpush1.msra.mxu0 %v1562
    %3894 = vmatprep.subr.mxu0 %v1571
    %3895 = vmatpush1.msra.mxu0 %v1570
    %3896 = vmatprep.subr.mxu0 %v1579
    %3897 = vmatpush1.msra.mxu0 %v1578
    %3898 = vmatprep.subr.mxu0 %v1587
    %3899 = vmatpush1.msra.mxu0 %v1586
    %3900 = vmatprep.subr.mxu0 %v1595
    %3901 = vmatpush1.msra.mxu0 %v1594
    %3902 = vmatprep.subr.mxu0 %v1603
    %3903 = vmatpush1.msra.mxu0 %v1602
    %3904 = vmatprep.subr.mxu0 %v1611
    %3905 = vmatpush1.msra.mxu0 %v1610
    %3906 = vmatprep.subr.mxu0 %v1619
    %3907 = vmatpush1.msra.mxu0 %v1618
    %3908 = vmatprep.subr.mxu0 %v1627
    %3909 = vmatpush1.msra.mxu0 %v1626
    %3910 = vmatprep.subr.mxu0 %v1635
    %3911 = vmatpush1.msra.mxu0 %v1634
    %3912 = vmatprep.subr.mxu0 %v1643
    %3913 = vmatpush1.msra.mxu0 %v1642
    %3914 = vmatprep.subr.mxu0 %v1651
    %3915 = vmatpush1.msra.mxu0 %v1650
    %3916 = vmatprep.subr.mxu0 %v1659
    %3917 = vmatpush1.msra.mxu0 %v1658
    %3918 = vmatprep.subr.mxu0 %v1667
    %3919 = vmatpush1.msra.mxu0 %v1666
    %3920 = vmatprep.subr.mxu0 %v1675
    %3921 = vmatpush1.msra.mxu0 %v1674
    %3922 = vmatprep.subr.mxu0 %v1683
    %3923 = vmatpush1.msra.mxu0 %v1682
    %3924 = vmatprep.subr.mxu0 %v1691
    %3925 = vmatpush1.msra.mxu0 %v1690
    %3926 = vmatprep.subr.mxu0 %v1699
    %3927 = vmatpush1.msra.mxu0 %v1698
    %3928 = vmatprep.mubr.f32.mxu0 %v3837
    %3929 = vmatmul.mubr.f32.gmra.mrb[0].mxu0 %v3836
    %v3930 = vpop.f32.mrb[0].mxu0
    %v3931 = vadd.f32 %v3856, %v3930
    %v3932 = vpop.f32.mrb[0].mxu0
    %v3933 = vadd.f32 %v3857, %v3932
    %3934 = vdwg.mxu0
    %3935 = vmatprep.subr.mxu0 %v1453
    %3936 = vmatpush1.msra.mxu0 %v1452
    %3937 = vmatprep.subr.mxu0 %v1461
    %3938 = vmatpush1.msra.mxu0 %v1460
    %3939 = vmatprep.subr.mxu0 %v1469
    %3940 = vmatpush1.msra.mxu0 %v1468
    %3941 = vmatprep.subr.mxu0 %v1477
    %3942 = vmatpush1.msra.mxu0 %v1476
    %3943 = vmatprep.subr.mxu0 %v1485
    %3944 = vmatpush1.msra.mxu0 %v1484
    %3945 = vmatprep.subr.mxu0 %v1493
    %3946 = vmatpush1.msra.mxu0 %v1492
    %3947 = vmatprep.subr.mxu0 %v1501
    %3948 = vmatpush1.msra.mxu0 %v1500
    %3949 = vmatprep.subr.mxu0 %v1509
    %3950 = vmatpush1.msra.mxu0 %v1508
    %3951 = vmatprep.subr.mxu0 %v1517
    %3952 = vmatpush1.msra.mxu0 %v1516
    %3953 = vmatprep.subr.mxu0 %v1525
    %3954 = vmatpush1.msra.mxu0 %v1524
    %3955 = vmatprep.subr.mxu0 %v1533
    %3956 = vmatpush1.msra.mxu0 %v1532
    %3957 = vmatprep.subr.mxu0 %v1541
    %3958 = vmatpush1.msra.mxu0 %v1540
    %3959 = vmatprep.subr.mxu0 %v1549
    %3960 = vmatpush1.msra.mxu0 %v1548
    %3961 = vmatprep.subr.mxu0 %v1557
    %3962 = vmatpush1.msra.mxu0 %v1556
    %3963 = vmatprep.subr.mxu0 %v1565
    %3964 = vmatpush1.msra.mxu0 %v1564
    %3965 = vmatprep.subr.mxu0 %v1573
    %3966 = vmatpush1.msra.mxu0 %v1572
    %3967 = vmatprep.subr.mxu0 %v1581
    %3968 = vmatpush1.msra.mxu0 %v1580
    %3969 = vmatprep.subr.mxu0 %v1589
    %3970 = vmatpush1.msra.mxu0 %v1588
    %3971 = vmatprep.subr.mxu0 %v1597
    %3972 = vmatpush1.msra.mxu0 %v1596
    %3973 = vmatprep.subr.mxu0 %v1605
    %3974 = vmatpush1.msra.mxu0 %v1604
    %3975 = vmatprep.subr.mxu0 %v1613
    %3976 = vmatpush1.msra.mxu0 %v1612
    %3977 = vmatprep.subr.mxu0 %v1621
    %3978 = vmatpush1.msra.mxu0 %v1620
    %3979 = vmatprep.subr.mxu0 %v1629
    %3980 = vmatpush1.msra.mxu0 %v1628
    %3981 = vmatprep.subr.mxu0 %v1637
    %3982 = vmatpush1.msra.mxu0 %v1636
    %3983 = vmatprep.subr.mxu0 %v1645
    %3984 = vmatpush1.msra.mxu0 %v1644
    %3985 = vmatprep.subr.mxu0 %v1653
    %3986 = vmatpush1.msra.mxu0 %v1652
    %3987 = vmatprep.subr.mxu0 %v1661
    %3988 = vmatpush1.msra.mxu0 %v1660
    %3989 = vmatprep.subr.mxu0 %v1669
    %3990 = vmatpush1.msra.mxu0 %v1668
    %3991 = vmatprep.subr.mxu0 %v1677
    %3992 = vmatpush1.msra.mxu0 %v1676
    %3993 = vmatprep.subr.mxu0 %v1685
    %3994 = vmatpush1.msra.mxu0 %v1684
    %3995 = vmatprep.subr.mxu0 %v1693
    %3996 = vmatpush1.msra.mxu0 %v1692
    %3997 = vmatprep.subr.mxu0 %v1701
    %3998 = vmatpush1.msra.mxu0 %v1700
    %3999 = vmatprep.mubr.f32.mxu0 %v3837
    %4000 = vmatmul.mubr.f32.gmra.mrb[0].mxu0 %v3836
    %v4001 = vpop.f32.mrb[0].mxu0
    %v4002 = vadd.f32 %v3858, %v4001
    %v4003 = vpop.f32.mrb[0].mxu0
    %v4004 = vadd.f32 %v3859, %v4003
    %4005 = vdwg.mxu0
    %4006 = vmatprep.subr.mxu0 %v1455
    %4007 = vmatpush1.msra.mxu0 %v1454
    %4008 = vmatprep.subr.mxu0 %v1463
    %4009 = vmatpush1.msra.mxu0 %v1462
    %4010 = vmatprep.subr.mxu0 %v1471
    %4011 = vmatpush1.msra.mxu0 %v1470
    %4012 = vmatprep.subr.mxu0 %v1479
    %4013 = vmatpush1.msra.mxu0 %v1478
    %4014 = vmatprep.subr.mxu0 %v1487
    %4015 = vmatpush1.msra.mxu0 %v1486
    %4016 = vmatprep.subr.mxu0 %v1495
    %4017 = vmatpush1.msra.mxu0 %v1494
    %4018 = vmatprep.subr.mxu0 %v1503
    %4019 = vmatpush1.msra.mxu0 %v1502
    %4020 = vmatprep.subr.mxu0 %v1511
    %4021 = vmatpush1.msra.mxu0 %v1510
    %4022 = vmatprep.subr.mxu0 %v1519
    %4023 = vmatpush1.msra.mxu0 %v1518
    %4024 = vmatprep.subr.mxu0 %v1527
    %4025 = vmatpush1.msra.mxu0 %v1526
    %4026 = vmatprep.subr.mxu0 %v1535
    %4027 = vmatpush1.msra.mxu0 %v1534
    %4028 = vmatprep.subr.mxu0 %v1543
    %4029 = vmatpush1.msra.mxu0 %v1542
    %4030 = vmatprep.subr.mxu0 %v1551
    %4031 = vmatpush1.msra.mxu0 %v1550
    %4032 = vmatprep.subr.mxu0 %v1559
    %4033 = vmatpush1.msra.mxu0 %v1558
    %4034 = vmatprep.subr.mxu0 %v1567
    %4035 = vmatpush1.msra.mxu0 %v1566
    %4036 = vmatprep.subr.mxu0 %v1575
    %4037 = vmatpush1.msra.mxu0 %v1574
    %4038 = vmatprep.subr.mxu0 %v1583
    %4039 = vmatpush1.msra.mxu0 %v1582
    %4040 = vmatprep.subr.mxu0 %v1591
    %4041 = vmatpush1.msra.mxu0 %v1590
    %4042 = vmatprep.subr.mxu0 %v1599
    %4043 = vmatpush1.msra.mxu0 %v1598
    %4044 = vmatprep.subr.mxu0 %v1607
    %4045 = vmatpush1.msra.mxu0 %v1606
    %4046 = vmatprep.subr.mxu0 %v1615
    %4047 = vmatpush1.msra.mxu0 %v1614
    %4048 = vmatprep.subr.mxu0 %v1623
    %4049 = vmatpush1.msra.mxu0 %v1622
    %4050 = vmatprep.subr.mxu0 %v1631
    %4051 = vmatpush1.msra.mxu0 %v1630
    %4052 = vmatprep.subr.mxu0 %v1639
    %4053 = vmatpush1.msra.mxu0 %v1638
    %4054 = vmatprep.subr.mxu0 %v1647
    %4055 = vmatpush1.msra.mxu0 %v1646
    %4056 = vmatprep.subr.mxu0 %v1655
    %4057 = vmatpush1.msra.mxu0 %v1654
    %4058 = vmatprep.subr.mxu0 %v1663
    %4059 = vmatpush1.msra.mxu0 %v1662
    %4060 = vmatprep.subr.mxu0 %v1671
    %4061 = vmatpush1.msra.mxu0 %v1670
    %4062 = vmatprep.subr.mxu0 %v1679
    %4063 = vmatpush1.msra.mxu0 %v1678
    %4064 = vmatprep.subr.mxu0 %v1687
    %4065 = vmatpush1.msra.mxu0 %v1686
    %4066 = vmatprep.subr.mxu0 %v1695
    %4067 = vmatpush1.msra.mxu0 %v1694
    %4068 = vmatprep.subr.mxu0 %v1703
    %4069 = vmatpush1.msra.mxu0 %v1702
    %4070 = vmatprep.mubr.f32.mxu0 %v3837
    %4071 = vmatmul.mubr.f32.gmra.mrb[0].mxu0 %v3836
    %v4072 = vpop.f32.mrb[0].mxu0
    %v4073 = vadd.f32 %v3860, %v4072
    %v4074 = vpop.f32.mrb[0].mxu0
    %v4075 = vadd.f32 %v3861, %v4074
    %4076 = vdwg.mxu0
    %4077 = vmatprep.subr.mxu0 %v1457
    %4078 = vmatpush1.msra.mxu0 %v1456
    %4079 = vmatprep.subr.mxu0 %v1465
    %4080 = vmatpush1.msra.mxu0 %v1464
    %4081 = vmatprep.subr.mxu0 %v1473
    %4082 = vmatpush1.msra.mxu0 %v1472
    %4083 = vmatprep.subr.mxu0 %v1481
    %4084 = vmatpush1.msra.mxu0 %v1480
    %4085 = vmatprep.subr.mxu0 %v1489
    %4086 = vmatpush1.msra.mxu0 %v1488
    %4087 = vmatprep.subr.mxu0 %v1497
    %4088 = vmatpush1.msra.mxu0 %v1496
    %4089 = vmatprep.subr.mxu0 %v1505
    %4090 = vmatpush1.msra.mxu0 %v1504
    %4091 = vmatprep.subr.mxu0 %v1513
    %4092 = vmatpush1.msra.mxu0 %v1512
    %4093 = vmatprep.subr.mxu0 %v1521
    %4094 = vmatpush1.msra.mxu0 %v1520
    %4095 = vmatprep.subr.mxu0 %v1529
    %4096 = vmatpush1.msra.mxu0 %v1528
    %4097 = vmatprep.subr.mxu0 %v1537
    %4098 = vmatpush1.msra.mxu0 %v1536
    %4099 = vmatprep.subr.mxu0 %v1545
    %4100 = vmatpush1.msra.mxu0 %v1544
    %4101 = vmatprep.subr.mxu0 %v1553
    %4102 = vmatpush1.msra.mxu0 %v1552
    %4103 = vmatprep.subr.mxu0 %v1561
    %4104 = vmatpush1.msra.mxu0 %v1560
    %4105 = vmatprep.subr.mxu0 %v1569
    %4106 = vmatpush1.msra.mxu0 %v1568
    %4107 = vmatprep.subr.mxu0 %v1577
    %4108 = vmatpush1.msra.mxu0 %v1576
    %4109 = vmatprep.subr.mxu0 %v1585
    %4110 = vmatpush1.msra.mxu0 %v1584
    %4111 = vmatprep.subr.mxu0 %v1593
    %4112 = vmatpush1.msra.mxu0 %v1592
    %4113 = vmatprep.subr.mxu0 %v1601
    %4114 = vmatpush1.msra.mxu0 %v1600
    %4115 = vmatprep.subr.mxu0 %v1609
    %4116 = vmatpush1.msra.mxu0 %v1608
    %4117 = vmatprep.subr.mxu0 %v1617
    %4118 = vmatpush1.msra.mxu0 %v1616
    %4119 = vmatprep.subr.mxu0 %v1625
    %4120 = vmatpush1.msra.mxu0 %v1624
    %4121 = vmatprep.subr.mxu0 %v1633
    %4122 = vmatpush1.msra.mxu0 %v1632
    %4123 = vmatprep.subr.mxu0 %v1641
    %4124 = vmatpush1.msra.mxu0 %v1640
    %4125 = vmatprep.subr.mxu0 %v1649
    %4126 = vmatpush1.msra.mxu0 %v1648
    %4127 = vmatprep.subr.mxu0 %v1657
    %4128 = vmatpush1.msra.mxu0 %v1656
    %4129 = vmatprep.subr.mxu0 %v1665
    %4130 = vmatpush1.msra.mxu0 %v1664
    %4131 = vmatprep.subr.mxu0 %v1673
    %4132 = vmatpush1.msra.mxu0 %v1672
    %4133 = vmatprep.subr.mxu0 %v1681
    %4134 = vmatpush1.msra.mxu0 %v1680
    %4135 = vmatprep.subr.mxu0 %v1689
    %4136 = vmatpush1.msra.mxu0 %v1688
    %4137 = vmatprep.subr.mxu0 %v1697
    %4138 = vmatpush1.msra.mxu0 %v1696
    %4139 = vmatprep.subr.mxu0 %v1705
    %4140 = vmatpush1.msra.mxu0 %v1704
    %4141 = vmatprep.mubr.f32.mxu0 %v3837
    %4142 = vmatmul.mubr.f32.gmra.mrb[0].mxu0 %v3836
    %v4143 = vpop.f32.mrb[0].mxu0
    %v4144 = vadd.f32 %v3862, %v4143
    %v4145 = vpop.f32.mrb[0].mxu0
    %v4146 = vadd.f32 %v3863, %v4145
    %4147 = vdwg.mxu0
    %v4148 = vmul.f32 %v3931, 0.5
    %v4149 = vmul.f32 %v3933, 0.5
    %v4150 = vtanh.pop %v4148
    %v4151 = vtanh.pop %v4149
    %v4152 = vadd.f32 %v4150, 1.0
    %v4153 = vadd.f32 %v4151, 1.0
    %v4154 = vmul.f32 %v4152, 0.5
    %v4155 = vmul.f32 %v4153, 0.5
    %v4156 = vmul.f32 %v4002, 0.5
    %v4157 = vmul.f32 %v4004, 0.5
    %v4158 = vtanh.pop %v4156
    %v4159 = vtanh.pop %v4157
    %v4160 = vadd.f32 %v4158, 1.0
    %v4161 = vadd.f32 %v4159, 1.0
    %v4162 = vmul.f32 %v4160, 0.5
    %v4163 = vmul.f32 %v4161, 0.5
    %v4164 = vtanh.pop %v4073
    %v4165 = vtanh.pop %v4075
    %v4166 = vmul.f32 %v4144, 0.5
    %v4167 = vmul.f32 %v4146, 0.5
    %v4168 = vtanh.pop %v4166
    %v4169 = vtanh.pop %v4167
    %v4170 = vadd.f32 %v4168, 1.0
    %v4171 = vadd.f32 %v4169, 1.0
    %v4172 = vmul.f32 %v4170, 0.5
    %v4173 = vmul.f32 %v4171, 0.5
    %v4174 = vmul.f32 %v4162, %v3838
    %v4175 = vmul.f32 %v4163, %v3839
    %v4176 = vmul.f32 %v4154, %v4164
    %v4177 = vmul.f32 %v4155, %v4165
    %v4178 = vadd.f32 %v4174, %v4176
    %v4179 = vadd.f32 %v4175, %v4177
    %v4180 = vtanh.pop %v4178
    %v4181 = vtanh.pop %v4179
    %v4182 = vmul.f32 %v4172, %v4180
    %v4183 = vmul.f32 %v4173, %v4181
    %v4184 = vsel %vm1444, 6, 9
    %v4185 = vsel %vm1445, 6, 9
    %vm4186 = vcmp.gt.s32.totalorder %v1449, %v4184
    %vm4187 = vcmp.gt.s32.totalorder %v1449, %v4185
    %v4188 = vsel %vm4186, %v4182, 0.0
    %v4189 = vsel %vm4187, %v4183, 0.0
    %4190 = vst [vmem:[#allocation15 + $0x30] sm:$0xff] %v4188
    %4191 = vst [vmem:[#allocation15 + $0x48] sm:$0xff] %v4189
    %v4192 = vsel %vm4186, %v4182, %v3836
    %v4193 = vsel %vm4187, %v4183, %v3837
    %v4194 = vsel %vm4186, %v4178, %v3838
    %v4195 = vsel %vm4187, %v4179, %v3839
    %v4196 = vld [vmem:[#allocation2 + $0x1c0] sm:$0xff]
    %v4197 = vld [vmem:[#allocation2 + $0x1c8] sm:$0xff]
    %v4198 = vld [vmem:[#allocation2 + $0x1d0] sm:$0xff]
    %v4199 = vld [vmem:[#allocation2 + $0x1d8] sm:$0xff]
    %v4200 = vld [vmem:[#allocation2 + $0x1e0] sm:$0xff]
    %v4201 = vld [vmem:[#allocation2 + $0x1e8] sm:$0xff]
    %v4202 = vld [vmem:[#allocation2 + $0x1f0] sm:$0xff]
    %v4203 = vld [vmem:[#allocation2 + $0x1f8] sm:$0xff]
    %v4204 = vld [vmem:[#allocation2 + $0x200] sm:$0xff]
    %v4205 = vld [vmem:[#allocation2 + $0x208] sm:$0xff]
    %v4206 = vld [vmem:[#allocation2 + $0x210] sm:$0xff]
    %v4207 = vld [vmem:[#allocation2 + $0x218] sm:$0xff]
    %v4208 = vld [vmem:[#allocation2 + $0x220] sm:$0xff]
    %v4209 = vld [vmem:[#allocation2 + $0x228] sm:$0xff]
    %v4210 = vld [vmem:[#allocation2 + $0x230] sm:$0xff]
    %v4211 = vld [vmem:[#allocation2 + $0x238] sm:$0xff]
    %v4212 = vsel %vm1436, %v4196, %v4204
    %v4213 = vsel %vm1437, %v4197, %v4205
    %v4214 = vsel %vm1438, %v4198, %v4206
    %v4215 = vsel %vm1439, %v4199, %v4207
    %v4216 = vsel %vm1440, %v4200, %v4208
    %v4217 = vsel %vm1441, %v4201, %v4209
    %v4218 = vsel %vm1442, %v4202, %v4210
    %v4219 = vsel %vm1443, %v4203, %v4211
    %4220 = vmatprep.subr.mxu0 %v1451
    %4221 = vmatpush1.msra.mxu0 %v1450
    %4222 = vmatprep.subr.mxu0 %v1459
    %4223 = vmatpush1.msra.mxu0 %v1458
    %4224 = vmatprep.subr.mxu0 %v1467
    %4225 = vmatpush1.msra.mxu0 %v1466
    %4226 = vmatprep.subr.mxu0 %v1475
    %4227 = vmatpush1.msra.mxu0 %v1474
    %4228 = vmatprep.subr.mxu0 %v1483
    %4229 = vmatpush1.msra.mxu0 %v1482
    %4230 = vmatprep.subr.mxu0 %v1491
    %4231 = vmatpush1.msra.mxu0 %v1490
    %4232 = vmatprep.subr.mxu0 %v1499
    %4233 = vmatpush1.msra.mxu0 %v1498
    %4234 = vmatprep.subr.mxu0 %v1507
    %4235 = vmatpush1.msra.mxu0 %v1506
    %4236 = vmatprep.subr.mxu0 %v1515
    %4237 = vmatpush1.msra.mxu0 %v1514
    %4238 = vmatprep.subr.mxu0 %v1523
    %4239 = vmatpush1.msra.mxu0 %v1522
    %4240 = vmatprep.subr.mxu0 %v1531
    %4241 = vmatpush1.msra.mxu0 %v1530
    %4242 = vmatprep.subr.mxu0 %v1539
    %4243 = vmatpush1.msra.mxu0 %v1538
    %4244 = vmatprep.subr.mxu0 %v1547
    %4245 = vmatpush1.msra.mxu0 %v1546
    %4246 = vmatprep.subr.mxu0 %v1555
    %4247 = vmatpush1.msra.mxu0 %v1554
    %4248 = vmatprep.subr.mxu0 %v1563
    %4249 = vmatpush1.msra.mxu0 %v1562
    %4250 = vmatprep.subr.mxu0 %v1571
    %4251 = vmatpush1.msra.mxu0 %v1570
    %4252 = vmatprep.subr.mxu0 %v1579
    %4253 = vmatpush1.msra.mxu0 %v1578
    %4254 = vmatprep.subr.mxu0 %v1587
    %4255 = vmatpush1.msra.mxu0 %v1586
    %4256 = vmatprep.subr.mxu0 %v1595
    %4257 = vmatpush1.msra.mxu0 %v1594
    %4258 = vmatprep.subr.mxu0 %v1603
    %4259 = vmatpush1.msra.mxu0 %v1602
    %4260 = vmatprep.subr.mxu0 %v1611
    %4261 = vmatpush1.msra.mxu0 %v1610
    %4262 = vmatprep.subr.mxu0 %v1619
    %4263 = vmatpush1.msra.mxu0 %v1618
    %4264 = vmatprep.subr.mxu0 %v1627
    %4265 = vmatpush1.msra.mxu0 %v1626
    %4266 = vmatprep.subr.mxu0 %v1635
    %4267 = vmatpush1.msra.mxu0 %v1634
    %4268 = vmatprep.subr.mxu0 %v1643
    %4269 = vmatpush1.msra.mxu0 %v1642
    %4270 = vmatprep.subr.mxu0 %v1651
    %4271 = vmatpush1.msra.mxu0 %v1650
    %4272 = vmatprep.subr.mxu0 %v1659
    %4273 = vmatpush1.msra.mxu0 %v1658
    %4274 = vmatprep.subr.mxu0 %v1667
    %4275 = vmatpush1.msra.mxu0 %v1666
    %4276 = vmatprep.subr.mxu0 %v1675
    %4277 = vmatpush1.msra.mxu0 %v1674
    %4278 = vmatprep.subr.mxu0 %v1683
    %4279 = vmatpush1.msra.mxu0 %v1682
    %4280 = vmatprep.subr.mxu0 %v1691
    %4281 = vmatpush1.msra.mxu0 %v1690
    %4282 = vmatprep.subr.mxu0 %v1699
    %4283 = vmatpush1.msra.mxu0 %v1698
    %4284 = vmatprep.mubr.f32.mxu0 %v4193
    %4285 = vmatmul.mubr.f32.gmra.mrb[0].mxu0 %v4192
    %v4286 = vpop.f32.mrb[0].mxu0
    %v4287 = vadd.f32 %v4212, %v4286
    %v4288 = vpop.f32.mrb[0].mxu0
    %v4289 = vadd.f32 %v4213, %v4288
    %4290 = vdwg.mxu0
    %4291 = vmatprep.subr.mxu0 %v1453
    %4292 = vmatpush1.msra.mxu0 %v1452
    %4293 = vmatprep.subr.mxu0 %v1461
    %4294 = vmatpush1.msra.mxu0 %v1460
    %4295 = vmatprep.subr.mxu0 %v1469
    %4296 = vmatpush1.msra.mxu0 %v1468
    %4297 = vmatprep.subr.mxu0 %v1477
    %4298 = vmatpush1.msra.mxu0 %v1476
    %4299 = vmatprep.subr.mxu0 %v1485
    %4300 = vmatpush1.msra.mxu0 %v1484
    %4301 = vmatprep.subr.mxu0 %v1493
    %4302 = vmatpush1.msra.mxu0 %v1492
    %4303 = vmatprep.subr.mxu0 %v1501
    %4304 = vmatpush1.msra.mxu0 %v1500
    %4305 = vmatprep.subr.mxu0 %v1509
    %4306 = vmatpush1.msra.mxu0 %v1508
    %4307 = vmatprep.subr.mxu0 %v1517
    %4308 = vmatpush1.msra.mxu0 %v1516
    %4309 = vmatprep.subr.mxu0 %v1525
    %4310 = vmatpush1.msra.mxu0 %v1524
    %4311 = vmatprep.subr.mxu0 %v1533
    %4312 = vmatpush1.msra.mxu0 %v1532
    %4313 = vmatprep.subr.mxu0 %v1541
    %4314 = vmatpush1.msra.mxu0 %v1540
    %4315 = vmatprep.subr.mxu0 %v1549
    %4316 = vmatpush1.msra.mxu0 %v1548
    %4317 = vmatprep.subr.mxu0 %v1557
    %4318 = vmatpush1.msra.mxu0 %v1556
    %4319 = vmatprep.subr.mxu0 %v1565
    %4320 = vmatpush1.msra.mxu0 %v1564
    %4321 = vmatprep.subr.mxu0 %v1573
    %4322 = vmatpush1.msra.mxu0 %v1572
    %4323 = vmatprep.subr.mxu0 %v1581
    %4324 = vmatpush1.msra.mxu0 %v1580
    %4325 = vmatprep.subr.mxu0 %v1589
    %4326 = vmatpush1.msra.mxu0 %v1588
    %4327 = vmatprep.subr.mxu0 %v1597
    %4328 = vmatpush1.msra.mxu0 %v1596
    %4329 = vmatprep.subr.mxu0 %v1605
    %4330 = vmatpush1.msra.mxu0 %v1604
    %4331 = vmatprep.subr.mxu0 %v1613
    %4332 = vmatpush1.msra.mxu0 %v1612
    %4333 = vmatprep.subr.mxu0 %v1621
    %4334 = vmatpush1.msra.mxu0 %v1620
    %4335 = vmatprep.subr.mxu0 %v1629
    %4336 = vmatpush1.msra.mxu0 %v1628
    %4337 = vmatprep.subr.mxu0 %v1637
    %4338 = vmatpush1.msra.mxu0 %v1636
    %4339 = vmatprep.subr.mxu0 %v1645
    %4340 = vmatpush1.msra.mxu0 %v1644
    %4341 = vmatprep.subr.mxu0 %v1653
    %4342 = vmatpush1.msra.mxu0 %v1652
    %4343 = vmatprep.subr.mxu0 %v1661
    %4344 = vmatpush1.msra.mxu0 %v1660
    %4345 = vmatprep.subr.mxu0 %v1669
    %4346 = vmatpush1.msra.mxu0 %v1668
    %4347 = vmatprep.subr.mxu0 %v1677
    %4348 = vmatpush1.msra.mxu0 %v1676
    %4349 = vmatprep.subr.mxu0 %v1685
    %4350 = vmatpush1.msra.mxu0 %v1684
    %4351 = vmatprep.subr.mxu0 %v1693
    %4352 = vmatpush1.msra.mxu0 %v1692
    %4353 = vmatprep.subr.mxu0 %v1701
    %4354 = vmatpush1.msra.mxu0 %v1700
    %4355 = vmatprep.mubr.f32.mxu0 %v4193
    %4356 = vmatmul.mubr.f32.gmra.mrb[0].mxu0 %v4192
    %v4357 = vpop.f32.mrb[0].mxu0
    %v4358 = vadd.f32 %v4214, %v4357
    %v4359 = vpop.f32.mrb[0].mxu0
    %v4360 = vadd.f32 %v4215, %v4359
    %4361 = vdwg.mxu0
    %4362 = vmatprep.subr.mxu0 %v1455
    %4363 = vmatpush1.msra.mxu0 %v1454
    %4364 = vmatprep.subr.mxu0 %v1463
    %4365 = vmatpush1.msra.mxu0 %v1462
    %4366 = vmatprep.subr.mxu0 %v1471
    %4367 = vmatpush1.msra.mxu0 %v1470
    %4368 = vmatprep.subr.mxu0 %v1479
    %4369 = vmatpush1.msra.mxu0 %v1478
    %4370 = vmatprep.subr.mxu0 %v1487
    %4371 = vmatpush1.msra.mxu0 %v1486
    %4372 = vmatprep.subr.mxu0 %v1495
    %4373 = vmatpush1.msra.mxu0 %v1494
    %4374 = vmatprep.subr.mxu0 %v1503
    %4375 = vmatpush1.msra.mxu0 %v1502
    %4376 = vmatprep.subr.mxu0 %v1511
    %4377 = vmatpush1.msra.mxu0 %v1510
    %4378 = vmatprep.subr.mxu0 %v1519
    %4379 = vmatpush1.msra.mxu0 %v1518
    %4380 = vmatprep.subr.mxu0 %v1527
    %4381 = vmatpush1.msra.mxu0 %v1526
    %4382 = vmatprep.subr.mxu0 %v1535
    %4383 = vmatpush1.msra.mxu0 %v1534
    %4384 = vmatprep.subr.mxu0 %v1543
    %4385 = vmatpush1.msra.mxu0 %v1542
    %4386 = vmatprep.subr.mxu0 %v1551
    %4387 = vmatpush1.msra.mxu0 %v1550
    %4388 = vmatprep.subr.mxu0 %v1559
    %4389 = vmatpush1.msra.mxu0 %v1558
    %4390 = vmatprep.subr.mxu0 %v1567
    %4391 = vmatpush1.msra.mxu0 %v1566
    %4392 = vmatprep.subr.mxu0 %v1575
    %4393 = vmatpush1.msra.mxu0 %v1574
    %4394 = vmatprep.subr.mxu0 %v1583
    %4395 = vmatpush1.msra.mxu0 %v1582
    %4396 = vmatprep.subr.mxu0 %v1591
    %4397 = vmatpush1.msra.mxu0 %v1590
    %4398 = vmatprep.subr.mxu0 %v1599
    %4399 = vmatpush1.msra.mxu0 %v1598
    %4400 = vmatprep.subr.mxu0 %v1607
    %4401 = vmatpush1.msra.mxu0 %v1606
    %4402 = vmatprep.subr.mxu0 %v1615
    %4403 = vmatpush1.msra.mxu0 %v1614
    %4404 = vmatprep.subr.mxu0 %v1623
    %4405 = vmatpush1.msra.mxu0 %v1622
    %4406 = vmatprep.subr.mxu0 %v1631
    %4407 = vmatpush1.msra.mxu0 %v1630
    %4408 = vmatprep.subr.mxu0 %v1639
    %4409 = vmatpush1.msra.mxu0 %v1638
    %4410 = vmatprep.subr.mxu0 %v1647
    %4411 = vmatpush1.msra.mxu0 %v1646
    %4412 = vmatprep.subr.mxu0 %v1655
    %4413 = vmatpush1.msra.mxu0 %v1654
    %4414 = vmatprep.subr.mxu0 %v1663
    %4415 = vmatpush1.msra.mxu0 %v1662
    %4416 = vmatprep.subr.mxu0 %v1671
    %4417 = vmatpush1.msra.mxu0 %v1670
    %4418 = vmatprep.subr.mxu0 %v1679
    %4419 = vmatpush1.msra.mxu0 %v1678
    %4420 = vmatprep.subr.mxu0 %v1687
    %4421 = vmatpush1.msra.mxu0 %v1686
    %4422 = vmatprep.subr.mxu0 %v1695
    %4423 = vmatpush1.msra.mxu0 %v1694
    %4424 = vmatprep.subr.mxu0 %v1703
    %4425 = vmatpush1.msra.mxu0 %v1702
    %4426 = vmatprep.mubr.f32.mxu0 %v4193
    %4427 = vmatmul.mubr.f32.gmra.mrb[0].mxu0 %v4192
    %v4428 = vpop.f32.mrb[0].mxu0
    %v4429 = vadd.f32 %v4216, %v4428
    %v4430 = vpop.f32.mrb[0].mxu0
    %v4431 = vadd.f32 %v4217, %v4430
    %4432 = vdwg.mxu0
    %4433 = vmatprep.subr.mxu0 %v1457
    %4434 = vmatpush1.msra.mxu0 %v1456
    %4435 = vmatprep.subr.mxu0 %v1465
    %4436 = vmatpush1.msra.mxu0 %v1464
    %4437 = vmatprep.subr.mxu0 %v1473
    %4438 = vmatpush1.msra.mxu0 %v1472
    %4439 = vmatprep.subr.mxu0 %v1481
    %4440 = vmatpush1.msra.mxu0 %v1480
    %4441 = vmatprep.subr.mxu0 %v1489
    %4442 = vmatpush1.msra.mxu0 %v1488
    %4443 = vmatprep.subr.mxu0 %v1497
    %4444 = vmatpush1.msra.mxu0 %v1496
    %4445 = vmatprep.subr.mxu0 %v1505
    %4446 = vmatpush1.msra.mxu0 %v1504
    %4447 = vmatprep.subr.mxu0 %v1513
    %4448 = vmatpush1.msra.mxu0 %v1512
    %4449 = vmatprep.subr.mxu0 %v1521
    %4450 = vmatpush1.msra.mxu0 %v1520
    %4451 = vmatprep.subr.mxu0 %v1529
    %4452 = vmatpush1.msra.mxu0 %v1528
    %4453 = vmatprep.subr.mxu0 %v1537
    %4454 = vmatpush1.msra.mxu0 %v1536
    %4455 = vmatprep.subr.mxu0 %v1545
    %4456 = vmatpush1.msra.mxu0 %v1544
    %4457 = vmatprep.subr.mxu0 %v1553
    %4458 = vmatpush1.msra.mxu0 %v1552
    %4459 = vmatprep.subr.mxu0 %v1561
    %4460 = vmatpush1.msra.mxu0 %v1560
    %4461 = vmatprep.subr.mxu0 %v1569
    %4462 = vmatpush1.msra.mxu0 %v1568
    %4463 = vmatprep.subr.mxu0 %v1577
    %4464 = vmatpush1.msra.mxu0 %v1576
    %4465 = vmatprep.subr.mxu0 %v1585
    %4466 = vmatpush1.msra.mxu0 %v1584
    %4467 = vmatprep.subr.mxu0 %v1593
    %4468 = vmatpush1.msra.mxu0 %v1592
    %4469 = vmatprep.subr.mxu0 %v1601
    %4470 = vmatpush1.msra.mxu0 %v1600
    %4471 = vmatprep.subr.mxu0 %v1609
    %4472 = vmatpush1.msra.mxu0 %v1608
    %4473 = vmatprep.subr.mxu0 %v1617
    %4474 = vmatpush1.msra.mxu0 %v1616
    %4475 = vmatprep.subr.mxu0 %v1625
    %4476 = vmatpush1.msra.mxu0 %v1624
    %4477 = vmatprep.subr.mxu0 %v1633
    %4478 = vmatpush1.msra.mxu0 %v1632
    %4479 = vmatprep.subr.mxu0 %v1641
    %4480 = vmatpush1.msra.mxu0 %v1640
    %4481 = vmatprep.subr.mxu0 %v1649
    %4482 = vmatpush1.msra.mxu0 %v1648
    %4483 = vmatprep.subr.mxu0 %v1657
    %4484 = vmatpush1.msra.mxu0 %v1656
    %4485 = vmatprep.subr.mxu0 %v1665
    %4486 = vmatpush1.msra.mxu0 %v1664
    %4487 = vmatprep.subr.mxu0 %v1673
    %4488 = vmatpush1.msra.mxu0 %v1672
    %4489 = vmatprep.subr.mxu0 %v1681
    %4490 = vmatpush1.msra.mxu0 %v1680
    %4491 = vmatprep.subr.mxu0 %v1689
    %4492 = vmatpush1.msra.mxu0 %v1688
    %4493 = vmatprep.subr.mxu0 %v1697
    %4494 = vmatpush1.msra.mxu0 %v1696
    %4495 = vmatprep.subr.mxu0 %v1705
    %4496 = vmatpush1.msra.mxu0 %v1704
    %4497 = vmatprep.mubr.f32.mxu0 %v4193
    %4498 = vmatmul.mubr.f32.gmra.mrb[0].mxu0 %v4192
    %v4499 = vpop.f32.mrb[0].mxu0
    %v4500 = vadd.f32 %v4218, %v4499
    %v4501 = vpop.f32.mrb[0].mxu0
    %v4502 = vadd.f32 %v4219, %v4501
    %4503 = vdwg.mxu0
    %v4504 = vmul.f32 %v4287, 0.5
    %v4505 = vmul.f32 %v4289, 0.5
    %v4506 = vtanh.pop %v4504
    %v4507 = vtanh.pop %v4505
    %v4508 = vadd.f32 %v4506, 1.0
    %v4509 = vadd.f32 %v4507, 1.0
    %v4510 = vmul.f32 %v4508, 0.5
    %v4511 = vmul.f32 %v4509, 0.5
    %v4512 = vmul.f32 %v4358, 0.5
    %v4513 = vmul.f32 %v4360, 0.5
    %v4514 = vtanh.pop %v4512
    %v4515 = vtanh.pop %v4513
    %v4516 = vadd.f32 %v4514, 1.0
    %v4517 = vadd.f32 %v4515, 1.0
    %v4518 = vmul.f32 %v4516, 0.5
    %v4519 = vmul.f32 %v4517, 0.5
    %v4520 = vtanh.pop %v4429
    %v4521 = vtanh.pop %v4431
    %v4522 = vmul.f32 %v4500, 0.5
    %v4523 = vmul.f32 %v4502, 0.5
    %v4524 = vtanh.pop %v4522
    %v4525 = vtanh.pop %v4523
    %v4526 = vadd.f32 %v4524, 1.0
    %v4527 = vadd.f32 %v4525, 1.0
    %v4528 = vmul.f32 %v4526, 0.5
    %v4529 = vmul.f32 %v4527, 0.5
    %v4530 = vmul.f32 %v4518, %v4194
    %v4531 = vmul.f32 %v4519, %v4195
    %v4532 = vmul.f32 %v4510, %v4520
    %v4533 = vmul.f32 %v4511, %v4521
    %v4534 = vadd.f32 %v4530, %v4532
    %v4535 = vadd.f32 %v4531, %v4533
    %v4536 = vtanh.pop %v4534
    %v4537 = vtanh.pop %v4535
    %v4538 = vmul.f32 %v4528, %v4536
    %v4539 = vmul.f32 %v4529, %v4537
    %v4540 = vsel %vm1444, 7, 8
    %v4541 = vsel %vm1445, 7, 8
    %vm4542 = vcmp.gt.s32.totalorder %v1449, %v4540
    %vm4543 = vcmp.gt.s32.totalorder %v1449, %v4541
    %v4544 = vsel %vm4542, %v4538, 0.0
    %v4545 = vsel %vm4543, %v4539, 0.0
    %4546 = vst [vmem:[#allocation15 + $0x38] sm:$0xff] %v4544
    %4547 = vst [vmem:[#allocation15 + $0x40] sm:$0xff] %v4545
    %v4548 = vsel %vm4542, %v4538, %v4192
    %v4549 = vsel %vm4543, %v4539, %v4193
    %v4550 = vsel %vm4542, %v4534, %v4194
    %v4551 = vsel %vm4543, %v4535, %v4195
    %v4552 = vld [vmem:[#allocation2 + $0x200] sm:$0xff]
    %v4553 = vld [vmem:[#allocation2 + $0x208] sm:$0xff]
    %v4554 = vld [vmem:[#allocation2 + $0x210] sm:$0xff]
    %v4555 = vld [vmem:[#allocation2 + $0x218] sm:$0xff]
    %v4556 = vld [vmem:[#allocation2 + $0x220] sm:$0xff]
    %v4557 = vld [vmem:[#allocation2 + $0x228] sm:$0xff]
    %v4558 = vld [vmem:[#allocation2 + $0x230] sm:$0xff]
    %v4559 = vld [vmem:[#allocation2 + $0x238] sm:$0xff]
    %v4560 = vld [vmem:[#allocation2 + $0x1c0] sm:$0xff]
    %v4561 = vld [vmem:[#allocation2 + $0x1c8] sm:$0xff]
    %v4562 = vld [vmem:[#allocation2 + $0x1d0] sm:$0xff]
    %v4563 = vld [vmem:[#allocation2 + $0x1d8] sm:$0xff]
    %v4564 = vld [vmem:[#allocation2 + $0x1e0] sm:$0xff]
    %v4565 = vld [vmem:[#allocation2 + $0x1e8] sm:$0xff]
    %v4566 = vld [vmem:[#allocation2 + $0x1f0] sm:$0xff]
    %v4567 = vld [vmem:[#allocation2 + $0x1f8] sm:$0xff]
    %v4568 = vsel %vm1436, %v4552, %v4560
    %v4569 = vsel %vm1437, %v4553, %v4561
    %v4570 = vsel %vm1438, %v4554, %v4562
    %v4571 = vsel %vm1439, %v4555, %v4563
    %v4572 = vsel %vm1440, %v4556, %v4564
    %v4573 = vsel %vm1441, %v4557, %v4565
    %v4574 = vsel %vm1442, %v4558, %v4566
    %v4575 = vsel %vm1443, %v4559, %v4567
    %4576 = vmatprep.subr.mxu0 %v1451
    %4577 = vmatpush1.msra.mxu0 %v1450
    %4578 = vmatprep.subr.mxu0 %v1459
    %4579 = vmatpush1.msra.mxu0 %v1458
    %4580 = vmatprep.subr.mxu0 %v1467
    %4581 = vmatpush1.msra.mxu0 %v1466
    %4582 = vmatprep.subr.mxu0 %v1475
    %4583 = vmatpush1.msra.mxu0 %v1474
    %4584 = vmatprep.subr.mxu0 %v1483
    %4585 = vmatpush1.msra.mxu0 %v1482
    %4586 = vmatprep.subr.mxu0 %v1491
    %4587 = vmatpush1.msra.mxu0 %v1490
    %4588 = vmatprep.subr.mxu0 %v1499
    %4589 = vmatpush1.msra.mxu0 %v1498
    %4590 = vmatprep.subr.mxu0 %v1507
    %4591 = vmatpush1.msra.mxu0 %v1506
    %4592 = vmatprep.subr.mxu0 %v1515
    %4593 = vmatpush1.msra.mxu0 %v1514
    %4594 = vmatprep.subr.mxu0 %v1523
    %4595 = vmatpush1.msra.mxu0 %v1522
    %4596 = vmatprep.subr.mxu0 %v1531
    %4597 = vmatpush1.msra.mxu0 %v1530
    %4598 = vmatprep.subr.mxu0 %v1539
    %4599 = vmatpush1.msra.mxu0 %v1538
    %4600 = vmatprep.subr.mxu0 %v1547
    %4601 = vmatpush1.msra.mxu0 %v1546
    %4602 = vmatprep.subr.mxu0 %v1555
    %4603 = vmatpush1.msra.mxu0 %v1554
    %4604 = vmatprep.subr.mxu0 %v1563
    %4605 = vmatpush1.msra.mxu0 %v1562
    %4606 = vmatprep.subr.mxu0 %v1571
    %4607 = vmatpush1.msra.mxu0 %v1570
    %4608 = vmatprep.subr.mxu0 %v1579
    %4609 = vmatpush1.msra.mxu0 %v1578
    %4610 = vmatprep.subr.mxu0 %v1587
    %4611 = vmatpush1.msra.mxu0 %v1586
    %4612 = vmatprep.subr.mxu0 %v1595
    %4613 = vmatpush1.msra.mxu0 %v1594
    %4614 = vmatprep.subr.mxu0 %v1603
    %4615 = vmatpush1.msra.mxu0 %v1602
    %4616 = vmatprep.subr.mxu0 %v1611
    %4617 = vmatpush1.msra.mxu0 %v1610
    %4618 = vmatprep.subr.mxu0 %v1619
    %4619 = vmatpush1.msra.mxu0 %v1618
    %4620 = vmatprep.subr.mxu0 %v1627
    %4621 = vmatpush1.msra.mxu0 %v1626
    %4622 = vmatprep.subr.mxu0 %v1635
    %4623 = vmatpush1.msra.mxu0 %v1634
    %4624 = vmatprep.subr.mxu0 %v1643
    %4625 = vmatpush1.msra.mxu0 %v1642
    %4626 = vmatprep.subr.mxu0 %v1651
    %4627 = vmatpush1.msra.mxu0 %v1650
    %4628 = vmatprep.subr.mxu0 %v1659
    %4629 = vmatpush1.msra.mxu0 %v1658
    %4630 = vmatprep.subr.mxu0 %v1667
    %4631 = vmatpush1.msra.mxu0 %v1666
    %4632 = vmatprep.subr.mxu0 %v1675
    %4633 = vmatpush1.msra.mxu0 %v1674
    %4634 = vmatprep.subr.mxu0 %v1683
    %4635 = vmatpush1.msra.mxu0 %v1682
    %4636 = vmatprep.subr.mxu0 %v1691
    %4637 = vmatpush1.msra.mxu0 %v1690
    %4638 = vmatprep.subr.mxu0 %v1699
    %4639 = vmatpush1.msra.mxu0 %v1698
    %4640 = vmatprep.mubr.f32.mxu0 %v4549
    %4641 = vmatmul.mubr.f32.gmra.mrb[0].mxu0 %v4548
    %v4642 = vpop.f32.mrb[0].mxu0
    %v4643 = vadd.f32 %v4568, %v4642
    %v4644 = vpop.f32.mrb[0].mxu0
    %v4645 = vadd.f32 %v4569, %v4644
    %4646 = vdwg.mxu0
    %4647 = vmatprep.subr.mxu0 %v1453
    %4648 = vmatpush1.msra.mxu0 %v1452
    %4649 = vmatprep.subr.mxu0 %v1461
    %4650 = vmatpush1.msra.mxu0 %v1460
    %4651 = vmatprep.subr.mxu0 %v1469
    %4652 = vmatpush1.msra.mxu0 %v1468
    %4653 = vmatprep.subr.mxu0 %v1477
    %4654 = vmatpush1.msra.mxu0 %v1476
    %4655 = vmatprep.subr.mxu0 %v1485
    %4656 = vmatpush1.msra.mxu0 %v1484
    %4657 = vmatprep.subr.mxu0 %v1493
    %4658 = vmatpush1.msra.mxu0 %v1492
    %4659 = vmatprep.subr.mxu0 %v1501
    %4660 = vmatpush1.msra.mxu0 %v1500
    %4661 = vmatprep.subr.mxu0 %v1509
    %4662 = vmatpush1.msra.mxu0 %v1508
    %4663 = vmatprep.subr.mxu0 %v1517
    %4664 = vmatpush1.msra.mxu0 %v1516
    %4665 = vmatprep.subr.mxu0 %v1525
    %4666 = vmatpush1.msra.mxu0 %v1524
    %4667 = vmatprep.subr.mxu0 %v1533
    %4668 = vmatpush1.msra.mxu0 %v1532
    %4669 = vmatprep.subr.mxu0 %v1541
    %4670 = vmatpush1.msra.mxu0 %v1540
    %4671 = vmatprep.subr.mxu0 %v1549
    %4672 = vmatpush1.msra.mxu0 %v1548
    %4673 = vmatprep.subr.mxu0 %v1557
    %4674 = vmatpush1.msra.mxu0 %v1556
    %4675 = vmatprep.subr.mxu0 %v1565
    %4676 = vmatpush1.msra.mxu0 %v1564
    %4677 = vmatprep.subr.mxu0 %v1573
    %4678 = vmatpush1.msra.mxu0 %v1572
    %4679 = vmatprep.subr.mxu0 %v1581
    %4680 = vmatpush1.msra.mxu0 %v1580
    %4681 = vmatprep.subr.mxu0 %v1589
    %4682 = vmatpush1.msra.mxu0 %v1588
    %4683 = vmatprep.subr.mxu0 %v1597
    %4684 = vmatpush1.msra.mxu0 %v1596
    %4685 = vmatprep.subr.mxu0 %v1605
    %4686 = vmatpush1.msra.mxu0 %v1604
    %4687 = vmatprep.subr.mxu0 %v1613
    %4688 = vmatpush1.msra.mxu0 %v1612
    %4689 = vmatprep.subr.mxu0 %v1621
    %4690 = vmatpush1.msra.mxu0 %v1620
    %4691 = vmatprep.subr.mxu0 %v1629
    %4692 = vmatpush1.msra.mxu0 %v1628
    %4693 = vmatprep.subr.mxu0 %v1637
    %4694 = vmatpush1.msra.mxu0 %v1636
    %4695 = vmatprep.subr.mxu0 %v1645
    %4696 = vmatpush1.msra.mxu0 %v1644
    %4697 = vmatprep.subr.mxu0 %v1653
    %4698 = vmatpush1.msra.mxu0 %v1652
    %4699 = vmatprep.subr.mxu0 %v1661
    %4700 = vmatpush1.msra.mxu0 %v1660
    %4701 = vmatprep.subr.mxu0 %v1669
    %4702 = vmatpush1.msra.mxu0 %v1668
    %4703 = vmatprep.subr.mxu0 %v1677
    %4704 = vmatpush1.msra.mxu0 %v1676
    %4705 = vmatprep.subr.mxu0 %v1685
    %4706 = vmatpush1.msra.mxu0 %v1684
    %4707 = vmatprep.subr.mxu0 %v1693
    %4708 = vmatpush1.msra.mxu0 %v1692
    %4709 = vmatprep.subr.mxu0 %v1701
    %4710 = vmatpush1.msra.mxu0 %v1700
    %4711 = vmatprep.mubr.f32.mxu0 %v4549
    %4712 = vmatmul.mubr.f32.gmra.mrb[0].mxu0 %v4548
    %v4713 = vpop.f32.mrb[0].mxu0
    %v4714 = vadd.f32 %v4570, %v4713
    %v4715 = vpop.f32.mrb[0].mxu0
    %v4716 = vadd.f32 %v4571, %v4715
    %4717 = vdwg.mxu0
    %4718 = vmatprep.subr.mxu0 %v1455
    %4719 = vmatpush1.msra.mxu0 %v1454
    %4720 = vmatprep.subr.mxu0 %v1463
    %4721 = vmatpush1.msra.mxu0 %v1462
    %4722 = vmatprep.subr.mxu0 %v1471
    %4723 = vmatpush1.msra.mxu0 %v1470
    %4724 = vmatprep.subr.mxu0 %v1479
    %4725 = vmatpush1.msra.mxu0 %v1478
    %4726 = vmatprep.subr.mxu0 %v1487
    %4727 = vmatpush1.msra.mxu0 %v1486
    %4728 = vmatprep.subr.mxu0 %v1495
    %4729 = vmatpush1.msra.mxu0 %v1494
    %4730 = vmatprep.subr.mxu0 %v1503
    %4731 = vmatpush1.msra.mxu0 %v1502
    %4732 = vmatprep.subr.mxu0 %v1511
    %4733 = vmatpush1.msra.mxu0 %v1510
    %4734 = vmatprep.subr.mxu0 %v1519
    %4735 = vmatpush1.msra.mxu0 %v1518
    %4736 = vmatprep.subr.mxu0 %v1527
    %4737 = vmatpush1.msra.mxu0 %v1526
    %4738 = vmatprep.subr.mxu0 %v1535
    %4739 = vmatpush1.msra.mxu0 %v1534
    %4740 = vmatprep.subr.mxu0 %v1543
    %4741 = vmatpush1.msra.mxu0 %v1542
    %4742 = vmatprep.subr.mxu0 %v1551
    %4743 = vmatpush1.msra.mxu0 %v1550
    %4744 = vmatprep.subr.mxu0 %v1559
    %4745 = vmatpush1.msra.mxu0 %v1558
    %4746 = vmatprep.subr.mxu0 %v1567
    %4747 = vmatpush1.msra.mxu0 %v1566
    %4748 = vmatprep.subr.mxu0 %v1575
    %4749 = vmatpush1.msra.mxu0 %v1574
    %4750 = vmatprep.subr.mxu0 %v1583
    %4751 = vmatpush1.msra.mxu0 %v1582
    %4752 = vmatprep.subr.mxu0 %v1591
    %4753 = vmatpush1.msra.mxu0 %v1590
    %4754 = vmatprep.subr.mxu0 %v1599
    %4755 = vmatpush1.msra.mxu0 %v1598
    %4756 = vmatprep.subr.mxu0 %v1607
    %4757 = vmatpush1.msra.mxu0 %v1606
    %4758 = vmatprep.subr.mxu0 %v1615
    %4759 = vmatpush1.msra.mxu0 %v1614
    %4760 = vmatprep.subr.mxu0 %v1623
    %4761 = vmatpush1.msra.mxu0 %v1622
    %4762 = vmatprep.subr.mxu0 %v1631
    %4763 = vmatpush1.msra.mxu0 %v1630
    %4764 = vmatprep.subr.mxu0 %v1639
    %4765 = vmatpush1.msra.mxu0 %v1638
    %4766 = vmatprep.subr.mxu0 %v1647
    %4767 = vmatpush1.msra.mxu0 %v1646
    %4768 = vmatprep.subr.mxu0 %v1655
    %4769 = vmatpush1.msra.mxu0 %v1654
    %4770 = vmatprep.subr.mxu0 %v1663
    %4771 = vmatpush1.msra.mxu0 %v1662
    %4772 = vmatprep.subr.mxu0 %v1671
    %4773 = vmatpush1.msra.mxu0 %v1670
    %4774 = vmatprep.subr.mxu0 %v1679
    %4775 = vmatpush1.msra.mxu0 %v1678
    %4776 = vmatprep.subr.mxu0 %v1687
    %4777 = vmatpush1.msra.mxu0 %v1686
    %4778 = vmatprep.subr.mxu0 %v1695
    %4779 = vmatpush1.msra.mxu0 %v1694
    %4780 = vmatprep.subr.mxu0 %v1703
    %4781 = vmatpush1.msra.mxu0 %v1702
    %4782 = vmatprep.mubr.f32.mxu0 %v4549
    %4783 = vmatmul.mubr.f32.gmra.mrb[0].mxu0 %v4548
    %v4784 = vpop.f32.mrb[0].mxu0
    %v4785 = vadd.f32 %v4572, %v4784
    %v4786 = vpop.f32.mrb[0].mxu0
    %v4787 = vadd.f32 %v4573, %v4786
    %4788 = vdwg.mxu0
    %4789 = vmatprep.subr.mxu0 %v1457
    %4790 = vmatpush1.msra.mxu0 %v1456
    %4791 = vmatprep.subr.mxu0 %v1465
    %4792 = vmatpush1.msra.mxu0 %v1464
    %4793 = vmatprep.subr.mxu0 %v1473
    %4794 = vmatpush1.msra.mxu0 %v1472
    %4795 = vmatprep.subr.mxu0 %v1481
    %4796 = vmatpush1.msra.mxu0 %v1480
    %4797 = vmatprep.subr.mxu0 %v1489
    %4798 = vmatpush1.msra.mxu0 %v1488
    %4799 = vmatprep.subr.mxu0 %v1497
    %4800 = vmatpush1.msra.mxu0 %v1496
    %4801 = vmatprep.subr.mxu0 %v1505
    %4802 = vmatpush1.msra.mxu0 %v1504
    %4803 = vmatprep.subr.mxu0 %v1513
    %4804 = vmatpush1.msra.mxu0 %v1512
    %4805 = vmatprep.subr.mxu0 %v1521
    %4806 = vmatpush1.msra.mxu0 %v1520
    %4807 = vmatprep.subr.mxu0 %v1529
    %4808 = vmatpush1.msra.mxu0 %v1528
    %4809 = vmatprep.subr.mxu0 %v1537
    %4810 = vmatpush1.msra.mxu0 %v1536
    %4811 = vmatprep.subr.mxu0 %v1545
    %4812 = vmatpush1.msra.mxu0 %v1544
    %4813 = vmatprep.subr.mxu0 %v1553
    %4814 = vmatpush1.msra.mxu0 %v1552
    %4815 = vmatprep.subr.mxu0 %v1561
    %4816 = vmatpush1.msra.mxu0 %v1560
    %4817 = vmatprep.subr.mxu0 %v1569
    %4818 = vmatpush1.msra.mxu0 %v1568
    %4819 = vmatprep.subr.mxu0 %v1577
    %4820 = vmatpush1.msra.mxu0 %v1576
    %4821 = vmatprep.subr.mxu0 %v1585
    %4822 = vmatpush1.msra.mxu0 %v1584
    %4823 = vmatprep.subr.mxu0 %v1593
    %4824 = vmatpush1.msra.mxu0 %v1592
    %4825 = vmatprep.subr.mxu0 %v1601
    %4826 = vmatpush1.msra.mxu0 %v1600
    %4827 = vmatprep.subr.mxu0 %v1609
    %4828 = vmatpush1.msra.mxu0 %v1608
    %4829 = vmatprep.subr.mxu0 %v1617
    %4830 = vmatpush1.msra.mxu0 %v1616
    %4831 = vmatprep.subr.mxu0 %v1625
    %4832 = vmatpush1.msra.mxu0 %v1624
    %4833 = vmatprep.subr.mxu0 %v1633
    %4834 = vmatpush1.msra.mxu0 %v1632
    %4835 = vmatprep.subr.mxu0 %v1641
    %4836 = vmatpush1.msra.mxu0 %v1640
    %4837 = vmatprep.subr.mxu0 %v1649
    %4838 = vmatpush1.msra.mxu0 %v1648
    %4839 = vmatprep.subr.mxu0 %v1657
    %4840 = vmatpush1.msra.mxu0 %v1656
    %4841 = vmatprep.subr.mxu0 %v1665
    %4842 = vmatpush1.msra.mxu0 %v1664
    %4843 = vmatprep.subr.mxu0 %v1673
    %4844 = vmatpush1.msra.mxu0 %v1672
    %4845 = vmatprep.subr.mxu0 %v1681
    %4846 = vmatpush1.msra.mxu0 %v1680
    %4847 = vmatprep.subr.mxu0 %v1689
    %4848 = vmatpush1.msra.mxu0 %v1688
    %4849 = vmatprep.subr.mxu0 %v1697
    %4850 = vmatpush1.msra.mxu0 %v1696
    %4851 = vmatprep.subr.mxu0 %v1705
    %4852 = vmatpush1.msra.mxu0 %v1704
    %4853 = vmatprep.mubr.f32.mxu0 %v4549
    %4854 = vmatmul.mubr.f32.gmra.mrb[0].mxu0 %v4548
    %v4855 = vpop.f32.mrb[0].mxu0
    %v4856 = vadd.f32 %v4574, %v4855
    %v4857 = vpop.f32.mrb[0].mxu0
    %v4858 = vadd.f32 %v4575, %v4857
    %4859 = vdwg.mxu0
    %v4860 = vmul.f32 %v4643, 0.5
    %v4861 = vmul.f32 %v4645, 0.5
    %v4862 = vtanh.pop %v4860
    %v4863 = vtanh.pop %v4861
    %v4864 = vadd.f32 %v4862, 1.0
    %v4865 = vadd.f32 %v4863, 1.0
    %v4866 = vmul.f32 %v4864, 0.5
    %v4867 = vmul.f32 %v4865, 0.5
    %v4868 = vmul.f32 %v4714, 0.5
    %v4869 = vmul.f32 %v4716, 0.5
    %v4870 = vtanh.pop %v4868
    %v4871 = vtanh.pop %v4869
    %v4872 = vadd.f32 %v4870, 1.0
    %v4873 = vadd.f32 %v4871, 1.0
    %v4874 = vmul.f32 %v4872, 0.5
    %v4875 = vmul.f32 %v4873, 0.5
    %v4876 = vtanh.pop %v4785
    %v4877 = vtanh.pop %v4787
    %v4878 = vmul.f32 %v4856, 0.5
    %v4879 = vmul.f32 %v4858, 0.5
    %v4880 = vtanh.pop %v4878
    %v4881 = vtanh.pop %v4879
    %v4882 = vadd.f32 %v4880, 1.0
    %v4883 = vadd.f32 %v4881, 1.0
    %v4884 = vmul.f32 %v4882, 0.5
    %v4885 = vmul.f32 %v4883, 0.5
    %v4886 = vmul.f32 %v4874, %v4550
    %v4887 = vmul.f32 %v4875, %v4551
    %v4888 = vmul.f32 %v4866, %v4876
    %v4889 = vmul.f32 %v4867, %v4877
    %v4890 = vadd.f32 %v4886, %v4888
    %v4891 = vadd.f32 %v4887, %v4889
    %v4892 = vtanh.pop %v4890
    %v4893 = vtanh.pop %v4891
    %v4894 = vmul.f32 %v4884, %v4892
    %v4895 = vmul.f32 %v4885, %v4893
    %v4896 = vsel %vm1444, 8, 7
    %v4897 = vsel %vm1445, 8, 7
    %vm4898 = vcmp.gt.s32.totalorder %v1449, %v4896
    %vm4899 = vcmp.gt.s32.totalorder %v1449, %v4897
    %v4900 = vsel %vm4898, %v4894, 0.0
    %v4901 = vsel %vm4899, %v4895, 0.0
    %v4902 = vld [vmem:[#allocation15 + $0x40] sm:$0xff]
    %v4903 = vadd.f32 %v4902, %v4900
    %4904 = vst [vmem:[#allocation15 + $0x40] sm:$0xff] %v4903
    %v4905 = vld [vmem:[#allocation15 + $0x38] sm:$0xff]
    %v4906 = vadd.f32 %v4905, %v4901
    %4907 = vst [vmem:[#allocation15 + $0x38] sm:$0xff] %v4906
    %v4908 = vsel %vm4898, %v4894, %v4548
    %v4909 = vsel %vm4899, %v4895, %v4549
    %v4910 = vsel %vm4898, %v4890, %v4550
    %v4911 = vsel %vm4899, %v4891, %v4551
    %v4912 = vld [vmem:[#allocation2 + $0x240] sm:$0xff]
    %v4913 = vld [vmem:[#allocation2 + $0x248] sm:$0xff]
    %v4914 = vld [vmem:[#allocation2 + $0x250] sm:$0xff]
    %v4915 = vld [vmem:[#allocation2 + $0x258] sm:$0xff]
    %v4916 = vld [vmem:[#allocation2 + $0x260] sm:$0xff]
    %v4917 = vld [vmem:[#allocation2 + $0x268] sm:$0xff]
    %v4918 = vld [vmem:[#allocation2 + $0x270] sm:$0xff]
    %v4919 = vld [vmem:[#allocation2 + $0x278] sm:$0xff]
    %v4920 = vld [vmem:[#allocation2 + $0x180] sm:$0xff]
    %v4921 = vld [vmem:[#allocation2 + $0x188] sm:$0xff]
    %v4922 = vld [vmem:[#allocation2 + $0x190] sm:$0xff]
    %v4923 = vld [vmem:[#allocation2 + $0x198] sm:$0xff]
    %v4924 = vld [vmem:[#allocation2 + $0x1a0] sm:$0xff]
    %v4925 = vld [vmem:[#allocation2 + $0x1a8] sm:$0xff]
    %v4926 = vld [vmem:[#allocation2 + $0x1b0] sm:$0xff]
    %v4927 = vld [vmem:[#allocation2 + $0x1b8] sm:$0xff]
    %v4928 = vsel %vm1436, %v4912, %v4920
    %v4929 = vsel %vm1437, %v4913, %v4921
    %v4930 = vsel %vm1438, %v4914, %v4922
    %v4931 = vsel %vm1439, %v4915, %v4923
    %v4932 = vsel %vm1440, %v4916, %v4924
    %v4933 = vsel %vm1441, %v4917, %v4925
    %v4934 = vsel %vm1442, %v4918, %v4926
    %v4935 = vsel %vm1443, %v4919, %v4927
    %4936 = vmatprep.subr.mxu0 %v1451
    %4937 = vmatpush1.msra.mxu0 %v1450
    %4938 = vmatprep.subr.mxu0 %v1459
    %4939 = vmatpush1.msra.mxu0 %v1458
    %4940 = vmatprep.subr.mxu0 %v1467
    %4941 = vmatpush1.msra.mxu0 %v1466
    %4942 = vmatprep.subr.mxu0 %v1475
    %4943 = vmatpush1.msra.mxu0 %v1474
    %4944 = vmatprep.subr.mxu0 %v1483
    %4945 = vmatpush1.msra.mxu0 %v1482
    %4946 = vmatprep.subr.mxu0 %v1491
    %4947 = vmatpush1.msra.mxu0 %v1490
    %4948 = vmatprep.subr.mxu0 %v1499
    %4949 = vmatpush1.msra.mxu0 %v1498
    %4950 = vmatprep.subr.mxu0 %v1507
    %4951 = vmatpush1.msra.mxu0 %v1506
    %4952 = vmatprep.subr.mxu0 %v1515
    %4953 = vmatpush1.msra.mxu0 %v1514
    %4954 = vmatprep.subr.mxu0 %v1523
    %4955 = vmatpush1.msra.mxu0 %v1522
    %4956 = vmatprep.subr.mxu0 %v1531
    %4957 = vmatpush1.msra.mxu0 %v1530
    %4958 = vmatprep.subr.mxu0 %v1539
    %4959 = vmatpush1.msra.mxu0 %v1538
    %4960 = vmatprep.subr.mxu0 %v1547
    %4961 = vmatpush1.msra.mxu0 %v1546
    %4962 = vmatprep.subr.mxu0 %v1555
    %4963 = vmatpush1.msra.mxu0 %v1554
    %4964 = vmatprep.subr.mxu0 %v1563
    %4965 = vmatpush1.msra.mxu0 %v1562
    %4966 = vmatprep.subr.mxu0 %v1571
    %4967 = vmatpush1.msra.mxu0 %v1570
    %4968 = vmatprep.subr.mxu0 %v1579
    %4969 = vmatpush1.msra.mxu0 %v1578
    %4970 = vmatprep.subr.mxu0 %v1587
    %4971 = vmatpush1.msra.mxu0 %v1586
    %4972 = vmatprep.subr.mxu0 %v1595
    %4973 = vmatpush1.msra.mxu0 %v1594
    %4974 = vmatprep.subr.mxu0 %v1603
    %4975 = vmatpush1.msra.mxu0 %v1602
    %4976 = vmatprep.subr.mxu0 %v1611
    %4977 = vmatpush1.msra.mxu0 %v1610
    %4978 = vmatprep.subr.mxu0 %v1619
    %4979 = vmatpush1.msra.mxu0 %v1618
    %4980 = vmatprep.subr.mxu0 %v1627
    %4981 = vmatpush1.msra.mxu0 %v1626
    %4982 = vmatprep.subr.mxu0 %v1635
    %4983 = vmatpush1.msra.mxu0 %v1634
    %4984 = vmatprep.subr.mxu0 %v1643
    %4985 = vmatpush1.msra.mxu0 %v1642
    %4986 = vmatprep.subr.mxu0 %v1651
    %4987 = vmatpush1.msra.mxu0 %v1650
    %4988 = vmatprep.subr.mxu0 %v1659
    %4989 = vmatpush1.msra.mxu0 %v1658
    %4990 = vmatprep.subr.mxu0 %v1667
    %4991 = vmatpush1.msra.mxu0 %v1666
    %4992 = vmatprep.subr.mxu0 %v1675
    %4993 = vmatpush1.msra.mxu0 %v1674
    %4994 = vmatprep.subr.mxu0 %v1683
    %4995 = vmatpush1.msra.mxu0 %v1682
    %4996 = vmatprep.subr.mxu0 %v1691
    %4997 = vmatpush1.msra.mxu0 %v1690
    %4998 = vmatprep.subr.mxu0 %v1699
    %4999 = vmatpush1.msra.mxu0 %v1698
    %5000 = vmatprep.mubr.f32.mxu0 %v4909
    %5001 = vmatmul.mubr.f32.gmra.mrb[0].mxu0 %v4908
    %v5002 = vpop.f32.mrb[0].mxu0
    %v5003 = vadd.f32 %v4928, %v5002
    %v5004 = vpop.f32.mrb[0].mxu0
    %v5005 = vadd.f32 %v4929, %v5004
    %5006 = vdwg.mxu0
    %5007 = vmatprep.subr.mxu0 %v1453
    %5008 = vmatpush1.msra.mxu0 %v1452
    %5009 = vmatprep.subr.mxu0 %v1461
    %5010 = vmatpush1.msra.mxu0 %v1460
    %5011 = vmatprep.subr.mxu0 %v1469
    %5012 = vmatpush1.msra.mxu0 %v1468
    %5013 = vmatprep.subr.mxu0 %v1477
    %5014 = vmatpush1.msra.mxu0 %v1476
    %5015 = vmatprep.subr.mxu0 %v1485
    %5016 = vmatpush1.msra.mxu0 %v1484
    %5017 = vmatprep.subr.mxu0 %v1493
    %5018 = vmatpush1.msra.mxu0 %v1492
    %5019 = vmatprep.subr.mxu0 %v1501
    %5020 = vmatpush1.msra.mxu0 %v1500
    %5021 = vmatprep.subr.mxu0 %v1509
    %5022 = vmatpush1.msra.mxu0 %v1508
    %5023 = vmatprep.subr.mxu0 %v1517
    %5024 = vmatpush1.msra.mxu0 %v1516
    %5025 = vmatprep.subr.mxu0 %v1525
    %5026 = vmatpush1.msra.mxu0 %v1524
    %5027 = vmatprep.subr.mxu0 %v1533
    %5028 = vmatpush1.msra.mxu0 %v1532
    %5029 = vmatprep.subr.mxu0 %v1541
    %5030 = vmatpush1.msra.mxu0 %v1540
    %5031 = vmatprep.subr.mxu0 %v1549
    %5032 = vmatpush1.msra.mxu0 %v1548
    %5033 = vmatprep.subr.mxu0 %v1557
    %5034 = vmatpush1.msra.mxu0 %v1556
    %5035 = vmatprep.subr.mxu0 %v1565
    %5036 = vmatpush1.msra.mxu0 %v1564
    %5037 = vmatprep.subr.mxu0 %v1573
    %5038 = vmatpush1.msra.mxu0 %v1572
    %5039 = vmatprep.subr.mxu0 %v1581
    %5040 = vmatpush1.msra.mxu0 %v1580
    %5041 = vmatprep.subr.mxu0 %v1589
    %5042 = vmatpush1.msra.mxu0 %v1588
    %5043 = vmatprep.subr.mxu0 %v1597
    %5044 = vmatpush1.msra.mxu0 %v1596
    %5045 = vmatprep.subr.mxu0 %v1605
    %5046 = vmatpush1.msra.mxu0 %v1604
    %5047 = vmatprep.subr.mxu0 %v1613
    %5048 = vmatpush1.msra.mxu0 %v1612
    %5049 = vmatprep.subr.mxu0 %v1621
    %5050 = vmatpush1.msra.mxu0 %v1620
    %5051 = vmatprep.subr.mxu0 %v1629
    %5052 = vmatpush1.msra.mxu0 %v1628
    %5053 = vmatprep.subr.mxu0 %v1637
    %5054 = vmatpush1.msra.mxu0 %v1636
    %5055 = vmatprep.subr.mxu0 %v1645
    %5056 = vmatpush1.msra.mxu0 %v1644
    %5057 = vmatprep.subr.mxu0 %v1653
    %5058 = vmatpush1.msra.mxu0 %v1652
    %5059 = vmatprep.subr.mxu0 %v1661
    %5060 = vmatpush1.msra.mxu0 %v1660
    %5061 = vmatprep.subr.mxu0 %v1669
    %5062 = vmatpush1.msra.mxu0 %v1668
    %5063 = vmatprep.subr.mxu0 %v1677
    %5064 = vmatpush1.msra.mxu0 %v1676
    %5065 = vmatprep.subr.mxu0 %v1685
    %5066 = vmatpush1.msra.mxu0 %v1684
    %5067 = vmatprep.subr.mxu0 %v1693
    %5068 = vmatpush1.msra.mxu0 %v1692
    %5069 = vmatprep.subr.mxu0 %v1701
    %5070 = vmatpush1.msra.mxu0 %v1700
    %5071 = vmatprep.mubr.f32.mxu0 %v4909
    %5072 = vmatmul.mubr.f32.gmra.mrb[0].mxu0 %v4908
    %v5073 = vpop.f32.mrb[0].mxu0
    %v5074 = vadd.f32 %v4930, %v5073
    %v5075 = vpop.f32.mrb[0].mxu0
    %v5076 = vadd.f32 %v4931, %v5075
    %5077 = vdwg.mxu0
    %5078 = vmatprep.subr.mxu0 %v1455
    %5079 = vmatpush1.msra.mxu0 %v1454
    %5080 = vmatprep.subr.mxu0 %v1463
    %5081 = vmatpush1.msra.mxu0 %v1462
    %5082 = vmatprep.subr.mxu0 %v1471
    %5083 = vmatpush1.msra.mxu0 %v1470
    %5084 = vmatprep.subr.mxu0 %v1479
    %5085 = vmatpush1.msra.mxu0 %v1478
    %5086 = vmatprep.subr.mxu0 %v1487
    %5087 = vmatpush1.msra.mxu0 %v1486
    %5088 = vmatprep.subr.mxu0 %v1495
    %5089 = vmatpush1.msra.mxu0 %v1494
    %5090 = vmatprep.subr.mxu0 %v1503
    %5091 = vmatpush1.msra.mxu0 %v1502
    %5092 = vmatprep.subr.mxu0 %v1511
    %5093 = vmatpush1.msra.mxu0 %v1510
    %5094 = vmatprep.subr.mxu0 %v1519
    %5095 = vmatpush1.msra.mxu0 %v1518
    %5096 = vmatprep.subr.mxu0 %v1527
    %5097 = vmatpush1.msra.mxu0 %v1526
    %5098 = vmatprep.subr.mxu0 %v1535
    %5099 = vmatpush1.msra.mxu0 %v1534
    %5100 = vmatprep.subr.mxu0 %v1543
    %5101 = vmatpush1.msra.mxu0 %v1542
    %5102 = vmatprep.subr.mxu0 %v1551
    %5103 = vmatpush1.msra.mxu0 %v1550
    %5104 = vmatprep.subr.mxu0 %v1559
    %5105 = vmatpush1.msra.mxu0 %v1558
    %5106 = vmatprep.subr.mxu0 %v1567
    %5107 = vmatpush1.msra.mxu0 %v1566
    %5108 = vmatprep.subr.mxu0 %v1575
    %5109 = vmatpush1.msra.mxu0 %v1574
    %5110 = vmatprep.subr.mxu0 %v1583
    %5111 = vmatpush1.msra.mxu0 %v1582
    %5112 = vmatprep.subr.mxu0 %v1591
    %5113 = vmatpush1.msra.mxu0 %v1590
    %5114 = vmatprep.subr.mxu0 %v1599
    %5115 = vmatpush1.msra.mxu0 %v1598
    %5116 = vmatprep.subr.mxu0 %v1607
    %5117 = vmatpush1.msra.mxu0 %v1606
    %5118 = vmatprep.subr.mxu0 %v1615
    %5119 = vmatpush1.msra.mxu0 %v1614
    %5120 = vmatprep.subr.mxu0 %v1623
    %5121 = vmatpush1.msra.mxu0 %v1622
    %5122 = vmatprep.subr.mxu0 %v1631
    %5123 = vmatpush1.msra.mxu0 %v1630
    %5124 = vmatprep.subr.mxu0 %v1639
    %5125 = vmatpush1.msra.mxu0 %v1638
    %5126 = vmatprep.subr.mxu0 %v1647
    %5127 = vmatpush1.msra.mxu0 %v1646
    %5128 = vmatprep.subr.mxu0 %v1655
    %5129 = vmatpush1.msra.mxu0 %v1654
    %5130 = vmatprep.subr.mxu0 %v1663
    %5131 = vmatpush1.msra.mxu0 %v1662
    %5132 = vmatprep.subr.mxu0 %v1671
    %5133 = vmatpush1.msra.mxu0 %v1670
    %5134 = vmatprep.subr.mxu0 %v1679
    %5135 = vmatpush1.msra.mxu0 %v1678
    %5136 = vmatprep.subr.mxu0 %v1687
    %5137 = vmatpush1.msra.mxu0 %v1686
    %5138 = vmatprep.subr.mxu0 %v1695
    %5139 = vmatpush1.msra.mxu0 %v1694
    %5140 = vmatprep.subr.mxu0 %v1703
    %5141 = vmatpush1.msra.mxu0 %v1702
    %5142 = vmatprep.mubr.f32.mxu0 %v4909
    %5143 = vmatmul.mubr.f32.gmra.mrb[0].mxu0 %v4908
    %v5144 = vpop.f32.mrb[0].mxu0
    %v5145 = vadd.f32 %v4932, %v5144
    %v5146 = vpop.f32.mrb[0].mxu0
    %v5147 = vadd.f32 %v4933, %v5146
    %5148 = vdwg.mxu0
    %5149 = vmatprep.subr.mxu0 %v1457
    %5150 = vmatpush1.msra.mxu0 %v1456
    %5151 = vmatprep.subr.mxu0 %v1465
    %5152 = vmatpush1.msra.mxu0 %v1464
    %5153 = vmatprep.subr.mxu0 %v1473
    %5154 = vmatpush1.msra.mxu0 %v1472
    %5155 = vmatprep.subr.mxu0 %v1481
    %5156 = vmatpush1.msra.mxu0 %v1480
    %5157 = vmatprep.subr.mxu0 %v1489
    %5158 = vmatpush1.msra.mxu0 %v1488
    %5159 = vmatprep.subr.mxu0 %v1497
    %5160 = vmatpush1.msra.mxu0 %v1496
    %5161 = vmatprep.subr.mxu0 %v1505
    %5162 = vmatpush1.msra.mxu0 %v1504
    %5163 = vmatprep.subr.mxu0 %v1513
    %5164 = vmatpush1.msra.mxu0 %v1512
    %5165 = vmatprep.subr.mxu0 %v1521
    %5166 = vmatpush1.msra.mxu0 %v1520
    %5167 = vmatprep.subr.mxu0 %v1529
    %5168 = vmatpush1.msra.mxu0 %v1528
    %5169 = vmatprep.subr.mxu0 %v1537
    %5170 = vmatpush1.msra.mxu0 %v1536
    %5171 = vmatprep.subr.mxu0 %v1545
    %5172 = vmatpush1.msra.mxu0 %v1544
    %5173 = vmatprep.subr.mxu0 %v1553
    %5174 = vmatpush1.msra.mxu0 %v1552
    %5175 = vmatprep.subr.mxu0 %v1561
    %5176 = vmatpush1.msra.mxu0 %v1560
    %5177 = vmatprep.subr.mxu0 %v1569
    %5178 = vmatpush1.msra.mxu0 %v1568
    %5179 = vmatprep.subr.mxu0 %v1577
    %5180 = vmatpush1.msra.mxu0 %v1576
    %5181 = vmatprep.subr.mxu0 %v1585
    %5182 = vmatpush1.msra.mxu0 %v1584
    %5183 = vmatprep.subr.mxu0 %v1593
    %5184 = vmatpush1.msra.mxu0 %v1592
    %5185 = vmatprep.subr.mxu0 %v1601
    %5186 = vmatpush1.msra.mxu0 %v1600
    %5187 = vmatprep.subr.mxu0 %v1609
    %5188 = vmatpush1.msra.mxu0 %v1608
    %5189 = vmatprep.subr.mxu0 %v1617
    %5190 = vmatpush1.msra.mxu0 %v1616
    %5191 = vmatprep.subr.mxu0 %v1625
    %5192 = vmatpush1.msra.mxu0 %v1624
    %5193 = vmatprep.subr.mxu0 %v1633
    %5194 = vmatpush1.msra.mxu0 %v1632
    %5195 = vmatprep.subr.mxu0 %v1641
    %5196 = vmatpush1.msra.mxu0 %v1640
    %5197 = vmatprep.subr.mxu0 %v1649
    %5198 = vmatpush1.msra.mxu0 %v1648
    %5199 = vmatprep.subr.mxu0 %v1657
    %5200 = vmatpush1.msra.mxu0 %v1656
    %5201 = vmatprep.subr.mxu0 %v1665
    %5202 = vmatpush1.msra.mxu0 %v1664
    %5203 = vmatprep.subr.mxu0 %v1673
    %5204 = vmatpush1.msra.mxu0 %v1672
    %5205 = vmatprep.subr.mxu0 %v1681
    %5206 = vmatpush1.msra.mxu0 %v1680
    %5207 = vmatprep.subr.mxu0 %v1689
    %5208 = vmatpush1.msra.mxu0 %v1688
    %5209 = vmatprep.subr.mxu0 %v1697
    %5210 = vmatpush1.msra.mxu0 %v1696
    %5211 = vmatprep.subr.mxu0 %v1705
    %5212 = vmatpush1.msra.mxu0 %v1704
    %5213 = vmatprep.mubr.f32.mxu0 %v4909
    %5214 = vmatmul.mubr.f32.gmra.mrb[0].mxu0 %v4908
    %v5215 = vpop.f32.mrb[0].mxu0
    %v5216 = vadd.f32 %v4934, %v5215
    %v5217 = vpop.f32.mrb[0].mxu0
    %v5218 = vadd.f32 %v4935, %v5217
    %5219 = vdwg.mxu0
    %v5220 = vmul.f32 %v5003, 0.5
    %v5221 = vmul.f32 %v5005, 0.5
    %v5222 = vtanh.pop %v5220
    %v5223 = vtanh.pop %v5221
    %v5224 = vadd.f32 %v5222, 1.0
    %v5225 = vadd.f32 %v5223, 1.0
    %v5226 = vmul.f32 %v5224, 0.5
    %v5227 = vmul.f32 %v5225, 0.5
    %v5228 = vmul.f32 %v5074, 0.5
    %v5229 = vmul.f32 %v5076, 0.5
    %v5230 = vtanh.pop %v5228
    %v5231 = vtanh.pop %v5229
    %v5232 = vadd.f32 %v5230, 1.0
    %v5233 = vadd.f32 %v5231, 1.0
    %v5234 = vmul.f32 %v5232, 0.5
    %v5235 = vmul.f32 %v5233, 0.5
    %v5236 = vtanh.pop %v5145
    %v5237 = vtanh.pop %v5147
    %v5238 = vmul.f32 %v5216, 0.5
    %v5239 = vmul.f32 %v5218, 0.5
    %v5240 = vtanh.pop %v5238
    %v5241 = vtanh.pop %v5239
    %v5242 = vadd.f32 %v5240, 1.0
    %v5243 = vadd.f32 %v5241, 1.0
    %v5244 = vmul.f32 %v5242, 0.5
    %v5245 = vmul.f32 %v5243, 0.5
    %v5246 = vmul.f32 %v5234, %v4910
    %v5247 = vmul.f32 %v5235, %v4911
    %v5248 = vmul.f32 %v5226, %v5236
    %v5249 = vmul.f32 %v5227, %v5237
    %v5250 = vadd.f32 %v5246, %v5248
    %v5251 = vadd.f32 %v5247, %v5249
    %v5252 = vtanh.pop %v5250
    %v5253 = vtanh.pop %v5251
    %v5254 = vmul.f32 %v5244, %v5252
    %v5255 = vmul.f32 %v5245, %v5253
    %v5256 = vsel %vm1444, 9, 6
    %v5257 = vsel %vm1445, 9, 6
    %vm5258 = vcmp.gt.s32.totalorder %v1449, %v5256
    %vm5259 = vcmp.gt.s32.totalorder %v1449, %v5257
    %v5260 = vsel %vm5258, %v5254, 0.0
    %v5261 = vsel %vm5259, %v5255, 0.0
    %v5262 = vld [vmem:[#allocation15 + $0x48] sm:$0xff]
    %v5263 = vadd.f32 %v5262, %v5260
    %5264 = vst [vmem:[#allocation15 + $0x48] sm:$0xff] %v5263
    %v5265 = vld [vmem:[#allocation15 + $0x30] sm:$0xff]
    %v5266 = vadd.f32 %v5265, %v5261
    %5267 = vst [vmem:[#allocation15 + $0x30] sm:$0xff] %v5266
    %v5268 = vsel %vm5258, %v5254, %v4908
    %v5269 = vsel %vm5259, %v5255, %v4909
    %v5270 = vsel %vm5258, %v5250, %v4910
    %v5271 = vsel %vm5259, %v5251, %v4911
    %v5272 = vld [vmem:[#allocation2 + $0x280] sm:$0xff]
    %v5273 = vld [vmem:[#allocation2 + $0x288] sm:$0xff]
    %v5274 = vld [vmem:[#allocation2 + $0x290] sm:$0xff]
    %v5275 = vld [vmem:[#allocation2 + $0x298] sm:$0xff]
    %v5276 = vld [vmem:[#allocation2 + $0x2a0] sm:$0xff]
    %v5277 = vld [vmem:[#allocation2 + $0x2a8] sm:$0xff]
    %v5278 = vld [vmem:[#allocation2 + $0x2b0] sm:$0xff]
    %v5279 = vld [vmem:[#allocation2 + $0x2b8] sm:$0xff]
    %v5280 = vld [vmem:[#allocation2 + $0x140] sm:$0xff]
    %v5281 = vld [vmem:[#allocation2 + $0x148] sm:$0xff]
    %v5282 = vld [vmem:[#allocation2 + $0x150] sm:$0xff]
    %v5283 = vld [vmem:[#allocation2 + $0x158] sm:$0xff]
    %v5284 = vld [vmem:[#allocation2 + $0x160] sm:$0xff]
    %v5285 = vld [vmem:[#allocation2 + $0x168] sm:$0xff]
    %v5286 = vld [vmem:[#allocation2 + $0x170] sm:$0xff]
    %v5287 = vld [vmem:[#allocation2 + $0x178] sm:$0xff]
    %v5288 = vsel %vm1436, %v5272, %v5280
    %v5289 = vsel %vm1437, %v5273, %v5281
    %v5290 = vsel %vm1438, %v5274, %v5282
    %v5291 = vsel %vm1439, %v5275, %v5283
    %v5292 = vsel %vm1440, %v5276, %v5284
    %v5293 = vsel %vm1441, %v5277, %v5285
    %v5294 = vsel %vm1442, %v5278, %v5286
    %v5295 = vsel %vm1443, %v5279, %v5287
    %5296 = vmatprep.subr.mxu0 %v1451
    %5297 = vmatpush1.msra.mxu0 %v1450
    %5298 = vmatprep.subr.mxu0 %v1459
    %5299 = vmatpush1.msra.mxu0 %v1458
    %5300 = vmatprep.subr.mxu0 %v1467
    %5301 = vmatpush1.msra.mxu0 %v1466
    %5302 = vmatprep.subr.mxu0 %v1475
    %5303 = vmatpush1.msra.mxu0 %v1474
    %5304 = vmatprep.subr.mxu0 %v1483
    %5305 = vmatpush1.msra.mxu0 %v1482
    %5306 = vmatprep.subr.mxu0 %v1491
    %5307 = vmatpush1.msra.mxu0 %v1490
    %5308 = vmatprep.subr.mxu0 %v1499
    %5309 = vmatpush1.msra.mxu0 %v1498
    %5310 = vmatprep.subr.mxu0 %v1507
    %5311 = vmatpush1.msra.mxu0 %v1506
    %5312 = vmatprep.subr.mxu0 %v1515
    %5313 = vmatpush1.msra.mxu0 %v1514
    %5314 = vmatprep.subr.mxu0 %v1523
    %5315 = vmatpush1.msra.mxu0 %v1522
    %5316 = vmatprep.subr.mxu0 %v1531
    %5317 = vmatpush1.msra.mxu0 %v1530
    %5318 = vmatprep.subr.mxu0 %v1539
    %5319 = vmatpush1.msra.mxu0 %v1538
    %5320 = vmatprep.subr.mxu0 %v1547
    %5321 = vmatpush1.msra.mxu0 %v1546
    %5322 = vmatprep.subr.mxu0 %v1555
    %5323 = vmatpush1.msra.mxu0 %v1554
    %5324 = vmatprep.subr.mxu0 %v1563
    %5325 = vmatpush1.msra.mxu0 %v1562
    %5326 = vmatprep.subr.mxu0 %v1571
    %5327 = vmatpush1.msra.mxu0 %v1570
    %5328 = vmatprep.subr.mxu0 %v1579
    %5329 = vmatpush1.msra.mxu0 %v1578
    %5330 = vmatprep.subr.mxu0 %v1587
    %5331 = vmatpush1.msra.mxu0 %v1586
    %5332 = vmatprep.subr.mxu0 %v1595
    %5333 = vmatpush1.msra.mxu0 %v1594
    %5334 = vmatprep.subr.mxu0 %v1603
    %5335 = vmatpush1.msra.mxu0 %v1602
    %5336 = vmatprep.subr.mxu0 %v1611
    %5337 = vmatpush1.msra.mxu0 %v1610
    %5338 = vmatprep.subr.mxu0 %v1619
    %5339 = vmatpush1.msra.mxu0 %v1618
    %5340 = vmatprep.subr.mxu0 %v1627
    %5341 = vmatpush1.msra.mxu0 %v1626
    %5342 = vmatprep.subr.mxu0 %v1635
    %5343 = vmatpush1.msra.mxu0 %v1634
    %5344 = vmatprep.subr.mxu0 %v1643
    %5345 = vmatpush1.msra.mxu0 %v1642
    %5346 = vmatprep.subr.mxu0 %v1651
    %5347 = vmatpush1.msra.mxu0 %v1650
    %5348 = vmatprep.subr.mxu0 %v1659
    %5349 = vmatpush1.msra.mxu0 %v1658
    %5350 = vmatprep.subr.mxu0 %v1667
    %5351 = vmatpush1.msra.mxu0 %v1666
    %5352 = vmatprep.subr.mxu0 %v1675
    %5353 = vmatpush1.msra.mxu0 %v1674
    %5354 = vmatprep.subr.mxu0 %v1683
    %5355 = vmatpush1.msra.mxu0 %v1682
    %5356 = vmatprep.subr.mxu0 %v1691
    %5357 = vmatpush1.msra.mxu0 %v1690
    %5358 = vmatprep.subr.mxu0 %v1699
    %5359 = vmatpush1.msra.mxu0 %v1698
    %5360 = vmatprep.mubr.f32.mxu0 %v5269
    %5361 = vmatmul.mubr.f32.gmra.mrb[0].mxu0 %v5268
    %v5362 = vpop.f32.mrb[0].mxu0
    %v5363 = vadd.f32 %v5288, %v5362
    %v5364 = vpop.f32.mrb[0].mxu0
    %v5365 = vadd.f32 %v5289, %v5364
    %5366 = vdwg.mxu0
    %5367 = vmatprep.subr.mxu0 %v1453
    %5368 = vmatpush1.msra.mxu0 %v1452
    %5369 = vmatprep.subr.mxu0 %v1461
    %5370 = vmatpush1.msra.mxu0 %v1460
    %5371 = vmatprep.subr.mxu0 %v1469
    %5372 = vmatpush1.msra.mxu0 %v1468
    %5373 = vmatprep.subr.mxu0 %v1477
    %5374 = vmatpush1.msra.mxu0 %v1476
    %5375 = vmatprep.subr.mxu0 %v1485
    %5376 = vmatpush1.msra.mxu0 %v1484
    %5377 = vmatprep.subr.mxu0 %v1493
    %5378 = vmatpush1.msra.mxu0 %v1492
    %5379 = vmatprep.subr.mxu0 %v1501
    %5380 = vmatpush1.msra.mxu0 %v1500
    %5381 = vmatprep.subr.mxu0 %v1509
    %5382 = vmatpush1.msra.mxu0 %v1508
    %5383 = vmatprep.subr.mxu0 %v1517
    %5384 = vmatpush1.msra.mxu0 %v1516
    %5385 = vmatprep.subr.mxu0 %v1525
    %5386 = vmatpush1.msra.mxu0 %v1524
    %5387 = vmatprep.subr.mxu0 %v1533
    %5388 = vmatpush1.msra.mxu0 %v1532
    %5389 = vmatprep.subr.mxu0 %v1541
    %5390 = vmatpush1.msra.mxu0 %v1540
    %5391 = vmatprep.subr.mxu0 %v1549
    %5392 = vmatpush1.msra.mxu0 %v1548
    %5393 = vmatprep.subr.mxu0 %v1557
    %5394 = vmatpush1.msra.mxu0 %v1556
    %5395 = vmatprep.subr.mxu0 %v1565
    %5396 = vmatpush1.msra.mxu0 %v1564
    %5397 = vmatprep.subr.mxu0 %v1573
    %5398 = vmatpush1.msra.mxu0 %v1572
    %5399 = vmatprep.subr.mxu0 %v1581
    %5400 = vmatpush1.msra.mxu0 %v1580
    %5401 = vmatprep.subr.mxu0 %v1589
    %5402 = vmatpush1.msra.mxu0 %v1588
    %5403 = vmatprep.subr.mxu0 %v1597
    %5404 = vmatpush1.msra.mxu0 %v1596
    %5405 = vmatprep.subr.mxu0 %v1605
    %5406 = vmatpush1.msra.mxu0 %v1604
    %5407 = vmatprep.subr.mxu0 %v1613
    %5408 = vmatpush1.msra.mxu0 %v1612
    %5409 = vmatprep.subr.mxu0 %v1621
    %5410 = vmatpush1.msra.mxu0 %v1620
    %5411 = vmatprep.subr.mxu0 %v1629
    %5412 = vmatpush1.msra.mxu0 %v1628
    %5413 = vmatprep.subr.mxu0 %v1637
    %5414 = vmatpush1.msra.mxu0 %v1636
    %5415 = vmatprep.subr.mxu0 %v1645
    %5416 = vmatpush1.msra.mxu0 %v1644
    %5417 = vmatprep.subr.mxu0 %v1653
    %5418 = vmatpush1.msra.mxu0 %v1652
    %5419 = vmatprep.subr.mxu0 %v1661
    %5420 = vmatpush1.msra.mxu0 %v1660
    %5421 = vmatprep.subr.mxu0 %v1669
    %5422 = vmatpush1.msra.mxu0 %v1668
    %5423 = vmatprep.subr.mxu0 %v1677
    %5424 = vmatpush1.msra.mxu0 %v1676
    %5425 = vmatprep.subr.mxu0 %v1685
    %5426 = vmatpush1.msra.mxu0 %v1684
    %5427 = vmatprep.subr.mxu0 %v1693
    %5428 = vmatpush1.msra.mxu0 %v1692
    %5429 = vmatprep.subr.mxu0 %v1701
    %5430 = vmatpush1.msra.mxu0 %v1700
    %5431 = vmatprep.mubr.f32.mxu0 %v5269
    %5432 = vmatmul.mubr.f32.gmra.mrb[0].mxu0 %v5268
    %v5433 = vpop.f32.mrb[0].mxu0
    %v5434 = vadd.f32 %v5290, %v5433
    %v5435 = vpop.f32.mrb[0].mxu0
    %v5436 = vadd.f32 %v5291, %v5435
    %5437 = vdwg.mxu0
    %5438 = vmatprep.subr.mxu0 %v1455
    %5439 = vmatpush1.msra.mxu0 %v1454
    %5440 = vmatprep.subr.mxu0 %v1463
    %5441 = vmatpush1.msra.mxu0 %v1462
    %5442 = vmatprep.subr.mxu0 %v1471
    %5443 = vmatpush1.msra.mxu0 %v1470
    %5444 = vmatprep.subr.mxu0 %v1479
    %5445 = vmatpush1.msra.mxu0 %v1478
    %5446 = vmatprep.subr.mxu0 %v1487
    %5447 = vmatpush1.msra.mxu0 %v1486
    %5448 = vmatprep.subr.mxu0 %v1495
    %5449 = vmatpush1.msra.mxu0 %v1494
    %5450 = vmatprep.subr.mxu0 %v1503
    %5451 = vmatpush1.msra.mxu0 %v1502
    %5452 = vmatprep.subr.mxu0 %v1511
    %5453 = vmatpush1.msra.mxu0 %v1510
    %5454 = vmatprep.subr.mxu0 %v1519
    %5455 = vmatpush1.msra.mxu0 %v1518
    %5456 = vmatprep.subr.mxu0 %v1527
    %5457 = vmatpush1.msra.mxu0 %v1526
    %5458 = vmatprep.subr.mxu0 %v1535
    %5459 = vmatpush1.msra.mxu0 %v1534
    %5460 = vmatprep.subr.mxu0 %v1543
    %5461 = vmatpush1.msra.mxu0 %v1542
    %5462 = vmatprep.subr.mxu0 %v1551
    %5463 = vmatpush1.msra.mxu0 %v1550
    %5464 = vmatprep.subr.mxu0 %v1559
    %5465 = vmatpush1.msra.mxu0 %v1558
    %5466 = vmatprep.subr.mxu0 %v1567
    %5467 = vmatpush1.msra.mxu0 %v1566
    %5468 = vmatprep.subr.mxu0 %v1575
    %5469 = vmatpush1.msra.mxu0 %v1574
    %5470 = vmatprep.subr.mxu0 %v1583
    %5471 = vmatpush1.msra.mxu0 %v1582
    %5472 = vmatprep.subr.mxu0 %v1591
    %5473 = vmatpush1.msra.mxu0 %v1590
    %5474 = vmatprep.subr.mxu0 %v1599
    %5475 = vmatpush1.msra.mxu0 %v1598
    %5476 = vmatprep.subr.mxu0 %v1607
    %5477 = vmatpush1.msra.mxu0 %v1606
    %5478 = vmatprep.subr.mxu0 %v1615
    %5479 = vmatpush1.msra.mxu0 %v1614
    %5480 = vmatprep.subr.mxu0 %v1623
    %5481 = vmatpush1.msra.mxu0 %v1622
    %5482 = vmatprep.subr.mxu0 %v1631
    %5483 = vmatpush1.msra.mxu0 %v1630
    %5484 = vmatprep.subr.mxu0 %v1639
    %5485 = vmatpush1.msra.mxu0 %v1638
    %5486 = vmatprep.subr.mxu0 %v1647
    %5487 = vmatpush1.msra.mxu0 %v1646
    %5488 = vmatprep.subr.mxu0 %v1655
    %5489 = vmatpush1.msra.mxu0 %v1654
    %5490 = vmatprep.subr.mxu0 %v1663
    %5491 = vmatpush1.msra.mxu0 %v1662
    %5492 = vmatprep.subr.mxu0 %v1671
    %5493 = vmatpush1.msra.mxu0 %v1670
    %5494 = vmatprep.subr.mxu0 %v1679
    %5495 = vmatpush1.msra.mxu0 %v1678
    %5496 = vmatprep.subr.mxu0 %v1687
    %5497 = vmatpush1.msra.mxu0 %v1686
    %5498 = vmatprep.subr.mxu0 %v1695
    %5499 = vmatpush1.msra.mxu0 %v1694
    %5500 = vmatprep.subr.mxu0 %v1703
    %5501 = vmatpush1.msra.mxu0 %v1702
    %5502 = vmatprep.mubr.f32.mxu0 %v5269
    %5503 = vmatmul.mubr.f32.gmra.mrb[0].mxu0 %v5268
    %v5504 = vpop.f32.mrb[0].mxu0
    %v5505 = vadd.f32 %v5292, %v5504
    %v5506 = vpop.f32.mrb[0].mxu0
    %v5507 = vadd.f32 %v5293, %v5506
    %5508 = vdwg.mxu0
    %5509 = vmatprep.subr.mxu0 %v1457
    %5510 = vmatpush1.msra.mxu0 %v1456
    %5511 = vmatprep.subr.mxu0 %v1465
    %5512 = vmatpush1.msra.mxu0 %v1464
    %5513 = vmatprep.subr.mxu0 %v1473
    %5514 = vmatpush1.msra.mxu0 %v1472
    %5515 = vmatprep.subr.mxu0 %v1481
    %5516 = vmatpush1.msra.mxu0 %v1480
    %5517 = vmatprep.subr.mxu0 %v1489
    %5518 = vmatpush1.msra.mxu0 %v1488
    %5519 = vmatprep.subr.mxu0 %v1497
    %5520 = vmatpush1.msra.mxu0 %v1496
    %5521 = vmatprep.subr.mxu0 %v1505
    %5522 = vmatpush1.msra.mxu0 %v1504
    %5523 = vmatprep.subr.mxu0 %v1513
    %5524 = vmatpush1.msra.mxu0 %v1512
    %5525 = vmatprep.subr.mxu0 %v1521
    %5526 = vmatpush1.msra.mxu0 %v1520
    %5527 = vmatprep.subr.mxu0 %v1529
    %5528 = vmatpush1.msra.mxu0 %v1528
    %5529 = vmatprep.subr.mxu0 %v1537
    %5530 = vmatpush1.msra.mxu0 %v1536
    %5531 = vmatprep.subr.mxu0 %v1545
    %5532 = vmatpush1.msra.mxu0 %v1544
    %5533 = vmatprep.subr.mxu0 %v1553
    %5534 = vmatpush1.msra.mxu0 %v1552
    %5535 = vmatprep.subr.mxu0 %v1561
    %5536 = vmatpush1.msra.mxu0 %v1560
    %5537 = vmatprep.subr.mxu0 %v1569
    %5538 = vmatpush1.msra.mxu0 %v1568
    %5539 = vmatprep.subr.mxu0 %v1577
    %5540 = vmatpush1.msra.mxu0 %v1576
    %5541 = vmatprep.subr.mxu0 %v1585
    %5542 = vmatpush1.msra.mxu0 %v1584
    %5543 = vmatprep.subr.mxu0 %v1593
    %5544 = vmatpush1.msra.mxu0 %v1592
    %5545 = vmatprep.subr.mxu0 %v1601
    %5546 = vmatpush1.msra.mxu0 %v1600
    %5547 = vmatprep.subr.mxu0 %v1609
    %5548 = vmatpush1.msra.mxu0 %v1608
    %5549 = vmatprep.subr.mxu0 %v1617
    %5550 = vmatpush1.msra.mxu0 %v1616
    %5551 = vmatprep.subr.mxu0 %v1625
    %5552 = vmatpush1.msra.mxu0 %v1624
    %5553 = vmatprep.subr.mxu0 %v1633
    %5554 = vmatpush1.msra.mxu0 %v1632
    %5555 = vmatprep.subr.mxu0 %v1641
    %5556 = vmatpush1.msra.mxu0 %v1640
    %5557 = vmatprep.subr.mxu0 %v1649
    %5558 = vmatpush1.msra.mxu0 %v1648
    %5559 = vmatprep.subr.mxu0 %v1657
    %5560 = vmatpush1.msra.mxu0 %v1656
    %5561 = vmatprep.subr.mxu0 %v1665
    %5562 = vmatpush1.msra.mxu0 %v1664
    %5563 = vmatprep.subr.mxu0 %v1673
    %5564 = vmatpush1.msra.mxu0 %v1672
    %5565 = vmatprep.subr.mxu0 %v1681
    %5566 = vmatpush1.msra.mxu0 %v1680
    %5567 = vmatprep.subr.mxu0 %v1689
    %5568 = vmatpush1.msra.mxu0 %v1688
    %5569 = vmatprep.subr.mxu0 %v1697
    %5570 = vmatpush1.msra.mxu0 %v1696
    %5571 = vmatprep.subr.mxu0 %v1705
    %5572 = vmatpush1.msra.mxu0 %v1704
    %5573 = vmatprep.mubr.f32.mxu0 %v5269
    %5574 = vmatmul.mubr.f32.gmra.mrb[0].mxu0 %v5268
    %v5575 = vpop.f32.mrb[0].mxu0
    %v5576 = vadd.f32 %v5294, %v5575
    %v5577 = vpop.f32.mrb[0].mxu0
    %v5578 = vadd.f32 %v5295, %v5577
    %5579 = vdwg.mxu0
    %v5580 = vmul.f32 %v5363, 0.5
    %v5581 = vmul.f32 %v5365, 0.5
    %v5582 = vtanh.pop %v5580
    %v5583 = vtanh.pop %v5581
    %v5584 = vadd.f32 %v5582, 1.0
    %v5585 = vadd.f32 %v5583, 1.0
    %v5586 = vmul.f32 %v5584, 0.5
    %v5587 = vmul.f32 %v5585, 0.5
    %v5588 = vmul.f32 %v5434, 0.5
    %v5589 = vmul.f32 %v5436, 0.5
    %v5590 = vtanh.pop %v5588
    %v5591 = vtanh.pop %v5589
    %v5592 = vadd.f32 %v5590, 1.0
    %v5593 = vadd.f32 %v5591, 1.0
    %v5594 = vmul.f32 %v5592, 0.5
    %v5595 = vmul.f32 %v5593, 0.5
    %v5596 = vtanh.pop %v5505
    %v5597 = vtanh.pop %v5507
    %v5598 = vmul.f32 %v5576, 0.5
    %v5599 = vmul.f32 %v5578, 0.5
    %v5600 = vtanh.pop %v5598
    %v5601 = vtanh.pop %v5599
    %v5602 = vadd.f32 %v5600, 1.0
    %v5603 = vadd.f32 %v5601, 1.0
    %v5604 = vmul.f32 %v5602, 0.5
    %v5605 = vmul.f32 %v5603, 0.5
    %v5606 = vmul.f32 %v5594, %v5270
    %v5607 = vmul.f32 %v5595, %v5271
    %v5608 = vmul.f32 %v5586, %v5596
    %v5609 = vmul.f32 %v5587, %v5597
    %v5610 = vadd.f32 %v5606, %v5608
    %v5611 = vadd.f32 %v5607, %v5609
    %v5612 = vtanh.pop %v5610
    %v5613 = vtanh.pop %v5611
    %v5614 = vmul.f32 %v5604, %v5612
    %v5615 = vmul.f32 %v5605, %v5613
    %v5616 = vsel %vm1444, 10, 5
    %v5617 = vsel %vm1445, 10, 5
    %vm5618 = vcmp.gt.s32.totalorder %v1449, %v5616
    %vm5619 = vcmp.gt.s32.totalorder %v1449, %v5617
    %v5620 = vsel %vm5618, %v5614, 0.0
    %v5621 = vsel %vm5619, %v5615, 0.0
    %v5622 = vld [vmem:[#allocation15 + $0x50] sm:$0xff]
    %v5623 = vadd.f32 %v5622, %v5620
    %5624 = vst [vmem:[#allocation15 + $0x50] sm:$0xff] %v5623
    %v5625 = vld [vmem:[#allocation15 + $0x28] sm:$0xff]
    %v5626 = vadd.f32 %v5625, %v5621
    %5627 = vst [vmem:[#allocation15 + $0x28] sm:$0xff] %v5626
    %v5628 = vsel %vm5618, %v5614, %v5268
    %v5629 = vsel %vm5619, %v5615, %v5269
    %v5630 = vsel %vm5618, %v5610, %v5270
    %v5631 = vsel %vm5619, %v5611, %v5271
    %v5632 = vld [vmem:[#allocation2 + $0x2c0] sm:$0xff]
    %v5633 = vld [vmem:[#allocation2 + $0x2c8] sm:$0xff]
    %v5634 = vld [vmem:[#allocation2 + $0x2d0] sm:$0xff]
    %v5635 = vld [vmem:[#allocation2 + $0x2d8] sm:$0xff]
    %v5636 = vld [vmem:[#allocation2 + $0x2e0] sm:$0xff]
    %v5637 = vld [vmem:[#allocation2 + $0x2e8] sm:$0xff]
    %v5638 = vld [vmem:[#allocation2 + $0x2f0] sm:$0xff]
    %v5639 = vld [vmem:[#allocation2 + $0x2f8] sm:$0xff]
    %v5640 = vld [vmem:[#allocation2 + $0x100] sm:$0xff]
    %v5641 = vld [vmem:[#allocation2 + $0x108] sm:$0xff]
    %v5642 = vld [vmem:[#allocation2 + $0x110] sm:$0xff]
    %v5643 = vld [vmem:[#allocation2 + $0x118] sm:$0xff]
    %v5644 = vld [vmem:[#allocation2 + $0x120] sm:$0xff]
    %v5645 = vld [vmem:[#allocation2 + $0x128] sm:$0xff]
    %v5646 = vld [vmem:[#allocation2 + $0x130] sm:$0xff]
    %v5647 = vld [vmem:[#allocation2 + $0x138] sm:$0xff]
    %v5648 = vsel %vm1436, %v5632, %v5640
    %v5649 = vsel %vm1437, %v5633, %v5641
    %v5650 = vsel %vm1438, %v5634, %v5642
    %v5651 = vsel %vm1439, %v5635, %v5643
    %v5652 = vsel %vm1440, %v5636, %v5644
    %v5653 = vsel %vm1441, %v5637, %v5645
    %v5654 = vsel %vm1442, %v5638, %v5646
    %v5655 = vsel %vm1443, %v5639, %v5647
    %5656 = vmatprep.subr.mxu0 %v1451
    %5657 = vmatpush1.msra.mxu0 %v1450
    %5658 = vmatprep.subr.mxu0 %v1459
    %5659 = vmatpush1.msra.mxu0 %v1458
    %5660 = vmatprep.subr.mxu0 %v1467
    %5661 = vmatpush1.msra.mxu0 %v1466
    %5662 = vmatprep.subr.mxu0 %v1475
    %5663 = vmatpush1.msra.mxu0 %v1474
    %5664 = vmatprep.subr.mxu0 %v1483
    %5665 = vmatpush1.msra.mxu0 %v1482
    %5666 = vmatprep.subr.mxu0 %v1491
    %5667 = vmatpush1.msra.mxu0 %v1490
    %5668 = vmatprep.subr.mxu0 %v1499
    %5669 = vmatpush1.msra.mxu0 %v1498
    %5670 = vmatprep.subr.mxu0 %v1507
    %5671 = vmatpush1.msra.mxu0 %v1506
    %5672 = vmatprep.subr.mxu0 %v1515
    %5673 = vmatpush1.msra.mxu0 %v1514
    %5674 = vmatprep.subr.mxu0 %v1523
    %5675 = vmatpush1.msra.mxu0 %v1522
    %5676 = vmatprep.subr.mxu0 %v1531
    %5677 = vmatpush1.msra.mxu0 %v1530
    %5678 = vmatprep.subr.mxu0 %v1539
    %5679 = vmatpush1.msra.mxu0 %v1538
    %5680 = vmatprep.subr.mxu0 %v1547
    %5681 = vmatpush1.msra.mxu0 %v1546
    %5682 = vmatprep.subr.mxu0 %v1555
    %5683 = vmatpush1.msra.mxu0 %v1554
    %5684 = vmatprep.subr.mxu0 %v1563
    %5685 = vmatpush1.msra.mxu0 %v1562
    %5686 = vmatprep.subr.mxu0 %v1571
    %5687 = vmatpush1.msra.mxu0 %v1570
    %5688 = vmatprep.subr.mxu0 %v1579
    %5689 = vmatpush1.msra.mxu0 %v1578
    %5690 = vmatprep.subr.mxu0 %v1587
    %5691 = vmatpush1.msra.mxu0 %v1586
    %5692 = vmatprep.subr.mxu0 %v1595
    %5693 = vmatpush1.msra.mxu0 %v1594
    %5694 = vmatprep.subr.mxu0 %v1603
    %5695 = vmatpush1.msra.mxu0 %v1602
    %5696 = vmatprep.subr.mxu0 %v1611
    %5697 = vmatpush1.msra.mxu0 %v1610
    %5698 = vmatprep.subr.mxu0 %v1619
    %5699 = vmatpush1.msra.mxu0 %v1618
    %5700 = vmatprep.subr.mxu0 %v1627
    %5701 = vmatpush1.msra.mxu0 %v1626
    %5702 = vmatprep.subr.mxu0 %v1635
    %5703 = vmatpush1.msra.mxu0 %v1634
    %5704 = vmatprep.subr.mxu0 %v1643
    %5705 = vmatpush1.msra.mxu0 %v1642
    %5706 = vmatprep.subr.mxu0 %v1651
    %5707 = vmatpush1.msra.mxu0 %v1650
    %5708 = vmatprep.subr.mxu0 %v1659
    %5709 = vmatpush1.msra.mxu0 %v1658
    %5710 = vmatprep.subr.mxu0 %v1667
    %5711 = vmatpush1.msra.mxu0 %v1666
    %5712 = vmatprep.subr.mxu0 %v1675
    %5713 = vmatpush1.msra.mxu0 %v1674
    %5714 = vmatprep.subr.mxu0 %v1683
    %5715 = vmatpush1.msra.mxu0 %v1682
    %5716 = vmatprep.subr.mxu0 %v1691
    %5717 = vmatpush1.msra.mxu0 %v1690
    %5718 = vmatprep.subr.mxu0 %v1699
    %5719 = vmatpush1.msra.mxu0 %v1698
    %5720 = vmatprep.mubr.f32.mxu0 %v5629
    %5721 = vmatmul.mubr.f32.gmra.mrb[0].mxu0 %v5628
    %v5722 = vpop.f32.mrb[0].mxu0
    %v5723 = vadd.f32 %v5648, %v5722
    %v5724 = vpop.f32.mrb[0].mxu0
    %v5725 = vadd.f32 %v5649, %v5724
    %5726 = vdwg.mxu0
    %5727 = vmatprep.subr.mxu0 %v1453
    %5728 = vmatpush1.msra.mxu0 %v1452
    %5729 = vmatprep.subr.mxu0 %v1461
    %5730 = vmatpush1.msra.mxu0 %v1460
    %5731 = vmatprep.subr.mxu0 %v1469
    %5732 = vmatpush1.msra.mxu0 %v1468
    %5733 = vmatprep.subr.mxu0 %v1477
    %5734 = vmatpush1.msra.mxu0 %v1476
    %5735 = vmatprep.subr.mxu0 %v1485
    %5736 = vmatpush1.msra.mxu0 %v1484
    %5737 = vmatprep.subr.mxu0 %v1493
    %5738 = vmatpush1.msra.mxu0 %v1492
    %5739 = vmatprep.subr.mxu0 %v1501
    %5740 = vmatpush1.msra.mxu0 %v1500
    %5741 = vmatprep.subr.mxu0 %v1509
    %5742 = vmatpush1.msra.mxu0 %v1508
    %5743 = vmatprep.subr.mxu0 %v1517
    %5744 = vmatpush1.msra.mxu0 %v1516
    %5745 = vmatprep.subr.mxu0 %v1525
    %5746 = vmatpush1.msra.mxu0 %v1524
    %5747 = vmatprep.subr.mxu0 %v1533
    %5748 = vmatpush1.msra.mxu0 %v1532
    %5749 = vmatprep.subr.mxu0 %v1541
    %5750 = vmatpush1.msra.mxu0 %v1540
    %5751 = vmatprep.subr.mxu0 %v1549
    %5752 = vmatpush1.msra.mxu0 %v1548
    %5753 = vmatprep.subr.mxu0 %v1557
    %5754 = vmatpush1.msra.mxu0 %v1556
    %5755 = vmatprep.subr.mxu0 %v1565
    %5756 = vmatpush1.msra.mxu0 %v1564
    %5757 = vmatprep.subr.mxu0 %v1573
    %5758 = vmatpush1.msra.mxu0 %v1572
    %5759 = vmatprep.subr.mxu0 %v1581
    %5760 = vmatpush1.msra.mxu0 %v1580
    %5761 = vmatprep.subr.mxu0 %v1589
    %5762 = vmatpush1.msra.mxu0 %v1588
    %5763 = vmatprep.subr.mxu0 %v1597
    %5764 = vmatpush1.msra.mxu0 %v1596
    %5765 = vmatprep.subr.mxu0 %v1605
    %5766 = vmatpush1.msra.mxu0 %v1604
    %5767 = vmatprep.subr.mxu0 %v1613
    %5768 = vmatpush1.msra.mxu0 %v1612
    %5769 = vmatprep.subr.mxu0 %v1621
    %5770 = vmatpush1.msra.mxu0 %v1620
    %5771 = vmatprep.subr.mxu0 %v1629
    %5772 = vmatpush1.msra.mxu0 %v1628
    %5773 = vmatprep.subr.mxu0 %v1637
    %5774 = vmatpush1.msra.mxu0 %v1636
    %5775 = vmatprep.subr.mxu0 %v1645
    %5776 = vmatpush1.msra.mxu0 %v1644
    %5777 = vmatprep.subr.mxu0 %v1653
    %5778 = vmatpush1.msra.mxu0 %v1652
    %5779 = vmatprep.subr.mxu0 %v1661
    %5780 = vmatpush1.msra.mxu0 %v1660
    %5781 = vmatprep.subr.mxu0 %v1669
    %5782 = vmatpush1.msra.mxu0 %v1668
    %5783 = vmatprep.subr.mxu0 %v1677
    %5784 = vmatpush1.msra.mxu0 %v1676
    %5785 = vmatprep.subr.mxu0 %v1685
    %5786 = vmatpush1.msra.mxu0 %v1684
    %5787 = vmatprep.subr.mxu0 %v1693
    %5788 = vmatpush1.msra.mxu0 %v1692
    %5789 = vmatprep.subr.mxu0 %v1701
    %5790 = vmatpush1.msra.mxu0 %v1700
    %5791 = vmatprep.mubr.f32.mxu0 %v5629
    %5792 = vmatmul.mubr.f32.gmra.mrb[0].mxu0 %v5628
    %v5793 = vpop.f32.mrb[0].mxu0
    %v5794 = vadd.f32 %v5650, %v5793
    %v5795 = vpop.f32.mrb[0].mxu0
    %v5796 = vadd.f32 %v5651, %v5795
    %5797 = vdwg.mxu0
    %5798 = vmatprep.subr.mxu0 %v1455
    %5799 = vmatpush1.msra.mxu0 %v1454
    %5800 = vmatprep.subr.mxu0 %v1463
    %5801 = vmatpush1.msra.mxu0 %v1462
    %5802 = vmatprep.subr.mxu0 %v1471
    %5803 = vmatpush1.msra.mxu0 %v1470
    %5804 = vmatprep.subr.mxu0 %v1479
    %5805 = vmatpush1.msra.mxu0 %v1478
    %5806 = vmatprep.subr.mxu0 %v1487
    %5807 = vmatpush1.msra.mxu0 %v1486
    %5808 = vmatprep.subr.mxu0 %v1495
    %5809 = vmatpush1.msra.mxu0 %v1494
    %5810 = vmatprep.subr.mxu0 %v1503
    %5811 = vmatpush1.msra.mxu0 %v1502
    %5812 = vmatprep.subr.mxu0 %v1511
    %5813 = vmatpush1.msra.mxu0 %v1510
    %5814 = vmatprep.subr.mxu0 %v1519
    %5815 = vmatpush1.msra.mxu0 %v1518
    %5816 = vmatprep.subr.mxu0 %v1527
    %5817 = vmatpush1.msra.mxu0 %v1526
    %5818 = vmatprep.subr.mxu0 %v1535
    %5819 = vmatpush1.msra.mxu0 %v1534
    %5820 = vmatprep.subr.mxu0 %v1543
    %5821 = vmatpush1.msra.mxu0 %v1542
    %5822 = vmatprep.subr.mxu0 %v1551
    %5823 = vmatpush1.msra.mxu0 %v1550
    %5824 = vmatprep.subr.mxu0 %v1559
    %5825 = vmatpush1.msra.mxu0 %v1558
    %5826 = vmatprep.subr.mxu0 %v1567
    %5827 = vmatpush1.msra.mxu0 %v1566
    %5828 = vmatprep.subr.mxu0 %v1575
    %5829 = vmatpush1.msra.mxu0 %v1574
    %5830 = vmatprep.subr.mxu0 %v1583
    %5831 = vmatpush1.msra.mxu0 %v1582
    %5832 = vmatprep.subr.mxu0 %v1591
    %5833 = vmatpush1.msra.mxu0 %v1590
    %5834 = vmatprep.subr.mxu0 %v1599
    %5835 = vmatpush1.msra.mxu0 %v1598
    %5836 = vmatprep.subr.mxu0 %v1607
    %5837 = vmatpush1.msra.mxu0 %v1606
    %5838 = vmatprep.subr.mxu0 %v1615
    %5839 = vmatpush1.msra.mxu0 %v1614
    %5840 = vmatprep.subr.mxu0 %v1623
    %5841 = vmatpush1.msra.mxu0 %v1622
    %5842 = vmatprep.subr.mxu0 %v1631
    %5843 = vmatpush1.msra.mxu0 %v1630
    %5844 = vmatprep.subr.mxu0 %v1639
    %5845 = vmatpush1.msra.mxu0 %v1638
    %5846 = vmatprep.subr.mxu0 %v1647
    %5847 = vmatpush1.msra.mxu0 %v1646
    %5848 = vmatprep.subr.mxu0 %v1655
    %5849 = vmatpush1.msra.mxu0 %v1654
    %5850 = vmatprep.subr.mxu0 %v1663
    %5851 = vmatpush1.msra.mxu0 %v1662
    %5852 = vmatprep.subr.mxu0 %v1671
    %5853 = vmatpush1.msra.mxu0 %v1670
    %5854 = vmatprep.subr.mxu0 %v1679
    %5855 = vmatpush1.msra.mxu0 %v1678
    %5856 = vmatprep.subr.mxu0 %v1687
    %5857 = vmatpush1.msra.mxu0 %v1686
    %5858 = vmatprep.subr.mxu0 %v1695
    %5859 = vmatpush1.msra.mxu0 %v1694
    %5860 = vmatprep.subr.mxu0 %v1703
    %5861 = vmatpush1.msra.mxu0 %v1702
    %5862 = vmatprep.mubr.f32.mxu0 %v5629
    %5863 = vmatmul.mubr.f32.gmra.mrb[0].mxu0 %v5628
    %v5864 = vpop.f32.mrb[0].mxu0
    %v5865 = vadd.f32 %v5652, %v5864
    %v5866 = vpop.f32.mrb[0].mxu0
    %v5867 = vadd.f32 %v5653, %v5866
    %5868 = vdwg.mxu0
    %5869 = vmatprep.subr.mxu0 %v1457
    %5870 = vmatpush1.msra.mxu0 %v1456
    %5871 = vmatprep.subr.mxu0 %v1465
    %5872 = vmatpush1.msra.mxu0 %v1464
    %5873 = vmatprep.subr.mxu0 %v1473
    %5874 = vmatpush1.msra.mxu0 %v1472
    %5875 = vmatprep.subr.mxu0 %v1481
    %5876 = vmatpush1.msra.mxu0 %v1480
    %5877 = vmatprep.subr.mxu0 %v1489
    %5878 = vmatpush1.msra.mxu0 %v1488
    %5879 = vmatprep.subr.mxu0 %v1497
    %5880 = vmatpush1.msra.mxu0 %v1496
    %5881 = vmatprep.subr.mxu0 %v1505
    %5882 = vmatpush1.msra.mxu0 %v1504
    %5883 = vmatprep.subr.mxu0 %v1513
    %5884 = vmatpush1.msra.mxu0 %v1512
    %5885 = vmatprep.subr.mxu0 %v1521
    %5886 = vmatpush1.msra.mxu0 %v1520
    %5887 = vmatprep.subr.mxu0 %v1529
    %5888 = vmatpush1.msra.mxu0 %v1528
    %5889 = vmatprep.subr.mxu0 %v1537
    %5890 = vmatpush1.msra.mxu0 %v1536
    %5891 = vmatprep.subr.mxu0 %v1545
    %5892 = vmatpush1.msra.mxu0 %v1544
    %5893 = vmatprep.subr.mxu0 %v1553
    %5894 = vmatpush1.msra.mxu0 %v1552
    %5895 = vmatprep.subr.mxu0 %v1561
    %5896 = vmatpush1.msra.mxu0 %v1560
    %5897 = vmatprep.subr.mxu0 %v1569
    %5898 = vmatpush1.msra.mxu0 %v1568
    %5899 = vmatprep.subr.mxu0 %v1577
    %5900 = vmatpush1.msra.mxu0 %v1576
    %5901 = vmatprep.subr.mxu0 %v1585
    %5902 = vmatpush1.msra.mxu0 %v1584
    %5903 = vmatprep.subr.mxu0 %v1593
    %5904 = vmatpush1.msra.mxu0 %v1592
    %5905 = vmatprep.subr.mxu0 %v1601
    %5906 = vmatpush1.msra.mxu0 %v1600
    %5907 = vmatprep.subr.mxu0 %v1609
    %5908 = vmatpush1.msra.mxu0 %v1608
    %5909 = vmatprep.subr.mxu0 %v1617
    %5910 = vmatpush1.msra.mxu0 %v1616
    %5911 = vmatprep.subr.mxu0 %v1625
    %5912 = vmatpush1.msra.mxu0 %v1624
    %5913 = vmatprep.subr.mxu0 %v1633
    %5914 = vmatpush1.msra.mxu0 %v1632
    %5915 = vmatprep.subr.mxu0 %v1641
    %5916 = vmatpush1.msra.mxu0 %v1640
    %5917 = vmatprep.subr.mxu0 %v1649
    %5918 = vmatpush1.msra.mxu0 %v1648
    %5919 = vmatprep.subr.mxu0 %v1657
    %5920 = vmatpush1.msra.mxu0 %v1656
    %5921 = vmatprep.subr.mxu0 %v1665
    %5922 = vmatpush1.msra.mxu0 %v1664
    %5923 = vmatprep.subr.mxu0 %v1673
    %5924 = vmatpush1.msra.mxu0 %v1672
    %5925 = vmatprep.subr.mxu0 %v1681
    %5926 = vmatpush1.msra.mxu0 %v1680
    %5927 = vmatprep.subr.mxu0 %v1689
    %5928 = vmatpush1.msra.mxu0 %v1688
    %5929 = vmatprep.subr.mxu0 %v1697
    %5930 = vmatpush1.msra.mxu0 %v1696
    %5931 = vmatprep.subr.mxu0 %v1705
    %5932 = vmatpush1.msra.mxu0 %v1704
    %5933 = vmatprep.mubr.f32.mxu0 %v5629
    %5934 = vmatmul.mubr.f32.gmra.mrb[0].mxu0 %v5628
    %v5935 = vpop.f32.mrb[0].mxu0
    %v5936 = vadd.f32 %v5654, %v5935
    %v5937 = vpop.f32.mrb[0].mxu0
    %v5938 = vadd.f32 %v5655, %v5937
    %5939 = vdwg.mxu0
    %v5940 = vmul.f32 %v5723, 0.5
    %v5941 = vmul.f32 %v5725, 0.5
    %v5942 = vtanh.pop %v5940
    %v5943 = vtanh.pop %v5941
    %v5944 = vadd.f32 %v5942, 1.0
    %v5945 = vadd.f32 %v5943, 1.0
    %v5946 = vmul.f32 %v5944, 0.5
    %v5947 = vmul.f32 %v5945, 0.5
    %v5948 = vmul.f32 %v5794, 0.5
    %v5949 = vmul.f32 %v5796, 0.5
    %v5950 = vtanh.pop %v5948
    %v5951 = vtanh.pop %v5949
    %v5952 = vadd.f32 %v5950, 1.0
    %v5953 = vadd.f32 %v5951, 1.0
    %v5954 = vmul.f32 %v5952, 0.5
    %v5955 = vmul.f32 %v5953, 0.5
    %v5956 = vtanh.pop %v5865
    %v5957 = vtanh.pop %v5867
    %v5958 = vmul.f32 %v5936, 0.5
    %v5959 = vmul.f32 %v5938, 0.5
    %v5960 = vtanh.pop %v5958
    %v5961 = vtanh.pop %v5959
    %v5962 = vadd.f32 %v5960, 1.0
    %v5963 = vadd.f32 %v5961, 1.0
    %v5964 = vmul.f32 %v5962, 0.5
    %v5965 = vmul.f32 %v5963, 0.5
    %v5966 = vmul.f32 %v5954, %v5630
    %v5967 = vmul.f32 %v5955, %v5631
    %v5968 = vmul.f32 %v5946, %v5956
    %v5969 = vmul.f32 %v5947, %v5957
    %v5970 = vadd.f32 %v5966, %v5968
    %v5971 = vadd.f32 %v5967, %v5969
    %v5972 = vtanh.pop %v5970
    %v5973 = vtanh.pop %v5971
    %v5974 = vmul.f32 %v5964, %v5972
    %v5975 = vmul.f32 %v5965, %v5973
    %v5976 = vsel %vm1444, 11, 4
    %v5977 = vsel %vm1445, 11, 4
    %vm5978 = vcmp.gt.s32.totalorder %v1449, %v5976
    %vm5979 = vcmp.gt.s32.totalorder %v1449, %v5977
    %v5980 = vsel %vm5978, %v5974, 0.0
    %v5981 = vsel %vm5979, %v5975, 0.0
    %v5982 = vld [vmem:[#allocation15 + $0x58] sm:$0xff]
    %v5983 = vadd.f32 %v5982, %v5980
    %5984 = vst [vmem:[#allocation15 + $0x58] sm:$0xff] %v5983
    %v5985 = vld [vmem:[#allocation15 + $0x20] sm:$0xff]
    %v5986 = vadd.f32 %v5985, %v5981
    %5987 = vst [vmem:[#allocation15 + $0x20] sm:$0xff] %v5986
    %v5988 = vsel %vm5978, %v5974, %v5628
    %v5989 = vsel %vm5979, %v5975, %v5629
    %v5990 = vsel %vm5978, %v5970, %v5630
    %v5991 = vsel %vm5979, %v5971, %v5631
    %v5992 = vld [vmem:[#allocation2 + $0x300] sm:$0xff]
    %v5993 = vld [vmem:[#allocation2 + $0x308] sm:$0xff]
    %v5994 = vld [vmem:[#allocation2 + $0x310] sm:$0xff]
    %v5995 = vld [vmem:[#allocation2 + $0x318] sm:$0xff]
    %v5996 = vld [vmem:[#allocation2 + $0x320] sm:$0xff]
    %v5997 = vld [vmem:[#allocation2 + $0x328] sm:$0xff]
    %v5998 = vld [vmem:[#allocation2 + $0x330] sm:$0xff]
    %v5999 = vld [vmem:[#allocation2 + $0x338] sm:$0xff]
    %v6000 = vld [vmem:[#allocation2 + $0xc0] sm:$0xff]
    %v6001 = vld [vmem:[#allocation2 + $0xc8] sm:$0xff]
    %v6002 = vld [vmem:[#allocation2 + $0xd0] sm:$0xff]
    %v6003 = vld [vmem:[#allocation2 + $0xd8] sm:$0xff]
    %v6004 = vld [vmem:[#allocation2 + $0xe0] sm:$0xff]
    %v6005 = vld [vmem:[#allocation2 + $0xe8] sm:$0xff]
    %v6006 = vld [vmem:[#allocation2 + $0xf0] sm:$0xff]
    %v6007 = vld [vmem:[#allocation2 + $0xf8] sm:$0xff]
    %v6008 = vsel %vm1436, %v5992, %v6000
    %v6009 = vsel %vm1437, %v5993, %v6001
    %v6010 = vsel %vm1438, %v5994, %v6002
    %v6011 = vsel %vm1439, %v5995, %v6003
    %v6012 = vsel %vm1440, %v5996, %v6004
    %v6013 = vsel %vm1441, %v5997, %v6005
    %v6014 = vsel %vm1442, %v5998, %v6006
    %v6015 = vsel %vm1443, %v5999, %v6007
    %6016 = vmatprep.subr.mxu0 %v1451
    %6017 = vmatpush1.msra.mxu0 %v1450
    %6018 = vmatprep.subr.mxu0 %v1459
    %6019 = vmatpush1.msra.mxu0 %v1458
    %6020 = vmatprep.subr.mxu0 %v1467
    %6021 = vmatpush1.msra.mxu0 %v1466
    %6022 = vmatprep.subr.mxu0 %v1475
    %6023 = vmatpush1.msra.mxu0 %v1474
    %6024 = vmatprep.subr.mxu0 %v1483
    %6025 = vmatpush1.msra.mxu0 %v1482
    %6026 = vmatprep.subr.mxu0 %v1491
    %6027 = vmatpush1.msra.mxu0 %v1490
    %6028 = vmatprep.subr.mxu0 %v1499
    %6029 = vmatpush1.msra.mxu0 %v1498
    %6030 = vmatprep.subr.mxu0 %v1507
    %6031 = vmatpush1.msra.mxu0 %v1506
    %6032 = vmatprep.subr.mxu0 %v1515
    %6033 = vmatpush1.msra.mxu0 %v1514
    %6034 = vmatprep.subr.mxu0 %v1523
    %6035 = vmatpush1.msra.mxu0 %v1522
    %6036 = vmatprep.subr.mxu0 %v1531
    %6037 = vmatpush1.msra.mxu0 %v1530
    %6038 = vmatprep.subr.mxu0 %v1539
    %6039 = vmatpush1.msra.mxu0 %v1538
    %6040 = vmatprep.subr.mxu0 %v1547
    %6041 = vmatpush1.msra.mxu0 %v1546
    %6042 = vmatprep.subr.mxu0 %v1555
    %6043 = vmatpush1.msra.mxu0 %v1554
    %6044 = vmatprep.subr.mxu0 %v1563
    %6045 = vmatpush1.msra.mxu0 %v1562
    %6046 = vmatprep.subr.mxu0 %v1571
    %6047 = vmatpush1.msra.mxu0 %v1570
    %6048 = vmatprep.subr.mxu0 %v1579
    %6049 = vmatpush1.msra.mxu0 %v1578
    %6050 = vmatprep.subr.mxu0 %v1587
    %6051 = vmatpush1.msra.mxu0 %v1586
    %6052 = vmatprep.subr.mxu0 %v1595
    %6053 = vmatpush1.msra.mxu0 %v1594
    %6054 = vmatprep.subr.mxu0 %v1603
    %6055 = vmatpush1.msra.mxu0 %v1602
    %6056 = vmatprep.subr.mxu0 %v1611
    %6057 = vmatpush1.msra.mxu0 %v1610
    %6058 = vmatprep.subr.mxu0 %v1619
    %6059 = vmatpush1.msra.mxu0 %v1618
    %6060 = vmatprep.subr.mxu0 %v1627
    %6061 = vmatpush1.msra.mxu0 %v1626
    %6062 = vmatprep.subr.mxu0 %v1635
    %6063 = vmatpush1.msra.mxu0 %v1634
    %6064 = vmatprep.subr.mxu0 %v1643
    %6065 = vmatpush1.msra.mxu0 %v1642
    %6066 = vmatprep.subr.mxu0 %v1651
    %6067 = vmatpush1.msra.mxu0 %v1650
    %6068 = vmatprep.subr.mxu0 %v1659
    %6069 = vmatpush1.msra.mxu0 %v1658
    %6070 = vmatprep.subr.mxu0 %v1667
    %6071 = vmatpush1.msra.mxu0 %v1666
    %6072 = vmatprep.subr.mxu0 %v1675
    %6073 = vmatpush1.msra.mxu0 %v1674
    %6074 = vmatprep.subr.mxu0 %v1683
    %6075 = vmatpush1.msra.mxu0 %v1682
    %6076 = vmatprep.subr.mxu0 %v1691
    %6077 = vmatpush1.msra.mxu0 %v1690
    %6078 = vmatprep.subr.mxu0 %v1699
    %6079 = vmatpush1.msra.mxu0 %v1698
    %6080 = vmatprep.mubr.f32.mxu0 %v5989
    %6081 = vmatmul.mubr.f32.gmra.mrb[0].mxu0 %v5988
    %v6082 = vpop.f32.mrb[0].mxu0
    %v6083 = vadd.f32 %v6008, %v6082
    %v6084 = vpop.f32.mrb[0].mxu0
    %v6085 = vadd.f32 %v6009, %v6084
    %6086 = vdwg.mxu0
    %6087 = vmatprep.subr.mxu0 %v1453
    %6088 = vmatpush1.msra.mxu0 %v1452
    %6089 = vmatprep.subr.mxu0 %v1461
    %6090 = vmatpush1.msra.mxu0 %v1460
    %6091 = vmatprep.subr.mxu0 %v1469
    %6092 = vmatpush1.msra.mxu0 %v1468
    %6093 = vmatprep.subr.mxu0 %v1477
    %6094 = vmatpush1.msra.mxu0 %v1476
    %6095 = vmatprep.subr.mxu0 %v1485
    %6096 = vmatpush1.msra.mxu0 %v1484
    %6097 = vmatprep.subr.mxu0 %v1493
    %6098 = vmatpush1.msra.mxu0 %v1492
    %6099 = vmatprep.subr.mxu0 %v1501
    %6100 = vmatpush1.msra.mxu0 %v1500
    %6101 = vmatprep.subr.mxu0 %v1509
    %6102 = vmatpush1.msra.mxu0 %v1508
    %6103 = vmatprep.subr.mxu0 %v1517
    %6104 = vmatpush1.msra.mxu0 %v1516
    %6105 = vmatprep.subr.mxu0 %v1525
    %6106 = vmatpush1.msra.mxu0 %v1524
    %6107 = vmatprep.subr.mxu0 %v1533
    %6108 = vmatpush1.msra.mxu0 %v1532
    %6109 = vmatprep.subr.mxu0 %v1541
    %6110 = vmatpush1.msra.mxu0 %v1540
    %6111 = vmatprep.subr.mxu0 %v1549
    %6112 = vmatpush1.msra.mxu0 %v1548
    %6113 = vmatprep.subr.mxu0 %v1557
    %6114 = vmatpush1.msra.mxu0 %v1556
    %6115 = vmatprep.subr.mxu0 %v1565
    %6116 = vmatpush1.msra.mxu0 %v1564
    %6117 = vmatprep.subr.mxu0 %v1573
    %6118 = vmatpush1.msra.mxu0 %v1572
    %6119 = vmatprep.subr.mxu0 %v1581
    %6120 = vmatpush1.msra.mxu0 %v1580
    %6121 = vmatprep.subr.mxu0 %v1589
    %6122 = vmatpush1.msra.mxu0 %v1588
    %6123 = vmatprep.subr.mxu0 %v1597
    %6124 = vmatpush1.msra.mxu0 %v1596
    %6125 = vmatprep.subr.mxu0 %v1605
    %6126 = vmatpush1.msra.mxu0 %v1604
    %6127 = vmatprep.subr.mxu0 %v1613
    %6128 = vmatpush1.msra.mxu0 %v1612
    %6129 = vmatprep.subr.mxu0 %v1621
    %6130 = vmatpush1.msra.mxu0 %v1620
    %6131 = vmatprep.subr.mxu0 %v1629
    %6132 = vmatpush1.msra.mxu0 %v1628
    %6133 = vmatprep.subr.mxu0 %v1637
    %6134 = vmatpush1.msra.mxu0 %v1636
    %6135 = vmatprep.subr.mxu0 %v1645
    %6136 = vmatpush1.msra.mxu0 %v1644
    %6137 = vmatprep.subr.mxu0 %v1653
    %6138 = vmatpush1.msra.mxu0 %v1652
    %6139 = vmatprep.subr.mxu0 %v1661
    %6140 = vmatpush1.msra.mxu0 %v1660
    %6141 = vmatprep.subr.mxu0 %v1669
    %6142 = vmatpush1.msra.mxu0 %v1668
    %6143 = vmatprep.subr.mxu0 %v1677
    %6144 = vmatpush1.msra.mxu0 %v1676
    %6145 = vmatprep.subr.mxu0 %v1685
    %6146 = vmatpush1.msra.mxu0 %v1684
    %6147 = vmatprep.subr.mxu0 %v1693
    %6148 = vmatpush1.msra.mxu0 %v1692
    %6149 = vmatprep.subr.mxu0 %v1701
    %6150 = vmatpush1.msra.mxu0 %v1700
    %6151 = vmatprep.mubr.f32.mxu0 %v5989
    %6152 = vmatmul.mubr.f32.gmra.mrb[0].mxu0 %v5988
    %v6153 = vpop.f32.mrb[0].mxu0
    %v6154 = vadd.f32 %v6010, %v6153
    %v6155 = vpop.f32.mrb[0].mxu0
    %v6156 = vadd.f32 %v6011, %v6155
    %6157 = vdwg.mxu0
    %6158 = vmatprep.subr.mxu0 %v1455
    %6159 = vmatpush1.msra.mxu0 %v1454
    %6160 = vmatprep.subr.mxu0 %v1463
    %6161 = vmatpush1.msra.mxu0 %v1462
    %6162 = vmatprep.subr.mxu0 %v1471
    %6163 = vmatpush1.msra.mxu0 %v1470
    %6164 = vmatprep.subr.mxu0 %v1479
    %6165 = vmatpush1.msra.mxu0 %v1478
    %6166 = vmatprep.subr.mxu0 %v1487
    %6167 = vmatpush1.msra.mxu0 %v1486
    %6168 = vmatprep.subr.mxu0 %v1495
    %6169 = vmatpush1.msra.mxu0 %v1494
    %6170 = vmatprep.subr.mxu0 %v1503
    %6171 = vmatpush1.msra.mxu0 %v1502
    %6172 = vmatprep.subr.mxu0 %v1511
    %6173 = vmatpush1.msra.mxu0 %v1510
    %6174 = vmatprep.subr.mxu0 %v1519
    %6175 = vmatpush1.msra.mxu0 %v1518
    %6176 = vmatprep.subr.mxu0 %v1527
    %6177 = vmatpush1.msra.mxu0 %v1526
    %6178 = vmatprep.subr.mxu0 %v1535
    %6179 = vmatpush1.msra.mxu0 %v1534
    %6180 = vmatprep.subr.mxu0 %v1543
    %6181 = vmatpush1.msra.mxu0 %v1542
    %6182 = vmatprep.subr.mxu0 %v1551
    %6183 = vmatpush1.msra.mxu0 %v1550
    %6184 = vmatprep.subr.mxu0 %v1559
    %6185 = vmatpush1.msra.mxu0 %v1558
    %6186 = vmatprep.subr.mxu0 %v1567
    %6187 = vmatpush1.msra.mxu0 %v1566
    %6188 = vmatprep.subr.mxu0 %v1575
    %6189 = vmatpush1.msra.mxu0 %v1574
    %6190 = vmatprep.subr.mxu0 %v1583
    %6191 = vmatpush1.msra.mxu0 %v1582
    %6192 = vmatprep.subr.mxu0 %v1591
    %6193 = vmatpush1.msra.mxu0 %v1590
    %6194 = vmatprep.subr.mxu0 %v1599
    %6195 = vmatpush1.msra.mxu0 %v1598
    %6196 = vmatprep.subr.mxu0 %v1607
    %6197 = vmatpush1.msra.mxu0 %v1606
    %6198 = vmatprep.subr.mxu0 %v1615
    %6199 = vmatpush1.msra.mxu0 %v1614
    %6200 = vmatprep.subr.mxu0 %v1623
    %6201 = vmatpush1.msra.mxu0 %v1622
    %6202 = vmatprep.subr.mxu0 %v1631
    %6203 = vmatpush1.msra.mxu0 %v1630
    %6204 = vmatprep.subr.mxu0 %v1639
    %6205 = vmatpush1.msra.mxu0 %v1638
    %6206 = vmatprep.subr.mxu0 %v1647
    %6207 = vmatpush1.msra.mxu0 %v1646
    %6208 = vmatprep.subr.mxu0 %v1655
    %6209 = vmatpush1.msra.mxu0 %v1654
    %6210 = vmatprep.subr.mxu0 %v1663
    %6211 = vmatpush1.msra.mxu0 %v1662
    %6212 = vmatprep.subr.mxu0 %v1671
    %6213 = vmatpush1.msra.mxu0 %v1670
    %6214 = vmatprep.subr.mxu0 %v1679
    %6215 = vmatpush1.msra.mxu0 %v1678
    %6216 = vmatprep.subr.mxu0 %v1687
    %6217 = vmatpush1.msra.mxu0 %v1686
    %6218 = vmatprep.subr.mxu0 %v1695
    %6219 = vmatpush1.msra.mxu0 %v1694
    %6220 = vmatprep.subr.mxu0 %v1703
    %6221 = vmatpush1.msra.mxu0 %v1702
    %6222 = vmatprep.mubr.f32.mxu0 %v5989
    %6223 = vmatmul.mubr.f32.gmra.mrb[0].mxu0 %v5988
    %v6224 = vpop.f32.mrb[0].mxu0
    %v6225 = vadd.f32 %v6012, %v6224
    %v6226 = vpop.f32.mrb[0].mxu0
    %v6227 = vadd.f32 %v6013, %v6226
    %6228 = vdwg.mxu0
    %6229 = vmatprep.subr.mxu0 %v1457
    %6230 = vmatpush1.msra.mxu0 %v1456
    %6231 = vmatprep.subr.mxu0 %v1465
    %6232 = vmatpush1.msra.mxu0 %v1464
    %6233 = vmatprep.subr.mxu0 %v1473
    %6234 = vmatpush1.msra.mxu0 %v1472
    %6235 = vmatprep.subr.mxu0 %v1481
    %6236 = vmatpush1.msra.mxu0 %v1480
    %6237 = vmatprep.subr.mxu0 %v1489
    %6238 = vmatpush1.msra.mxu0 %v1488
    %6239 = vmatprep.subr.mxu0 %v1497
    %6240 = vmatpush1.msra.mxu0 %v1496
    %6241 = vmatprep.subr.mxu0 %v1505
    %6242 = vmatpush1.msra.mxu0 %v1504
    %6243 = vmatprep.subr.mxu0 %v1513
    %6244 = vmatpush1.msra.mxu0 %v1512
    %6245 = vmatprep.subr.mxu0 %v1521
    %6246 = vmatpush1.msra.mxu0 %v1520
    %6247 = vmatprep.subr.mxu0 %v1529
    %6248 = vmatpush1.msra.mxu0 %v1528
    %6249 = vmatprep.subr.mxu0 %v1537
    %6250 = vmatpush1.msra.mxu0 %v1536
    %6251 = vmatprep.subr.mxu0 %v1545
    %6252 = vmatpush1.msra.mxu0 %v1544
    %6253 = vmatprep.subr.mxu0 %v1553
    %6254 = vmatpush1.msra.mxu0 %v1552
    %6255 = vmatprep.subr.mxu0 %v1561
    %6256 = vmatpush1.msra.mxu0 %v1560
    %6257 = vmatprep.subr.mxu0 %v1569
    %6258 = vmatpush1.msra.mxu0 %v1568
    %6259 = vmatprep.subr.mxu0 %v1577
    %6260 = vmatpush1.msra.mxu0 %v1576
    %6261 = vmatprep.subr.mxu0 %v1585
    %6262 = vmatpush1.msra.mxu0 %v1584
    %6263 = vmatprep.subr.mxu0 %v1593
    %6264 = vmatpush1.msra.mxu0 %v1592
    %6265 = vmatprep.subr.mxu0 %v1601
    %6266 = vmatpush1.msra.mxu0 %v1600
    %6267 = vmatprep.subr.mxu0 %v1609
    %6268 = vmatpush1.msra.mxu0 %v1608
    %6269 = vmatprep.subr.mxu0 %v1617
    %6270 = vmatpush1.msra.mxu0 %v1616
    %6271 = vmatprep.subr.mxu0 %v1625
    %6272 = vmatpush1.msra.mxu0 %v1624
    %6273 = vmatprep.subr.mxu0 %v1633
    %6274 = vmatpush1.msra.mxu0 %v1632
    %6275 = vmatprep.subr.mxu0 %v1641
    %6276 = vmatpush1.msra.mxu0 %v1640
    %6277 = vmatprep.subr.mxu0 %v1649
    %6278 = vmatpush1.msra.mxu0 %v1648
    %6279 = vmatprep.subr.mxu0 %v1657
    %6280 = vmatpush1.msra.mxu0 %v1656
    %6281 = vmatprep.subr.mxu0 %v1665
    %6282 = vmatpush1.msra.mxu0 %v1664
    %6283 = vmatprep.subr.mxu0 %v1673
    %6284 = vmatpush1.msra.mxu0 %v1672
    %6285 = vmatprep.subr.mxu0 %v1681
    %6286 = vmatpush1.msra.mxu0 %v1680
    %6287 = vmatprep.subr.mxu0 %v1689
    %6288 = vmatpush1.msra.mxu0 %v1688
    %6289 = vmatprep.subr.mxu0 %v1697
    %6290 = vmatpush1.msra.mxu0 %v1696
    %6291 = vmatprep.subr.mxu0 %v1705
    %6292 = vmatpush1.msra.mxu0 %v1704
    %6293 = vmatprep.mubr.f32.mxu0 %v5989
    %6294 = vmatmul.mubr.f32.gmra.mrb[0].mxu0 %v5988
    %v6295 = vpop.f32.mrb[0].mxu0
    %v6296 = vadd.f32 %v6014, %v6295
    %v6297 = vpop.f32.mrb[0].mxu0
    %v6298 = vadd.f32 %v6015, %v6297
    %6299 = vdwg.mxu0
    %v6300 = vmul.f32 %v6083, 0.5
    %v6301 = vmul.f32 %v6085, 0.5
    %v6302 = vtanh.pop %v6300
    %v6303 = vtanh.pop %v6301
    %v6304 = vadd.f32 %v6302, 1.0
    %v6305 = vadd.f32 %v6303, 1.0
    %v6306 = vmul.f32 %v6304, 0.5
    %v6307 = vmul.f32 %v6305, 0.5
    %v6308 = vmul.f32 %v6154, 0.5
    %v6309 = vmul.f32 %v6156, 0.5
    %v6310 = vtanh.pop %v6308
    %v6311 = vtanh.pop %v6309
    %v6312 = vadd.f32 %v6310, 1.0
    %v6313 = vadd.f32 %v6311, 1.0
    %v6314 = vmul.f32 %v6312, 0.5
    %v6315 = vmul.f32 %v6313, 0.5
    %v6316 = vtanh.pop %v6225
    %v6317 = vtanh.pop %v6227
    %v6318 = vmul.f32 %v6296, 0.5
    %v6319 = vmul.f32 %v6298, 0.5
    %v6320 = vtanh.pop %v6318
    %v6321 = vtanh.pop %v6319
    %v6322 = vadd.f32 %v6320, 1.0
    %v6323 = vadd.f32 %v6321, 1.0
    %v6324 = vmul.f32 %v6322, 0.5
    %v6325 = vmul.f32 %v6323, 0.5
    %v6326 = vmul.f32 %v6314, %v5990
    %v6327 = vmul.f32 %v6315, %v5991
    %v6328 = vmul.f32 %v6306, %v6316
    %v6329 = vmul.f32 %v6307, %v6317
    %v6330 = vadd.f32 %v6326, %v6328
    %v6331 = vadd.f32 %v6327, %v6329
    %v6332 = vtanh.pop %v6330
    %v6333 = vtanh.pop %v6331
    %v6334 = vmul.f32 %v6324, %v6332
    %v6335 = vmul.f32 %v6325, %v6333
    %v6336 = vsel %vm1444, 12, 3
    %v6337 = vsel %vm1445, 12, 3
    %vm6338 = vcmp.gt.s32.totalorder %v1449, %v6336
    %vm6339 = vcmp.gt.s32.totalorder %v1449, %v6337
    %v6340 = vsel %vm6338, %v6334, 0.0
    %v6341 = vsel %vm6339, %v6335, 0.0
    %v6342 = vld [vmem:[#allocation15 + $0x60] sm:$0xff]
    %v6343 = vadd.f32 %v6342, %v6340
    %6344 = vst [vmem:[#allocation15 + $0x60] sm:$0xff] %v6343
    %v6345 = vld [vmem:[#allocation15 + $0x18] sm:$0xff]
    %v6346 = vadd.f32 %v6345, %v6341
    %6347 = vst [vmem:[#allocation15 + $0x18] sm:$0xff] %v6346
    %v6348 = vsel %vm6338, %v6334, %v5988
    %v6349 = vsel %vm6339, %v6335, %v5989
    %v6350 = vsel %vm6338, %v6330, %v5990
    %v6351 = vsel %vm6339, %v6331, %v5991
    %v6352 = vld [vmem:[#allocation2 + $0x340] sm:$0xff]
    %v6353 = vld [vmem:[#allocation2 + $0x348] sm:$0xff]
    %v6354 = vld [vmem:[#allocation2 + $0x350] sm:$0xff]
    %v6355 = vld [vmem:[#allocation2 + $0x358] sm:$0xff]
    %v6356 = vld [vmem:[#allocation2 + $0x360] sm:$0xff]
    %v6357 = vld [vmem:[#allocation2 + $0x368] sm:$0xff]
    %v6358 = vld [vmem:[#allocation2 + $0x370] sm:$0xff]
    %v6359 = vld [vmem:[#allocation2 + $0x378] sm:$0xff]
    %v6360 = vld [vmem:[#allocation2 + $0x80] sm:$0xff]
    %v6361 = vld [vmem:[#allocation2 + $0x88] sm:$0xff]
    %v6362 = vld [vmem:[#allocation2 + $0x90] sm:$0xff]
    %v6363 = vld [vmem:[#allocation2 + $0x98] sm:$0xff]
    %v6364 = vld [vmem:[#allocation2 + $0xa0] sm:$0xff]
    %v6365 = vld [vmem:[#allocation2 + $0xa8] sm:$0xff]
    %v6366 = vld [vmem:[#allocation2 + $0xb0] sm:$0xff]
    %v6367 = vld [vmem:[#allocation2 + $0xb8] sm:$0xff]
    %v6368 = vsel %vm1436, %v6352, %v6360
    %v6369 = vsel %vm1437, %v6353, %v6361
    %v6370 = vsel %vm1438, %v6354, %v6362
    %v6371 = vsel %vm1439, %v6355, %v6363
    %v6372 = vsel %vm1440, %v6356, %v6364
    %v6373 = vsel %vm1441, %v6357, %v6365
    %v6374 = vsel %vm1442, %v6358, %v6366
    %v6375 = vsel %vm1443, %v6359, %v6367
    %6376 = vmatprep.subr.mxu0 %v1451
    %6377 = vmatpush1.msra.mxu0 %v1450
    %6378 = vmatprep.subr.mxu0 %v1459
    %6379 = vmatpush1.msra.mxu0 %v1458
    %6380 = vmatprep.subr.mxu0 %v1467
    %6381 = vmatpush1.msra.mxu0 %v1466
    %6382 = vmatprep.subr.mxu0 %v1475
    %6383 = vmatpush1.msra.mxu0 %v1474
    %6384 = vmatprep.subr.mxu0 %v1483
    %6385 = vmatpush1.msra.mxu0 %v1482
    %6386 = vmatprep.subr.mxu0 %v1491
    %6387 = vmatpush1.msra.mxu0 %v1490
    %6388 = vmatprep.subr.mxu0 %v1499
    %6389 = vmatpush1.msra.mxu0 %v1498
    %6390 = vmatprep.subr.mxu0 %v1507
    %6391 = vmatpush1.msra.mxu0 %v1506
    %6392 = vmatprep.subr.mxu0 %v1515
    %6393 = vmatpush1.msra.mxu0 %v1514
    %6394 = vmatprep.subr.mxu0 %v1523
    %6395 = vmatpush1.msra.mxu0 %v1522
    %6396 = vmatprep.subr.mxu0 %v1531
    %6397 = vmatpush1.msra.mxu0 %v1530
    %6398 = vmatprep.subr.mxu0 %v1539
    %6399 = vmatpush1.msra.mxu0 %v1538
    %6400 = vmatprep.subr.mxu0 %v1547
    %6401 = vmatpush1.msra.mxu0 %v1546
    %6402 = vmatprep.subr.mxu0 %v1555
    %6403 = vmatpush1.msra.mxu0 %v1554
    %6404 = vmatprep.subr.mxu0 %v1563
    %6405 = vmatpush1.msra.mxu0 %v1562
    %6406 = vmatprep.subr.mxu0 %v1571
    %6407 = vmatpush1.msra.mxu0 %v1570
    %6408 = vmatprep.subr.mxu0 %v1579
    %6409 = vmatpush1.msra.mxu0 %v1578
    %6410 = vmatprep.subr.mxu0 %v1587
    %6411 = vmatpush1.msra.mxu0 %v1586
    %6412 = vmatprep.subr.mxu0 %v1595
    %6413 = vmatpush1.msra.mxu0 %v1594
    %6414 = vmatprep.subr.mxu0 %v1603
    %6415 = vmatpush1.msra.mxu0 %v1602
    %6416 = vmatprep.subr.mxu0 %v1611
    %6417 = vmatpush1.msra.mxu0 %v1610
    %6418 = vmatprep.subr.mxu0 %v1619
    %6419 = vmatpush1.msra.mxu0 %v1618
    %6420 = vmatprep.subr.mxu0 %v1627
    %6421 = vmatpush1.msra.mxu0 %v1626
    %6422 = vmatprep.subr.mxu0 %v1635
    %6423 = vmatpush1.msra.mxu0 %v1634
    %6424 = vmatprep.subr.mxu0 %v1643
    %6425 = vmatpush1.msra.mxu0 %v1642
    %6426 = vmatprep.subr.mxu0 %v1651
    %6427 = vmatpush1.msra.mxu0 %v1650
    %6428 = vmatprep.subr.mxu0 %v1659
    %6429 = vmatpush1.msra.mxu0 %v1658
    %6430 = vmatprep.subr.mxu0 %v1667
    %6431 = vmatpush1.msra.mxu0 %v1666
    %6432 = vmatprep.subr.mxu0 %v1675
    %6433 = vmatpush1.msra.mxu0 %v1674
    %6434 = vmatprep.subr.mxu0 %v1683
    %6435 = vmatpush1.msra.mxu0 %v1682
    %6436 = vmatprep.subr.mxu0 %v1691
    %6437 = vmatpush1.msra.mxu0 %v1690
    %6438 = vmatprep.subr.mxu0 %v1699
    %6439 = vmatpush1.msra.mxu0 %v1698
    %6440 = vmatprep.mubr.f32.mxu0 %v6349
    %6441 = vmatmul.mubr.f32.gmra.mrb[0].mxu0 %v6348
    %v6442 = vpop.f32.mrb[0].mxu0
    %v6443 = vadd.f32 %v6368, %v6442
    %v6444 = vpop.f32.mrb[0].mxu0
    %v6445 = vadd.f32 %v6369, %v6444
    %6446 = vdwg.mxu0
    %6447 = vmatprep.subr.mxu0 %v1453
    %6448 = vmatpush1.msra.mxu0 %v1452
    %6449 = vmatprep.subr.mxu0 %v1461
    %6450 = vmatpush1.msra.mxu0 %v1460
    %6451 = vmatprep.subr.mxu0 %v1469
    %6452 = vmatpush1.msra.mxu0 %v1468
    %6453 = vmatprep.subr.mxu0 %v1477
    %6454 = vmatpush1.msra.mxu0 %v1476
    %6455 = vmatprep.subr.mxu0 %v1485
    %6456 = vmatpush1.msra.mxu0 %v1484
    %6457 = vmatprep.subr.mxu0 %v1493
    %6458 = vmatpush1.msra.mxu0 %v1492
    %6459 = vmatprep.subr.mxu0 %v1501
    %6460 = vmatpush1.msra.mxu0 %v1500
    %6461 = vmatprep.subr.mxu0 %v1509
    %6462 = vmatpush1.msra.mxu0 %v1508
    %6463 = vmatprep.subr.mxu0 %v1517
    %6464 = vmatpush1.msra.mxu0 %v1516
    %6465 = vmatprep.subr.mxu0 %v1525
    %6466 = vmatpush1.msra.mxu0 %v1524
    %6467 = vmatprep.subr.mxu0 %v1533
    %6468 = vmatpush1.msra.mxu0 %v1532
    %6469 = vmatprep.subr.mxu0 %v1541
    %6470 = vmatpush1.msra.mxu0 %v1540
    %6471 = vmatprep.subr.mxu0 %v1549
    %6472 = vmatpush1.msra.mxu0 %v1548
    %6473 = vmatprep.subr.mxu0 %v1557
    %6474 = vmatpush1.msra.mxu0 %v1556
    %6475 = vmatprep.subr.mxu0 %v1565
    %6476 = vmatpush1.msra.mxu0 %v1564
    %6477 = vmatprep.subr.mxu0 %v1573
    %6478 = vmatpush1.msra.mxu0 %v1572
    %6479 = vmatprep.subr.mxu0 %v1581
    %6480 = vmatpush1.msra.mxu0 %v1580
    %6481 = vmatprep.subr.mxu0 %v1589
    %6482 = vmatpush1.msra.mxu0 %v1588
    %6483 = vmatprep.subr.mxu0 %v1597
    %6484 = vmatpush1.msra.mxu0 %v1596
    %6485 = vmatprep.subr.mxu0 %v1605
    %6486 = vmatpush1.msra.mxu0 %v1604
    %6487 = vmatprep.subr.mxu0 %v1613
    %6488 = vmatpush1.msra.mxu0 %v1612
    %6489 = vmatprep.subr.mxu0 %v1621
    %6490 = vmatpush1.msra.mxu0 %v1620
    %6491 = vmatprep.subr.mxu0 %v1629
    %6492 = vmatpush1.msra.mxu0 %v1628
    %6493 = vmatprep.subr.mxu0 %v1637
    %6494 = vmatpush1.msra.mxu0 %v1636
    %6495 = vmatprep.subr.mxu0 %v1645
    %6496 = vmatpush1.msra.mxu0 %v1644
    %6497 = vmatprep.subr.mxu0 %v1653
    %6498 = vmatpush1.msra.mxu0 %v1652
    %6499 = vmatprep.subr.mxu0 %v1661
    %6500 = vmatpush1.msra.mxu0 %v1660
    %6501 = vmatprep.subr.mxu0 %v1669
    %6502 = vmatpush1.msra.mxu0 %v1668
    %6503 = vmatprep.subr.mxu0 %v1677
    %6504 = vmatpush1.msra.mxu0 %v1676
    %6505 = vmatprep.subr.mxu0 %v1685
    %6506 = vmatpush1.msra.mxu0 %v1684
    %6507 = vmatprep.subr.mxu0 %v1693
    %6508 = vmatpush1.msra.mxu0 %v1692
    %6509 = vmatprep.subr.mxu0 %v1701
    %6510 = vmatpush1.msra.mxu0 %v1700
    %6511 = vmatprep.mubr.f32.mxu0 %v6349
    %6512 = vmatmul.mubr.f32.gmra.mrb[0].mxu0 %v6348
    %v6513 = vpop.f32.mrb[0].mxu0
    %v6514 = vadd.f32 %v6370, %v6513
    %v6515 = vpop.f32.mrb[0].mxu0
    %v6516 = vadd.f32 %v6371, %v6515
    %6517 = vdwg.mxu0
    %6518 = vmatprep.subr.mxu0 %v1455
    %6519 = vmatpush1.msra.mxu0 %v1454
    %6520 = vmatprep.subr.mxu0 %v1463
    %6521 = vmatpush1.msra.mxu0 %v1462
    %6522 = vmatprep.subr.mxu0 %v1471
    %6523 = vmatpush1.msra.mxu0 %v1470
    %6524 = vmatprep.subr.mxu0 %v1479
    %6525 = vmatpush1.msra.mxu0 %v1478
    %6526 = vmatprep.subr.mxu0 %v1487
    %6527 = vmatpush1.msra.mxu0 %v1486
    %6528 = vmatprep.subr.mxu0 %v1495
    %6529 = vmatpush1.msra.mxu0 %v1494
    %6530 = vmatprep.subr.mxu0 %v1503
    %6531 = vmatpush1.msra.mxu0 %v1502
    %6532 = vmatprep.subr.mxu0 %v1511
    %6533 = vmatpush1.msra.mxu0 %v1510
    %6534 = vmatprep.subr.mxu0 %v1519
    %6535 = vmatpush1.msra.mxu0 %v1518
    %6536 = vmatprep.subr.mxu0 %v1527
    %6537 = vmatpush1.msra.mxu0 %v1526
    %6538 = vmatprep.subr.mxu0 %v1535
    %6539 = vmatpush1.msra.mxu0 %v1534
    %6540 = vmatprep.subr.mxu0 %v1543
    %6541 = vmatpush1.msra.mxu0 %v1542
    %6542 = vmatprep.subr.mxu0 %v1551
    %6543 = vmatpush1.msra.mxu0 %v1550
    %6544 = vmatprep.subr.mxu0 %v1559
    %6545 = vmatpush1.msra.mxu0 %v1558
    %6546 = vmatprep.subr.mxu0 %v1567
    %6547 = vmatpush1.msra.mxu0 %v1566
    %6548 = vmatprep.subr.mxu0 %v1575
    %6549 = vmatpush1.msra.mxu0 %v1574
    %6550 = vmatprep.subr.mxu0 %v1583
    %6551 = vmatpush1.msra.mxu0 %v1582
    %6552 = vmatprep.subr.mxu0 %v1591
    %6553 = vmatpush1.msra.mxu0 %v1590
    %6554 = vmatprep.subr.mxu0 %v1599
    %6555 = vmatpush1.msra.mxu0 %v1598
    %6556 = vmatprep.subr.mxu0 %v1607
    %6557 = vmatpush1.msra.mxu0 %v1606
    %6558 = vmatprep.subr.mxu0 %v1615
    %6559 = vmatpush1.msra.mxu0 %v1614
    %6560 = vmatprep.subr.mxu0 %v1623
    %6561 = vmatpush1.msra.mxu0 %v1622
    %6562 = vmatprep.subr.mxu0 %v1631
    %6563 = vmatpush1.msra.mxu0 %v1630
    %6564 = vmatprep.subr.mxu0 %v1639
    %6565 = vmatpush1.msra.mxu0 %v1638
    %6566 = vmatprep.subr.mxu0 %v1647
    %6567 = vmatpush1.msra.mxu0 %v1646
    %6568 = vmatprep.subr.mxu0 %v1655
    %6569 = vmatpush1.msra.mxu0 %v1654
    %6570 = vmatprep.subr.mxu0 %v1663
    %6571 = vmatpush1.msra.mxu0 %v1662
    %6572 = vmatprep.subr.mxu0 %v1671
    %6573 = vmatpush1.msra.mxu0 %v1670
    %6574 = vmatprep.subr.mxu0 %v1679
    %6575 = vmatpush1.msra.mxu0 %v1678
    %6576 = vmatprep.subr.mxu0 %v1687
    %6577 = vmatpush1.msra.mxu0 %v1686
    %6578 = vmatprep.subr.mxu0 %v1695
    %6579 = vmatpush1.msra.mxu0 %v1694
    %6580 = vmatprep.subr.mxu0 %v1703
    %6581 = vmatpush1.msra.mxu0 %v1702
    %6582 = vmatprep.mubr.f32.mxu0 %v6349
    %6583 = vmatmul.mubr.f32.gmra.mrb[0].mxu0 %v6348
    %v6584 = vpop.f32.mrb[0].mxu0
    %v6585 = vadd.f32 %v6372, %v6584
    %v6586 = vpop.f32.mrb[0].mxu0
    %v6587 = vadd.f32 %v6373, %v6586
    %6588 = vdwg.mxu0
    %6589 = vmatprep.subr.mxu0 %v1457
    %6590 = vmatpush1.msra.mxu0 %v1456
    %6591 = vmatprep.subr.mxu0 %v1465
    %6592 = vmatpush1.msra.mxu0 %v1464
    %6593 = vmatprep.subr.mxu0 %v1473
    %6594 = vmatpush1.msra.mxu0 %v1472
    %6595 = vmatprep.subr.mxu0 %v1481
    %6596 = vmatpush1.msra.mxu0 %v1480
    %6597 = vmatprep.subr.mxu0 %v1489
    %6598 = vmatpush1.msra.mxu0 %v1488
    %6599 = vmatprep.subr.mxu0 %v1497
    %6600 = vmatpush1.msra.mxu0 %v1496
    %6601 = vmatprep.subr.mxu0 %v1505
    %6602 = vmatpush1.msra.mxu0 %v1504
    %6603 = vmatprep.subr.mxu0 %v1513
    %6604 = vmatpush1.msra.mxu0 %v1512
    %6605 = vmatprep.subr.mxu0 %v1521
    %6606 = vmatpush1.msra.mxu0 %v1520
    %6607 = vmatprep.subr.mxu0 %v1529
    %6608 = vmatpush1.msra.mxu0 %v1528
    %6609 = vmatprep.subr.mxu0 %v1537
    %6610 = vmatpush1.msra.mxu0 %v1536
    %6611 = vmatprep.subr.mxu0 %v1545
    %6612 = vmatpush1.msra.mxu0 %v1544
    %6613 = vmatprep.subr.mxu0 %v1553
    %6614 = vmatpush1.msra.mxu0 %v1552
    %6615 = vmatprep.subr.mxu0 %v1561
    %6616 = vmatpush1.msra.mxu0 %v1560
    %6617 = vmatprep.subr.mxu0 %v1569
    %6618 = vmatpush1.msra.mxu0 %v1568
    %6619 = vmatprep.subr.mxu0 %v1577
    %6620 = vmatpush1.msra.mxu0 %v1576
    %6621 = vmatprep.subr.mxu0 %v1585
    %6622 = vmatpush1.msra.mxu0 %v1584
    %6623 = vmatprep.subr.mxu0 %v1593
    %6624 = vmatpush1.msra.mxu0 %v1592
    %6625 = vmatprep.subr.mxu0 %v1601
    %6626 = vmatpush1.msra.mxu0 %v1600
    %6627 = vmatprep.subr.mxu0 %v1609
    %6628 = vmatpush1.msra.mxu0 %v1608
    %6629 = vmatprep.subr.mxu0 %v1617
    %6630 = vmatpush1.msra.mxu0 %v1616
    %6631 = vmatprep.subr.mxu0 %v1625
    %6632 = vmatpush1.msra.mxu0 %v1624
    %6633 = vmatprep.subr.mxu0 %v1633
    %6634 = vmatpush1.msra.mxu0 %v1632
    %6635 = vmatprep.subr.mxu0 %v1641
    %6636 = vmatpush1.msra.mxu0 %v1640
    %6637 = vmatprep.subr.mxu0 %v1649
    %6638 = vmatpush1.msra.mxu0 %v1648
    %6639 = vmatprep.subr.mxu0 %v1657
    %6640 = vmatpush1.msra.mxu0 %v1656
    %6641 = vmatprep.subr.mxu0 %v1665
    %6642 = vmatpush1.msra.mxu0 %v1664
    %6643 = vmatprep.subr.mxu0 %v1673
    %6644 = vmatpush1.msra.mxu0 %v1672
    %6645 = vmatprep.subr.mxu0 %v1681
    %6646 = vmatpush1.msra.mxu0 %v1680
    %6647 = vmatprep.subr.mxu0 %v1689
    %6648 = vmatpush1.msra.mxu0 %v1688
    %6649 = vmatprep.subr.mxu0 %v1697
    %6650 = vmatpush1.msra.mxu0 %v1696
    %6651 = vmatprep.subr.mxu0 %v1705
    %6652 = vmatpush1.msra.mxu0 %v1704
    %6653 = vmatprep.mubr.f32.mxu0 %v6349
    %6654 = vmatmul.mubr.f32.gmra.mrb[0].mxu0 %v6348
    %v6655 = vpop.f32.mrb[0].mxu0
    %v6656 = vadd.f32 %v6374, %v6655
    %v6657 = vpop.f32.mrb[0].mxu0
    %v6658 = vadd.f32 %v6375, %v6657
    %6659 = vdwg.mxu0
    %v6660 = vmul.f32 %v6443, 0.5
    %v6661 = vmul.f32 %v6445, 0.5
    %v6662 = vtanh.pop %v6660
    %v6663 = vtanh.pop %v6661
    %v6664 = vadd.f32 %v6662, 1.0
    %v6665 = vadd.f32 %v6663, 1.0
    %v6666 = vmul.f32 %v6664, 0.5
    %v6667 = vmul.f32 %v6665, 0.5
    %v6668 = vmul.f32 %v6514, 0.5
    %v6669 = vmul.f32 %v6516, 0.5
    %v6670 = vtanh.pop %v6668
    %v6671 = vtanh.pop %v6669
    %v6672 = vadd.f32 %v6670, 1.0
    %v6673 = vadd.f32 %v6671, 1.0
    %v6674 = vmul.f32 %v6672, 0.5
    %v6675 = vmul.f32 %v6673, 0.5
    %v6676 = vtanh.pop %v6585
    %v6677 = vtanh.pop %v6587
    %v6678 = vmul.f32 %v6656, 0.5
    %v6679 = vmul.f32 %v6658, 0.5
    %v6680 = vtanh.pop %v6678
    %v6681 = vtanh.pop %v6679
    %v6682 = vadd.f32 %v6680, 1.0
    %v6683 = vadd.f32 %v6681, 1.0
    %v6684 = vmul.f32 %v6682, 0.5
    %v6685 = vmul.f32 %v6683, 0.5
    %v6686 = vmul.f32 %v6674, %v6350
    %v6687 = vmul.f32 %v6675, %v6351
    %v6688 = vmul.f32 %v6666, %v6676
    %v6689 = vmul.f32 %v6667, %v6677
    %v6690 = vadd.f32 %v6686, %v6688
    %v6691 = vadd.f32 %v6687, %v6689
    %v6692 = vtanh.pop %v6690
    %v6693 = vtanh.pop %v6691
    %v6694 = vmul.f32 %v6684, %v6692
    %v6695 = vmul.f32 %v6685, %v6693
    %v6696 = vsel %vm1444, 13, 2
    %v6697 = vsel %vm1445, 13, 2
    %vm6698 = vcmp.gt.s32.totalorder %v1449, %v6696
    %vm6699 = vcmp.gt.s32.totalorder %v1449, %v6697
    %v6700 = vsel %vm6698, %v6694, 0.0
    %v6701 = vsel %vm6699, %v6695, 0.0
    %v6702 = vld [vmem:[#allocation15 + $0x68] sm:$0xff]
    %v6703 = vadd.f32 %v6702, %v6700
    %6704 = vst [vmem:[#allocation15 + $0x68] sm:$0xff] %v6703
    %v6705 = vld [vmem:[#allocation15 + $0x10] sm:$0xff]
    %v6706 = vadd.f32 %v6705, %v6701
    %6707 = vst [vmem:[#allocation15 + $0x10] sm:$0xff] %v6706
    %v6708 = vsel %vm6698, %v6694, %v6348
    %v6709 = vsel %vm6699, %v6695, %v6349
    %v6710 = vsel %vm6698, %v6690, %v6350
    %v6711 = vsel %vm6699, %v6691, %v6351
    %v6712 = vld [vmem:[#allocation2 + $0x380] sm:$0xff]
    %v6713 = vld [vmem:[#allocation2 + $0x388] sm:$0xff]
    %v6714 = vld [vmem:[#allocation2 + $0x390] sm:$0xff]
    %v6715 = vld [vmem:[#allocation2 + $0x398] sm:$0xff]
    %v6716 = vld [vmem:[#allocation2 + $0x3a0] sm:$0xff]
    %v6717 = vld [vmem:[#allocation2 + $0x3a8] sm:$0xff]
    %v6718 = vld [vmem:[#allocation2 + $0x3b0] sm:$0xff]
    %v6719 = vld [vmem:[#allocation2 + $0x3b8] sm:$0xff]
    %v6720 = vld [vmem:[#allocation2 + $0x40] sm:$0xff]
    %v6721 = vld [vmem:[#allocation2 + $0x48] sm:$0xff]
    %v6722 = vld [vmem:[#allocation2 + $0x50] sm:$0xff]
    %v6723 = vld [vmem:[#allocation2 + $0x58] sm:$0xff]
    %v6724 = vld [vmem:[#allocation2 + $0x60] sm:$0xff]
    %v6725 = vld [vmem:[#allocation2 + $0x68] sm:$0xff]
    %v6726 = vld [vmem:[#allocation2 + $0x70] sm:$0xff]
    %v6727 = vld [vmem:[#allocation2 + $0x78] sm:$0xff]
    %v6728 = vsel %vm1436, %v6712, %v6720
    %v6729 = vsel %vm1437, %v6713, %v6721
    %v6730 = vsel %vm1438, %v6714, %v6722
    %v6731 = vsel %vm1439, %v6715, %v6723
    %v6732 = vsel %vm1440, %v6716, %v6724
    %v6733 = vsel %vm1441, %v6717, %v6725
    %v6734 = vsel %vm1442, %v6718, %v6726
    %v6735 = vsel %vm1443, %v6719, %v6727
    %6736 = vmatprep.subr.mxu0 %v1451
    %6737 = vmatpush1.msra.mxu0 %v1450
    %6738 = vmatprep.subr.mxu0 %v1459
    %6739 = vmatpush1.msra.mxu0 %v1458
    %6740 = vmatprep.subr.mxu0 %v1467
    %6741 = vmatpush1.msra.mxu0 %v1466
    %6742 = vmatprep.subr.mxu0 %v1475
    %6743 = vmatpush1.msra.mxu0 %v1474
    %6744 = vmatprep.subr.mxu0 %v1483
    %6745 = vmatpush1.msra.mxu0 %v1482
    %6746 = vmatprep.subr.mxu0 %v1491
    %6747 = vmatpush1.msra.mxu0 %v1490
    %6748 = vmatprep.subr.mxu0 %v1499
    %6749 = vmatpush1.msra.mxu0 %v1498
    %6750 = vmatprep.subr.mxu0 %v1507
    %6751 = vmatpush1.msra.mxu0 %v1506
    %6752 = vmatprep.subr.mxu0 %v1515
    %6753 = vmatpush1.msra.mxu0 %v1514
    %6754 = vmatprep.subr.mxu0 %v1523
    %6755 = vmatpush1.msra.mxu0 %v1522
    %6756 = vmatprep.subr.mxu0 %v1531
    %6757 = vmatpush1.msra.mxu0 %v1530
    %6758 = vmatprep.subr.mxu0 %v1539
    %6759 = vmatpush1.msra.mxu0 %v1538
    %6760 = vmatprep.subr.mxu0 %v1547
    %6761 = vmatpush1.msra.mxu0 %v1546
    %6762 = vmatprep.subr.mxu0 %v1555
    %6763 = vmatpush1.msra.mxu0 %v1554
    %6764 = vmatprep.subr.mxu0 %v1563
    %6765 = vmatpush1.msra.mxu0 %v1562
    %6766 = vmatprep.subr.mxu0 %v1571
    %6767 = vmatpush1.msra.mxu0 %v1570
    %6768 = vmatprep.subr.mxu0 %v1579
    %6769 = vmatpush1.msra.mxu0 %v1578
    %6770 = vmatprep.subr.mxu0 %v1587
    %6771 = vmatpush1.msra.mxu0 %v1586
    %6772 = vmatprep.subr.mxu0 %v1595
    %6773 = vmatpush1.msra.mxu0 %v1594
    %6774 = vmatprep.subr.mxu0 %v1603
    %6775 = vmatpush1.msra.mxu0 %v1602
    %6776 = vmatprep.subr.mxu0 %v1611
    %6777 = vmatpush1.msra.mxu0 %v1610
    %6778 = vmatprep.subr.mxu0 %v1619
    %6779 = vmatpush1.msra.mxu0 %v1618
    %6780 = vmatprep.subr.mxu0 %v1627
    %6781 = vmatpush1.msra.mxu0 %v1626
    %6782 = vmatprep.subr.mxu0 %v1635
    %6783 = vmatpush1.msra.mxu0 %v1634
    %6784 = vmatprep.subr.mxu0 %v1643
    %6785 = vmatpush1.msra.mxu0 %v1642
    %6786 = vmatprep.subr.mxu0 %v1651
    %6787 = vmatpush1.msra.mxu0 %v1650
    %6788 = vmatprep.subr.mxu0 %v1659
    %6789 = vmatpush1.msra.mxu0 %v1658
    %6790 = vmatprep.subr.mxu0 %v1667
    %6791 = vmatpush1.msra.mxu0 %v1666
    %6792 = vmatprep.subr.mxu0 %v1675
    %6793 = vmatpush1.msra.mxu0 %v1674
    %6794 = vmatprep.subr.mxu0 %v1683
    %6795 = vmatpush1.msra.mxu0 %v1682
    %6796 = vmatprep.subr.mxu0 %v1691
    %6797 = vmatpush1.msra.mxu0 %v1690
    %6798 = vmatprep.subr.mxu0 %v1699
    %6799 = vmatpush1.msra.mxu0 %v1698
    %6800 = vmatprep.mubr.f32.mxu0 %v6709
    %6801 = vmatmul.mubr.f32.gmra.mrb[0].mxu0 %v6708
    %v6802 = vpop.f32.mrb[0].mxu0
    %v6803 = vadd.f32 %v6728, %v6802
    %v6804 = vpop.f32.mrb[0].mxu0
    %v6805 = vadd.f32 %v6729, %v6804
    %6806 = vdwg.mxu0
    %6807 = vmatprep.subr.mxu0 %v1453
    %6808 = vmatpush1.msra.mxu0 %v1452
    %6809 = vmatprep.subr.mxu0 %v1461
    %6810 = vmatpush1.msra.mxu0 %v1460
    %6811 = vmatprep.subr.mxu0 %v1469
    %6812 = vmatpush1.msra.mxu0 %v1468
    %6813 = vmatprep.subr.mxu0 %v1477
    %6814 = vmatpush1.msra.mxu0 %v1476
    %6815 = vmatprep.subr.mxu0 %v1485
    %6816 = vmatpush1.msra.mxu0 %v1484
    %6817 = vmatprep.subr.mxu0 %v1493
    %6818 = vmatpush1.msra.mxu0 %v1492
    %6819 = vmatprep.subr.mxu0 %v1501
    %6820 = vmatpush1.msra.mxu0 %v1500
    %6821 = vmatprep.subr.mxu0 %v1509
    %6822 = vmatpush1.msra.mxu0 %v1508
    %6823 = vmatprep.subr.mxu0 %v1517
    %6824 = vmatpush1.msra.mxu0 %v1516
    %6825 = vmatprep.subr.mxu0 %v1525
    %6826 = vmatpush1.msra.mxu0 %v1524
    %6827 = vmatprep.subr.mxu0 %v1533
    %6828 = vmatpush1.msra.mxu0 %v1532
    %6829 = vmatprep.subr.mxu0 %v1541
    %6830 = vmatpush1.msra.mxu0 %v1540
    %6831 = vmatprep.subr.mxu0 %v1549
    %6832 = vmatpush1.msra.mxu0 %v1548
    %6833 = vmatprep.subr.mxu0 %v1557
    %6834 = vmatpush1.msra.mxu0 %v1556
    %6835 = vmatprep.subr.mxu0 %v1565
    %6836 = vmatpush1.msra.mxu0 %v1564
    %6837 = vmatprep.subr.mxu0 %v1573
    %6838 = vmatpush1.msra.mxu0 %v1572
    %6839 = vmatprep.subr.mxu0 %v1581
    %6840 = vmatpush1.msra.mxu0 %v1580
    %6841 = vmatprep.subr.mxu0 %v1589
    %6842 = vmatpush1.msra.mxu0 %v1588
    %6843 = vmatprep.subr.mxu0 %v1597
    %6844 = vmatpush1.msra.mxu0 %v1596
    %6845 = vmatprep.subr.mxu0 %v1605
    %6846 = vmatpush1.msra.mxu0 %v1604
    %6847 = vmatprep.subr.mxu0 %v1613
    %6848 = vmatpush1.msra.mxu0 %v1612
    %6849 = vmatprep.subr.mxu0 %v1621
    %6850 = vmatpush1.msra.mxu0 %v1620
    %6851 = vmatprep.subr.mxu0 %v1629
    %6852 = vmatpush1.msra.mxu0 %v1628
    %6853 = vmatprep.subr.mxu0 %v1637
    %6854 = vmatpush1.msra.mxu0 %v1636
    %6855 = vmatprep.subr.mxu0 %v1645
    %6856 = vmatpush1.msra.mxu0 %v1644
    %6857 = vmatprep.subr.mxu0 %v1653
    %6858 = vmatpush1.msra.mxu0 %v1652
    %6859 = vmatprep.subr.mxu0 %v1661
    %6860 = vmatpush1.msra.mxu0 %v1660
    %6861 = vmatprep.subr.mxu0 %v1669
    %6862 = vmatpush1.msra.mxu0 %v1668
    %6863 = vmatprep.subr.mxu0 %v1677
    %6864 = vmatpush1.msra.mxu0 %v1676
    %6865 = vmatprep.subr.mxu0 %v1685
    %6866 = vmatpush1.msra.mxu0 %v1684
    %6867 = vmatprep.subr.mxu0 %v1693
    %6868 = vmatpush1.msra.mxu0 %v1692
    %6869 = vmatprep.subr.mxu0 %v1701
    %6870 = vmatpush1.msra.mxu0 %v1700
    %6871 = vmatprep.mubr.f32.mxu0 %v6709
    %6872 = vmatmul.mubr.f32.gmra.mrb[0].mxu0 %v6708
    %v6873 = vpop.f32.mrb[0].mxu0
    %v6874 = vadd.f32 %v6730, %v6873
    %v6875 = vpop.f32.mrb[0].mxu0
    %v6876 = vadd.f32 %v6731, %v6875
    %6877 = vdwg.mxu0
    %6878 = vmatprep.subr.mxu0 %v1455
    %6879 = vmatpush1.msra.mxu0 %v1454
    %6880 = vmatprep.subr.mxu0 %v1463
    %6881 = vmatpush1.msra.mxu0 %v1462
    %6882 = vmatprep.subr.mxu0 %v1471
    %6883 = vmatpush1.msra.mxu0 %v1470
    %6884 = vmatprep.subr.mxu0 %v1479
    %6885 = vmatpush1.msra.mxu0 %v1478
    %6886 = vmatprep.subr.mxu0 %v1487
    %6887 = vmatpush1.msra.mxu0 %v1486
    %6888 = vmatprep.subr.mxu0 %v1495
    %6889 = vmatpush1.msra.mxu0 %v1494
    %6890 = vmatprep.subr.mxu0 %v1503
    %6891 = vmatpush1.msra.mxu0 %v1502
    %6892 = vmatprep.subr.mxu0 %v1511
    %6893 = vmatpush1.msra.mxu0 %v1510
    %6894 = vmatprep.subr.mxu0 %v1519
    %6895 = vmatpush1.msra.mxu0 %v1518
    %6896 = vmatprep.subr.mxu0 %v1527
    %6897 = vmatpush1.msra.mxu0 %v1526
    %6898 = vmatprep.subr.mxu0 %v1535
    %6899 = vmatpush1.msra.mxu0 %v1534
    %6900 = vmatprep.subr.mxu0 %v1543
    %6901 = vmatpush1.msra.mxu0 %v1542
    %6902 = vmatprep.subr.mxu0 %v1551
    %6903 = vmatpush1.msra.mxu0 %v1550
    %6904 = vmatprep.subr.mxu0 %v1559
    %6905 = vmatpush1.msra.mxu0 %v1558
    %6906 = vmatprep.subr.mxu0 %v1567
    %6907 = vmatpush1.msra.mxu0 %v1566
    %6908 = vmatprep.subr.mxu0 %v1575
    %6909 = vmatpush1.msra.mxu0 %v1574
    %6910 = vmatprep.subr.mxu0 %v1583
    %6911 = vmatpush1.msra.mxu0 %v1582
    %6912 = vmatprep.subr.mxu0 %v1591
    %6913 = vmatpush1.msra.mxu0 %v1590
    %6914 = vmatprep.subr.mxu0 %v1599
    %6915 = vmatpush1.msra.mxu0 %v1598
    %6916 = vmatprep.subr.mxu0 %v1607
    %6917 = vmatpush1.msra.mxu0 %v1606
    %6918 = vmatprep.subr.mxu0 %v1615
    %6919 = vmatpush1.msra.mxu0 %v1614
    %6920 = vmatprep.subr.mxu0 %v1623
    %6921 = vmatpush1.msra.mxu0 %v1622
    %6922 = vmatprep.subr.mxu0 %v1631
    %6923 = vmatpush1.msra.mxu0 %v1630
    %6924 = vmatprep.subr.mxu0 %v1639
    %6925 = vmatpush1.msra.mxu0 %v1638
    %6926 = vmatprep.subr.mxu0 %v1647
    %6927 = vmatpush1.msra.mxu0 %v1646
    %6928 = vmatprep.subr.mxu0 %v1655
    %6929 = vmatpush1.msra.mxu0 %v1654
    %6930 = vmatprep.subr.mxu0 %v1663
    %6931 = vmatpush1.msra.mxu0 %v1662
    %6932 = vmatprep.subr.mxu0 %v1671
    %6933 = vmatpush1.msra.mxu0 %v1670
    %6934 = vmatprep.subr.mxu0 %v1679
    %6935 = vmatpush1.msra.mxu0 %v1678
    %6936 = vmatprep.subr.mxu0 %v1687
    %6937 = vmatpush1.msra.mxu0 %v1686
    %6938 = vmatprep.subr.mxu0 %v1695
    %6939 = vmatpush1.msra.mxu0 %v1694
    %6940 = vmatprep.subr.mxu0 %v1703
    %6941 = vmatpush1.msra.mxu0 %v1702
    %6942 = vmatprep.mubr.f32.mxu0 %v6709
    %6943 = vmatmul.mubr.f32.gmra.mrb[0].mxu0 %v6708
    %v6944 = vpop.f32.mrb[0].mxu0
    %v6945 = vadd.f32 %v6732, %v6944
    %v6946 = vpop.f32.mrb[0].mxu0
    %v6947 = vadd.f32 %v6733, %v6946
    %6948 = vdwg.mxu0
    %6949 = vmatprep.subr.mxu0 %v1457
    %6950 = vmatpush1.msra.mxu0 %v1456
    %6951 = vmatprep.subr.mxu0 %v1465
    %6952 = vmatpush1.msra.mxu0 %v1464
    %6953 = vmatprep.subr.mxu0 %v1473
    %6954 = vmatpush1.msra.mxu0 %v1472
    %6955 = vmatprep.subr.mxu0 %v1481
    %6956 = vmatpush1.msra.mxu0 %v1480
    %6957 = vmatprep.subr.mxu0 %v1489
    %6958 = vmatpush1.msra.mxu0 %v1488
    %6959 = vmatprep.subr.mxu0 %v1497
    %6960 = vmatpush1.msra.mxu0 %v1496
    %6961 = vmatprep.subr.mxu0 %v1505
    %6962 = vmatpush1.msra.mxu0 %v1504
    %6963 = vmatprep.subr.mxu0 %v1513
    %6964 = vmatpush1.msra.mxu0 %v1512
    %6965 = vmatprep.subr.mxu0 %v1521
    %6966 = vmatpush1.msra.mxu0 %v1520
    %6967 = vmatprep.subr.mxu0 %v1529
    %6968 = vmatpush1.msra.mxu0 %v1528
    %6969 = vmatprep.subr.mxu0 %v1537
    %6970 = vmatpush1.msra.mxu0 %v1536
    %6971 = vmatprep.subr.mxu0 %v1545
    %6972 = vmatpush1.msra.mxu0 %v1544
    %6973 = vmatprep.subr.mxu0 %v1553
    %6974 = vmatpush1.msra.mxu0 %v1552
    %6975 = vmatprep.subr.mxu0 %v1561
    %6976 = vmatpush1.msra.mxu0 %v1560
    %6977 = vmatprep.subr.mxu0 %v1569
    %6978 = vmatpush1.msra.mxu0 %v1568
    %6979 = vmatprep.subr.mxu0 %v1577
    %6980 = vmatpush1.msra.mxu0 %v1576
    %6981 = vmatprep.subr.mxu0 %v1585
    %6982 = vmatpush1.msra.mxu0 %v1584
    %6983 = vmatprep.subr.mxu0 %v1593
    %6984 = vmatpush1.msra.mxu0 %v1592
    %6985 = vmatprep.subr.mxu0 %v1601
    %6986 = vmatpush1.msra.mxu0 %v1600
    %6987 = vmatprep.subr.mxu0 %v1609
    %6988 = vmatpush1.msra.mxu0 %v1608
    %6989 = vmatprep.subr.mxu0 %v1617
    %6990 = vmatpush1.msra.mxu0 %v1616
    %6991 = vmatprep.subr.mxu0 %v1625
    %6992 = vmatpush1.msra.mxu0 %v1624
    %6993 = vmatprep.subr.mxu0 %v1633
    %6994 = vmatpush1.msra.mxu0 %v1632
    %6995 = vmatprep.subr.mxu0 %v1641
    %6996 = vmatpush1.msra.mxu0 %v1640
    %6997 = vmatprep.subr.mxu0 %v1649
    %6998 = vmatpush1.msra.mxu0 %v1648
    %6999 = vmatprep.subr.mxu0 %v1657
    %7000 = vmatpush1.msra.mxu0 %v1656
    %7001 = vmatprep.subr.mxu0 %v1665
    %7002 = vmatpush1.msra.mxu0 %v1664
    %7003 = vmatprep.subr.mxu0 %v1673
    %7004 = vmatpush1.msra.mxu0 %v1672
    %7005 = vmatprep.subr.mxu0 %v1681
    %7006 = vmatpush1.msra.mxu0 %v1680
    %7007 = vmatprep.subr.mxu0 %v1689
    %7008 = vmatpush1.msra.mxu0 %v1688
    %7009 = vmatprep.subr.mxu0 %v1697
    %7010 = vmatpush1.msra.mxu0 %v1696
    %7011 = vmatprep.subr.mxu0 %v1705
    %7012 = vmatpush1.msra.mxu0 %v1704
    %7013 = vmatprep.mubr.f32.mxu0 %v6709
    %7014 = vmatmul.mubr.f32.gmra.mrb[0].mxu0 %v6708
    %v7015 = vpop.f32.mrb[0].mxu0
    %v7016 = vadd.f32 %v6734, %v7015
    %v7017 = vpop.f32.mrb[0].mxu0
    %v7018 = vadd.f32 %v6735, %v7017
    %7019 = vdwg.mxu0
    %v7020 = vmul.f32 %v6803, 0.5
    %v7021 = vmul.f32 %v6805, 0.5
    %v7022 = vtanh.pop %v7020
    %v7023 = vtanh.pop %v7021
    %v7024 = vadd.f32 %v7022, 1.0
    %v7025 = vadd.f32 %v7023, 1.0
    %v7026 = vmul.f32 %v7024, 0.5
    %v7027 = vmul.f32 %v7025, 0.5
    %v7028 = vmul.f32 %v6874, 0.5
    %v7029 = vmul.f32 %v6876, 0.5
    %v7030 = vtanh.pop %v7028
    %v7031 = vtanh.pop %v7029
    %v7032 = vadd.f32 %v7030, 1.0
    %v7033 = vadd.f32 %v7031, 1.0
    %v7034 = vmul.f32 %v7032, 0.5
    %v7035 = vmul.f32 %v7033, 0.5
    %v7036 = vtanh.pop %v6945
    %v7037 = vtanh.pop %v6947
    %v7038 = vmul.f32 %v7016, 0.5
    %v7039 = vmul.f32 %v7018, 0.5
    %v7040 = vtanh.pop %v7038
    %v7041 = vtanh.pop %v7039
    %v7042 = vadd.f32 %v7040, 1.0
    %v7043 = vadd.f32 %v7041, 1.0
    %v7044 = vmul.f32 %v7042, 0.5
    %v7045 = vmul.f32 %v7043, 0.5
    %v7046 = vmul.f32 %v7034, %v6710
    %v7047 = vmul.f32 %v7035, %v6711
    %v7048 = vmul.f32 %v7026, %v7036
    %v7049 = vmul.f32 %v7027, %v7037
    %v7050 = vadd.f32 %v7046, %v7048
    %v7051 = vadd.f32 %v7047, %v7049
    %v7052 = vtanh.pop %v7050
    %v7053 = vtanh.pop %v7051
    %v7054 = vmul.f32 %v7044, %v7052
    %v7055 = vmul.f32 %v7045, %v7053
    %v7056 = vsel %vm1444, 14, 1
    %v7057 = vsel %vm1445, 14, 1
    %vm7058 = vcmp.gt.s32.totalorder %v1449, %v7056
    %vm7059 = vcmp.gt.s32.totalorder %v1449, %v7057
    %v7060 = vsel %vm7058, %v7054, 0.0
    %v7061 = vsel %vm7059, %v7055, 0.0
    %v7062 = vld [vmem:[#allocation15 + $0x70] sm:$0xff]
    %v7063 = vadd.f32 %v7062, %v7060
    %7064 = vst [vmem:[#allocation15 + $0x70] sm:$0xff] %v7063
    %v7065 = vld [vmem:[#allocation15 + $0x8] sm:$0xff]
    %v7066 = vadd.f32 %v7065, %v7061
    %7067 = vst [vmem:[#allocation15 + $0x8] sm:$0xff] %v7066
    %v7068 = vsel %vm7058, %v7054, %v6708
    %v7069 = vsel %vm7059, %v7055, %v6709
    %v7070 = vsel %vm7058, %v7050, %v6710
    %v7071 = vsel %vm7059, %v7051, %v6711
    %v7072 = vld [vmem:[#allocation2 + $0x3c0] sm:$0xff]
    %v7073 = vld [vmem:[#allocation2 + $0x3c8] sm:$0xff]
    %v7074 = vld [vmem:[#allocation2 + $0x3d0] sm:$0xff]
    %v7075 = vld [vmem:[#allocation2 + $0x3d8] sm:$0xff]
    %v7076 = vld [vmem:[#allocation2 + $0x3e0] sm:$0xff]
    %v7077 = vld [vmem:[#allocation2 + $0x3e8] sm:$0xff]
    %v7078 = vld [vmem:[#allocation2 + $0x3f0] sm:$0xff]
    %v7079 = vld [vmem:[#allocation2 + $0x3f8] sm:$0xff]
    %v7080 = vld [vmem:[#allocation2] sm:$0xff]
    %v7081 = vld [vmem:[#allocation2 + $0x8] sm:$0xff]
    %v7082 = vld [vmem:[#allocation2 + $0x10] sm:$0xff]
    %v7083 = vld [vmem:[#allocation2 + $0x18] sm:$0xff]
    %v7084 = vld [vmem:[#allocation2 + $0x20] sm:$0xff]
    %v7085 = vld [vmem:[#allocation2 + $0x28] sm:$0xff]
    %v7086 = vld [vmem:[#allocation2 + $0x30] sm:$0xff]
    %v7087 = vld [vmem:[#allocation2 + $0x38] sm:$0xff]
    %v7088 = vsel %vm1436, %v7072, %v7080
    %v7089 = vsel %vm1437, %v7073, %v7081
    %v7090 = vsel %vm1438, %v7074, %v7082
    %v7091 = vsel %vm1439, %v7075, %v7083
    %v7092 = vsel %vm1440, %v7076, %v7084
    %v7093 = vsel %vm1441, %v7077, %v7085
    %v7094 = vsel %vm1442, %v7078, %v7086
    %v7095 = vsel %vm1443, %v7079, %v7087
    %7096 = vmatprep.subr.mxu0 %v1451
    %7097 = vmatpush1.msra.mxu0 %v1450
    %7098 = vmatprep.subr.mxu0 %v1459
    %7099 = vmatpush1.msra.mxu0 %v1458
    %7100 = vmatprep.subr.mxu0 %v1467
    %7101 = vmatpush1.msra.mxu0 %v1466
    %7102 = vmatprep.subr.mxu0 %v1475
    %7103 = vmatpush1.msra.mxu0 %v1474
    %7104 = vmatprep.subr.mxu0 %v1483
    %7105 = vmatpush1.msra.mxu0 %v1482
    %7106 = vmatprep.subr.mxu0 %v1491
    %7107 = vmatpush1.msra.mxu0 %v1490
    %7108 = vmatprep.subr.mxu0 %v1499
    %7109 = vmatpush1.msra.mxu0 %v1498
    %7110 = vmatprep.subr.mxu0 %v1507
    %7111 = vmatpush1.msra.mxu0 %v1506
    %7112 = vmatprep.subr.mxu0 %v1515
    %7113 = vmatpush1.msra.mxu0 %v1514
    %7114 = vmatprep.subr.mxu0 %v1523
    %7115 = vmatpush1.msra.mxu0 %v1522
    %7116 = vmatprep.subr.mxu0 %v1531
    %7117 = vmatpush1.msra.mxu0 %v1530
    %7118 = vmatprep.subr.mxu0 %v1539
    %7119 = vmatpush1.msra.mxu0 %v1538
    %7120 = vmatprep.subr.mxu0 %v1547
    %7121 = vmatpush1.msra.mxu0 %v1546
    %7122 = vmatprep.subr.mxu0 %v1555
    %7123 = vmatpush1.msra.mxu0 %v1554
    %7124 = vmatprep.subr.mxu0 %v1563
    %7125 = vmatpush1.msra.mxu0 %v1562
    %7126 = vmatprep.subr.mxu0 %v1571
    %7127 = vmatpush1.msra.mxu0 %v1570
    %7128 = vmatprep.subr.mxu0 %v1579
    %7129 = vmatpush1.msra.mxu0 %v1578
    %7130 = vmatprep.subr.mxu0 %v1587
    %7131 = vmatpush1.msra.mxu0 %v1586
    %7132 = vmatprep.subr.mxu0 %v1595
    %7133 = vmatpush1.msra.mxu0 %v1594
    %7134 = vmatprep.subr.mxu0 %v1603
    %7135 = vmatpush1.msra.mxu0 %v1602
    %7136 = vmatprep.subr.mxu0 %v1611
    %7137 = vmatpush1.msra.mxu0 %v1610
    %7138 = vmatprep.subr.mxu0 %v1619
    %7139 = vmatpush1.msra.mxu0 %v1618
    %7140 = vmatprep.subr.mxu0 %v1627
    %7141 = vmatpush1.msra.mxu0 %v1626
    %7142 = vmatprep.subr.mxu0 %v1635
    %7143 = vmatpush1.msra.mxu0 %v1634
    %7144 = vmatprep.subr.mxu0 %v1643
    %7145 = vmatpush1.msra.mxu0 %v1642
    %7146 = vmatprep.subr.mxu0 %v1651
    %7147 = vmatpush1.msra.mxu0 %v1650
    %7148 = vmatprep.subr.mxu0 %v1659
    %7149 = vmatpush1.msra.mxu0 %v1658
    %7150 = vmatprep.subr.mxu0 %v1667
    %7151 = vmatpush1.msra.mxu0 %v1666
    %7152 = vmatprep.subr.mxu0 %v1675
    %7153 = vmatpush1.msra.mxu0 %v1674
    %7154 = vmatprep.subr.mxu0 %v1683
    %7155 = vmatpush1.msra.mxu0 %v1682
    %7156 = vmatprep.subr.mxu0 %v1691
    %7157 = vmatpush1.msra.mxu0 %v1690
    %7158 = vmatprep.subr.mxu0 %v1699
    %7159 = vmatpush1.msra.mxu0 %v1698
    %7160 = vmatprep.mubr.f32.mxu0 %v7069
    %7161 = vmatmul.mubr.f32.gmra.mrb[0].mxu0 %v7068
    %v7162 = vpop.f32.mrb[0].mxu0
    %v7163 = vadd.f32 %v7088, %v7162
    %v7164 = vpop.f32.mrb[0].mxu0
    %v7165 = vadd.f32 %v7089, %v7164
    %7166 = vdwg.mxu0
    %7167 = vmatprep.subr.mxu0 %v1453
    %7168 = vmatpush1.msra.mxu0 %v1452
    %7169 = vmatprep.subr.mxu0 %v1461
    %7170 = vmatpush1.msra.mxu0 %v1460
    %7171 = vmatprep.subr.mxu0 %v1469
    %7172 = vmatpush1.msra.mxu0 %v1468
    %7173 = vmatprep.subr.mxu0 %v1477
    %7174 = vmatpush1.msra.mxu0 %v1476
    %7175 = vmatprep.subr.mxu0 %v1485
    %7176 = vmatpush1.msra.mxu0 %v1484
    %7177 = vmatprep.subr.mxu0 %v1493
    %7178 = vmatpush1.msra.mxu0 %v1492
    %7179 = vmatprep.subr.mxu0 %v1501
    %7180 = vmatpush1.msra.mxu0 %v1500
    %7181 = vmatprep.subr.mxu0 %v1509
    %7182 = vmatpush1.msra.mxu0 %v1508
    %7183 = vmatprep.subr.mxu0 %v1517
    %7184 = vmatpush1.msra.mxu0 %v1516
    %7185 = vmatprep.subr.mxu0 %v1525
    %7186 = vmatpush1.msra.mxu0 %v1524
    %7187 = vmatprep.subr.mxu0 %v1533
    %7188 = vmatpush1.msra.mxu0 %v1532
    %7189 = vmatprep.subr.mxu0 %v1541
    %7190 = vmatpush1.msra.mxu0 %v1540
    %7191 = vmatprep.subr.mxu0 %v1549
    %7192 = vmatpush1.msra.mxu0 %v1548
    %7193 = vmatprep.subr.mxu0 %v1557
    %7194 = vmatpush1.msra.mxu0 %v1556
    %7195 = vmatprep.subr.mxu0 %v1565
    %7196 = vmatpush1.msra.mxu0 %v1564
    %7197 = vmatprep.subr.mxu0 %v1573
    %7198 = vmatpush1.msra.mxu0 %v1572
    %7199 = vmatprep.subr.mxu0 %v1581
    %7200 = vmatpush1.msra.mxu0 %v1580
    %7201 = vmatprep.subr.mxu0 %v1589
    %7202 = vmatpush1.msra.mxu0 %v1588
    %7203 = vmatprep.subr.mxu0 %v1597
    %7204 = vmatpush1.msra.mxu0 %v1596
    %7205 = vmatprep.subr.mxu0 %v1605
    %7206 = vmatpush1.msra.mxu0 %v1604
    %7207 = vmatprep.subr.mxu0 %v1613
    %7208 = vmatpush1.msra.mxu0 %v1612
    %7209 = vmatprep.subr.mxu0 %v1621
    %7210 = vmatpush1.msra.mxu0 %v1620
    %7211 = vmatprep.subr.mxu0 %v1629
    %7212 = vmatpush1.msra.mxu0 %v1628
    %7213 = vmatprep.subr.mxu0 %v1637
    %7214 = vmatpush1.msra.mxu0 %v1636
    %7215 = vmatprep.subr.mxu0 %v1645
    %7216 = vmatpush1.msra.mxu0 %v1644
    %7217 = vmatprep.subr.mxu0 %v1653
    %7218 = vmatpush1.msra.mxu0 %v1652
    %7219 = vmatprep.subr.mxu0 %v1661
    %7220 = vmatpush1.msra.mxu0 %v1660
    %7221 = vmatprep.subr.mxu0 %v1669
    %7222 = vmatpush1.msra.mxu0 %v1668
    %7223 = vmatprep.subr.mxu0 %v1677
    %7224 = vmatpush1.msra.mxu0 %v1676
    %7225 = vmatprep.subr.mxu0 %v1685
    %7226 = vmatpush1.msra.mxu0 %v1684
    %7227 = vmatprep.subr.mxu0 %v1693
    %7228 = vmatpush1.msra.mxu0 %v1692
    %7229 = vmatprep.subr.mxu0 %v1701
    %7230 = vmatpush1.msra.mxu0 %v1700
    %7231 = vmatprep.mubr.f32.mxu0 %v7069
    %7232 = vmatmul.mubr.f32.gmra.mrb[0].mxu0 %v7068
    %v7233 = vpop.f32.mrb[0].mxu0
    %v7234 = vadd.f32 %v7090, %v7233
    %v7235 = vpop.f32.mrb[0].mxu0
    %v7236 = vadd.f32 %v7091, %v7235
    %7237 = vdwg.mxu0
    %7238 = vmatprep.subr.mxu0 %v1455
    %7239 = vmatpush1.msra.mxu0 %v1454
    %7240 = vmatprep.subr.mxu0 %v1463
    %7241 = vmatpush1.msra.mxu0 %v1462
    %7242 = vmatprep.subr.mxu0 %v1471
    %7243 = vmatpush1.msra.mxu0 %v1470
    %7244 = vmatprep.subr.mxu0 %v1479
    %7245 = vmatpush1.msra.mxu0 %v1478
    %7246 = vmatprep.subr.mxu0 %v1487
    %7247 = vmatpush1.msra.mxu0 %v1486
    %7248 = vmatprep.subr.mxu0 %v1495
    %7249 = vmatpush1.msra.mxu0 %v1494
    %7250 = vmatprep.subr.mxu0 %v1503
    %7251 = vmatpush1.msra.mxu0 %v1502
    %7252 = vmatprep.subr.mxu0 %v1511
    %7253 = vmatpush1.msra.mxu0 %v1510
    %7254 = vmatprep.subr.mxu0 %v1519
    %7255 = vmatpush1.msra.mxu0 %v1518
    %7256 = vmatprep.subr.mxu0 %v1527
    %7257 = vmatpush1.msra.mxu0 %v1526
    %7258 = vmatprep.subr.mxu0 %v1535
    %7259 = vmatpush1.msra.mxu0 %v1534
    %7260 = vmatprep.subr.mxu0 %v1543
    %7261 = vmatpush1.msra.mxu0 %v1542
    %7262 = vmatprep.subr.mxu0 %v1551
    %7263 = vmatpush1.msra.mxu0 %v1550
    %7264 = vmatprep.subr.mxu0 %v1559
    %7265 = vmatpush1.msra.mxu0 %v1558
    %7266 = vmatprep.subr.mxu0 %v1567
    %7267 = vmatpush1.msra.mxu0 %v1566
    %7268 = vmatprep.subr.mxu0 %v1575
    %7269 = vmatpush1.msra.mxu0 %v1574
    %7270 = vmatprep.subr.mxu0 %v1583
    %7271 = vmatpush1.msra.mxu0 %v1582
    %7272 = vmatprep.subr.mxu0 %v1591
    %7273 = vmatpush1.msra.mxu0 %v1590
    %7274 = vmatprep.subr.mxu0 %v1599
    %7275 = vmatpush1.msra.mxu0 %v1598
    %7276 = vmatprep.subr.mxu0 %v1607
    %7277 = vmatpush1.msra.mxu0 %v1606
    %7278 = vmatprep.subr.mxu0 %v1615
    %7279 = vmatpush1.msra.mxu0 %v1614
    %7280 = vmatprep.subr.mxu0 %v1623
    %7281 = vmatpush1.msra.mxu0 %v1622
    %7282 = vmatprep.subr.mxu0 %v1631
    %7283 = vmatpush1.msra.mxu0 %v1630
    %7284 = vmatprep.subr.mxu0 %v1639
    %7285 = vmatpush1.msra.mxu0 %v1638
    %7286 = vmatprep.subr.mxu0 %v1647
    %7287 = vmatpush1.msra.mxu0 %v1646
    %7288 = vmatprep.subr.mxu0 %v1655
    %7289 = vmatpush1.msra.mxu0 %v1654
    %7290 = vmatprep.subr.mxu0 %v1663
    %7291 = vmatpush1.msra.mxu0 %v1662
    %7292 = vmatprep.subr.mxu0 %v1671
    %7293 = vmatpush1.msra.mxu0 %v1670
    %7294 = vmatprep.subr.mxu0 %v1679
    %7295 = vmatpush1.msra.mxu0 %v1678
    %7296 = vmatprep.subr.mxu0 %v1687
    %7297 = vmatpush1.msra.mxu0 %v1686
    %7298 = vmatprep.subr.mxu0 %v1695
    %7299 = vmatpush1.msra.mxu0 %v1694
    %7300 = vmatprep.subr.mxu0 %v1703
    %7301 = vmatpush1.msra.mxu0 %v1702
    %7302 = vmatprep.mubr.f32.mxu0 %v7069
    %7303 = vmatmul.mubr.f32.gmra.mrb[0].mxu0 %v7068
    %v7304 = vpop.f32.mrb[0].mxu0
    %v7305 = vadd.f32 %v7092, %v7304
    %v7306 = vpop.f32.mrb[0].mxu0
    %v7307 = vadd.f32 %v7093, %v7306
    %7308 = vdwg.mxu0
    %7309 = vmatprep.subr.mxu0 %v1457
    %7310 = vmatpush1.msra.mxu0 %v1456
    %7311 = vmatprep.subr.mxu0 %v1465
    %7312 = vmatpush1.msra.mxu0 %v1464
    %7313 = vmatprep.subr.mxu0 %v1473
    %7314 = vmatpush1.msra.mxu0 %v1472
    %7315 = vmatprep.subr.mxu0 %v1481
    %7316 = vmatpush1.msra.mxu0 %v1480
    %7317 = vmatprep.subr.mxu0 %v1489
    %7318 = vmatpush1.msra.mxu0 %v1488
    %7319 = vmatprep.subr.mxu0 %v1497
    %7320 = vmatpush1.msra.mxu0 %v1496
    %7321 = vmatprep.subr.mxu0 %v1505
    %7322 = vmatpush1.msra.mxu0 %v1504
    %7323 = vmatprep.subr.mxu0 %v1513
    %7324 = vmatpush1.msra.mxu0 %v1512
    %7325 = vmatprep.subr.mxu0 %v1521
    %7326 = vmatpush1.msra.mxu0 %v1520
    %7327 = vmatprep.subr.mxu0 %v1529
    %7328 = vmatpush1.msra.mxu0 %v1528
    %7329 = vmatprep.subr.mxu0 %v1537
    %7330 = vmatpush1.msra.mxu0 %v1536
    %7331 = vmatprep.subr.mxu0 %v1545
    %7332 = vmatpush1.msra.mxu0 %v1544
    %7333 = vmatprep.subr.mxu0 %v1553
    %7334 = vmatpush1.msra.mxu0 %v1552
    %7335 = vmatprep.subr.mxu0 %v1561
    %7336 = vmatpush1.msra.mxu0 %v1560
    %7337 = vmatprep.subr.mxu0 %v1569
    %7338 = vmatpush1.msra.mxu0 %v1568
    %7339 = vmatprep.subr.mxu0 %v1577
    %7340 = vmatpush1.msra.mxu0 %v1576
    %7341 = vmatprep.subr.mxu0 %v1585
    %7342 = vmatpush1.msra.mxu0 %v1584
    %7343 = vmatprep.subr.mxu0 %v1593
    %7344 = vmatpush1.msra.mxu0 %v1592
    %7345 = vmatprep.subr.mxu0 %v1601
    %7346 = vmatpush1.msra.mxu0 %v1600
    %7347 = vmatprep.subr.mxu0 %v1609
    %7348 = vmatpush1.msra.mxu0 %v1608
    %7349 = vmatprep.subr.mxu0 %v1617
    %7350 = vmatpush1.msra.mxu0 %v1616
    %7351 = vmatprep.subr.mxu0 %v1625
    %7352 = vmatpush1.msra.mxu0 %v1624
    %7353 = vmatprep.subr.mxu0 %v1633
    %7354 = vmatpush1.msra.mxu0 %v1632
    %7355 = vmatprep.subr.mxu0 %v1641
    %7356 = vmatpush1.msra.mxu0 %v1640
    %7357 = vmatprep.subr.mxu0 %v1649
    %7358 = vmatpush1.msra.mxu0 %v1648
    %7359 = vmatprep.subr.mxu0 %v1657
    %7360 = vmatpush1.msra.mxu0 %v1656
    %7361 = vmatprep.subr.mxu0 %v1665
    %7362 = vmatpush1.msra.mxu0 %v1664
    %7363 = vmatprep.subr.mxu0 %v1673
    %7364 = vmatpush1.msra.mxu0 %v1672
    %7365 = vmatprep.subr.mxu0 %v1681
    %7366 = vmatpush1.msra.mxu0 %v1680
    %7367 = vmatprep.subr.mxu0 %v1689
    %7368 = vmatpush1.msra.mxu0 %v1688
    %7369 = vmatprep.subr.mxu0 %v1697
    %7370 = vmatpush1.msra.mxu0 %v1696
    %7371 = vmatprep.subr.mxu0 %v1705
    %7372 = vmatpush1.msra.mxu0 %v1704
    %7373 = vmatprep.mubr.f32.mxu0 %v7069
    %7374 = vmatmul.mubr.f32.gmra.mrb[0].mxu0 %v7068
    %v7375 = vpop.f32.mrb[0].mxu0
    %v7376 = vadd.f32 %v7094, %v7375
    %v7377 = vpop.f32.mrb[0].mxu0
    %v7378 = vadd.f32 %v7095, %v7377
    %7379 = vdwg.mxu0
    %v7380 = vmul.f32 %v7163, 0.5
    %v7381 = vmul.f32 %v7165, 0.5
    %v7382 = vtanh.pop %v7380
    %v7383 = vtanh.pop %v7381
    %v7384 = vadd.f32 %v7382, 1.0
    %v7385 = vadd.f32 %v7383, 1.0
    %v7386 = vmul.f32 %v7384, 0.5
    %v7387 = vmul.f32 %v7385, 0.5
    %v7388 = vmul.f32 %v7234, 0.5
    %v7389 = vmul.f32 %v7236, 0.5
    %v7390 = vtanh.pop %v7388
    %v7391 = vtanh.pop %v7389
    %v7392 = vadd.f32 %v7390, 1.0
    %v7393 = vadd.f32 %v7391, 1.0
    %v7394 = vmul.f32 %v7392, 0.5
    %v7395 = vmul.f32 %v7393, 0.5
    %v7396 = vtanh.pop %v7305
    %v7397 = vtanh.pop %v7307
    %v7398 = vmul.f32 %v7376, 0.5
    %v7399 = vmul.f32 %v7378, 0.5
    %v7400 = vtanh.pop %v7398
    %v7401 = vtanh.pop %v7399
    %v7402 = vadd.f32 %v7400, 1.0
    %v7403 = vadd.f32 %v7401, 1.0
    %v7404 = vmul.f32 %v7402, 0.5
    %v7405 = vmul.f32 %v7403, 0.5
    %v7406 = vmul.f32 %v7394, %v7070
    %v7407 = vmul.f32 %v7395, %v7071
    %v7408 = vmul.f32 %v7386, %v7396
    %v7409 = vmul.f32 %v7387, %v7397
    %v7410 = vadd.f32 %v7406, %v7408
    %v7411 = vadd.f32 %v7407, %v7409
    %v7412 = vtanh.pop %v7410
    %v7413 = vtanh.pop %v7411
    %v7414 = vmul.f32 %v7404, %v7412
    %v7415 = vmul.f32 %v7405, %v7413
    %v7416 = vsel %vm1444, 15, 0
    %v7417 = vsel %vm1445, 15, 0
    %vm7418 = vcmp.gt.s32.totalorder %v1449, %v7416
    %vm7419 = vcmp.gt.s32.totalorder %v1449, %v7417
    %v7420 = vsel %vm7418, %v7414, 0.0
    %v7421 = vsel %vm7419, %v7415, 0.0
    %v7422 = vld [vmem:[#allocation15 + $0x78] sm:$0xff]
    %v7423 = vadd.f32 %v7422, %v7420
    %7424 = vst [vmem:[#allocation15 + $0x78] sm:$0xff] %v7423
    %v7425 = vld [vmem:[#allocation15] sm:$0xff]
    %v7426 = vadd.f32 %v7425, %v7421
    %7427 = vst [vmem:[#allocation15] sm:$0xff] %v7426
    %v7428 = vsel %vm7418, %v7414, %v7068
    %v7429 = vsel %vm7418, %v7410, %v7070
    %7430 = vst [vmem:[#allocation16] sm:$0xff] %v7428
    %7431 = vst [vmem:[#allocation18] sm:$0xff] %v7429
    %v7432 = vld [vmem:[#allocation15] sm:$0xff]
    %v7433 = vld [vmem:[#allocation15 + $0x8] sm:$0xff]
    %v7434 = vld [vmem:[#allocation15 + $0x10] sm:$0xff]
    %v7435 = vld [vmem:[#allocation15 + $0x18] sm:$0xff]
    %v7436 = vld [vmem:[#allocation15 + $0x20] sm:$0xff]
    %v7437 = vld [vmem:[#allocation15 + $0x28] sm:$0xff]
    %v7438 = vld [vmem:[#allocation15 + $0x30] sm:$0xff]
    %v7439 = vld [vmem:[#allocation15 + $0x38] sm:$0xff]
    %v7440 = vld [vmem:[#allocation15 + $0x40] sm:$0xff]
    %v7441 = vld [vmem:[#allocation15 + $0x48] sm:$0xff]
    %v7442 = vld [vmem:[#allocation15 + $0x50] sm:$0xff]
    %v7443 = vld [vmem:[#allocation15 + $0x58] sm:$0xff]
    %v7444 = vld [vmem:[#allocation15 + $0x60] sm:$0xff]
    %v7445 = vld [vmem:[#allocation15 + $0x68] sm:$0xff]
    %7446 = vst [vmem:[#allocation3] sm:$0xff] %v7432
    %7447 = vst [vmem:[#allocation3 + $0x18] sm:$0xff] %v7433
    %7448 = vst [vmem:[#allocation3 + $0x30] sm:$0xff] %v7434
    %7449 = vst [vmem:[#allocation3 + $0x48] sm:$0xff] %v7435
    %7450 = vst [vmem:[#allocation3 + $0x60] sm:$0xff] %v7436
    %7451 = vst [vmem:[#allocation3 + $0x78] sm:$0xff] %v7437
    %7452 = vst [vmem:[#allocation3 + $0x90] sm:$0xff] %v7438
    %7453 = vst [vmem:[#allocation3 + $0xa8] sm:$0xff] %v7439
    %7454 = vst [vmem:[#allocation3 + $0xc0] sm:$0xff] %v7440
    %7455 = vst [vmem:[#allocation3 + $0xd8] sm:$0xff] %v7441
    %7456 = vst [vmem:[#allocation3 + $0xf0] sm:$0xff] %v7442
    %7457 = vst [vmem:[#allocation3 + $0x108] sm:$0xff] %v7443
    %7458 = vst [vmem:[#allocation3 + $0x120] sm:$0xff] %v7444
    %7459 = vst [vmem:[#allocation3 + $0x138] sm:$0xff] %v7445
    %v7460 = vld [vmem:[#allocation15 + $0x8] sm:$0xff]
    %v7461 = vld [vmem:[#allocation15 + $0x10] sm:$0xff]
    %v7462 = vld [vmem:[#allocation15 + $0x18] sm:$0xff]
    %v7463 = vld [vmem:[#allocation15 + $0x20] sm:$0xff]
    %v7464 = vld [vmem:[#allocation15 + $0x28] sm:$0xff]
    %v7465 = vld [vmem:[#allocation15 + $0x30] sm:$0xff]
    %v7466 = vld [vmem:[#allocation15 + $0x38] sm:$0xff]
    %v7467 = vld [vmem:[#allocation15 + $0x40] sm:$0xff]
    %v7468 = vld [vmem:[#allocation15 + $0x48] sm:$0xff]
    %v7469 = vld [vmem:[#allocation15 + $0x50] sm:$0xff]
    %v7470 = vld [vmem:[#allocation15 + $0x58] sm:$0xff]
    %v7471 = vld [vmem:[#allocation15 + $0x60] sm:$0xff]
    %v7472 = vld [vmem:[#allocation15 + $0x68] sm:$0xff]
    %v7473 = vld [vmem:[#allocation15 + $0x70] sm:$0xff]
    %7474 = vst [vmem:[#allocation3 + $0x8] sm:$0xff] %v7460
    %7475 = vst [vmem:[#allocation3 + $0x20] sm:$0xff] %v7461
    %7476 = vst [vmem:[#allocation3 + $0x38] sm:$0xff] %v7462
    %7477 = vst [vmem:[#allocation3 + $0x50] sm:$0xff] %v7463
    %7478 = vst [vmem:[#allocation3 + $0x68] sm:$0xff] %v7464
    %7479 = vst [vmem:[#allocation3 + $0x80] sm:$0xff] %v7465
    %7480 = vst [vmem:[#allocation3 + $0x98] sm:$0xff] %v7466
    %7481 = vst [vmem:[#allocation3 + $0xb0] sm:$0xff] %v7467
    %7482 = vst [vmem:[#allocation3 + $0xc8] sm:$0xff] %v7468
    %7483 = vst [vmem:[#allocation3 + $0xe0] sm:$0xff] %v7469
    %7484 = vst [vmem:[#allocation3 + $0xf8] sm:$0xff] %v7470
    %7485 = vst [vmem:[#allocation3 + $0x110] sm:$0xff] %v7471
    %7486 = vst [vmem:[#allocation3 + $0x128] sm:$0xff] %v7472
    %7487 = vst [vmem:[#allocation3 + $0x140] sm:$0xff] %v7473
    %v7488 = vld [vmem:[#allocation15 + $0x10] sm:$0xff]
    %v7489 = vld [vmem:[#allocation15 + $0x18] sm:$0xff]
    %v7490 = vld [vmem:[#allocation15 + $0x20] sm:$0xff]
    %v7491 = vld [vmem:[#allocation15 + $0x28] sm:$0xff]
    %v7492 = vld [vmem:[#allocation15 + $0x30] sm:$0xff]
    %v7493 = vld [vmem:[#allocation15 + $0x38] sm:$0xff]
    %v7494 = vld [vmem:[#allocation15 + $0x40] sm:$0xff]
    %v7495 = vld [vmem:[#allocation15 + $0x48] sm:$0xff]
    %v7496 = vld [vmem:[#allocation15 + $0x50] sm:$0xff]
    %v7497 = vld [vmem:[#allocation15 + $0x58] sm:$0xff]
    %v7498 = vld [vmem:[#allocation15 + $0x60] sm:$0xff]
    %v7499 = vld [vmem:[#allocation15 + $0x68] sm:$0xff]
    %v7500 = vld [vmem:[#allocation15 + $0x70] sm:$0xff]
    %v7501 = vld [vmem:[#allocation15 + $0x78] sm:$0xff]
    %7502 = vst [vmem:[#allocation3 + $0x10] sm:$0xff] %v7488
    %7503 = vst [vmem:[#allocation3 + $0x28] sm:$0xff] %v7489
    %7504 = vst [vmem:[#allocation3 + $0x40] sm:$0xff] %v7490
    %7505 = vst [vmem:[#allocation3 + $0x58] sm:$0xff] %v7491
    %7506 = vst [vmem:[#allocation3 + $0x70] sm:$0xff] %v7492
    %7507 = vst [vmem:[#allocation3 + $0x88] sm:$0xff] %v7493
    %7508 = vst [vmem:[#allocation3 + $0xa0] sm:$0xff] %v7494
    %7509 = vst [vmem:[#allocation3 + $0xb8] sm:$0xff] %v7495
    %7510 = vst [vmem:[#allocation3 + $0xd0] sm:$0xff] %v7496
    %7511 = vst [vmem:[#allocation3 + $0xe8] sm:$0xff] %v7497
    %7512 = vst [vmem:[#allocation3 + $0x100] sm:$0xff] %v7498
    %7513 = vst [vmem:[#allocation3 + $0x118] sm:$0xff] %v7499
    %7514 = vst [vmem:[#allocation3 + $0x130] sm:$0xff] %v7500
    %7515 = vst [vmem:[#allocation3 + $0x148] sm:$0xff] %v7501
    %v7516 = vld [vmem:[#allocation3] sm:$0xff]
    %v7517 = vld [vmem:[#allocation3 + $0x8] sm:$0xff]
    %v7518 = vld [vmem:[#allocation3 + $0x10] sm:$0xff]
    %v7519 = vld [vmem:[#allocation3 + $0x18] sm:$0xff]
    %v7520 = vld [vmem:[#allocation3 + $0x20] sm:$0xff]
    %v7521 = vld [vmem:[#allocation3 + $0x28] sm:$0xff]
    %v7522 = vld [vmem:[#allocation3 + $0x30] sm:$0xff]
    %v7523 = vld [vmem:[#allocation3 + $0x38] sm:$0xff]
    %v7524 = vld [vmem:[#allocation3 + $0x40] sm:$0xff]
    %v7525 = vld [vmem:[#allocation3 + $0x48] sm:$0xff]
    %v7526 = vld [vmem:[#allocation3 + $0x50] sm:$0xff]
    %v7527 = vld [vmem:[#allocation3 + $0x58] sm:$0xff]
    %v7528 = vld [vmem:[#allocation3 + $0x60] sm:$0xff]
    %v7529 = vld [vmem:[#allocation3 + $0x68] sm:$0xff]
    %v7530 = vld [vmem:[#allocation3 + $0x70] sm:$0xff]
    %v7531 = vld [vmem:[#allocation3 + $0x78] sm:$0xff]
    %v7532 = vld [vmem:[#allocation3 + $0x80] sm:$0xff]
    %v7533 = vld [vmem:[#allocation3 + $0x88] sm:$0xff]
    %v7534 = vld [vmem:[#allocation3 + $0x90] sm:$0xff]
    %v7535 = vld [vmem:[#allocation3 + $0x98] sm:$0xff]
    %v7536 = vld [vmem:[#allocation3 + $0xa0] sm:$0xff]
    %v7537 = vld [vmem:[#allocation3 + $0xa8] sm:$0xff]
    %v7538 = vld [vmem:[#allocation3 + $0xb0] sm:$0xff]
    %v7539 = vld [vmem:[#allocation3 + $0xb8] sm:$0xff]
    %v7540 = vld [vmem:[#allocation3 + $0xc0] sm:$0xff]
    %v7541 = vld [vmem:[#allocation3 + $0xc8] sm:$0xff]
    %v7542 = vld [vmem:[#allocation3 + $0xd0] sm:$0xff]
    %v7543 = vld [vmem:[#allocation3 + $0xd8] sm:$0xff]
    %v7544 = vld [vmem:[#allocation3 + $0xe0] sm:$0xff]
    %v7545 = vld [vmem:[#allocation3 + $0xe8] sm:$0xff]
    %v7546 = vld [vmem:[#allocation3 + $0xf0] sm:$0xff]
    %v7547 = vld [vmem:[#allocation3 + $0xf8] sm:$0xff]
    %v7548 = vld [vmem:[#allocation3 + $0x100] sm:$0xff]
    %v7549 = vld [vmem:[#allocation3 + $0x108] sm:$0xff]
    %v7550 = vld [vmem:[#allocation3 + $0x110] sm:$0xff]
    %v7551 = vld [vmem:[#allocation3 + $0x118] sm:$0xff]
    %v7552 = vld [vmem:[#allocation3 + $0x120] sm:$0xff]
    %v7553 = vld [vmem:[#allocation3 + $0x128] sm:$0xff]
    %v7554 = vld [vmem:[#allocation3 + $0x130] sm:$0xff]
    %v7555 = vld [vmem:[#allocation3 + $0x138] sm:$0xff]
    %v7556 = vld [vmem:[#allocation3 + $0x140] sm:$0xff]
    %v7557 = vld [vmem:[#allocation3 + $0x148] sm:$0xff]
    %v7558 = vld [vmem:[#allocation11] sm:$0xff]
    %v7559 = vld [vmem:[#allocation11 + $0x8] sm:$0xff]
    %v7560 = vld [vmem:[#allocation11 + $0x10] sm:$0xff]
    %v7561 = vld [vmem:[#allocation11 + $0x18] sm:$0xff]
    %v7562 = vld [vmem:[#allocation11 + $0x20] sm:$0xff]
    %v7563 = vld [vmem:[#allocation11 + $0x28] sm:$0xff]
    %v7564 = vld [vmem:[#allocation11 + $0x30] sm:$0xff]
    %v7565 = vld [vmem:[#allocation11 + $0x38] sm:$0xff]
    %v7566 = vld [vmem:[#allocation11 + $0x40] sm:$0xff]
    %v7567 = vld [vmem:[#allocation11 + $0x48] sm:$0xff]
    %v7568 = vld [vmem:[#allocation11 + $0x50] sm:$0xff]
    %v7569 = vld [vmem:[#allocation11 + $0x58] sm:$0xff]
    %v7570 = vld [vmem:[#allocation11 + $0x60] sm:$0xff]
    %v7571 = vld [vmem:[#allocation11 + $0x68] sm:$0xff]
    %v7572 = vld [vmem:[#allocation11 + $0x70] sm:$0xff]
    %v7573 = vld [vmem:[#allocation11 + $0x78] sm:$0xff]
    %v7574 = vld [vmem:[#allocation11 + $0x80] sm:$0xff]
    %v7575 = vld [vmem:[#allocation11 + $0x88] sm:$0xff]
    %v7576 = vld [vmem:[#allocation11 + $0x90] sm:$0xff]
    %v7577 = vld [vmem:[#allocation11 + $0x98] sm:$0xff]
    %v7578 = vld [vmem:[#allocation11 + $0xa0] sm:$0xff]
    %v7579 = vld [vmem:[#allocation11 + $0xa8] sm:$0xff]
    %v7580 = vld [vmem:[#allocation11 + $0xb0] sm:$0xff]
    %v7581 = vld [vmem:[#allocation11 + $0xb8] sm:$0xff]
    %v7582 = vld [vmem:[#allocation11 + $0xc0] sm:$0xff]
    %v7583 = vld [vmem:[#allocation11 + $0xc8] sm:$0xff]
    %v7584 = vld [vmem:[#allocation11 + $0xd0] sm:$0xff]
    %v7585 = vld [vmem:[#allocation11 + $0xd8] sm:$0xff]
    %v7586 = vld [vmem:[#allocation11 + $0xe0] sm:$0xff]
    %v7587 = vld [vmem:[#allocation11 + $0xe8] sm:$0xff]
    %v7588 = vld [vmem:[#allocation11 + $0xf0] sm:$0xff]
    %v7589 = vld [vmem:[#allocation11 + $0xf8] sm:$0xff]
    %v7590 = vld [vmem:[#allocation11 + $0x100] sm:$0xff]
    %v7591 = vld [vmem:[#allocation11 + $0x108] sm:$0xff]
    %v7592 = vld [vmem:[#allocation11 + $0x110] sm:$0xff]
    %v7593 = vld [vmem:[#allocation11 + $0x118] sm:$0xff]
    %v7594 = vld [vmem:[#allocation11 + $0x120] sm:$0xff]
    %v7595 = vld [vmem:[#allocation11 + $0x128] sm:$0xff]
    %v7596 = vld [vmem:[#allocation11 + $0x130] sm:$0xff]
    %v7597 = vld [vmem:[#allocation11 + $0x138] sm:$0xff]
    %v7598 = vld [vmem:[#allocation11 + $0x140] sm:$0xff]
    %v7599 = vld [vmem:[#allocation11 + $0x148] sm:$0xff]
    %v7600 = vld [vmem:[#allocation11 + $0x150] sm:$0xff]
    %v7601 = vld [vmem:[#allocation11 + $0x158] sm:$0xff]
    %v7602 = vld [vmem:[#allocation11 + $0x160] sm:$0xff]
    %v7603 = vld [vmem:[#allocation11 + $0x168] sm:$0xff]
    %v7604 = vld [vmem:[#allocation11 + $0x170] sm:$0xff]
    %v7605 = vld [vmem:[#allocation11 + $0x178] sm:$0xff]
    %v7606 = vld [vmem:[%s7] sm:$0x1]
    %v7608 = vlaneseq
    %v7609 = vshrl.u32 %v7608, 7
    %v7610 = vsub.s32 0, %v7609
    %v7611 = vrot.slane %v7606, %v7610
    %7613 = vmatprep.subr.mxu0 0.0
    %7614 = vmatpush1.msra.mxu0 %v7558
    %7615 = vmatprep.subr.mxu0 0.0
    %7616 = vmatpush1.msra.mxu0 %v7559
    %7617 = vmatprep.subr.mxu0 0.0
    %7618 = vmatpush1.msra.mxu0 %v7560
    %7619 = vmatprep.subr.mxu0 0.0
    %7620 = vmatpush1.msra.mxu0 %v7561
    %7621 = vmatprep.subr.mxu0 0.0
    %7622 = vmatpush1.msra.mxu0 %v7562
    %7623 = vmatprep.subr.mxu0 0.0
    %7624 = vmatpush1.msra.mxu0 %v7563
    %7625 = vmatprep.subr.mxu0 0.0
    %7626 = vmatpush1.msra.mxu0 %v7564
    %7627 = vmatprep.subr.mxu0 0.0
    %7628 = vmatpush1.msra.mxu0 %v7565
    %7629 = vmatprep.subr.mxu0 0.0
    %7630 = vmatpush1.msra.mxu0 %v7566
    %7631 = vmatprep.subr.mxu0 0.0
    %7632 = vmatpush1.msra.mxu0 %v7567
    %7633 = vmatprep.subr.mxu0 0.0
    %7634 = vmatpush1.msra.mxu0 %v7568
    %7635 = vmatprep.subr.mxu0 0.0
    %7636 = vmatpush1.msra.mxu0 %v7569
    %7637 = vmatprep.subr.mxu0 0.0
    %7638 = vmatpush1.msra.mxu0 %v7570
    %7639 = vmatprep.subr.mxu0 0.0
    %7640 = vmatpush1.msra.mxu0 %v7571
    %7641 = vmatprep.subr.mxu0 0.0
    %7642 = vmatpush1.msra.mxu0 %v7572
    %7643 = vmatprep.subr.mxu0 0.0
    %7644 = vmatpush1.msra.mxu0 %v7573
    %7645 = vmatprep.subr.mxu0 0.0
    %7646 = vmatpush1.msra.mxu0 %v7574
    %7647 = vmatprep.subr.mxu0 0.0
    %7648 = vmatpush1.msra.mxu0 %v7575
    %7649 = vmatprep.subr.mxu0 0.0
    %7650 = vmatpush1.msra.mxu0 %v7576
    %7651 = vmatprep.subr.mxu0 0.0
    %7652 = vmatpush1.msra.mxu0 %v7577
    %7653 = vmatprep.subr.mxu0 0.0
    %7654 = vmatpush1.msra.mxu0 %v7578
    %7655 = vmatprep.subr.mxu0 0.0
    %7656 = vmatpush1.msra.mxu0 %v7579
    %7657 = vmatprep.subr.mxu0 0.0
    %7658 = vmatpush1.msra.mxu0 %v7580
    %7659 = vmatprep.subr.mxu0 0.0
    %7660 = vmatpush1.msra.mxu0 %v7581
    %7661 = vmatprep.subr.mxu0 0.0
    %7662 = vmatpush1.msra.mxu0 %v7582
    %7663 = vmatprep.subr.mxu0 0.0
    %7664 = vmatpush1.msra.mxu0 %v7583
    %7665 = vmatprep.subr.mxu0 0.0
    %7666 = vmatpush1.msra.mxu0 %v7584
    %7667 = vmatprep.subr.mxu0 0.0
    %7668 = vmatpush1.msra.mxu0 %v7585
    %7669 = vmatprep.subr.mxu0 0.0
    %7670 = vmatpush1.msra.mxu0 %v7586
    %7671 = vmatprep.subr.mxu0 0.0
    %7672 = vmatpush1.msra.mxu0 %v7587
    %7673 = vmatprep.subr.mxu0 0.0
    %7674 = vmatpush1.msra.mxu0 %v7588
    %7675 = vmatprep.subr.mxu0 0.0
    %7676 = vmatpush1.msra.mxu0 %v7589
    %7677 = vmatprep.mubr.f32.mxu0 %v7517
    %7678 = vmatmul.mubr.f32.gmra.mrb[0].mxu0 %v7516
    %v7679 = vpop.f32.mrb[0].mxu0
    %v7680 = vadd.f32 %v7611, %v7679
    %v7681 = vpop.f32.mrb[0].mxu0
    %7682 = vmatprep.mubr.f32.mxu0 %v7520
    %7683 = vmatmul.mubr.f32.gmra.mrb[0].mxu0 %v7519
    %v7684 = vpop.f32.mrb[0].mxu0
    %v7685 = vadd.f32 %v7611, %v7684
    %v7686 = vpop.f32.mrb[0].mxu0
    %7687 = vmatprep.mubr.f32.mxu0 %v7523
    %7688 = vmatmul.mubr.f32.gmra.mrb[0].mxu0 %v7522
    %v7689 = vpop.f32.mrb[0].mxu0
    %v7690 = vadd.f32 %v7611, %v7689
    %v7691 = vpop.f32.mrb[0].mxu0
    %7692 = vmatprep.mubr.f32.mxu0 %v7526
    %7693 = vmatmul.mubr.f32.gmra.mrb[0].mxu0 %v7525
    %v7694 = vpop.f32.mrb[0].mxu0
    %v7695 = vadd.f32 %v7611, %v7694
    %v7696 = vpop.f32.mrb[0].mxu0
    %7697 = vmatprep.mubr.f32.mxu0 %v7529
    %7698 = vmatmul.mubr.f32.gmra.mrb[0].mxu0 %v7528
    %v7699 = vpop.f32.mrb[0].mxu0
    %v7700 = vadd.f32 %v7611, %v7699
    %v7701 = vpop.f32.mrb[0].mxu0
    %7702 = vmatprep.mubr.f32.mxu0 %v7532
    %7703 = vmatmul.mubr.f32.gmra.mrb[0].mxu0 %v7531
    %v7704 = vpop.f32.mrb[0].mxu0
    %v7705 = vadd.f32 %v7611, %v7704
    %v7706 = vpop.f32.mrb[0].mxu0
    %7707 = vmatprep.mubr.f32.mxu0 %v7535
    %7708 = vmatmul.mubr.f32.gmra.mrb[0].mxu0 %v7534
    %v7709 = vpop.f32.mrb[0].mxu0
    %v7710 = vadd.f32 %v7611, %v7709
    %v7711 = vpop.f32.mrb[0].mxu0
    %7712 = vmatprep.mubr.f32.mxu0 %v7538
    %7713 = vmatmul.mubr.f32.gmra.mrb[0].mxu0 %v7537
    %v7714 = vpop.f32.mrb[0].mxu0
    %v7715 = vadd.f32 %v7611, %v7714
    %v7716 = vpop.f32.mrb[0].mxu0
    %7717 = vmatprep.mubr.f32.mxu0 %v7541
    %7718 = vmatmul.mubr.f32.gmra.mrb[0].mxu0 %v7540
    %v7719 = vpop.f32.mrb[0].mxu0
    %v7720 = vadd.f32 %v7611, %v7719
    %v7721 = vpop.f32.mrb[0].mxu0
    %7722 = vmatprep.mubr.f32.mxu0 %v7544
    %7723 = vmatmul.mubr.f32.gmra.mrb[0].mxu0 %v7543
    %v7724 = vpop.f32.mrb[0].mxu0
    %v7725 = vadd.f32 %v7611, %v7724
    %v7726 = vpop.f32.mrb[0].mxu0
    %7727 = vmatprep.mubr.f32.mxu0 %v7547
    %7728 = vmatmul.mubr.f32.gmra.mrb[0].mxu0 %v7546
    %v7729 = vpop.f32.mrb[0].mxu0
    %v7730 = vadd.f32 %v7611, %v7729
    %v7731 = vpop.f32.mrb[0].mxu0
    %7732 = vmatprep.mubr.f32.mxu0 %v7550
    %7733 = vmatmul.mubr.f32.gmra.mrb[0].mxu0 %v7549
    %v7734 = vpop.f32.mrb[0].mxu0
    %v7735 = vadd.f32 %v7611, %v7734
    %v7736 = vpop.f32.mrb[0].mxu0
    %7737 = vmatprep.mubr.f32.mxu0 %v7553
    %7738 = vmatmul.mubr.f32.gmra.mrb[0].mxu0 %v7552
    %v7739 = vpop.f32.mrb[0].mxu0
    %v7740 = vadd.f32 %v7611, %v7739
    %v7741 = vpop.f32.mrb[0].mxu0
    %7742 = vmatprep.mubr.f32.mxu0 %v7556
    %7743 = vmatmul.mubr.f32.gmra.mrb[0].mxu0 %v7555
    %v7744 = vpop.f32.mrb[0].mxu0
    %v7745 = vadd.f32 %v7611, %v7744
    %v7746 = vpop.f32.mrb[0].mxu0
    %7747 = vdwg.mxu0
    %7748 = vmatprep.subr.mxu0 0.0
    %7749 = vmatpush1.msra.mxu0 %v7590
    %7750 = vmatprep.subr.mxu0 0.0
    %7751 = vmatpush1.msra.mxu0 %v7591
    %7752 = vmatprep.subr.mxu0 0.0
    %7753 = vmatpush1.msra.mxu0 %v7592
    %7754 = vmatprep.subr.mxu0 0.0
    %7755 = vmatpush1.msra.mxu0 %v7593
    %7756 = vmatprep.subr.mxu0 0.0
    %7757 = vmatpush1.msra.mxu0 %v7594
    %7758 = vmatprep.subr.mxu0 0.0
    %7759 = vmatpush1.msra.mxu0 %v7595
    %7760 = vmatprep.subr.mxu0 0.0
    %7761 = vmatpush1.msra.mxu0 %v7596
    %7762 = vmatprep.subr.mxu0 0.0
    %7763 = vmatpush1.msra.mxu0 %v7597
    %7764 = vmatprep.subr.mxu0 0.0
    %7765 = vmatpush1.msra.mxu0 %v7598
    %7766 = vmatprep.subr.mxu0 0.0
    %7767 = vmatpush1.msra.mxu0 %v7599
    %7768 = vmatprep.subr.mxu0 0.0
    %7769 = vmatpush1.msra.mxu0 %v7600
    %7770 = vmatprep.subr.mxu0 0.0
    %7771 = vmatpush1.msra.mxu0 %v7601
    %7772 = vmatprep.subr.mxu0 0.0
    %7773 = vmatpush1.msra.mxu0 %v7602
    %7774 = vmatprep.subr.mxu0 0.0
    %7775 = vmatpush1.msra.mxu0 %v7603
    %7776 = vmatprep.subr.mxu0 0.0
    %7777 = vmatpush1.msra.mxu0 %v7604
    %7778 = vmatprep.subr.mxu0 0.0
    %7779 = vmatpush1.msra.mxu0 %v7605
    %7780 = vmatprep.subr.mxu0 0.0
    %7781 = vmatpush1.msra.mxu0 0.0
    %7782 = vmatprep.subr.mxu0 0.0
    %7783 = vmatpush1.msra.mxu0 0.0
    %7784 = vmatprep.subr.mxu0 0.0
    %7785 = vmatpush1.msra.mxu0 0.0
    %7786 = vmatprep.subr.mxu0 0.0
    %7787 = vmatpush1.msra.mxu0 0.0
    %7788 = vmatprep.subr.mxu0 0.0
    %7789 = vmatpush1.msra.mxu0 0.0
    %7790 = vmatprep.subr.mxu0 0.0
    %7791 = vmatpush1.msra.mxu0 0.0
    %7792 = vmatprep.subr.mxu0 0.0
    %7793 = vmatpush1.msra.mxu0 0.0
    %7794 = vmatprep.subr.mxu0 0.0
    %7795 = vmatpush1.msra.mxu0 0.0
    %7796 = vmatprep.subr.mxu0 0.0
    %7797 = vmatpush1.msra.mxu0 0.0
    %7798 = vmatprep.subr.mxu0 0.0
    %7799 = vmatpush1.msra.mxu0 0.0
    %7800 = vmatprep.subr.mxu0 0.0
    %7801 = vmatpush1.msra.mxu0 0.0
    %7802 = vmatprep.subr.mxu0 0.0
    %7803 = vmatpush1.msra.mxu0 0.0
    %7804 = vmatprep.subr.mxu0 0.0
    %7805 = vmatpush1.msra.mxu0 0.0
    %7806 = vmatprep.subr.mxu0 0.0
    %7807 = vmatpush1.msra.mxu0 0.0
    %7808 = vmatprep.subr.mxu0 0.0
    %7809 = vmatpush1.msra.mxu0 0.0
    %7810 = vmatprep.subr.mxu0 0.0
    %7811 = vmatpush1.msra.mxu0 0.0
    %7812 = vmatprep.mubr.f32.mxu0 0.0
    %7813 = vmatmul.mubr.f32.gmra.mrb[0].mxu0 %v7518
    %v7814 = vpop.f32.mrb[0].mxu0
    %v7815 = vadd.f32 %v7680, %v7814
    %v7816 = vpop.f32.mrb[0].mxu0
    %7817 = vmatprep.mubr.f32.mxu0 0.0
    %7818 = vmatmul.mubr.f32.gmra.mrb[0].mxu0 %v7521
    %v7819 = vpop.f32.mrb[0].mxu0
    %v7820 = vadd.f32 %v7685, %v7819
    %v7821 = vpop.f32.mrb[0].mxu0
    %7822 = vmatprep.mubr.f32.mxu0 0.0
    %7823 = vmatmul.mubr.f32.gmra.mrb[0].mxu0 %v7524
    %v7824 = vpop.f32.mrb[0].mxu0
    %v7825 = vadd.f32 %v7690, %v7824
    %v7826 = vpop.f32.mrb[0].mxu0
    %7827 = vmatprep.mubr.f32.mxu0 0.0
    %7828 = vmatmul.mubr.f32.gmra.mrb[0].mxu0 %v7527
    %v7829 = vpop.f32.mrb[0].mxu0
    %v7830 = vadd.f32 %v7695, %v7829
    %v7831 = vpop.f32.mrb[0].mxu0
    %7832 = vmatprep.mubr.f32.mxu0 0.0
    %7833 = vmatmul.mubr.f32.gmra.mrb[0].mxu0 %v7530
    %v7834 = vpop.f32.mrb[0].mxu0
    %v7835 = vadd.f32 %v7700, %v7834
    %v7836 = vpop.f32.mrb[0].mxu0
    %7837 = vmatprep.mubr.f32.mxu0 0.0
    %7838 = vmatmul.mubr.f32.gmra.mrb[0].mxu0 %v7533
    %v7839 = vpop.f32.mrb[0].mxu0
    %v7840 = vadd.f32 %v7705, %v7839
    %v7841 = vpop.f32.mrb[0].mxu0
    %7842 = vmatprep.mubr.f32.mxu0 0.0
    %7843 = vmatmul.mubr.f32.gmra.mrb[0].mxu0 %v7536
    %v7844 = vpop.f32.mrb[0].mxu0
    %v7845 = vadd.f32 %v7710, %v7844
    %v7846 = vpop.f32.mrb[0].mxu0
    %7847 = vmatprep.mubr.f32.mxu0 0.0
    %7848 = vmatmul.mubr.f32.gmra.mrb[0].mxu0 %v7539
    %v7849 = vpop.f32.mrb[0].mxu0
    %v7850 = vadd.f32 %v7715, %v7849
    %v7851 = vpop.f32.mrb[0].mxu0
    %7852 = vmatprep.mubr.f32.mxu0 0.0
    %7853 = vmatmul.mubr.f32.gmra.mrb[0].mxu0 %v7542
    %v7854 = vpop.f32.mrb[0].mxu0
    %v7855 = vadd.f32 %v7720, %v7854
    %v7856 = vpop.f32.mrb[0].mxu0
    %7857 = vmatprep.mubr.f32.mxu0 0.0
    %7858 = vmatmul.mubr.f32.gmra.mrb[0].mxu0 %v7545
    %v7859 = vpop.f32.mrb[0].mxu0
    %v7860 = vadd.f32 %v7725, %v7859
    %v7861 = vpop.f32.mrb[0].mxu0
    %7862 = vmatprep.mubr.f32.mxu0 0.0
    %7863 = vmatmul.mubr.f32.gmra.mrb[0].mxu0 %v7548
    %v7864 = vpop.f32.mrb[0].mxu0
    %v7865 = vadd.f32 %v7730, %v7864
    %v7866 = vpop.f32.mrb[0].mxu0
    %7867 = vmatprep.mubr.f32.mxu0 0.0
    %7868 = vmatmul.mubr.f32.gmra.mrb[0].mxu0 %v7551
    %v7869 = vpop.f32.mrb[0].mxu0
    %v7870 = vadd.f32 %v7735, %v7869
    %v7871 = vpop.f32.mrb[0].mxu0
    %7872 = vmatprep.mubr.f32.mxu0 0.0
    %7873 = vmatmul.mubr.f32.gmra.mrb[0].mxu0 %v7554
    %v7874 = vpop.f32.mrb[0].mxu0
    %v7875 = vadd.f32 %v7740, %v7874
    %v7876 = vpop.f32.mrb[0].mxu0
    %7877 = vmatprep.mubr.f32.mxu0 0.0
    %7878 = vmatmul.mubr.f32.gmra.mrb[0].mxu0 %v7557
    %v7879 = vpop.f32.mrb[0].mxu0
    %v7880 = vadd.f32 %v7745, %v7879
    %v7881 = vpop.f32.mrb[0].mxu0
    %7882 = vdwg.mxu0
    %v7883 = vmin.f32 %v7815, 0.0
    %v7884 = vmin.f32 %v7820, 0.0
    %v7885 = vmin.f32 %v7825, 0.0
    %v7886 = vmin.f32 %v7830, 0.0
    %v7887 = vmin.f32 %v7835, 0.0
    %v7888 = vmin.f32 %v7840, 0.0
    %v7889 = vmin.f32 %v7845, 0.0
    %v7890 = vmin.f32 %v7850, 0.0
    %v7891 = vmin.f32 %v7855, 0.0
    %v7892 = vmin.f32 %v7860, 0.0
    %v7893 = vmin.f32 %v7865, 0.0
    %v7894 = vmin.f32 %v7870, 0.0
    %v7895 = vmin.f32 %v7875, 0.0
    %v7896 = vmin.f32 %v7880, 0.0
    %v7897 = vmul.f32 %v7883, 1.442695
    %v7898 = vpow.pop %v7897
    %v7899 = vmul.f32 %v7884, 1.442695
    %v7900 = vpow.pop %v7899
    %v7901 = vmul.f32 %v7885, 1.442695
    %v7902 = vpow.pop %v7901
    %v7903 = vmul.f32 %v7886, 1.442695
    %v7904 = vpow.pop %v7903
    %v7905 = vmul.f32 %v7887, 1.442695
    %v7906 = vpow.pop %v7905
    %v7907 = vmul.f32 %v7888, 1.442695
    %v7908 = vpow.pop %v7907
    %v7909 = vmul.f32 %v7889, 1.442695
    %v7910 = vpow.pop %v7909
    %v7911 = vmul.f32 %v7890, 1.442695
    %v7912 = vpow.pop %v7911
    %v7913 = vmul.f32 %v7891, 1.442695
    %v7914 = vpow.pop %v7913
    %v7915 = vmul.f32 %v7892, 1.442695
    %v7916 = vpow.pop %v7915
    %v7917 = vmul.f32 %v7893, 1.442695
    %v7918 = vpow.pop %v7917
    %v7919 = vmul.f32 %v7894, 1.442695
    %v7920 = vpow.pop %v7919
    %v7921 = vmul.f32 %v7895, 1.442695
    %v7922 = vpow.pop %v7921
    %v7923 = vmul.f32 %v7896, 1.442695
    %v7924 = vpow.pop %v7923
    %v7925 = vsub.f32 %v7898, 1.0
    %v7926 = vsub.f32 %v7900, 1.0
    %v7927 = vsub.f32 %v7902, 1.0
    %v7928 = vsub.f32 %v7904, 1.0
    %v7929 = vsub.f32 %v7906, 1.0
    %v7930 = vsub.f32 %v7908, 1.0
    %v7931 = vsub.f32 %v7910, 1.0
    %v7932 = vsub.f32 %v7912, 1.0
    %v7933 = vsub.f32 %v7914, 1.0
    %v7934 = vsub.f32 %v7916, 1.0
    %v7935 = vsub.f32 %v7918, 1.0
    %v7936 = vsub.f32 %v7920, 1.0
    %v7937 = vsub.f32 %v7922, 1.0
    %v7938 = vsub.f32 %v7924, 1.0
    %v7939 = vmul.f32 %v7925, 1.6732632
    %v7940 = vmul.f32 %v7926, 1.6732632
    %v7941 = vmul.f32 %v7927, 1.6732632
    %v7942 = vmul.f32 %v7928, 1.6732632
    %v7943 = vmul.f32 %v7929, 1.6732632
    %v7944 = vmul.f32 %v7930, 1.6732632
    %v7945 = vmul.f32 %v7931, 1.6732632
    %v7946 = vmul.f32 %v7932, 1.6732632
    %v7947 = vmul.f32 %v7933, 1.6732632
    %v7948 = vmul.f32 %v7934, 1.6732632
    %v7949 = vmul.f32 %v7935, 1.6732632
    %v7950 = vmul.f32 %v7936, 1.6732632
    %v7951 = vmul.f32 %v7937, 1.6732632
    %v7952 = vmul.f32 %v7938, 1.6732632
    %vm7953 = vcmp.gt.f32.partialorder %v7815, 0.0
    %vm7954 = vcmp.gt.f32.partialorder %v7820, 0.0
    %vm7955 = vcmp.gt.f32.partialorder %v7825, 0.0
    %vm7956 = vcmp.gt.f32.partialorder %v7830, 0.0
    %vm7957 = vcmp.gt.f32.partialorder %v7835, 0.0
    %vm7958 = vcmp.gt.f32.partialorder %v7840, 0.0
    %vm7959 = vcmp.gt.f32.partialorder %v7845, 0.0
    %vm7960 = vcmp.gt.f32.partialorder %v7850, 0.0
    %vm7961 = vcmp.gt.f32.partialorder %v7855, 0.0
    %vm7962 = vcmp.gt.f32.partialorder %v7860, 0.0
    %vm7963 = vcmp.gt.f32.partialorder %v7865, 0.0
    %vm7964 = vcmp.gt.f32.partialorder %v7870, 0.0
    %vm7965 = vcmp.gt.f32.partialorder %v7875, 0.0
    %vm7966 = vcmp.gt.f32.partialorder %v7880, 0.0
    %v7967 = vsel %vm7953, %v7815, %v7939
    %v7968 = vsel %vm7954, %v7820, %v7940
    %v7969 = vsel %vm7955, %v7825, %v7941
    %v7970 = vsel %vm7956, %v7830, %v7942
    %v7971 = vsel %vm7957, %v7835, %v7943
    %v7972 = vsel %vm7958, %v7840, %v7944
    %v7973 = vsel %vm7959, %v7845, %v7945
    %v7974 = vsel %vm7960, %v7850, %v7946
    %v7975 = vsel %vm7961, %v7855, %v7947
    %v7976 = vsel %vm7962, %v7860, %v7948
    %v7977 = vsel %vm7963, %v7865, %v7949
    %v7978 = vsel %vm7964, %v7870, %v7950
    %v7979 = vsel %vm7965, %v7875, %v7951
    %v7980 = vsel %vm7966, %v7880, %v7952
    %v7981 = vmul.f32 %v7967, 1.050701
    %v7982 = vmul.f32 %v7968, 1.050701
    %v7983 = vmul.f32 %v7969, 1.050701
    %v7984 = vmul.f32 %v7970, 1.050701
    %v7985 = vmul.f32 %v7971, 1.050701
    %v7986 = vmul.f32 %v7972, 1.050701
    %v7987 = vmul.f32 %v7973, 1.050701
    %v7988 = vmul.f32 %v7974, 1.050701
    %v7989 = vmul.f32 %v7975, 1.050701
    %v7990 = vmul.f32 %v7976, 1.050701
    %v7991 = vmul.f32 %v7977, 1.050701
    %v7992 = vmul.f32 %v7978, 1.050701
    %v7993 = vmul.f32 %v7979, 1.050701
    %v7994 = vmul.f32 %v7980, 1.050701
    %7995 = vst [vmem:[#allocation4] sm:$0xff] %v7981
    %7996 = vst [vmem:[#allocation4 + $0x8] sm:$0xff] %v7982
    %7997 = vst [vmem:[#allocation4 + $0x10] sm:$0xff] %v7983
    %7998 = vst [vmem:[#allocation4 + $0x18] sm:$0xff] %v7984
    %7999 = vst [vmem:[#allocation4 + $0x20] sm:$0xff] %v7985
    %8000 = vst [vmem:[#allocation4 + $0x28] sm:$0xff] %v7986
    %8001 = vst [vmem:[#allocation4 + $0x30] sm:$0xff] %v7987
    %8002 = vst [vmem:[#allocation4 + $0x38] sm:$0xff] %v7988
    %8003 = vst [vmem:[#allocation4 + $0x40] sm:$0xff] %v7989
    %8004 = vst [vmem:[#allocation4 + $0x48] sm:$0xff] %v7990
    %8005 = vst [vmem:[#allocation4 + $0x50] sm:$0xff] %v7991
    %8006 = vst [vmem:[#allocation4 + $0x58] sm:$0xff] %v7992
    %8007 = vst [vmem:[#allocation4 + $0x60] sm:$0xff] %v7993
    %8008 = vst [vmem:[#allocation4 + $0x68] sm:$0xff] %v7994
    %v8009 = vld [vmem:[#allocation4] sm:$0xff]
    %v8010 = vld [vmem:[#allocation4 + $0x8] sm:$0xff]
    %v8011 = vld [vmem:[#allocation4 + $0x10] sm:$0xff]
    %v8012 = vld [vmem:[#allocation4 + $0x18] sm:$0xff]
    %v8013 = vld [vmem:[#allocation4 + $0x20] sm:$0xff]
    %v8014 = vld [vmem:[#allocation4 + $0x28] sm:$0xff]
    %v8015 = vld [vmem:[#allocation4 + $0x30] sm:$0xff]
    %v8016 = vld [vmem:[#allocation4 + $0x38] sm:$0xff]
    %v8017 = vld [vmem:[#allocation4 + $0x40] sm:$0xff]
    %v8018 = vld [vmem:[#allocation4 + $0x48] sm:$0xff]
    %8019 = vst [vmem:[#allocation3] sm:$0xff] %v8009
    %8020 = vst [vmem:[#allocation3 + $0x18] sm:$0xff] %v8010
    %8021 = vst [vmem:[#allocation3 + $0x30] sm:$0xff] %v8011
    %8022 = vst [vmem:[#allocation3 + $0x48] sm:$0xff] %v8012
    %8023 = vst [vmem:[#allocation3 + $0x60] sm:$0xff] %v8013
    %8024 = vst [vmem:[#allocation3 + $0x78] sm:$0xff] %v8014
    %8025 = vst [vmem:[#allocation3 + $0x90] sm:$0xff] %v8015
    %8026 = vst [vmem:[#allocation3 + $0xa8] sm:$0xff] %v8016
    %8027 = vst [vmem:[#allocation3 + $0xc0] sm:$0xff] %v8017
    %8028 = vst [vmem:[#allocation3 + $0xd8] sm:$0xff] %v8018
    %v8029 = vld [vmem:[#allocation4 + $0x10] sm:$0xff]
    %v8030 = vld [vmem:[#allocation4 + $0x18] sm:$0xff]
    %v8031 = vld [vmem:[#allocation4 + $0x20] sm:$0xff]
    %v8032 = vld [vmem:[#allocation4 + $0x28] sm:$0xff]
    %v8033 = vld [vmem:[#allocation4 + $0x30] sm:$0xff]
    %v8034 = vld [vmem:[#allocation4 + $0x38] sm:$0xff]
    %v8035 = vld [vmem:[#allocation4 + $0x40] sm:$0xff]
    %v8036 = vld [vmem:[#allocation4 + $0x48] sm:$0xff]
    %v8037 = vld [vmem:[#allocation4 + $0x50] sm:$0xff]
    %v8038 = vld [vmem:[#allocation4 + $0x58] sm:$0xff]
    %8039 = vst [vmem:[#allocation3 + $0x8] sm:$0xff] %v8029
    %8040 = vst [vmem:[#allocation3 + $0x20] sm:$0xff] %v8030
    %8041 = vst [vmem:[#allocation3 + $0x38] sm:$0xff] %v8031
    %8042 = vst [vmem:[#allocation3 + $0x50] sm:$0xff] %v8032
    %8043 = vst [vmem:[#allocation3 + $0x68] sm:$0xff] %v8033
    %8044 = vst [vmem:[#allocation3 + $0x80] sm:$0xff] %v8034
    %8045 = vst [vmem:[#allocation3 + $0x98] sm:$0xff] %v8035
    %8046 = vst [vmem:[#allocation3 + $0xb0] sm:$0xff] %v8036
    %8047 = vst [vmem:[#allocation3 + $0xc8] sm:$0xff] %v8037
    %8048 = vst [vmem:[#allocation3 + $0xe0] sm:$0xff] %v8038
    %v8049 = vld [vmem:[#allocation4 + $0x20] sm:$0xff]
    %v8050 = vld [vmem:[#allocation4 + $0x28] sm:$0xff]
    %v8051 = vld [vmem:[#allocation4 + $0x30] sm:$0xff]
    %v8052 = vld [vmem:[#allocation4 + $0x38] sm:$0xff]
    %v8053 = vld [vmem:[#allocation4 + $0x40] sm:$0xff]
    %v8054 = vld [vmem:[#allocation4 + $0x48] sm:$0xff]
    %v8055 = vld [vmem:[#allocation4 + $0x50] sm:$0xff]
    %v8056 = vld [vmem:[#allocation4 + $0x58] sm:$0xff]
    %v8057 = vld [vmem:[#allocation4 + $0x60] sm:$0xff]
    %v8058 = vld [vmem:[#allocation4 + $0x68] sm:$0xff]
    %8059 = vst [vmem:[#allocation3 + $0x10] sm:$0xff] %v8049
    %8060 = vst [vmem:[#allocation3 + $0x28] sm:$0xff] %v8050
    %8061 = vst [vmem:[#allocation3 + $0x40] sm:$0xff] %v8051
    %8062 = vst [vmem:[#allocation3 + $0x58] sm:$0xff] %v8052
    %8063 = vst [vmem:[#allocation3 + $0x70] sm:$0xff] %v8053
    %8064 = vst [vmem:[#allocation3 + $0x88] sm:$0xff] %v8054
    %8065 = vst [vmem:[#allocation3 + $0xa0] sm:$0xff] %v8055
    %8066 = vst [vmem:[#allocation3 + $0xb8] sm:$0xff] %v8056
    %8067 = vst [vmem:[#allocation3 + $0xd0] sm:$0xff] %v8057
    %8068 = vst [vmem:[#allocation3 + $0xe8] sm:$0xff] %v8058
    %v8069 = vld [vmem:[#allocation3] sm:$0xff]
    %v8070 = vld [vmem:[#allocation3 + $0x8] sm:$0xff]
    %v8071 = vld [vmem:[#allocation3 + $0x10] sm:$0xff]
    %v8072 = vld [vmem:[#allocation3 + $0x18] sm:$0xff]
    %v8073 = vld [vmem:[#allocation3 + $0x20] sm:$0xff]
    %v8074 = vld [vmem:[#allocation3 + $0x28] sm:$0xff]
    %v8075 = vld [vmem:[#allocation3 + $0x30] sm:$0xff]
    %v8076 = vld [vmem:[#allocation3 + $0x38] sm:$0xff]
    %v8077 = vld [vmem:[#allocation3 + $0x40] sm:$0xff]
    %v8078 = vld [vmem:[#allocation3 + $0x48] sm:$0xff]
    %v8079 = vld [vmem:[#allocation3 + $0x50] sm:$0xff]
    %v8080 = vld [vmem:[#allocation3 + $0x58] sm:$0xff]
    %v8081 = vld [vmem:[#allocation3 + $0x60] sm:$0xff]
    %v8082 = vld [vmem:[#allocation3 + $0x68] sm:$0xff]
    %v8083 = vld [vmem:[#allocation3 + $0x70] sm:$0xff]
    %v8084 = vld [vmem:[#allocation3 + $0x78] sm:$0xff]
    %v8085 = vld [vmem:[#allocation3 + $0x80] sm:$0xff]
    %v8086 = vld [vmem:[#allocation3 + $0x88] sm:$0xff]
    %v8087 = vld [vmem:[#allocation3 + $0x90] sm:$0xff]
    %v8088 = vld [vmem:[#allocation3 + $0x98] sm:$0xff]
    %v8089 = vld [vmem:[#allocation3 + $0xa0] sm:$0xff]
    %v8090 = vld [vmem:[#allocation3 + $0xa8] sm:$0xff]
    %v8091 = vld [vmem:[#allocation3 + $0xb0] sm:$0xff]
    %v8092 = vld [vmem:[#allocation3 + $0xb8] sm:$0xff]
    %v8093 = vld [vmem:[#allocation3 + $0xc0] sm:$0xff]
    %v8094 = vld [vmem:[#allocation3 + $0xc8] sm:$0xff]
    %v8095 = vld [vmem:[#allocation3 + $0xd0] sm:$0xff]
    %v8096 = vld [vmem:[#allocation3 + $0xd8] sm:$0xff]
    %v8097 = vld [vmem:[#allocation3 + $0xe0] sm:$0xff]
    %v8098 = vld [vmem:[#allocation3 + $0xe8] sm:$0xff]
    %v8099 = vld [vmem:[#allocation12] sm:$0xff]
    %v8100 = vld [vmem:[#allocation12 + $0x8] sm:$0xff]
    %v8101 = vld [vmem:[#allocation12 + $0x10] sm:$0xff]
    %v8102 = vld [vmem:[#allocation12 + $0x18] sm:$0xff]
    %v8103 = vld [vmem:[#allocation12 + $0x20] sm:$0xff]
    %v8104 = vld [vmem:[#allocation12 + $0x28] sm:$0xff]
    %v8105 = vld [vmem:[#allocation12 + $0x30] sm:$0xff]
    %v8106 = vld [vmem:[#allocation12 + $0x38] sm:$0xff]
    %v8107 = vld [vmem:[#allocation12 + $0x40] sm:$0xff]
    %v8108 = vld [vmem:[#allocation12 + $0x48] sm:$0xff]
    %v8109 = vld [vmem:[#allocation12 + $0x50] sm:$0xff]
    %v8110 = vld [vmem:[#allocation12 + $0x58] sm:$0xff]
    %v8111 = vld [vmem:[#allocation12 + $0x60] sm:$0xff]
    %v8112 = vld [vmem:[#allocation12 + $0x68] sm:$0xff]
    %v8113 = vld [vmem:[#allocation12 + $0x70] sm:$0xff]
    %v8114 = vld [vmem:[#allocation12 + $0x78] sm:$0xff]
    %v8115 = vld [vmem:[#allocation12 + $0x80] sm:$0xff]
    %v8116 = vld [vmem:[#allocation12 + $0x88] sm:$0xff]
    %v8117 = vld [vmem:[#allocation12 + $0x90] sm:$0xff]
    %v8118 = vld [vmem:[#allocation12 + $0x98] sm:$0xff]
    %v8119 = vld [vmem:[#allocation12 + $0xa0] sm:$0xff]
    %v8120 = vld [vmem:[#allocation12 + $0xa8] sm:$0xff]
    %v8121 = vld [vmem:[#allocation12 + $0xb0] sm:$0xff]
    %v8122 = vld [vmem:[#allocation12 + $0xb8] sm:$0xff]
    %v8123 = vld [vmem:[#allocation12 + $0xc0] sm:$0xff]
    %v8124 = vld [vmem:[#allocation12 + $0xc8] sm:$0xff]
    %v8125 = vld [vmem:[#allocation12 + $0xd0] sm:$0xff]
    %v8126 = vld [vmem:[#allocation12 + $0xd8] sm:$0xff]
    %v8127 = vld [vmem:[#allocation12 + $0xe0] sm:$0xff]
    %v8128 = vld [vmem:[#allocation12 + $0xe8] sm:$0xff]
    %v8129 = vld [vmem:[#allocation12 + $0xf0] sm:$0xff]
    %v8130 = vld [vmem:[#allocation12 + $0xf8] sm:$0xff]
    %v8131 = vld [vmem:[#allocation12 + $0x100] sm:$0xff]
    %v8132 = vld [vmem:[#allocation12 + $0x108] sm:$0xff]
    %v8133 = vld [vmem:[#allocation12 + $0x110] sm:$0xff]
    %v8134 = vld [vmem:[#allocation12 + $0x118] sm:$0xff]
    %v8135 = vld [vmem:[#allocation12 + $0x120] sm:$0xff]
    %v8136 = vld [vmem:[#allocation12 + $0x128] sm:$0xff]
    %v8137 = vld [vmem:[#allocation12 + $0x130] sm:$0xff]
    %v8138 = vld [vmem:[#allocation12 + $0x138] sm:$0xff]
    %v8139 = vld [vmem:[#allocation12 + $0x140] sm:$0xff]
    %v8140 = vld [vmem:[#allocation12 + $0x148] sm:$0xff]
    %v8141 = vld [vmem:[#allocation12 + $0x150] sm:$0xff]
    %v8142 = vld [vmem:[#allocation12 + $0x158] sm:$0xff]
    %v8143 = vld [vmem:[#allocation12 + $0x160] sm:$0xff]
    %v8144 = vld [vmem:[#allocation12 + $0x168] sm:$0xff]
    %v8145 = vld [vmem:[#allocation12 + $0x170] sm:$0xff]
    %v8146 = vld [vmem:[#allocation12 + $0x178] sm:$0xff]
    %v8147 = vld [vmem:[%s9] sm:$0x1]
    %v8149 = vlaneseq
    %v8150 = vshrl.u32 %v8149, 7
    %v8151 = vsub.s32 0, %v8150
    %v8152 = vrot.slane %v8147, %v8151
    %8154 = vmatprep.subr.mxu0 0.0
    %8155 = vmatpush1.msra.mxu0 %v8099
    %8156 = vmatprep.subr.mxu0 0.0
    %8157 = vmatpush1.msra.mxu0 %v8100
    %8158 = vmatprep.subr.mxu0 0.0
    %8159 = vmatpush1.msra.mxu0 %v8101
    %8160 = vmatprep.subr.mxu0 0.0
    %8161 = vmatpush1.msra.mxu0 %v8102
    %8162 = vmatprep.subr.mxu0 0.0
    %8163 = vmatpush1.msra.mxu0 %v8103
    %8164 = vmatprep.subr.mxu0 0.0
    %8165 = vmatpush1.msra.mxu0 %v8104
    %8166 = vmatprep.subr.mxu0 0.0
    %8167 = vmatpush1.msra.mxu0 %v8105
    %8168 = vmatprep.subr.mxu0 0.0
    %8169 = vmatpush1.msra.mxu0 %v8106
    %8170 = vmatprep.subr.mxu0 0.0
    %8171 = vmatpush1.msra.mxu0 %v8107
    %8172 = vmatprep.subr.mxu0 0.0
    %8173 = vmatpush1.msra.mxu0 %v8108
    %8174 = vmatprep.subr.mxu0 0.0
    %8175 = vmatpush1.msra.mxu0 %v8109
    %8176 = vmatprep.subr.mxu0 0.0
    %8177 = vmatpush1.msra.mxu0 %v8110
    %8178 = vmatprep.subr.mxu0 0.0
    %8179 = vmatpush1.msra.mxu0 %v8111
    %8180 = vmatprep.subr.mxu0 0.0
    %8181 = vmatpush1.msra.mxu0 %v8112
    %8182 = vmatprep.subr.mxu0 0.0
    %8183 = vmatpush1.msra.mxu0 %v8113
    %8184 = vmatprep.subr.mxu0 0.0
    %8185 = vmatpush1.msra.mxu0 %v8114
    %8186 = vmatprep.subr.mxu0 0.0
    %8187 = vmatpush1.msra.mxu0 %v8115
    %8188 = vmatprep.subr.mxu0 0.0
    %8189 = vmatpush1.msra.mxu0 %v8116
    %8190 = vmatprep.subr.mxu0 0.0
    %8191 = vmatpush1.msra.mxu0 %v8117
    %8192 = vmatprep.subr.mxu0 0.0
    %8193 = vmatpush1.msra.mxu0 %v8118
    %8194 = vmatprep.subr.mxu0 0.0
    %8195 = vmatpush1.msra.mxu0 %v8119
    %8196 = vmatprep.subr.mxu0 0.0
    %8197 = vmatpush1.msra.mxu0 %v8120
    %8198 = vmatprep.subr.mxu0 0.0
    %8199 = vmatpush1.msra.mxu0 %v8121
    %8200 = vmatprep.subr.mxu0 0.0
    %8201 = vmatpush1.msra.mxu0 %v8122
    %8202 = vmatprep.subr.mxu0 0.0
    %8203 = vmatpush1.msra.mxu0 %v8123
    %8204 = vmatprep.subr.mxu0 0.0
    %8205 = vmatpush1.msra.mxu0 %v8124
    %8206 = vmatprep.subr.mxu0 0.0
    %8207 = vmatpush1.msra.mxu0 %v8125
    %8208 = vmatprep.subr.mxu0 0.0
    %8209 = vmatpush1.msra.mxu0 %v8126
    %8210 = vmatprep.subr.mxu0 0.0
    %8211 = vmatpush1.msra.mxu0 %v8127
    %8212 = vmatprep.subr.mxu0 0.0
    %8213 = vmatpush1.msra.mxu0 %v8128
    %8214 = vmatprep.subr.mxu0 0.0
    %8215 = vmatpush1.msra.mxu0 %v8129
    %8216 = vmatprep.subr.mxu0 0.0
    %8217 = vmatpush1.msra.mxu0 %v8130
    %8218 = vmatprep.mubr.f32.mxu0 %v8070
    %8219 = vmatmul.mubr.f32.gmra.mrb[0].mxu0 %v8069
    %v8220 = vpop.f32.mrb[0].mxu0
    %v8221 = vadd.f32 %v8152, %v8220
    %v8222 = vpop.f32.mrb[0].mxu0
    %8223 = vmatprep.mubr.f32.mxu0 %v8073
    %8224 = vmatmul.mubr.f32.gmra.mrb[0].mxu0 %v8072
    %v8225 = vpop.f32.mrb[0].mxu0
    %v8226 = vadd.f32 %v8152, %v8225
    %v8227 = vpop.f32.mrb[0].mxu0
    %8228 = vmatprep.mubr.f32.mxu0 %v8076
    %8229 = vmatmul.mubr.f32.gmra.mrb[0].mxu0 %v8075
    %v8230 = vpop.f32.mrb[0].mxu0
    %v8231 = vadd.f32 %v8152, %v8230
    %v8232 = vpop.f32.mrb[0].mxu0
    %8233 = vmatprep.mubr.f32.mxu0 %v8079
    %8234 = vmatmul.mubr.f32.gmra.mrb[0].mxu0 %v8078
    %v8235 = vpop.f32.mrb[0].mxu0
    %v8236 = vadd.f32 %v8152, %v8235
    %v8237 = vpop.f32.mrb[0].mxu0
    %8238 = vmatprep.mubr.f32.mxu0 %v8082
    %8239 = vmatmul.mubr.f32.gmra.mrb[0].mxu0 %v8081
    %v8240 = vpop.f32.mrb[0].mxu0
    %v8241 = vadd.f32 %v8152, %v8240
    %v8242 = vpop.f32.mrb[0].mxu0
    %8243 = vmatprep.mubr.f32.mxu0 %v8085
    %8244 = vmatmul.mubr.f32.gmra.mrb[0].mxu0 %v8084
    %v8245 = vpop.f32.mrb[0].mxu0
    %v8246 = vadd.f32 %v8152, %v8245
    %v8247 = vpop.f32.mrb[0].mxu0
    %8248 = vmatprep.mubr.f32.mxu0 %v8088
    %8249 = vmatmul.mubr.f32.gmra.mrb[0].mxu0 %v8087
    %v8250 = vpop.f32.mrb[0].mxu0
    %v8251 = vadd.f32 %v8152, %v8250
    %v8252 = vpop.f32.mrb[0].mxu0
    %8253 = vmatprep.mubr.f32.mxu0 %v8091
    %8254 = vmatmul.mubr.f32.gmra.mrb[0].mxu0 %v8090
    %v8255 = vpop.f32.mrb[0].mxu0
    %v8256 = vadd.f32 %v8152, %v8255
    %v8257 = vpop.f32.mrb[0].mxu0
    %8258 = vmatprep.mubr.f32.mxu0 %v8094
    %8259 = vmatmul.mubr.f32.gmra.mrb[0].mxu0 %v8093
    %v8260 = vpop.f32.mrb[0].mxu0
    %v8261 = vadd.f32 %v8152, %v8260
    %v8262 = vpop.f32.mrb[0].mxu0
    %8263 = vmatprep.mubr.f32.mxu0 %v8097
    %8264 = vmatmul.mubr.f32.gmra.mrb[0].mxu0 %v8096
    %v8265 = vpop.f32.mrb[0].mxu0
    %v8266 = vadd.f32 %v8152, %v8265
    %v8267 = vpop.f32.mrb[0].mxu0
    %8268 = vdwg.mxu0
    %8269 = vmatprep.subr.mxu0 0.0
    %8270 = vmatpush1.msra.mxu0 %v8131
    %8271 = vmatprep.subr.mxu0 0.0
    %8272 = vmatpush1.msra.mxu0 %v8132
    %8273 = vmatprep.subr.mxu0 0.0
    %8274 = vmatpush1.msra.mxu0 %v8133
    %8275 = vmatprep.subr.mxu0 0.0
    %8276 = vmatpush1.msra.mxu0 %v8134
    %8277 = vmatprep.subr.mxu0 0.0
    %8278 = vmatpush1.msra.mxu0 %v8135
    %8279 = vmatprep.subr.mxu0 0.0
    %8280 = vmatpush1.msra.mxu0 %v8136
    %8281 = vmatprep.subr.mxu0 0.0
    %8282 = vmatpush1.msra.mxu0 %v8137
    %8283 = vmatprep.subr.mxu0 0.0
    %8284 = vmatpush1.msra.mxu0 %v8138
    %8285 = vmatprep.subr.mxu0 0.0
    %8286 = vmatpush1.msra.mxu0 %v8139
    %8287 = vmatprep.subr.mxu0 0.0
    %8288 = vmatpush1.msra.mxu0 %v8140
    %8289 = vmatprep.subr.mxu0 0.0
    %8290 = vmatpush1.msra.mxu0 %v8141
    %8291 = vmatprep.subr.mxu0 0.0
    %8292 = vmatpush1.msra.mxu0 %v8142
    %8293 = vmatprep.subr.mxu0 0.0
    %8294 = vmatpush1.msra.mxu0 %v8143
    %8295 = vmatprep.subr.mxu0 0.0
    %8296 = vmatpush1.msra.mxu0 %v8144
    %8297 = vmatprep.subr.mxu0 0.0
    %8298 = vmatpush1.msra.mxu0 %v8145
    %8299 = vmatprep.subr.mxu0 0.0
    %8300 = vmatpush1.msra.mxu0 %v8146
    %8301 = vmatprep.subr.mxu0 0.0
    %8302 = vmatpush1.msra.mxu0 0.0
    %8303 = vmatprep.subr.mxu0 0.0
    %8304 = vmatpush1.msra.mxu0 0.0
    %8305 = vmatprep.subr.mxu0 0.0
    %8306 = vmatpush1.msra.mxu0 0.0
    %8307 = vmatprep.subr.mxu0 0.0
    %8308 = vmatpush1.msra.mxu0 0.0
    %8309 = vmatprep.subr.mxu0 0.0
    %8310 = vmatpush1.msra.mxu0 0.0
    %8311 = vmatprep.subr.mxu0 0.0
    %8312 = vmatpush1.msra.mxu0 0.0
    %8313 = vmatprep.subr.mxu0 0.0
    %8314 = vmatpush1.msra.mxu0 0.0
    %8315 = vmatprep.subr.mxu0 0.0
    %8316 = vmatpush1.msra.mxu0 0.0
    %8317 = vmatprep.subr.mxu0 0.0
    %8318 = vmatpush1.msra.mxu0 0.0
    %8319 = vmatprep.subr.mxu0 0.0
    %8320 = vmatpush1.msra.mxu0 0.0
    %8321 = vmatprep.subr.mxu0 0.0
    %8322 = vmatpush1.msra.mxu0 0.0
    %8323 = vmatprep.subr.mxu0 0.0
    %8324 = vmatpush1.msra.mxu0 0.0
    %8325 = vmatprep.subr.mxu0 0.0
    %8326 = vmatpush1.msra.mxu0 0.0
    %8327 = vmatprep.subr.mxu0 0.0
    %8328 = vmatpush1.msra.mxu0 0.0
    %8329 = vmatprep.subr.mxu0 0.0
    %8330 = vmatpush1.msra.mxu0 0.0
    %8331 = vmatprep.subr.mxu0 0.0
    %8332 = vmatpush1.msra.mxu0 0.0
    %8333 = vmatprep.mubr.f32.mxu0 0.0
    %8334 = vmatmul.mubr.f32.gmra.mrb[0].mxu0 %v8071
    %v8335 = vpop.f32.mrb[0].mxu0
    %v8336 = vadd.f32 %v8221, %v8335
    %v8337 = vpop.f32.mrb[0].mxu0
    %8338 = vmatprep.mubr.f32.mxu0 0.0
    %8339 = vmatmul.mubr.f32.gmra.mrb[0].mxu0 %v8074
    %v8340 = vpop.f32.mrb[0].mxu0
    %v8341 = vadd.f32 %v8226, %v8340
    %v8342 = vpop.f32.mrb[0].mxu0
    %8343 = vmatprep.mubr.f32.mxu0 0.0
    %8344 = vmatmul.mubr.f32.gmra.mrb[0].mxu0 %v8077
    %v8345 = vpop.f32.mrb[0].mxu0
    %v8346 = vadd.f32 %v8231, %v8345
    %v8347 = vpop.f32.mrb[0].mxu0
    %8348 = vmatprep.mubr.f32.mxu0 0.0
    %8349 = vmatmul.mubr.f32.gmra.mrb[0].mxu0 %v8080
    %v8350 = vpop.f32.mrb[0].mxu0
    %v8351 = vadd.f32 %v8236, %v8350
    %v8352 = vpop.f32.mrb[0].mxu0
    %8353 = vmatprep.mubr.f32.mxu0 0.0
    %8354 = vmatmul.mubr.f32.gmra.mrb[0].mxu0 %v8083
    %v8355 = vpop.f32.mrb[0].mxu0
    %v8356 = vadd.f32 %v8241, %v8355
    %v8357 = vpop.f32.mrb[0].mxu0
    %8358 = vmatprep.mubr.f32.mxu0 0.0
    %8359 = vmatmul.mubr.f32.gmra.mrb[0].mxu0 %v8086
    %v8360 = vpop.f32.mrb[0].mxu0
    %v8361 = vadd.f32 %v8246, %v8360
    %v8362 = vpop.f32.mrb[0].mxu0
    %8363 = vmatprep.mubr.f32.mxu0 0.0
    %8364 = vmatmul.mubr.f32.gmra.mrb[0].mxu0 %v8089
    %v8365 = vpop.f32.mrb[0].mxu0
    %v8366 = vadd.f32 %v8251, %v8365
    %v8367 = vpop.f32.mrb[0].mxu0
    %8368 = vmatprep.mubr.f32.mxu0 0.0
    %8369 = vmatmul.mubr.f32.gmra.mrb[0].mxu0 %v8092
    %v8370 = vpop.f32.mrb[0].mxu0
    %v8371 = vadd.f32 %v8256, %v8370
    %v8372 = vpop.f32.mrb[0].mxu0
    %8373 = vmatprep.mubr.f32.mxu0 0.0
    %8374 = vmatmul.mubr.f32.gmra.mrb[0].mxu0 %v8095
    %v8375 = vpop.f32.mrb[0].mxu0
    %v8376 = vadd.f32 %v8261, %v8375
    %v8377 = vpop.f32.mrb[0].mxu0
    %8378 = vmatprep.mubr.f32.mxu0 0.0
    %8379 = vmatmul.mubr.f32.gmra.mrb[0].mxu0 %v8098
    %v8380 = vpop.f32.mrb[0].mxu0
    %v8381 = vadd.f32 %v8266, %v8380
    %v8382 = vpop.f32.mrb[0].mxu0
    %8383 = vdwg.mxu0
    %v8384 = vmin.f32 %v8336, 0.0
    %v8385 = vmin.f32 %v8341, 0.0
    %v8386 = vmin.f32 %v8346, 0.0
    %v8387 = vmin.f32 %v8351, 0.0
    %v8388 = vmin.f32 %v8356, 0.0
    %v8389 = vmin.f32 %v8361, 0.0
    %v8390 = vmin.f32 %v8366, 0.0
    %v8391 = vmin.f32 %v8371, 0.0
    %v8392 = vmin.f32 %v8376, 0.0
    %v8393 = vmin.f32 %v8381, 0.0
    %v8394 = vmul.f32 %v8384, 1.442695
    %v8395 = vpow.pop %v8394
    %v8396 = vmul.f32 %v8385, 1.442695
    %v8397 = vpow.pop %v8396
    %v8398 = vmul.f32 %v8386, 1.442695
    %v8399 = vpow.pop %v8398
    %v8400 = vmul.f32 %v8387, 1.442695
    %v8401 = vpow.pop %v8400
    %v8402 = vmul.f32 %v8388, 1.442695
    %v8403 = vpow.pop %v8402
    %v8404 = vmul.f32 %v8389, 1.442695
    %v8405 = vpow.pop %v8404
    %v8406 = vmul.f32 %v8390, 1.442695
    %v8407 = vpow.pop %v8406
    %v8408 = vmul.f32 %v8391, 1.442695
    %v8409 = vpow.pop %v8408
    %v8410 = vmul.f32 %v8392, 1.442695
    %v8411 = vpow.pop %v8410
    %v8412 = vmul.f32 %v8393, 1.442695
    %v8413 = vpow.pop %v8412
    %v8414 = vsub.f32 %v8395, 1.0
    %v8415 = vsub.f32 %v8397, 1.0
    %v8416 = vsub.f32 %v8399, 1.0
    %v8417 = vsub.f32 %v8401, 1.0
    %v8418 = vsub.f32 %v8403, 1.0
    %v8419 = vsub.f32 %v8405, 1.0
    %v8420 = vsub.f32 %v8407, 1.0
    %v8421 = vsub.f32 %v8409, 1.0
    %v8422 = vsub.f32 %v8411, 1.0
    %v8423 = vsub.f32 %v8413, 1.0
    %v8424 = vmul.f32 %v8414, 1.6732632
    %v8425 = vmul.f32 %v8415, 1.6732632
    %v8426 = vmul.f32 %v8416, 1.6732632
    %v8427 = vmul.f32 %v8417, 1.6732632
    %v8428 = vmul.f32 %v8418, 1.6732632
    %v8429 = vmul.f32 %v8419, 1.6732632
    %v8430 = vmul.f32 %v8420, 1.6732632
    %v8431 = vmul.f32 %v8421, 1.6732632
    %v8432 = vmul.f32 %v8422, 1.6732632
    %v8433 = vmul.f32 %v8423, 1.6732632
    %vm8434 = vcmp.gt.f32.partialorder %v8336, 0.0
    %vm8435 = vcmp.gt.f32.partialorder %v8341, 0.0
    %vm8436 = vcmp.gt.f32.partialorder %v8346, 0.0
    %vm8437 = vcmp.gt.f32.partialorder %v8351, 0.0
    %vm8438 = vcmp.gt.f32.partialorder %v8356, 0.0
    %vm8439 = vcmp.gt.f32.partialorder %v8361, 0.0
    %vm8440 = vcmp.gt.f32.partialorder %v8366, 0.0
    %vm8441 = vcmp.gt.f32.partialorder %v8371, 0.0
    %vm8442 = vcmp.gt.f32.partialorder %v8376, 0.0
    %vm8443 = vcmp.gt.f32.partialorder %v8381, 0.0
    %v8444 = vsel %vm8434, %v8336, %v8424
    %v8445 = vsel %vm8435, %v8341, %v8425
    %v8446 = vsel %vm8436, %v8346, %v8426
    %v8447 = vsel %vm8437, %v8351, %v8427
    %v8448 = vsel %vm8438, %v8356, %v8428
    %v8449 = vsel %vm8439, %v8361, %v8429
    %v8450 = vsel %vm8440, %v8366, %v8430
    %v8451 = vsel %vm8441, %v8371, %v8431
    %v8452 = vsel %vm8442, %v8376, %v8432
    %v8453 = vsel %vm8443, %v8381, %v8433
    %v8454 = vmul.f32 %v8444, 1.050701
    %v8455 = vmul.f32 %v8445, 1.050701
    %v8456 = vmul.f32 %v8446, 1.050701
    %v8457 = vmul.f32 %v8447, 1.050701
    %v8458 = vmul.f32 %v8448, 1.050701
    %v8459 = vmul.f32 %v8449, 1.050701
    %v8460 = vmul.f32 %v8450, 1.050701
    %v8461 = vmul.f32 %v8451, 1.050701
    %v8462 = vmul.f32 %v8452, 1.050701
    %v8463 = vmul.f32 %v8453, 1.050701
    %8464 = vst [vmem:[#allocation5] sm:$0xff] %v8454
    %8465 = vst [vmem:[#allocation5 + $0x8] sm:$0xff] %v8455
    %8466 = vst [vmem:[#allocation5 + $0x10] sm:$0xff] %v8456
    %8467 = vst [vmem:[#allocation5 + $0x18] sm:$0xff] %v8457
    %8468 = vst [vmem:[#allocation5 + $0x20] sm:$0xff] %v8458
    %8469 = vst [vmem:[#allocation5 + $0x28] sm:$0xff] %v8459
    %8470 = vst [vmem:[#allocation5 + $0x30] sm:$0xff] %v8460
    %8471 = vst [vmem:[#allocation5 + $0x38] sm:$0xff] %v8461
    %8472 = vst [vmem:[#allocation5 + $0x40] sm:$0xff] %v8462
    %8473 = vst [vmem:[#allocation5 + $0x48] sm:$0xff] %v8463
    %v8474 = vld [vmem:[#allocation5] sm:$0xff]
    %v8475 = vld [vmem:[#allocation5 + $0x8] sm:$0xff]
    %v8476 = vld [vmem:[#allocation5 + $0x10] sm:$0xff]
    %v8477 = vld [vmem:[#allocation5 + $0x18] sm:$0xff]
    %8478 = vst [vmem:[#allocation3] sm:$0xff] %v8474
    %8479 = vst [vmem:[#allocation3 + $0x18] sm:$0xff] %v8475
    %8480 = vst [vmem:[#allocation3 + $0x30] sm:$0xff] %v8476
    %8481 = vst [vmem:[#allocation3 + $0x48] sm:$0xff] %v8477
    %v8482 = vld [vmem:[#allocation5 + $0x18] sm:$0xff]
    %v8483 = vld [vmem:[#allocation5 + $0x20] sm:$0xff]
    %v8484 = vld [vmem:[#allocation5 + $0x28] sm:$0xff]
    %v8485 = vld [vmem:[#allocation5 + $0x30] sm:$0xff]
    %8486 = vst [vmem:[#allocation3 + $0x8] sm:$0xff] %v8482
    %8487 = vst [vmem:[#allocation3 + $0x20] sm:$0xff] %v8483
    %8488 = vst [vmem:[#allocation3 + $0x38] sm:$0xff] %v8484
    %8489 = vst [vmem:[#allocation3 + $0x50] sm:$0xff] %v8485
    %v8490 = vld [vmem:[#allocation5 + $0x30] sm:$0xff]
    %v8491 = vld [vmem:[#allocation5 + $0x38] sm:$0xff]
    %v8492 = vld [vmem:[#allocation5 + $0x40] sm:$0xff]
    %v8493 = vld [vmem:[#allocation5 + $0x48] sm:$0xff]
    %8494 = vst [vmem:[#allocation3 + $0x10] sm:$0xff] %v8490
    %8495 = vst [vmem:[#allocation3 + $0x28] sm:$0xff] %v8491
    %8496 = vst [vmem:[#allocation3 + $0x40] sm:$0xff] %v8492
    %8497 = vst [vmem:[#allocation3 + $0x58] sm:$0xff] %v8493
    %v8498 = vld [vmem:[#allocation3] sm:$0xff]
    %v8499 = vld [vmem:[#allocation3 + $0x8] sm:$0xff]
    %v8500 = vld [vmem:[#allocation3 + $0x10] sm:$0xff]
    %v8501 = vld [vmem:[#allocation3 + $0x18] sm:$0xff]
    %v8502 = vld [vmem:[#allocation3 + $0x20] sm:$0xff]
    %v8503 = vld [vmem:[#allocation3 + $0x28] sm:$0xff]
    %v8504 = vld [vmem:[#allocation3 + $0x30] sm:$0xff]
    %v8505 = vld [vmem:[#allocation3 + $0x38] sm:$0xff]
    %v8506 = vld [vmem:[#allocation3 + $0x40] sm:$0xff]
    %v8507 = vld [vmem:[#allocation3 + $0x48] sm:$0xff]
    %v8508 = vld [vmem:[#allocation3 + $0x50] sm:$0xff]
    %v8509 = vld [vmem:[#allocation3 + $0x58] sm:$0xff]
    %v8510 = vld [vmem:[#allocation14] sm:$0xff]
    %v8511 = vld [vmem:[#allocation14 + $0x8] sm:$0xff]
    %v8512 = vld [vmem:[#allocation14 + $0x10] sm:$0xff]
    %v8513 = vld [vmem:[#allocation14 + $0x18] sm:$0xff]
    %v8514 = vld [vmem:[#allocation14 + $0x20] sm:$0xff]
    %v8515 = vld [vmem:[#allocation14 + $0x28] sm:$0xff]
    %v8516 = vld [vmem:[#allocation14 + $0x30] sm:$0xff]
    %v8517 = vld [vmem:[#allocation14 + $0x38] sm:$0xff]
    %v8518 = vld [vmem:[#allocation14 + $0x40] sm:$0xff]
    %v8519 = vld [vmem:[#allocation14 + $0x48] sm:$0xff]
    %v8520 = vld [vmem:[#allocation14 + $0x50] sm:$0xff]
    %v8521 = vld [vmem:[#allocation14 + $0x58] sm:$0xff]
    %v8522 = vld [vmem:[#allocation14 + $0x60] sm:$0xff]
    %v8523 = vld [vmem:[#allocation14 + $0x68] sm:$0xff]
    %v8524 = vld [vmem:[#allocation14 + $0x70] sm:$0xff]
    %v8525 = vld [vmem:[#allocation14 + $0x78] sm:$0xff]
    %v8526 = vld [vmem:[#allocation14 + $0x80] sm:$0xff]
    %v8527 = vld [vmem:[#allocation14 + $0x88] sm:$0xff]
    %v8528 = vld [vmem:[#allocation14 + $0x90] sm:$0xff]
    %v8529 = vld [vmem:[#allocation14 + $0x98] sm:$0xff]
    %v8530 = vld [vmem:[#allocation14 + $0xa0] sm:$0xff]
    %v8531 = vld [vmem:[#allocation14 + $0xa8] sm:$0xff]
    %v8532 = vld [vmem:[#allocation14 + $0xb0] sm:$0xff]
    %v8533 = vld [vmem:[#allocation14 + $0xb8] sm:$0xff]
    %v8534 = vld [vmem:[#allocation14 + $0xc0] sm:$0xff]
    %v8535 = vld [vmem:[#allocation14 + $0xc8] sm:$0xff]
    %v8536 = vld [vmem:[#allocation14 + $0xd0] sm:$0xff]
    %v8537 = vld [vmem:[#allocation14 + $0xd8] sm:$0xff]
    %v8538 = vld [vmem:[#allocation14 + $0xe0] sm:$0xff]
    %v8539 = vld [vmem:[#allocation14 + $0xe8] sm:$0xff]
    %v8540 = vld [vmem:[#allocation14 + $0xf0] sm:$0xff]
    %v8541 = vld [vmem:[#allocation14 + $0xf8] sm:$0xff]
    %v8542 = vld [vmem:[#allocation14 + $0x100] sm:$0xff]
    %v8543 = vld [vmem:[#allocation14 + $0x108] sm:$0xff]
    %v8544 = vld [vmem:[#allocation14 + $0x110] sm:$0xff]
    %v8545 = vld [vmem:[#allocation14 + $0x118] sm:$0xff]
    %v8546 = vld [vmem:[#allocation14 + $0x120] sm:$0xff]
    %v8547 = vld [vmem:[#allocation14 + $0x128] sm:$0xff]
    %v8548 = vld [vmem:[#allocation14 + $0x130] sm:$0xff]
    %v8549 = vld [vmem:[#allocation14 + $0x138] sm:$0xff]
    %v8550 = vld [vmem:[#allocation14 + $0x140] sm:$0xff]
    %v8551 = vld [vmem:[#allocation14 + $0x148] sm:$0xff]
    %v8552 = vld [vmem:[#allocation14 + $0x150] sm:$0xff]
    %v8553 = vld [vmem:[#allocation14 + $0x158] sm:$0xff]
    %v8554 = vld [vmem:[#allocation14 + $0x160] sm:$0xff]
    %v8555 = vld [vmem:[#allocation14 + $0x168] sm:$0xff]
    %v8556 = vld [vmem:[#allocation14 + $0x170] sm:$0xff]
    %v8557 = vld [vmem:[#allocation14 + $0x178] sm:$0xff]
    %v8558 = vld [vmem:[%s11] sm:$0x1]
    %v8560 = vlaneseq
    %v8561 = vshrl.u32 %v8560, 7
    %v8562 = vsub.s32 0, %v8561
    %v8563 = vrot.slane %v8558, %v8562
    %8565 = vmatprep.subr.mxu0 0.0
    %8566 = vmatpush1.msra.mxu0 %v8510
    %8567 = vmatprep.subr.mxu0 0.0
    %8568 = vmatpush1.msra.mxu0 %v8511
    %8569 = vmatprep.subr.mxu0 0.0
    %8570 = vmatpush1.msra.mxu0 %v8512
    %8571 = vmatprep.subr.mxu0 0.0
    %8572 = vmatpush1.msra.mxu0 %v8513
    %8573 = vmatprep.subr.mxu0 0.0
    %8574 = vmatpush1.msra.mxu0 %v8514
    %8575 = vmatprep.subr.mxu0 0.0
    %8576 = vmatpush1.msra.mxu0 %v8515
    %8577 = vmatprep.subr.mxu0 0.0
    %8578 = vmatpush1.msra.mxu0 %v8516
    %8579 = vmatprep.subr.mxu0 0.0
    %8580 = vmatpush1.msra.mxu0 %v8517
    %8581 = vmatprep.subr.mxu0 0.0
    %8582 = vmatpush1.msra.mxu0 %v8518
    %8583 = vmatprep.subr.mxu0 0.0
    %8584 = vmatpush1.msra.mxu0 %v8519
    %8585 = vmatprep.subr.mxu0 0.0
    %8586 = vmatpush1.msra.mxu0 %v8520
    %8587 = vmatprep.subr.mxu0 0.0
    %8588 = vmatpush1.msra.mxu0 %v8521
    %8589 = vmatprep.subr.mxu0 0.0
    %8590 = vmatpush1.msra.mxu0 %v8522
    %8591 = vmatprep.subr.mxu0 0.0
    %8592 = vmatpush1.msra.mxu0 %v8523
    %8593 = vmatprep.subr.mxu0 0.0
    %8594 = vmatpush1.msra.mxu0 %v8524
    %8595 = vmatprep.subr.mxu0 0.0
    %8596 = vmatpush1.msra.mxu0 %v8525
    %8597 = vmatprep.subr.mxu0 0.0
    %8598 = vmatpush1.msra.mxu0 %v8526
    %8599 = vmatprep.subr.mxu0 0.0
    %8600 = vmatpush1.msra.mxu0 %v8527
    %8601 = vmatprep.subr.mxu0 0.0
    %8602 = vmatpush1.msra.mxu0 %v8528
    %8603 = vmatprep.subr.mxu0 0.0
    %8604 = vmatpush1.msra.mxu0 %v8529
    %8605 = vmatprep.subr.mxu0 0.0
    %8606 = vmatpush1.msra.mxu0 %v8530
    %8607 = vmatprep.subr.mxu0 0.0
    %8608 = vmatpush1.msra.mxu0 %v8531
    %8609 = vmatprep.subr.mxu0 0.0
    %8610 = vmatpush1.msra.mxu0 %v8532
    %8611 = vmatprep.subr.mxu0 0.0
    %8612 = vmatpush1.msra.mxu0 %v8533
    %8613 = vmatprep.subr.mxu0 0.0
    %8614 = vmatpush1.msra.mxu0 %v8534
    %8615 = vmatprep.subr.mxu0 0.0
    %8616 = vmatpush1.msra.mxu0 %v8535
    %8617 = vmatprep.subr.mxu0 0.0
    %8618 = vmatpush1.msra.mxu0 %v8536
    %8619 = vmatprep.subr.mxu0 0.0
    %8620 = vmatpush1.msra.mxu0 %v8537
    %8621 = vmatprep.subr.mxu0 0.0
    %8622 = vmatpush1.msra.mxu0 %v8538
    %8623 = vmatprep.subr.mxu0 0.0
    %8624 = vmatpush1.msra.mxu0 %v8539
    %8625 = vmatprep.subr.mxu0 0.0
    %8626 = vmatpush1.msra.mxu0 %v8540
    %8627 = vmatprep.subr.mxu0 0.0
    %8628 = vmatpush1.msra.mxu0 %v8541
    %8629 = vmatprep.mubr.f32.mxu0 %v8499
    %8630 = vmatmul.mubr.f32.gmra.mrb[0].mxu0 %v8498
    %v8631 = vpop.f32.mrb[0].mxu0
    %v8632 = vadd.f32 %v8563, %v8631
    %v8633 = vpop.f32.mrb[0].mxu0
    %8634 = vmatprep.mubr.f32.mxu0 %v8502
    %8635 = vmatmul.mubr.f32.gmra.mrb[0].mxu0 %v8501
    %v8636 = vpop.f32.mrb[0].mxu0
    %v8637 = vadd.f32 %v8563, %v8636
    %v8638 = vpop.f32.mrb[0].mxu0
    %8639 = vmatprep.mubr.f32.mxu0 %v8505
    %8640 = vmatmul.mubr.f32.gmra.mrb[0].mxu0 %v8504
    %v8641 = vpop.f32.mrb[0].mxu0
    %v8642 = vadd.f32 %v8563, %v8641
    %v8643 = vpop.f32.mrb[0].mxu0
    %8644 = vmatprep.mubr.f32.mxu0 %v8508
    %8645 = vmatmul.mubr.f32.gmra.mrb[0].mxu0 %v8507
    %v8646 = vpop.f32.mrb[0].mxu0
    %v8647 = vadd.f32 %v8563, %v8646
    %v8648 = vpop.f32.mrb[0].mxu0
    %8649 = vdwg.mxu0
    %8650 = vmatprep.subr.mxu0 0.0
    %8651 = vmatpush1.msra.mxu0 %v8542
    %8652 = vmatprep.subr.mxu0 0.0
    %8653 = vmatpush1.msra.mxu0 %v8543
    %8654 = vmatprep.subr.mxu0 0.0
    %8655 = vmatpush1.msra.mxu0 %v8544
    %8656 = vmatprep.subr.mxu0 0.0
    %8657 = vmatpush1.msra.mxu0 %v8545
    %8658 = vmatprep.subr.mxu0 0.0
    %8659 = vmatpush1.msra.mxu0 %v8546
    %8660 = vmatprep.subr.mxu0 0.0
    %8661 = vmatpush1.msra.mxu0 %v8547
    %8662 = vmatprep.subr.mxu0 0.0
    %8663 = vmatpush1.msra.mxu0 %v8548
    %8664 = vmatprep.subr.mxu0 0.0
    %8665 = vmatpush1.msra.mxu0 %v8549
    %8666 = vmatprep.subr.mxu0 0.0
    %8667 = vmatpush1.msra.mxu0 %v8550
    %8668 = vmatprep.subr.mxu0 0.0
    %8669 = vmatpush1.msra.mxu0 %v8551
    %8670 = vmatprep.subr.mxu0 0.0
    %8671 = vmatpush1.msra.mxu0 %v8552
    %8672 = vmatprep.subr.mxu0 0.0
    %8673 = vmatpush1.msra.mxu0 %v8553
    %8674 = vmatprep.subr.mxu0 0.0
    %8675 = vmatpush1.msra.mxu0 %v8554
    %8676 = vmatprep.subr.mxu0 0.0
    %8677 = vmatpush1.msra.mxu0 %v8555
    %8678 = vmatprep.subr.mxu0 0.0
    %8679 = vmatpush1.msra.mxu0 %v8556
    %8680 = vmatprep.subr.mxu0 0.0
    %8681 = vmatpush1.msra.mxu0 %v8557
    %8682 = vmatprep.subr.mxu0 0.0
    %8683 = vmatpush1.msra.mxu0 0.0
    %8684 = vmatprep.subr.mxu0 0.0
    %8685 = vmatpush1.msra.mxu0 0.0
    %8686 = vmatprep.subr.mxu0 0.0
    %8687 = vmatpush1.msra.mxu0 0.0
    %8688 = vmatprep.subr.mxu0 0.0
    %8689 = vmatpush1.msra.mxu0 0.0
    %8690 = vmatprep.subr.mxu0 0.0
    %8691 = vmatpush1.msra.mxu0 0.0
    %8692 = vmatprep.subr.mxu0 0.0
    %8693 = vmatpush1.msra.mxu0 0.0
    %8694 = vmatprep.subr.mxu0 0.0
    %8695 = vmatpush1.msra.mxu0 0.0
    %8696 = vmatprep.subr.mxu0 0.0
    %8697 = vmatpush1.msra.mxu0 0.0
    %8698 = vmatprep.subr.mxu0 0.0
    %8699 = vmatpush1.msra.mxu0 0.0
    %8700 = vmatprep.subr.mxu0 0.0
    %8701 = vmatpush1.msra.mxu0 0.0
    %8702 = vmatprep.subr.mxu0 0.0
    %8703 = vmatpush1.msra.mxu0 0.0
    %8704 = vmatprep.subr.mxu0 0.0
    %8705 = vmatpush1.msra.mxu0 0.0
    %8706 = vmatprep.subr.mxu0 0.0
    %8707 = vmatpush1.msra.mxu0 0.0
    %8708 = vmatprep.subr.mxu0 0.0
    %8709 = vmatpush1.msra.mxu0 0.0
    %8710 = vmatprep.subr.mxu0 0.0
    %8711 = vmatpush1.msra.mxu0 0.0
    %8712 = vmatprep.subr.mxu0 0.0
    %8713 = vmatpush1.msra.mxu0 0.0
    %8714 = vmatprep.mubr.f32.mxu0 0.0
    %8715 = vmatmul.mubr.f32.gmra.mrb[0].mxu0 %v8500
    %v8716 = vpop.f32.mrb[0].mxu0
    %v8717 = vadd.f32 %v8632, %v8716
    %v8718 = vpop.f32.mrb[0].mxu0
    %8719 = vmatprep.mubr.f32.mxu0 0.0
    %8720 = vmatmul.mubr.f32.gmra.mrb[0].mxu0 %v8503
    %v8721 = vpop.f32.mrb[0].mxu0
    %v8722 = vadd.f32 %v8637, %v8721
    %v8723 = vpop.f32.mrb[0].mxu0
    %8724 = vmatprep.mubr.f32.mxu0 0.0
    %8725 = vmatmul.mubr.f32.gmra.mrb[0].mxu0 %v8506
    %v8726 = vpop.f32.mrb[0].mxu0
    %v8727 = vadd.f32 %v8642, %v8726
    %v8728 = vpop.f32.mrb[0].mxu0
    %8729 = vmatprep.mubr.f32.mxu0 0.0
    %8730 = vmatmul.mubr.f32.gmra.mrb[0].mxu0 %v8509
    %v8731 = vpop.f32.mrb[0].mxu0
    %v8732 = vadd.f32 %v8647, %v8731
    %v8733 = vpop.f32.mrb[0].mxu0
    %8734 = vdwg.mxu0
    %v8735 = vmin.f32 %v8717, 0.0
    %v8736 = vmin.f32 %v8722, 0.0
    %v8737 = vmin.f32 %v8727, 0.0
    %v8738 = vmin.f32 %v8732, 0.0
    %v8739 = vmul.f32 %v8735, 1.442695
    %v8740 = vpow.pop %v8739
    %v8741 = vmul.f32 %v8736, 1.442695
    %v8742 = vpow.pop %v8741
    %v8743 = vmul.f32 %v8737, 1.442695
    %v8744 = vpow.pop %v8743
    %v8745 = vmul.f32 %v8738, 1.442695
    %v8746 = vpow.pop %v8745
    %v8747 = vsub.f32 %v8740, 1.0
    %v8748 = vsub.f32 %v8742, 1.0
    %v8749 = vsub.f32 %v8744, 1.0
    %v8750 = vsub.f32 %v8746, 1.0
    %v8751 = vmul.f32 %v8747, 1.6732632
    %v8752 = vmul.f32 %v8748, 1.6732632
    %v8753 = vmul.f32 %v8749, 1.6732632
    %v8754 = vmul.f32 %v8750, 1.6732632
    %vm8755 = vcmp.gt.f32.partialorder %v8717, 0.0
    %vm8756 = vcmp.gt.f32.partialorder %v8722, 0.0
    %vm8757 = vcmp.gt.f32.partialorder %v8727, 0.0
    %vm8758 = vcmp.gt.f32.partialorder %v8732, 0.0
    %v8759 = vsel %vm8755, %v8717, %v8751
    %v8760 = vsel %vm8756, %v8722, %v8752
    %v8761 = vsel %vm8757, %v8727, %v8753
    %v8762 = vsel %vm8758, %v8732, %v8754
    %v8763 = vmul.f32 %v8759, 1.050701
    %v8764 = vmul.f32 %v8760, 1.050701
    %v8765 = vmul.f32 %v8761, 1.050701
    %v8766 = vmul.f32 %v8762, 1.050701
    %8767 = vst [vmem:[#allocation19] sm:$0xff] %v8763
    %8768 = vst [vmem:[#allocation19 + $0x8] sm:$0xff] %v8764
    %8769 = vst [vmem:[#allocation19 + $0x10] sm:$0xff] %v8765
    %8770 = vst [vmem:[#allocation19 + $0x18] sm:$0xff] %v8766
    // Predicated region
    $region70: #{tpu_custom_call.1} parent=1 // pred_check
      _
    $region71: #{tpu_custom_call.1} parent=1 // pred_check_branch
      %8772 = sbr.rel (0) target = $region73
    $region72: #{tpu_custom_call.1} parent=1 // pred_region
      %s8774 = ssub.s32 2048, 2048
      %8775 = vsyncadd [#allocation8], %s8774
      %s8776 = sshll.u32 [#allocation15], 4
      %s8777 = int_to_ptr.vmem [resolvable:$true] %s8776
      %8782 = dma.vmem_to_hbm [thread:$0]  %s8777, 2048, %s12, [#allocation8], 128, 128, 8
    $region73: #{tpu_custom_call.1} parent=1 // pred_fallthru
      _
    // Predicated region
    $region74: #{tpu_custom_call.1} parent=1 // pred_check
      _
    $region75: #{tpu_custom_call.1} parent=1 // pred_check_branch
      %8784 = sbr.rel (0) target = $region77
    $region76: #{tpu_custom_call.1} parent=1 // pred_region
      %s8786 = ssub.s32 128, 128
      %8787 = vsyncadd [#allocation17], %s8786
      %s8789 = sshll.u32 [#allocation16], 4
      %s8790 = int_to_ptr.vmem [resolvable:$true] %s8789
      %8792 = dma.vmem_to_hbm [thread:$0]  %s8790, 128, %s13, [#allocation17]
    $region77: #{tpu_custom_call.1} parent=1 // pred_fallthru
      _
    // Predicated region
    $region78: #{tpu_custom_call.1} parent=1 // pred_check
      _
    $region79: #{tpu_custom_call.1} parent=1 // pred_check_branch
      %8794 = sbr.rel (0) target = $region81
    $region80: #{tpu_custom_call.1} parent=1 // pred_region
      %s8796 = ssub.s32 128, 128
      %8797 = vsyncadd [#allocation17], %s8796
      %s8799 = sshll.u32 [#allocation18], 4
      %s8800 = int_to_ptr.vmem [resolvable:$true] %s8799
      %8802 = dma.vmem_to_hbm [thread:$0]  %s8800, 128, %s14, [#allocation17]
    $region81: #{tpu_custom_call.1} parent=1 // pred_fallthru
      _
    // Predicated region
    $region82: #{tpu_custom_call.1} parent=1 // pred_check
      _
    $region83: #{tpu_custom_call.1} parent=1 // pred_check_branch
      %8804 = sbr.rel (0) target = $region85
    $region84: #{tpu_custom_call.1} parent=1 // pred_region
      %s8806 = ssub.s32 512, 512
      %8807 = vsyncadd [#allocation20], %s8806
      %s8808 = sshll.u32 [#allocation19], 4
      %s8809 = int_to_ptr.vmem [resolvable:$true] %s8808
      %8814 = dma.vmem_to_hbm [thread:$0]  %s8809, 512, %s15, [#allocation20], 128, 128, 8
    $region85: #{tpu_custom_call.1} parent=1 // pred_fallthru
      _
    // Predicated region
    $region86: #{tpu_custom_call.1} parent=1 // pred_check
      _
    $region87: #{tpu_custom_call.1} parent=1 // pred_check_branch
      %8816 = sbr.rel (0) target = $region89
    $region88: #{tpu_custom_call.1} parent=1 // pred_region
      %8817 = dma.done [#allocation8], 2048
    $region89: #{tpu_custom_call.1} parent=1 // pred_fallthru
      _
    // Predicated region
    $region90: #{tpu_custom_call.1} parent=1 // pred_check
      _
    $region91: #{tpu_custom_call.1} parent=1 // pred_check_branch
      %8819 = sbr.rel (0) target = $region93
    $region92: #{tpu_custom_call.1} parent=1 // pred_region
      %8820 = dma.done [#allocation17], 128
    $region93: #{tpu_custom_call.1} parent=1 // pred_fallthru
      _
    // Predicated region
    $region94: #{tpu_custom_call.1} parent=1 // pred_check
      _
    $region95: #{tpu_custom_call.1} parent=1 // pred_check_branch
      %8822 = sbr.rel (0) target = $region97
    $region96: #{tpu_custom_call.1} parent=1 // pred_region
      %8823 = dma.done [#allocation17], 128
    $region97: #{tpu_custom_call.1} parent=1 // pred_fallthru
      _
    // Predicated region
    $region98: #{tpu_custom_call.1} parent=1 // pred_check
      _
    $region99: #{tpu_custom_call.1} parent=1 // pred_check_branch
      %8825 = sbr.rel (0) target = $region101
    $region100: #{tpu_custom_call.1} parent=1 // pred_region
      %8826 = dma.done [#allocation20], 512
    $region101: #{tpu_custom_call.1} parent=1 // pred_fallthru
      _
    %8827 = vsyncpa [#allocation7], 1
    %8828 = vsyncpa [#allocation10], 1
    %8829 = vsyncpa [#allocation13], 1
    %8830 = vsyncpa [#allocation8], 1
    %8831 = vsyncpa [#allocation17], 1
    %8832 = vsyncpa [#allocation20], 1

</llo_original>
